<compile_context>
chip_gen: v7x
topology: tpu7x:2x2x1
jax: 0.10.0
libtpu: 0.0.40
codegen_flags: <defaults>
</compile_context>

<pallas_src>
import math
import functools

import jax
import jax.numpy as jnp
from jax.experimental import pallas as pl
from jax.experimental.pallas import tpu as pltpu

LN_EPS = 1e-5


# ---------------------------------------------------------------------------
# In-kernel math helpers (operate on values, not refs)
# ---------------------------------------------------------------------------
def _ln_raw(v):
    """LayerNorm WITHOUT gamma/beta (those are folded into the next linear)."""
    mu = jnp.mean(v, axis=-1, keepdims=True)
    var = jnp.mean(jnp.square(v - mu), axis=-1, keepdims=True)
    return (v - mu) * jax.lax.rsqrt(var + LN_EPS)


def _gelu(h):
    # exact (erf) GELU, matching torch.nn.GELU default
    return 0.5 * h * (1.0 + jax.lax.erf(h * (1.0 / math.sqrt(2.0))))


# ---------------------------------------------------------------------------
# Fused LunaModule kernel: one grid step == `bt` batch elements, whole module.
# ---------------------------------------------------------------------------
def _luna_module_kernel(x_ref, aux_ref, bias_ref,
                        l1_wq, l1_wkv, l1_wo, f1_w1, f1_w2,
                        l2_wq, l2_wkv, l2_wo, f2_w1, f2_w2,
                        x_out_ref, aux_out_ref, attn1_ref, attn2_ref,
                        *, bt, T, N, D, FFD, num_heads, scale, compute_dtype):
    hd = D // num_heads

    bias = bias_ref[...]                       # (10, pad_width) f32, one DMA

    def brow(i, w):                            # static row/lane slice
        return bias[i:i + 1, :w]

    x = x_ref[...]                             # (bt*T, D) f32
    aux = aux_ref[...]                         # (bt*N, D) f32

    def cross_attention(q_in, kv_in, wq_ref, wkv_ref, wo_ref,
                        bq, bkv, bo, nq, nk, attn_out_ref, transposed):
        """Pre-norm multi-head cross attention on a (bt*nq, D)/(bt*nk, D) slab.

        Projections + o_proj + FF-sized matmuls run on the full slab; only the
        tiny score/AV dots are per-(batch, head).  If `transposed`, the
        attention map is produced/stored as (nk, nq) with softmax on axis 0.
        """
        qn = _ln_raw(q_in).astype(compute_dtype)
        kvn = _ln_raw(kv_in).astype(compute_dtype)
        # softmax scale folded into q: O(rows*D) instead of O(heads*nq*nk)
        q = (jnp.dot(qn, wq_ref[...],
                     preferred_element_type=jnp.float32) + bq) * scale   # (bt*nq, D)
        kv = jnp.dot(kvn, wkv_ref[...],
                     preferred_element_type=jnp.float32) + bkv           # (bt*nk, 2D)
        k = kv[:, :D]
        v = kv[:, D:]

        o_rows = []
        for b in range(bt):                    # static unroll over batch
            qb = q[b * nq:(b + 1) * nq]
            kb = k[b * nk:(b + 1) * nk]
            vb = v[b * nk:(b + 1) * nk]
            o_heads = []
            attn_heads = []
            for h in range(num_heads):         # static unroll over heads
                sl = slice(h * hd, (h + 1) * hd)
                if not transposed:
                    # luna1: (nq, nk) logits, softmax over keys (last axis)
                    logits = jax.lax.dot_general(
                        qb[:, sl], kb[:, sl], (((1,), (1,)), ((), ())),
                        preferred_element_type=jnp.float32)              # (nq, nk)
                    m = jnp.max(logits, axis=-1, keepdims=True)
                    p = jnp.exp(logits - m)
                    attn = p / jnp.sum(p, axis=-1, keepdims=True)        # exact
                    o_h = jnp.dot(attn, vb[:, sl],
                                  preferred_element_type=jnp.float32)    # (nq, hd)
                else:
                    # luna2: pre-transposed (nk, nq) logits, softmax on axis 0
                    logits_t = jax.lax.dot_general(
                        kb[:, sl], qb[:, sl], (((1,), (1,)), ((), ())),
                        preferred_element_type=jnp.float32)              # (nk, nq)
                    m = jnp.max(logits_t, axis=0, keepdims=True)
                    p = jnp.exp(logits_t - m)
                    attn = p / jnp.sum(p, axis=0, keepdims=True)         # exact
                    o_h = jax.lax.dot_general(
                        attn, vb[:, sl], (((0,), (0,)), ((), ())),
                        preferred_element_type=jnp.float32)              # (nq, hd)
                attn_heads.append(attn)
                o_heads.append(o_h)
            # Early, lane-dense store: (N, num_heads*T) per batch element.
            attn_out_ref[b] = jnp.concatenate(attn_heads, axis=-1)
            o_rows.append(jnp.concatenate(o_heads, axis=-1))             # (nq, D)

        o = jnp.concatenate(o_rows, axis=0)                              # (bt*nq, D)
        # Single full-width o_proj (contraction depth D, no per-head chain).
        out = q_in + jnp.dot(o.astype(compute_dtype), wo_ref[...],
                             preferred_element_type=jnp.float32) + bo
        return out

    def prenorm_ff(vv, w1_ref, w2_ref, b1, b2):
        hid = jnp.dot(_ln_raw(vv).astype(compute_dtype), w1_ref[...],
                      preferred_element_type=jnp.float32) + b1
        hid = _gelu(hid)
        y = jnp.dot(hid.astype(compute_dtype), w2_ref[...],
                    preferred_element_type=jnp.float32) + b2
        return y + vv

    # luna1 (PreNormLunaS1): q <- aux, k/v <- x, residual on aux
    aux1 = cross_attention(aux, x, l1_wq, l1_wkv, l1_wo,
                           brow(0, D), brow(1, 2 * D), brow(2, D),
                           N, T, attn1_ref, transposed=False)
    # ff_aux
    aux2 = prenorm_ff(aux1, f1_w1, f1_w2, brow(3, FFD), brow(4, D))
    aux_out_ref[...] = aux2          # store as soon as it is final

    # luna2 (PreNormLunaS2): q <- x, k/v <- aux2, residual on x
    x1 = cross_attention(x, aux2, l2_wq, l2_wkv, l2_wo,
                         brow(5, D), brow(6, 2 * D), brow(7, D),
                         T, N, attn2_ref, transposed=True)
    # ff
    x2 = prenorm_ff(x1, f2_w1, f2_w2, brow(8, FFD), brow(9, D))
    x_out_ref[...] = x2


# ---------------------------------------------------------------------------
# Wrapper-side parameter folding (one-time, outside the kernel)
# ---------------------------------------------------------------------------
def _fold_luna(p, dtype):
    """Fold LN gamma/beta into q/k/v weights, fuse K & V into one weight."""
    D = p['wq'].shape[0]
    gq = p['norm_q_g'].reshape(D, 1)
    gkv = p['norm_kv_g'].reshape(D, 1)
    bq_ln = p['norm_q_b'].reshape(1, D)
    bkv_ln = p['norm_kv_b'].reshape(1, D)

    wq = (gq * p['wq']).astype(dtype)                                    # (D, D)
    bq = bq_ln @ p['wq'] + p['bq']                                       # (1, D)
    wk = gkv * p['wk']
    wv = gkv * p['wv']
    bk = bkv_ln @ p['wk'] + p['bk']
    bv = bkv_ln @ p['wv'] + p['bv']
    wkv = jnp.concatenate([wk, wv], axis=1).astype(dtype)                # (D, 2D)
    bkv = jnp.concatenate([bk, bv], axis=1)                              # (1, 2D)
    wo = p['wo'].astype(dtype)
    bo = p['bo'].reshape(1, D)
    return (wq, wkv, wo), (bq, bkv, bo)


def _fold_ff(p, dtype):
    D = p['w1'].shape[0]
    g = p['norm_g'].reshape(D, 1)
    b_ln = p['norm_b'].reshape(1, D)
    w1 = (g * p['w1']).astype(dtype)
    b1 = b_ln @ p['w1'] + p['b1']
    w2 = p['w2'].astype(dtype)
    b2 = p['b2']
    return (w1, w2), (b1, b2)


def _pack_biases(rows, width):
    """Stack all (1, w) bias vectors into one padded (n, width) f32 array."""
    out = []
    for r in rows:
        r = r.reshape(1, -1).astype(jnp.float32)
        out.append(jnp.pad(r, ((0, 0), (0, width - r.shape[1]))))
    return jnp.concatenate(out, axis=0)


# ---------------------------------------------------------------------------
# Wrapper around pallas_call
# ---------------------------------------------------------------------------
def luna_module_forward(x, aux, params, num_heads, *,
                        weight_dtype=jnp.bfloat16, batch_block=None):
    """x: (B, H, W, D) channels-last; aux: (B, N, D).

    Returns (x_out (B,H,W,D), aux_out (B,N,D),
             attn_aux_to_x (B,heads,N,H*W), attn_x_to_aux (B,heads,H*W,N)).
    """
    B, H, W, D = x.shape
    T = H * W
    N = aux.shape[1]
    hd = D // num_heads
    scale = math.sqrt(1.0 / hd)
    FFD = params['ff_aux']['w1'].shape[1]

    bt = B if batch_block is None else batch_block
    if B % bt != 0:
        raise ValueError("batch_block must divide B")
    n_blocks = B // bt   # keep >1 on v7x so both TensorCores get work

    x2d = x.reshape(B * T, D)
    aux2d = aux.reshape(B * N, D)

    l1w, l1b = _fold_luna(params['luna1'], weight_dtype)
    f1w, f1b = _fold_ff(params['ff_aux'], weight_dtype)
    l2w, l2b = _fold_luna(params['luna2'], weight_dtype)
    f2w, f2b = _fold_ff(params['ff'], weight_dtype)

    bias_width = max(D, 2 * D, FFD)
    biases = _pack_biases(list(l1b) + list(f1b) + list(l2b) + list(f2b),
                          bias_width)
    weights = list(l1w) + list(f1w) + list(l2w) + list(f2w)

    kernel = functools.partial(
        _luna_module_kernel, bt=bt, T=T, N=N, D=D, FFD=FFD,
        num_heads=num_heads, scale=scale, compute_dtype=weight_dtype)

    def _const(i):
        return (0, 0)

    in_specs = [pl.BlockSpec((bt * T, D), lambda i: (i, 0)),
                pl.BlockSpec((bt * N, D), lambda i: (i, 0)),
                pl.BlockSpec(biases.shape, _const)]
    in_specs += [pl.BlockSpec(w.shape, _const) for w in weights]

    out_shape = (jax.ShapeDtypeStruct((B * T, D), jnp.float32),
                 jax.ShapeDtypeStruct((B * N, D), jnp.float32),
                 jax.ShapeDtypeStruct((B, N, num_heads * T), jnp.float32),
                 jax.ShapeDtypeStruct((B, N, num_heads * T), jnp.float32))
    out_specs = (pl.BlockSpec((bt * T, D), lambda i: (i, 0)),
                 pl.BlockSpec((bt * N, D), lambda i: (i, 0)),
                 pl.BlockSpec((bt, N, num_heads * T), lambda i: (i, 0, 0)),
                 pl.BlockSpec((bt, N, num_heads * T), lambda i: (i, 0, 0)))

    x2, aux2, attn1_p, attn2_p = pl.pallas_call(
        kernel,
        grid=(n_blocks,),
        in_specs=in_specs,
        out_specs=out_specs,
        out_shape=out_shape,
        compiler_params=pltpu.CompilerParams(
            dimension_semantics=("parallel",),
            vmem_limit_bytes=32 * 1024 * 1024),
    )(x2d, aux2d, biases, *weights)

    # Kernel stores heads lane-concatenated as (B, N, heads*T); unpack here.
    attn_aux_to_x = attn1_p.reshape(B, N, num_heads, T).transpose(0, 2, 1, 3)
    attn_x_to_aux = attn2_p.reshape(B, N, num_heads, T).transpose(0, 2, 3, 1)
    return (x2.reshape(B, H, W, D), aux2.reshape(B, N, D),
            attn_aux_to_x, attn_x_to_aux)


# ---------------------------------------------------------------------------
# Deterministic parameter init (synthetic — shapes from the module __init__)
# ---------------------------------------------------------------------------
def init_params(key, d, ffd):
    keys = iter(jax.random.split(key, 64))

    def lin(din, dout):
        w = jax.random.normal(next(keys), (din, dout), jnp.float32) / math.sqrt(din)
        b = jax.random.normal(next(keys), (1, dout), jnp.float32) * 0.02
        return w, b

    def ln_params():
        g = 1.0 + 0.1 * jax.random.normal(next(keys), (1, d), jnp.float32)
        b = 0.1 * jax.random.normal(next(keys), (1, d), jnp.float32)
        return g, b

    def luna_params():
        p = {}
        p['norm_q_g'], p['norm_q_b'] = ln_params()
        p['norm_kv_g'], p['norm_kv_b'] = ln_params()
        p['wq'], p['bq'] = lin(d, d)
        p['wk'], p['bk'] = lin(d, d)
        p['wv'], p['bv'] = lin(d, d)
        p['wo'], p['bo'] = lin(d, d)
        return p

    def ff_params():
        p = {}
        p['norm_g'], p['norm_b'] = ln_params()
        p['w1'], p['b1'] = lin(d, ffd)
        p['w2'], p['b2'] = lin(ffd, d)
        return p

    return {'luna1': luna_params(), 'ff_aux': ff_params(),
            'luna2': luna_params(), 'ff': ff_params()}


# ---------------------------------------------------------------------------
# Pure-JAX f32 reference (mirrors the PyTorch forward) for verification
# ---------------------------------------------------------------------------
def _layernorm(x, g, b):
    mu = jnp.mean(x, axis=-1, keepdims=True)
    var = jnp.mean(jnp.square(x - mu), axis=-1, keepdims=True)
    return (x - mu) * jax.lax.rsqrt(var + LN_EPS) * g + b


def _ref_luna(q_in, kv_in, p, num_heads):
    B, Q, D = q_in.shape
    K = kv_in.shape[1]
    hd = D // num_heads
    scale = math.sqrt(1.0 / hd)
    qn = _layernorm(q_in, p['norm_q_g'], p['norm_q_b'])
    kvn = _layernorm(kv_in, p['norm_kv_g'], p['norm_kv_b'])
    q = qn @ p['wq'] + p['bq']
    k = kvn @ p['wk'] + p['bk']
    v = kvn @ p['wv'] + p['bv']
    qh = q.reshape(B, Q, num_heads, hd)
    kh = k.reshape(B, K, num_heads, hd)
    vh = v.reshape(B, K, num_heads, hd)
    logits = jnp.einsum('bqhd,bkhd->bhqk', qh, kh) * scale
    attn = jax.nn.softmax(logits, axis=-1)
    o = jnp.einsum('bhqk,bkhd->bqhd', attn, vh).reshape(B, Q, D)
    out = o @ p['wo'] + p['bo'] + q_in
    return out, attn


def _ref_ff(x, p):
    xn = _layernorm(x, p['norm_g'], p['norm_b'])
    h = xn @ p['w1'] + p['b1']
    h = 0.5 * h * (1.0 + jax.lax.erf(h / math.sqrt(2.0)))
    return h @ p['w2'] + p['b2'] + x


def _ref_forward(x, aux, params, num_heads):
    B, H, W, D = x.shape
    x_flat = x.reshape(B, H * W, D)
    aux1, a1 = _ref_luna(aux, x_flat, params['luna1'], num_heads)
    aux2 = _ref_ff(aux1, params['ff_aux'])
    x1, a2 = _ref_luna(x_flat, aux2, params['luna2'], num_heads)
    x2 = _ref_ff(x1, params['ff'])
    return x2.reshape(B, H, W, D), aux2, a1, a2


# ---------------------------------------------------------------------------
if __name__ == "__main__":
    B, H, W, D = 2, 8, 8, 32
    N = 8
    NUM_HEADS = 4
    FFD = 4 * D

    root = jax.random.PRNGKey(0)
    kx, kaux, kp = jax.random.split(root, 3)
    x = jax.random.normal(kx, (B, H, W, D), jnp.float32)
    aux = jax.random.normal(kaux, (B, N, D), jnp.float32)
    params = init_params(kp, D, FFD)

    refs = _ref_forward(x, aux, params, NUM_HEADS)

    # 1) f32-weight path: numerically equivalent to the reference (proves the
    #    batch folding, LN-gamma/beta folding, fused KV, single o_proj and the
    #    transposed luna2 softmax are exact).
    fwd_f32 = jax.jit(functools.partial(
        luna_module_forward, num_heads=NUM_HEADS, weight_dtype=jnp.float32))
    outs_f32 = jax.block_until_ready(fwd_f32(x, aux, params))
    for got, want in zip(outs_f32, refs):
        assert got.shape == want.shape, (got.shape, want.shape)
        assert jnp.allclose(got, want, rtol=1e-3, atol=1e-3), float(
            jnp.max(jnp.abs(got - want)))

    # 2) bf16-weight path (production default: bf16 MXU inputs, f32 accum).
    #    Loose tolerance reflects only bf16 quantization of weights/activations
    #    at D=32 vs the all-f32 reference; exactness is proven by (1).
    fwd_bf16 = jax.jit(functools.partial(
        luna_module_forward, num_heads=NUM_HEADS, weight_dtype=jnp.bfloat16))
    outs_bf16 = jax.block_until_ready(fwd_bf16(x, aux, params))
    for got, want in zip(outs_bf16, refs):
        assert got.shape == want.shape, (got.shape, want.shape)
        assert bool(jnp.all(jnp.isfinite(got)))
        assert jnp.allclose(got, want, rtol=1e-1, atol=2e-1), float(
            jnp.max(jnp.abs(got - want)))

    print("KERNEL_OK")
</pallas_src>

<mosaic_0001>
module attributes {stable_mosaic.version = 11 : i64} {
  func.func @_luna_module_kernel(%arg0: i32, %arg1: memref<128x32xf32, #tpu.memory_space<vmem>>, %arg2: memref<16x32xf32, #tpu.memory_space<vmem>>, %arg3: memref<10x128xf32, #tpu.memory_space<vmem>>, %arg4: memref<32x32xf32, #tpu.memory_space<vmem>>, %arg5: memref<32x64xf32, #tpu.memory_space<vmem>>, %arg6: memref<32x32xf32, #tpu.memory_space<vmem>>, %arg7: memref<32x128xf32, #tpu.memory_space<vmem>>, %arg8: memref<128x32xf32, #tpu.memory_space<vmem>>, %arg9: memref<32x32xf32, #tpu.memory_space<vmem>>, %arg10: memref<32x64xf32, #tpu.memory_space<vmem>>, %arg11: memref<32x32xf32, #tpu.memory_space<vmem>>, %arg12: memref<32x128xf32, #tpu.memory_space<vmem>>, %arg13: memref<128x32xf32, #tpu.memory_space<vmem>>, %arg14: memref<128x32xf32, #tpu.memory_space<vmem>>, %arg15: memref<16x32xf32, #tpu.memory_space<vmem>>, %arg16: memref<2x8x256xf32, #tpu.memory_space<vmem>>, %arg17: memref<2x8x256xf32, #tpu.memory_space<vmem>>) attributes {dimension_semantics = [#tpu.dimension_semantics<parallel>], iteration_bounds = array<i64: 1>, scalar_prefetch = 0 : i64, scratch_operands = 0 : i64, tpu.core_type = #tpu.core_type<tc>, window_params = [{transform_indices = @transform_0, window_bounds = array<i64: 128, 32>}, {transform_indices = @transform_1, window_bounds = array<i64: 16, 32>}, {pipeline_mode = #tpu.pipeline_mode<synchronous>, transform_indices = @transform_2, window_bounds = array<i64: 10, 128>}, {pipeline_mode = #tpu.pipeline_mode<synchronous>, transform_indices = @transform_3, window_bounds = array<i64: 32, 32>}, {pipeline_mode = #tpu.pipeline_mode<synchronous>, transform_indices = @transform_4, window_bounds = array<i64: 32, 64>}, {pipeline_mode = #tpu.pipeline_mode<synchronous>, transform_indices = @transform_5, window_bounds = array<i64: 32, 32>}, {pipeline_mode = #tpu.pipeline_mode<synchronous>, transform_indices = @transform_6, window_bounds = array<i64: 32, 128>}, {pipeline_mode = #tpu.pipeline_mode<synchronous>, transform_indices = @transform_7, window_bounds = array<i64: 128, 32>}, {pipeline_mode = #tpu.pipeline_mode<synchronous>, transform_indices = @transform_8, window_bounds = array<i64: 32, 32>}, {pipeline_mode = #tpu.pipeline_mode<synchronous>, transform_indices = @transform_9, window_bounds = array<i64: 32, 64>}, {pipeline_mode = #tpu.pipeline_mode<synchronous>, transform_indices = @transform_10, window_bounds = array<i64: 32, 32>}, {pipeline_mode = #tpu.pipeline_mode<synchronous>, transform_indices = @transform_11, window_bounds = array<i64: 32, 128>}, {pipeline_mode = #tpu.pipeline_mode<synchronous>, transform_indices = @transform_12, window_bounds = array<i64: 128, 32>}, {transform_indices = @transform_13, window_bounds = array<i64: 128, 32>}, {transform_indices = @transform_14, window_bounds = array<i64: 16, 32>}, {transform_indices = @transform_15, window_bounds = array<i64: 2, 8, 256>}, {transform_indices = @transform_16, window_bounds = array<i64: 2, 8, 256>}]} {
    %c0 = arith.constant 0 : index
    %c0_0 = arith.constant 0 : index
    %0 = vector.load %arg3[%c0, %c0_0] : memref<10x128xf32, #tpu.memory_space<vmem>>, vector<10x128xf32>
    %c0_1 = arith.constant 0 : index
    %c0_2 = arith.constant 0 : index
    %1 = vector.load %arg1[%c0_1, %c0_2] : memref<128x32xf32, #tpu.memory_space<vmem>>, vector<128x32xf32>
    %c0_3 = arith.constant 0 : index
    %c0_4 = arith.constant 0 : index
    %2 = vector.load %arg2[%c0_3, %c0_4] : memref<16x32xf32, #tpu.memory_space<vmem>>, vector<16x32xf32>
    %3 = vector.extract_strided_slice %0 {offsets = [0, 0], sizes = [1, 32], strides = [1, 1]} : vector<10x128xf32> to vector<1x32xf32>
    %4 = vector.extract_strided_slice %0 {offsets = [1, 0], sizes = [1, 64], strides = [1, 1]} : vector<10x128xf32> to vector<1x64xf32>
    %5 = vector.extract_strided_slice %0 {offsets = [2, 0], sizes = [1, 32], strides = [1, 1]} : vector<10x128xf32> to vector<1x32xf32>
    %cst = arith.constant dense<0.000000e+00> : vector<16xf32>
    %6 = vector.multi_reduction <add>, %2, %cst [1] : vector<16x32xf32> to vector<16xf32>
    %7 = vector.shape_cast %6 : vector<16xf32> to vector<16x1xf32>
    %cst_5 = arith.constant 3.200000e+01 : f32
    %8 = vector.broadcast %cst_5 : f32 to vector<16x1xf32>
    %9 = arith.divf %7, %8 : vector<16x1xf32>
    %10 = vector.broadcast %9 : vector<16x1xf32> to vector<16x32xf32>
    %11 = arith.subf %2, %10 : vector<16x32xf32>
    %12 = arith.mulf %11, %11 : vector<16x32xf32>
    %cst_6 = arith.constant dense<0.000000e+00> : vector<16xf32>
    %13 = vector.multi_reduction <add>, %12, %cst_6 [1] : vector<16x32xf32> to vector<16xf32>
    %14 = vector.shape_cast %13 : vector<16xf32> to vector<16x1xf32>
    %cst_7 = arith.constant 3.200000e+01 : f32
    %15 = vector.broadcast %cst_7 : f32 to vector<16x1xf32>
    %16 = arith.divf %14, %15 : vector<16x1xf32>
    %17 = vector.broadcast %9 : vector<16x1xf32> to vector<16x32xf32>
    %18 = arith.subf %2, %17 : vector<16x32xf32>
    %cst_8 = arith.constant 9.99999974E-6 : f32
    %19 = vector.broadcast %cst_8 : f32 to vector<16x1xf32>
    %20 = arith.addf %16, %19 : vector<16x1xf32>
    %21 = math.rsqrt %20 : vector<16x1xf32>
    %22 = vector.broadcast %21 : vector<16x1xf32> to vector<16x32xf32>
    %23 = arith.mulf %18, %22 : vector<16x32xf32>
    %cst_9 = arith.constant dense<0.000000e+00> : vector<128xf32>
    %24 = vector.multi_reduction <add>, %1, %cst_9 [1] : vector<128x32xf32> to vector<128xf32>
    %25 = vector.shape_cast %24 : vector<128xf32> to vector<128x1xf32>
    %cst_10 = arith.constant 3.200000e+01 : f32
    %26 = vector.broadcast %cst_10 : f32 to vector<128x1xf32>
    %27 = arith.divf %25, %26 : vector<128x1xf32>
    %28 = vector.broadcast %27 : vector<128x1xf32> to vector<128x32xf32>
    %29 = arith.subf %1, %28 : vector<128x32xf32>
    %30 = arith.mulf %29, %29 : vector<128x32xf32>
    %cst_11 = arith.constant dense<0.000000e+00> : vector<128xf32>
    %31 = vector.multi_reduction <add>, %30, %cst_11 [1] : vector<128x32xf32> to vector<128xf32>
    %32 = vector.shape_cast %31 : vector<128xf32> to vector<128x1xf32>
    %cst_12 = arith.constant 3.200000e+01 : f32
    %33 = vector.broadcast %cst_12 : f32 to vector<128x1xf32>
    %34 = arith.divf %32, %33 : vector<128x1xf32>
    %35 = vector.broadcast %27 : vector<128x1xf32> to vector<128x32xf32>
    %36 = arith.subf %1, %35 : vector<128x32xf32>
    %cst_13 = arith.constant 9.99999974E-6 : f32
    %37 = vector.broadcast %cst_13 : f32 to vector<128x1xf32>
    %38 = arith.addf %34, %37 : vector<128x1xf32>
    %39 = math.rsqrt %38 : vector<128x1xf32>
    %40 = vector.broadcast %39 : vector<128x1xf32> to vector<128x32xf32>
    %41 = arith.mulf %36, %40 : vector<128x32xf32>
    %c0_14 = arith.constant 0 : index
    %c0_15 = arith.constant 0 : index
    %42 = vector.load %arg4[%c0_14, %c0_15] : memref<32x32xf32, #tpu.memory_space<vmem>>, vector<32x32xf32>
    %cst_16 = arith.constant dense<0.000000e+00> : vector<16x32xf32>
    %43 = tpu.matmul %23, %42, %cst_16 {dimension_numbers = #tpu.dot_dimension_numbers<[1], [0], [0], [1], [0, 0, 1, 1], [], []>} : vector<16x32xf32>, vector<32x32xf32>, vector<16x32xf32> -> vector<16x32xf32>
    %44 = vector.broadcast %3 : vector<1x32xf32> to vector<16x32xf32>
    %45 = arith.addf %43, %44 : vector<16x32xf32>
    %cst_17 = arith.constant 0.353553385 : f32
    %46 = vector.broadcast %cst_17 : f32 to vector<16x32xf32>
    %47 = arith.mulf %45, %46 : vector<16x32xf32>
    %c0_18 = arith.constant 0 : index
    %c0_19 = arith.constant 0 : index
    %48 = vector.load %arg5[%c0_18, %c0_19] : memref<32x64xf32, #tpu.memory_space<vmem>>, vector<32x64xf32>
    %cst_20 = arith.constant dense<0.000000e+00> : vector<128x64xf32>
    %49 = tpu.matmul %41, %48, %cst_20 {dimension_numbers = #tpu.dot_dimension_numbers<[1], [0], [0], [1], [0, 0, 1, 1], [], []>} : vector<128x32xf32>, vector<32x64xf32>, vector<128x64xf32> -> vector<128x64xf32>
    %50 = vector.broadcast %4 : vector<1x64xf32> to vector<128x64xf32>
    %51 = arith.addf %49, %50 : vector<128x64xf32>
    %52 = vector.extract_strided_slice %51 {offsets = [0, 0], sizes = [128, 32], strides = [1, 1]} : vector<128x64xf32> to vector<128x32xf32>
    %53 = vector.extract_strided_slice %51 {offsets = [0, 32], sizes = [128, 32], strides = [1, 1]} : vector<128x64xf32> to vector<128x32xf32>
    %54 = vector.extract_strided_slice %47 {offsets = [0, 0], sizes = [8, 32], strides = [1, 1]} : vector<16x32xf32> to vector<8x32xf32>
    %55 = vector.extract_strided_slice %52 {offsets = [0, 0], sizes = [64, 32], strides = [1, 1]} : vector<128x32xf32> to vector<64x32xf32>
    %56 = vector.extract_strided_slice %53 {offsets = [0, 0], sizes = [64, 32], strides = [1, 1]} : vector<128x32xf32> to vector<64x32xf32>
    %57 = vector.extract_strided_slice %54 {offsets = [0, 0], sizes = [8, 8], strides = [1, 1]} : vector<8x32xf32> to vector<8x8xf32>
    %58 = vector.extract_strided_slice %55 {offsets = [0, 0], sizes = [64, 8], strides = [1, 1]} : vector<64x32xf32> to vector<64x8xf32>
    %cst_21 = arith.constant dense<0.000000e+00> : vector<8x64xf32>
    %59 = tpu.matmul %57, %58, %cst_21 {dimension_numbers = #tpu.dot_dimension_numbers<[1], [1], [0], [0], [0, 0, 1, 0], [], []>} : vector<8x8xf32>, vector<64x8xf32>, vector<8x64xf32> -> vector<8x64xf32>
    %cst_22 = arith.constant dense<0xFF800000> : vector<8xf32>
    %60 = vector.multi_reduction <maximumf>, %59, %cst_22 [1] : vector<8x64xf32> to vector<8xf32>
    %61 = vector.shape_cast %60 : vector<8xf32> to vector<8x1xf32>
    %62 = vector.broadcast %61 : vector<8x1xf32> to vector<8x64xf32>
    %63 = arith.subf %59, %62 : vector<8x64xf32>
    %64 = math.exp %63 : vector<8x64xf32>
    %cst_23 = arith.constant dense<0.000000e+00> : vector<8xf32>
    %65 = vector.multi_reduction <add>, %64, %cst_23 [1] : vector<8x64xf32> to vector<8xf32>
    %66 = vector.shape_cast %65 : vector<8xf32> to vector<8x1xf32>
    %67 = vector.broadcast %66 : vector<8x1xf32> to vector<8x64xf32>
    %68 = arith.divf %64, %67 : vector<8x64xf32>
    %69 = vector.extract_strided_slice %56 {offsets = [0, 0], sizes = [64, 8], strides = [1, 1]} : vector<64x32xf32> to vector<64x8xf32>
    %cst_24 = arith.constant dense<0.000000e+00> : vector<8x8xf32>
    %70 = tpu.matmul %68, %69, %cst_24 {dimension_numbers = #tpu.dot_dimension_numbers<[1], [0], [0], [1], [0, 0, 1, 1], [], []>} : vector<8x64xf32>, vector<64x8xf32>, vector<8x8xf32> -> vector<8x8xf32>
    %71 = vector.extract_strided_slice %54 {offsets = [0, 8], sizes = [8, 8], strides = [1, 1]} : vector<8x32xf32> to vector<8x8xf32>
    %72 = vector.extract_strided_slice %55 {offsets = [0, 8], sizes = [64, 8], strides = [1, 1]} : vector<64x32xf32> to vector<64x8xf32>
    %cst_25 = arith.constant dense<0.000000e+00> : vector<8x64xf32>
    %73 = tpu.matmul %71, %72, %cst_25 {dimension_numbers = #tpu.dot_dimension_numbers<[1], [1], [0], [0], [0, 0, 1, 0], [], []>} : vector<8x8xf32>, vector<64x8xf32>, vector<8x64xf32> -> vector<8x64xf32>
    %cst_26 = arith.constant dense<0xFF800000> : vector<8xf32>
    %74 = vector.multi_reduction <maximumf>, %73, %cst_26 [1] : vector<8x64xf32> to vector<8xf32>
    %75 = vector.shape_cast %74 : vector<8xf32> to vector<8x1xf32>
    %76 = vector.broadcast %75 : vector<8x1xf32> to vector<8x64xf32>
    %77 = arith.subf %73, %76 : vector<8x64xf32>
    %78 = math.exp %77 : vector<8x64xf32>
    %cst_27 = arith.constant dense<0.000000e+00> : vector<8xf32>
    %79 = vector.multi_reduction <add>, %78, %cst_27 [1] : vector<8x64xf32> to vector<8xf32>
    %80 = vector.shape_cast %79 : vector<8xf32> to vector<8x1xf32>
    %81 = vector.broadcast %80 : vector<8x1xf32> to vector<8x64xf32>
    %82 = arith.divf %78, %81 : vector<8x64xf32>
    %83 = vector.extract_strided_slice %56 {offsets = [0, 8], sizes = [64, 8], strides = [1, 1]} : vector<64x32xf32> to vector<64x8xf32>
    %cst_28 = arith.constant dense<0.000000e+00> : vector<8x8xf32>
    %84 = tpu.matmul %82, %83, %cst_28 {dimension_numbers = #tpu.dot_dimension_numbers<[1], [0], [0], [1], [0, 0, 1, 1], [], []>} : vector<8x64xf32>, vector<64x8xf32>, vector<8x8xf32> -> vector<8x8xf32>
    %85 = vector.extract_strided_slice %54 {offsets = [0, 16], sizes = [8, 8], strides = [1, 1]} : vector<8x32xf32> to vector<8x8xf32>
    %86 = vector.extract_strided_slice %55 {offsets = [0, 16], sizes = [64, 8], strides = [1, 1]} : vector<64x32xf32> to vector<64x8xf32>
    %cst_29 = arith.constant dense<0.000000e+00> : vector<8x64xf32>
    %87 = tpu.matmul %85, %86, %cst_29 {dimension_numbers = #tpu.dot_dimension_numbers<[1], [1], [0], [0], [0, 0, 1, 0], [], []>} : vector<8x8xf32>, vector<64x8xf32>, vector<8x64xf32> -> vector<8x64xf32>
    %cst_30 = arith.constant dense<0xFF800000> : vector<8xf32>
    %88 = vector.multi_reduction <maximumf>, %87, %cst_30 [1] : vector<8x64xf32> to vector<8xf32>
    %89 = vector.shape_cast %88 : vector<8xf32> to vector<8x1xf32>
    %90 = vector.broadcast %89 : vector<8x1xf32> to vector<8x64xf32>
    %91 = arith.subf %87, %90 : vector<8x64xf32>
    %92 = math.exp %91 : vector<8x64xf32>
    %cst_31 = arith.constant dense<0.000000e+00> : vector<8xf32>
    %93 = vector.multi_reduction <add>, %92, %cst_31 [1] : vector<8x64xf32> to vector<8xf32>
    %94 = vector.shape_cast %93 : vector<8xf32> to vector<8x1xf32>
    %95 = vector.broadcast %94 : vector<8x1xf32> to vector<8x64xf32>
    %96 = arith.divf %92, %95 : vector<8x64xf32>
    %97 = vector.extract_strided_slice %56 {offsets = [0, 16], sizes = [64, 8], strides = [1, 1]} : vector<64x32xf32> to vector<64x8xf32>
    %cst_32 = arith.constant dense<0.000000e+00> : vector<8x8xf32>
    %98 = tpu.matmul %96, %97, %cst_32 {dimension_numbers = #tpu.dot_dimension_numbers<[1], [0], [0], [1], [0, 0, 1, 1], [], []>} : vector<8x64xf32>, vector<64x8xf32>, vector<8x8xf32> -> vector<8x8xf32>
    %99 = vector.extract_strided_slice %54 {offsets = [0, 24], sizes = [8, 8], strides = [1, 1]} : vector<8x32xf32> to vector<8x8xf32>
    %100 = vector.extract_strided_slice %55 {offsets = [0, 24], sizes = [64, 8], strides = [1, 1]} : vector<64x32xf32> to vector<64x8xf32>
    %cst_33 = arith.constant dense<0.000000e+00> : vector<8x64xf32>
    %101 = tpu.matmul %99, %100, %cst_33 {dimension_numbers = #tpu.dot_dimension_numbers<[1], [1], [0], [0], [0, 0, 1, 0], [], []>} : vector<8x8xf32>, vector<64x8xf32>, vector<8x64xf32> -> vector<8x64xf32>
    %cst_34 = arith.constant dense<0xFF800000> : vector<8xf32>
    %102 = vector.multi_reduction <maximumf>, %101, %cst_34 [1] : vector<8x64xf32> to vector<8xf32>
    %103 = vector.shape_cast %102 : vector<8xf32> to vector<8x1xf32>
    %104 = vector.broadcast %103 : vector<8x1xf32> to vector<8x64xf32>
    %105 = arith.subf %101, %104 : vector<8x64xf32>
    %106 = math.exp %105 : vector<8x64xf32>
    %cst_35 = arith.constant dense<0.000000e+00> : vector<8xf32>
    %107 = vector.multi_reduction <add>, %106, %cst_35 [1] : vector<8x64xf32> to vector<8xf32>
    %108 = vector.shape_cast %107 : vector<8xf32> to vector<8x1xf32>
    %109 = vector.broadcast %108 : vector<8x1xf32> to vector<8x64xf32>
    %110 = arith.divf %106, %109 : vector<8x64xf32>
    %111 = vector.extract_strided_slice %56 {offsets = [0, 24], sizes = [64, 8], strides = [1, 1]} : vector<64x32xf32> to vector<64x8xf32>
    %cst_36 = arith.constant dense<0.000000e+00> : vector<8x8xf32>
    %112 = tpu.matmul %110, %111, %cst_36 {dimension_numbers = #tpu.dot_dimension_numbers<[1], [0], [0], [1], [0, 0, 1, 1], [], []>} : vector<8x64xf32>, vector<64x8xf32>, vector<8x8xf32> -> vector<8x8xf32>
    %113 = tpu.concatenate %68, %82, %96, %110 in 1 : vector<8x64xf32>, vector<8x64xf32>, vector<8x64xf32>, vector<8x64xf32> -> vector<8x256xf32>
    %c0_37 = arith.constant 0 : index
    %c0_38 = arith.constant 0 : index
    %c0_39 = arith.constant 0 : index
    %114 = vector.load %arg16[%c0_37, %c0_38, %c0_39] : memref<2x8x256xf32, #tpu.memory_space<vmem>>, vector<1x8x256xf32>
    %115 = vector.shape_cast %114 : vector<1x8x256xf32> to vector<8x256xf32>
    %116 = vector.shape_cast %113 : vector<8x256xf32> to vector<1x8x256xf32>
    tpu.vector_store %arg16[%c0_37, %c0_38, %c0_39], %116 {strides = array<i32>} : memref<2x8x256xf32, #tpu.memory_space<vmem>>, vector<1x8x256xf32>,
    %117 = tpu.concatenate %70, %84, %98, %112 in 1 : vector<8x8xf32>, vector<8x8xf32>, vector<8x8xf32>, vector<8x8xf32> -> vector<8x32xf32>
    %118 = vector.extract_strided_slice %47 {offsets = [8, 0], sizes = [8, 32], strides = [1, 1]} : vector<16x32xf32> to vector<8x32xf32>
    %119 = vector.extract_strided_slice %52 {offsets = [64, 0], sizes = [64, 32], strides = [1, 1]} : vector<128x32xf32> to vector<64x32xf32>
    %120 = vector.extract_strided_slice %53 {offsets = [64, 0], sizes = [64, 32], strides = [1, 1]} : vector<128x32xf32> to vector<64x32xf32>
    %121 = vector.extract_strided_slice %118 {offsets = [0, 0], sizes = [8, 8], strides = [1, 1]} : vector<8x32xf32> to vector<8x8xf32>
    %122 = vector.extract_strided_slice %119 {offsets = [0, 0], sizes = [64, 8], strides = [1, 1]} : vector<64x32xf32> to vector<64x8xf32>
    %cst_40 = arith.constant dense<0.000000e+00> : vector<8x64xf32>
    %123 = tpu.matmul %121, %122, %cst_40 {dimension_numbers = #tpu.dot_dimension_numbers<[1], [1], [0], [0], [0, 0, 1, 0], [], []>} : vector<8x8xf32>, vector<64x8xf32>, vector<8x64xf32> -> vector<8x64xf32>
    %cst_41 = arith.constant dense<0xFF800000> : vector<8xf32>
    %124 = vector.multi_reduction <maximumf>, %123, %cst_41 [1] : vector<8x64xf32> to vector<8xf32>
    %125 = vector.shape_cast %124 : vector<8xf32> to vector<8x1xf32>
    %126 = vector.broadcast %125 : vector<8x1xf32> to vector<8x64xf32>
    %127 = arith.subf %123, %126 : vector<8x64xf32>
    %128 = math.exp %127 : vector<8x64xf32>
    %cst_42 = arith.constant dense<0.000000e+00> : vector<8xf32>
    %129 = vector.multi_reduction <add>, %128, %cst_42 [1] : vector<8x64xf32> to vector<8xf32>
    %130 = vector.shape_cast %129 : vector<8xf32> to vector<8x1xf32>
    %131 = vector.broadcast %130 : vector<8x1xf32> to vector<8x64xf32>
    %132 = arith.divf %128, %131 : vector<8x64xf32>
    %133 = vector.extract_strided_slice %120 {offsets = [0, 0], sizes = [64, 8], strides = [1, 1]} : vector<64x32xf32> to vector<64x8xf32>
    %cst_43 = arith.constant dense<0.000000e+00> : vector<8x8xf32>
    %134 = tpu.matmul %132, %133, %cst_43 {dimension_numbers = #tpu.dot_dimension_numbers<[1], [0], [0], [1], [0, 0, 1, 1], [], []>} : vector<8x64xf32>, vector<64x8xf32>, vector<8x8xf32> -> vector<8x8xf32>
    %135 = vector.extract_strided_slice %118 {offsets = [0, 8], sizes = [8, 8], strides = [1, 1]} : vector<8x32xf32> to vector<8x8xf32>
    %136 = vector.extract_strided_slice %119 {offsets = [0, 8], sizes = [64, 8], strides = [1, 1]} : vector<64x32xf32> to vector<64x8xf32>
    %cst_44 = arith.constant dense<0.000000e+00> : vector<8x64xf32>
    %137 = tpu.matmul %135, %136, %cst_44 {dimension_numbers = #tpu.dot_dimension_numbers<[1], [1], [0], [0], [0, 0, 1, 0], [], []>} : vector<8x8xf32>, vector<64x8xf32>, vector<8x64xf32> -> vector<8x64xf32>
    %cst_45 = arith.constant dense<0xFF800000> : vector<8xf32>
    %138 = vector.multi_reduction <maximumf>, %137, %cst_45 [1] : vector<8x64xf32> to vector<8xf32>
    %139 = vector.shape_cast %138 : vector<8xf32> to vector<8x1xf32>
    %140 = vector.broadcast %139 : vector<8x1xf32> to vector<8x64xf32>
    %141 = arith.subf %137, %140 : vector<8x64xf32>
    %142 = math.exp %141 : vector<8x64xf32>
    %cst_46 = arith.constant dense<0.000000e+00> : vector<8xf32>
    %143 = vector.multi_reduction <add>, %142, %cst_46 [1] : vector<8x64xf32> to vector<8xf32>
    %144 = vector.shape_cast %143 : vector<8xf32> to vector<8x1xf32>
    %145 = vector.broadcast %144 : vector<8x1xf32> to vector<8x64xf32>
    %146 = arith.divf %142, %145 : vector<8x64xf32>
    %147 = vector.extract_strided_slice %120 {offsets = [0, 8], sizes = [64, 8], strides = [1, 1]} : vector<64x32xf32> to vector<64x8xf32>
    %cst_47 = arith.constant dense<0.000000e+00> : vector<8x8xf32>
    %148 = tpu.matmul %146, %147, %cst_47 {dimension_numbers = #tpu.dot_dimension_numbers<[1], [0], [0], [1], [0, 0, 1, 1], [], []>} : vector<8x64xf32>, vector<64x8xf32>, vector<8x8xf32> -> vector<8x8xf32>
    %149 = vector.extract_strided_slice %118 {offsets = [0, 16], sizes = [8, 8], strides = [1, 1]} : vector<8x32xf32> to vector<8x8xf32>
    %150 = vector.extract_strided_slice %119 {offsets = [0, 16], sizes = [64, 8], strides = [1, 1]} : vector<64x32xf32> to vector<64x8xf32>
    %cst_48 = arith.constant dense<0.000000e+00> : vector<8x64xf32>
    %151 = tpu.matmul %149, %150, %cst_48 {dimension_numbers = #tpu.dot_dimension_numbers<[1], [1], [0], [0], [0, 0, 1, 0], [], []>} : vector<8x8xf32>, vector<64x8xf32>, vector<8x64xf32> -> vector<8x64xf32>
    %cst_49 = arith.constant dense<0xFF800000> : vector<8xf32>
    %152 = vector.multi_reduction <maximumf>, %151, %cst_49 [1] : vector<8x64xf32> to vector<8xf32>
    %153 = vector.shape_cast %152 : vector<8xf32> to vector<8x1xf32>
    %154 = vector.broadcast %153 : vector<8x1xf32> to vector<8x64xf32>
    %155 = arith.subf %151, %154 : vector<8x64xf32>
    %156 = math.exp %155 : vector<8x64xf32>
    %cst_50 = arith.constant dense<0.000000e+00> : vector<8xf32>
    %157 = vector.multi_reduction <add>, %156, %cst_50 [1] : vector<8x64xf32> to vector<8xf32>
    %158 = vector.shape_cast %157 : vector<8xf32> to vector<8x1xf32>
    %159 = vector.broadcast %158 : vector<8x1xf32> to vector<8x64xf32>
    %160 = arith.divf %156, %159 : vector<8x64xf32>
    %161 = vector.extract_strided_slice %120 {offsets = [0, 16], sizes = [64, 8], strides = [1, 1]} : vector<64x32xf32> to vector<64x8xf32>
    %cst_51 = arith.constant dense<0.000000e+00> : vector<8x8xf32>
    %162 = tpu.matmul %160, %161, %cst_51 {dimension_numbers = #tpu.dot_dimension_numbers<[1], [0], [0], [1], [0, 0, 1, 1], [], []>} : vector<8x64xf32>, vector<64x8xf32>, vector<8x8xf32> -> vector<8x8xf32>
    %163 = vector.extract_strided_slice %118 {offsets = [0, 24], sizes = [8, 8], strides = [1, 1]} : vector<8x32xf32> to vector<8x8xf32>
    %164 = vector.extract_strided_slice %119 {offsets = [0, 24], sizes = [64, 8], strides = [1, 1]} : vector<64x32xf32> to vector<64x8xf32>
    %cst_52 = arith.constant dense<0.000000e+00> : vector<8x64xf32>
    %165 = tpu.matmul %163, %164, %cst_52 {dimension_numbers = #tpu.dot_dimension_numbers<[1], [1], [0], [0], [0, 0, 1, 0], [], []>} : vector<8x8xf32>, vector<64x8xf32>, vector<8x64xf32> -> vector<8x64xf32>
    %cst_53 = arith.constant dense<0xFF800000> : vector<8xf32>
    %166 = vector.multi_reduction <maximumf>, %165, %cst_53 [1] : vector<8x64xf32> to vector<8xf32>
    %167 = vector.shape_cast %166 : vector<8xf32> to vector<8x1xf32>
    %168 = vector.broadcast %167 : vector<8x1xf32> to vector<8x64xf32>
    %169 = arith.subf %165, %168 : vector<8x64xf32>
    %170 = math.exp %169 : vector<8x64xf32>
    %cst_54 = arith.constant dense<0.000000e+00> : vector<8xf32>
    %171 = vector.multi_reduction <add>, %170, %cst_54 [1] : vector<8x64xf32> to vector<8xf32>
    %172 = vector.shape_cast %171 : vector<8xf32> to vector<8x1xf32>
    %173 = vector.broadcast %172 : vector<8x1xf32> to vector<8x64xf32>
    %174 = arith.divf %170, %173 : vector<8x64xf32>
    %175 = vector.extract_strided_slice %120 {offsets = [0, 24], sizes = [64, 8], strides = [1, 1]} : vector<64x32xf32> to vector<64x8xf32>
    %cst_55 = arith.constant dense<0.000000e+00> : vector<8x8xf32>
    %176 = tpu.matmul %174, %175, %cst_55 {dimension_numbers = #tpu.dot_dimension_numbers<[1], [0], [0], [1], [0, 0, 1, 1], [], []>} : vector<8x64xf32>, vector<64x8xf32>, vector<8x8xf32> -> vector<8x8xf32>
    %177 = tpu.concatenate %132, %146, %160, %174 in 1 : vector<8x64xf32>, vector<8x64xf32>, vector<8x64xf32>, vector<8x64xf32> -> vector<8x256xf32>
    %c1 = arith.constant 1 : index
    %c0_56 = arith.constant 0 : index
    %c0_57 = arith.constant 0 : index
    %178 = vector.load %arg16[%c1, %c0_56, %c0_57] : memref<2x8x256xf32, #tpu.memory_space<vmem>>, vector<1x8x256xf32>
    %179 = vector.shape_cast %178 : vector<1x8x256xf32> to vector<8x256xf32>
    %180 = vector.shape_cast %177 : vector<8x256xf32> to vector<1x8x256xf32>
    tpu.vector_store %arg16[%c1, %c0_56, %c0_57], %180 {strides = array<i32>} : memref<2x8x256xf32, #tpu.memory_space<vmem>>, vector<1x8x256xf32>,
    %181 = tpu.concatenate %134, %148, %162, %176 in 1 : vector<8x8xf32>, vector<8x8xf32>, vector<8x8xf32>, vector<8x8xf32> -> vector<8x32xf32>
    %182 = tpu.concatenate %117, %181 in 0 : vector<8x32xf32>, vector<8x32xf32> -> vector<16x32xf32>
    %c0_58 = arith.constant 0 : index
    %c0_59 = arith.constant 0 : index
    %183 = vector.load %arg6[%c0_58, %c0_59] : memref<32x32xf32, #tpu.memory_space<vmem>>, vector<32x32xf32>
    %cst_60 = arith.constant dense<0.000000e+00> : vector<16x32xf32>
    %184 = tpu.matmul %182, %183, %cst_60 {dimension_numbers = #tpu.dot_dimension_numbers<[1], [0], [0], [1], [0, 0, 1, 1], [], []>} : vector<16x32xf32>, vector<32x32xf32>, vector<16x32xf32> -> vector<16x32xf32>
    %185 = arith.addf %2, %184 : vector<16x32xf32>
    %186 = vector.broadcast %5 : vector<1x32xf32> to vector<16x32xf32>
    %187 = arith.addf %185, %186 : vector<16x32xf32>
    %188 = vector.extract_strided_slice %0 {offsets = [3, 0], sizes = [1, 128], strides = [1, 1]} : vector<10x128xf32> to vector<1x128xf32>
    %189 = vector.extract_strided_slice %0 {offsets = [4, 0], sizes = [1, 32], strides = [1, 1]} : vector<10x128xf32> to vector<1x32xf32>
    %cst_61 = arith.constant dense<0.000000e+00> : vector<16xf32>
    %190 = vector.multi_reduction <add>, %187, %cst_61 [1] : vector<16x32xf32> to vector<16xf32>
    %191 = vector.shape_cast %190 : vector<16xf32> to vector<16x1xf32>
    %cst_62 = arith.constant 3.200000e+01 : f32
    %192 = vector.broadcast %cst_62 : f32 to vector<16x1xf32>
    %193 = arith.divf %191, %192 : vector<16x1xf32>
    %194 = vector.broadcast %193 : vector<16x1xf32> to vector<16x32xf32>
    %195 = arith.subf %187, %194 : vector<16x32xf32>
    %196 = arith.mulf %195, %195 : vector<16x32xf32>
    %cst_63 = arith.constant dense<0.000000e+00> : vector<16xf32>
    %197 = vector.multi_reduction <add>, %196, %cst_63 [1] : vector<16x32xf32> to vector<16xf32>
    %198 = vector.shape_cast %197 : vector<16xf32> to vector<16x1xf32>
    %cst_64 = arith.constant 3.200000e+01 : f32
    %199 = vector.broadcast %cst_64 : f32 to vector<16x1xf32>
    %200 = arith.divf %198, %199 : vector<16x1xf32>
    %201 = vector.broadcast %193 : vector<16x1xf32> to vector<16x32xf32>
    %202 = arith.subf %187, %201 : vector<16x32xf32>
    %cst_65 = arith.constant 9.99999974E-6 : f32
    %203 = vector.broadcast %cst_65 : f32 to vector<16x1xf32>
    %204 = arith.addf %200, %203 : vector<16x1xf32>
    %205 = math.rsqrt %204 : vector<16x1xf32>
    %206 = vector.broadcast %205 : vector<16x1xf32> to vector<16x32xf32>
    %207 = arith.mulf %202, %206 : vector<16x32xf32>
    %c0_66 = arith.constant 0 : index
    %c0_67 = arith.constant 0 : index
    %208 = vector.load %arg7[%c0_66, %c0_67] : memref<32x128xf32, #tpu.memory_space<vmem>>, vector<32x128xf32>
    %cst_68 = arith.constant dense<0.000000e+00> : vector<16x128xf32>
    %209 = tpu.matmul %207, %208, %cst_68 {dimension_numbers = #tpu.dot_dimension_numbers<[1], [0], [0], [1], [0, 0, 1, 1], [], []>} : vector<16x32xf32>, vector<32x128xf32>, vector<16x128xf32> -> vector<16x128xf32>
    %210 = vector.broadcast %188 : vector<1x128xf32> to vector<16x128xf32>
    %211 = arith.addf %209, %210 : vector<16x128xf32>
    %cst_69 = arith.constant 5.000000e-01 : f32
    %212 = vector.broadcast %cst_69 : f32 to vector<16x128xf32>
    %213 = arith.mulf %212, %211 : vector<16x128xf32>
    %cst_70 = arith.constant 0.707106769 : f32
    %214 = vector.broadcast %cst_70 : f32 to vector<16x128xf32>
    %215 = arith.mulf %211, %214 : vector<16x128xf32>
    %216 = math.erf %215 : vector<16x128xf32>
    %cst_71 = arith.constant 1.000000e+00 : f32
    %217 = vector.broadcast %cst_71 : f32 to vector<16x128xf32>
    %218 = arith.addf %217, %216 : vector<16x128xf32>
    %219 = arith.mulf %213, %218 : vector<16x128xf32>
    %c0_72 = arith.constant 0 : index
    %c0_73 = arith.constant 0 : index
    %220 = vector.load %arg8[%c0_72, %c0_73] : memref<128x32xf32, #tpu.memory_space<vmem>>, vector<128x32xf32>
    %cst_74 = arith.constant dense<0.000000e+00> : vector<16x32xf32>
    %221 = tpu.matmul %219, %220, %cst_74 {dimension_numbers = #tpu.dot_dimension_numbers<[1], [0], [0], [1], [0, 0, 1, 1], [], []>} : vector<16x128xf32>, vector<128x32xf32>, vector<16x32xf32> -> vector<16x32xf32>
    %222 = vector.broadcast %189 : vector<1x32xf32> to vector<16x32xf32>
    %223 = arith.addf %221, %222 : vector<16x32xf32>
    %224 = arith.addf %223, %187 : vector<16x32xf32>
    %c0_75 = arith.constant 0 : index
    %c0_76 = arith.constant 0 : index
    %225 = vector.load %arg15[%c0_75, %c0_76] : memref<16x32xf32, #tpu.memory_space<vmem>>, vector<16x32xf32>
    tpu.vector_store %arg15[%c0_75, %c0_76], %224 {strides = array<i32>} : memref<16x32xf32, #tpu.memory_space<vmem>>, vector<16x32xf32>,
    %226 = vector.extract_strided_slice %0 {offsets = [5, 0], sizes = [1, 32], strides = [1, 1]} : vector<10x128xf32> to vector<1x32xf32>
    %227 = vector.extract_strided_slice %0 {offsets = [6, 0], sizes = [1, 64], strides = [1, 1]} : vector<10x128xf32> to vector<1x64xf32>
    %228 = vector.extract_strided_slice %0 {offsets = [7, 0], sizes = [1, 32], strides = [1, 1]} : vector<10x128xf32> to vector<1x32xf32>
    %cst_77 = arith.constant dense<0.000000e+00> : vector<128xf32>
    %229 = vector.multi_reduction <add>, %1, %cst_77 [1] : vector<128x32xf32> to vector<128xf32>
    %230 = vector.shape_cast %229 : vector<128xf32> to vector<128x1xf32>
    %cst_78 = arith.constant 3.200000e+01 : f32
    %231 = vector.broadcast %cst_78 : f32 to vector<128x1xf32>
    %232 = arith.divf %230, %231 : vector<128x1xf32>
    %233 = vector.broadcast %232 : vector<128x1xf32> to vector<128x32xf32>
    %234 = arith.subf %1, %233 : vector<128x32xf32>
    %235 = arith.mulf %234, %234 : vector<128x32xf32>
    %cst_79 = arith.constant dense<0.000000e+00> : vector<128xf32>
    %236 = vector.multi_reduction <add>, %235, %cst_79 [1] : vector<128x32xf32> to vector<128xf32>
    %237 = vector.shape_cast %236 : vector<128xf32> to vector<128x1xf32>
    %cst_80 = arith.constant 3.200000e+01 : f32
    %238 = vector.broadcast %cst_80 : f32 to vector<128x1xf32>
    %239 = arith.divf %237, %238 : vector<128x1xf32>
    %240 = vector.broadcast %232 : vector<128x1xf32> to vector<128x32xf32>
    %241 = arith.subf %1, %240 : vector<128x32xf32>
    %cst_81 = arith.constant 9.99999974E-6 : f32
    %242 = vector.broadcast %cst_81 : f32 to vector<128x1xf32>
    %243 = arith.addf %239, %242 : vector<128x1xf32>
    %244 = math.rsqrt %243 : vector<128x1xf32>
    %245 = vector.broadcast %244 : vector<128x1xf32> to vector<128x32xf32>
    %246 = arith.mulf %241, %245 : vector<128x32xf32>
    %cst_82 = arith.constant dense<0.000000e+00> : vector<16xf32>
    %247 = vector.multi_reduction <add>, %224, %cst_82 [1] : vector<16x32xf32> to vector<16xf32>
    %248 = vector.shape_cast %247 : vector<16xf32> to vector<16x1xf32>
    %cst_83 = arith.constant 3.200000e+01 : f32
    %249 = vector.broadcast %cst_83 : f32 to vector<16x1xf32>
    %250 = arith.divf %248, %249 : vector<16x1xf32>
    %251 = vector.broadcast %250 : vector<16x1xf32> to vector<16x32xf32>
    %252 = arith.subf %224, %251 : vector<16x32xf32>
    %253 = arith.mulf %252, %252 : vector<16x32xf32>
    %cst_84 = arith.constant dense<0.000000e+00> : vector<16xf32>
    %254 = vector.multi_reduction <add>, %253, %cst_84 [1] : vector<16x32xf32> to vector<16xf32>
    %255 = vector.shape_cast %254 : vector<16xf32> to vector<16x1xf32>
    %cst_85 = arith.constant 3.200000e+01 : f32
    %256 = vector.broadcast %cst_85 : f32 to vector<16x1xf32>
    %257 = arith.divf %255, %256 : vector<16x1xf32>
    %258 = vector.broadcast %250 : vector<16x1xf32> to vector<16x32xf32>
    %259 = arith.subf %224, %258 : vector<16x32xf32>
    %cst_86 = arith.constant 9.99999974E-6 : f32
    %260 = vector.broadcast %cst_86 : f32 to vector<16x1xf32>
    %261 = arith.addf %257, %260 : vector<16x1xf32>
    %262 = math.rsqrt %261 : vector<16x1xf32>
    %263 = vector.broadcast %262 : vector<16x1xf32> to vector<16x32xf32>
    %264 = arith.mulf %259, %263 : vector<16x32xf32>
    %c0_87 = arith.constant 0 : index
    %c0_88 = arith.constant 0 : index
    %265 = vector.load %arg9[%c0_87, %c0_88] : memref<32x32xf32, #tpu.memory_space<vmem>>, vector<32x32xf32>
    %cst_89 = arith.constant dense<0.000000e+00> : vector<128x32xf32>
    %266 = tpu.matmul %246, %265, %cst_89 {dimension_numbers = #tpu.dot_dimension_numbers<[1], [0], [0], [1], [0, 0, 1, 1], [], []>} : vector<128x32xf32>, vector<32x32xf32>, vector<128x32xf32> -> vector<128x32xf32>
    %267 = vector.broadcast %226 : vector<1x32xf32> to vector<128x32xf32>
    %268 = arith.addf %266, %267 : vector<128x32xf32>
    %cst_90 = arith.constant 0.353553385 : f32
    %269 = vector.broadcast %cst_90 : f32 to vector<128x32xf32>
    %270 = arith.mulf %268, %269 : vector<128x32xf32>
    %c0_91 = arith.constant 0 : index
    %c0_92 = arith.constant 0 : index
    %271 = vector.load %arg10[%c0_91, %c0_92] : memref<32x64xf32, #tpu.memory_space<vmem>>, vector<32x64xf32>
    %cst_93 = arith.constant dense<0.000000e+00> : vector<16x64xf32>
    %272 = tpu.matmul %264, %271, %cst_93 {dimension_numbers = #tpu.dot_dimension_numbers<[1], [0], [0], [1], [0, 0, 1, 1], [], []>} : vector<16x32xf32>, vector<32x64xf32>, vector<16x64xf32> -> vector<16x64xf32>
    %273 = vector.broadcast %227 : vector<1x64xf32> to vector<16x64xf32>
    %274 = arith.addf %272, %273 : vector<16x64xf32>
    %275 = vector.extract_strided_slice %274 {offsets = [0, 0], sizes = [16, 32], strides = [1, 1]} : vector<16x64xf32> to vector<16x32xf32>
    %276 = vector.extract_strided_slice %274 {offsets = [0, 32], sizes = [16, 32], strides = [1, 1]} : vector<16x64xf32> to vector<16x32xf32>
    %277 = vector.extract_strided_slice %270 {offsets = [0, 0], sizes = [64, 32], strides = [1, 1]} : vector<128x32xf32> to vector<64x32xf32>
    %278 = vector.extract_strided_slice %275 {offsets = [0, 0], sizes = [8, 32], strides = [1, 1]} : vector<16x32xf32> to vector<8x32xf32>
    %279 = vector.extract_strided_slice %276 {offsets = [0, 0], sizes = [8, 32], strides = [1, 1]} : vector<16x32xf32> to vector<8x32xf32>
    %280 = vector.extract_strided_slice %278 {offsets = [0, 0], sizes = [8, 8], strides = [1, 1]} : vector<8x32xf32> to vector<8x8xf32>
    %281 = vector.extract_strided_slice %277 {offsets = [0, 0], sizes = [64, 8], strides = [1, 1]} : vector<64x32xf32> to vector<64x8xf32>
    %cst_94 = arith.constant dense<0.000000e+00> : vector<8x64xf32>
    %282 = tpu.matmul %280, %281, %cst_94 {dimension_numbers = #tpu.dot_dimension_numbers<[1], [1], [0], [0], [0, 0, 1, 0], [], []>} : vector<8x8xf32>, vector<64x8xf32>, vector<8x64xf32> -> vector<8x64xf32>
    %cst_95 = arith.constant dense<0xFF800000> : vector<64xf32>
    %283 = vector.multi_reduction <maximumf>, %282, %cst_95 [0] : vector<8x64xf32> to vector<64xf32>
    %284 = vector.shape_cast %283 : vector<64xf32> to vector<1x64xf32>
    %285 = vector.broadcast %284 : vector<1x64xf32> to vector<8x64xf32>
    %286 = arith.subf %282, %285 : vector<8x64xf32>
    %287 = math.exp %286 : vector<8x64xf32>
    %cst_96 = arith.constant dense<0.000000e+00> : vector<64xf32>
    %288 = vector.multi_reduction <add>, %287, %cst_96 [0] : vector<8x64xf32> to vector<64xf32>
    %289 = vector.shape_cast %288 : vector<64xf32> to vector<1x64xf32>
    %290 = vector.broadcast %289 : vector<1x64xf32> to vector<8x64xf32>
    %291 = arith.divf %287, %290 : vector<8x64xf32>
    %292 = vector.extract_strided_slice %279 {offsets = [0, 0], sizes = [8, 8], strides = [1, 1]} : vector<8x32xf32> to vector<8x8xf32>
    %cst_97 = arith.constant dense<0.000000e+00> : vector<64x8xf32>
    %293 = tpu.matmul %291, %292, %cst_97 {dimension_numbers = #tpu.dot_dimension_numbers<[0], [0], [1], [1], [0, 1, 1, 1], [], []>} : vector<8x64xf32>, vector<8x8xf32>, vector<64x8xf32> -> vector<64x8xf32>
    %294 = vector.extract_strided_slice %278 {offsets = [0, 8], sizes = [8, 8], strides = [1, 1]} : vector<8x32xf32> to vector<8x8xf32>
    %295 = vector.extract_strided_slice %277 {offsets = [0, 8], sizes = [64, 8], strides = [1, 1]} : vector<64x32xf32> to vector<64x8xf32>
    %cst_98 = arith.constant dense<0.000000e+00> : vector<8x64xf32>
    %296 = tpu.matmul %294, %295, %cst_98 {dimension_numbers = #tpu.dot_dimension_numbers<[1], [1], [0], [0], [0, 0, 1, 0], [], []>} : vector<8x8xf32>, vector<64x8xf32>, vector<8x64xf32> -> vector<8x64xf32>
    %cst_99 = arith.constant dense<0xFF800000> : vector<64xf32>
    %297 = vector.multi_reduction <maximumf>, %296, %cst_99 [0] : vector<8x64xf32> to vector<64xf32>
    %298 = vector.shape_cast %297 : vector<64xf32> to vector<1x64xf32>
    %299 = vector.broadcast %298 : vector<1x64xf32> to vector<8x64xf32>
    %300 = arith.subf %296, %299 : vector<8x64xf32>
    %301 = math.exp %300 : vector<8x64xf32>
    %cst_100 = arith.constant dense<0.000000e+00> : vector<64xf32>
    %302 = vector.multi_reduction <add>, %301, %cst_100 [0] : vector<8x64xf32> to vector<64xf32>
    %303 = vector.shape_cast %302 : vector<64xf32> to vector<1x64xf32>
    %304 = vector.broadcast %303 : vector<1x64xf32> to vector<8x64xf32>
    %305 = arith.divf %301, %304 : vector<8x64xf32>
    %306 = vector.extract_strided_slice %279 {offsets = [0, 8], sizes = [8, 8], strides = [1, 1]} : vector<8x32xf32> to vector<8x8xf32>
    %cst_101 = arith.constant dense<0.000000e+00> : vector<64x8xf32>
    %307 = tpu.matmul %305, %306, %cst_101 {dimension_numbers = #tpu.dot_dimension_numbers<[0], [0], [1], [1], [0, 1, 1, 1], [], []>} : vector<8x64xf32>, vector<8x8xf32>, vector<64x8xf32> -> vector<64x8xf32>
    %308 = vector.extract_strided_slice %278 {offsets = [0, 16], sizes = [8, 8], strides = [1, 1]} : vector<8x32xf32> to vector<8x8xf32>
    %309 = vector.extract_strided_slice %277 {offsets = [0, 16], sizes = [64, 8], strides = [1, 1]} : vector<64x32xf32> to vector<64x8xf32>
    %cst_102 = arith.constant dense<0.000000e+00> : vector<8x64xf32>
    %310 = tpu.matmul %308, %309, %cst_102 {dimension_numbers = #tpu.dot_dimension_numbers<[1], [1], [0], [0], [0, 0, 1, 0], [], []>} : vector<8x8xf32>, vector<64x8xf32>, vector<8x64xf32> -> vector<8x64xf32>
    %cst_103 = arith.constant dense<0xFF800000> : vector<64xf32>
    %311 = vector.multi_reduction <maximumf>, %310, %cst_103 [0] : vector<8x64xf32> to vector<64xf32>
    %312 = vector.shape_cast %311 : vector<64xf32> to vector<1x64xf32>
    %313 = vector.broadcast %312 : vector<1x64xf32> to vector<8x64xf32>
    %314 = arith.subf %310, %313 : vector<8x64xf32>
    %315 = math.exp %314 : vector<8x64xf32>
    %cst_104 = arith.constant dense<0.000000e+00> : vector<64xf32>
    %316 = vector.multi_reduction <add>, %315, %cst_104 [0] : vector<8x64xf32> to vector<64xf32>
    %317 = vector.shape_cast %316 : vector<64xf32> to vector<1x64xf32>
    %318 = vector.broadcast %317 : vector<1x64xf32> to vector<8x64xf32>
    %319 = arith.divf %315, %318 : vector<8x64xf32>
    %320 = vector.extract_strided_slice %279 {offsets = [0, 16], sizes = [8, 8], strides = [1, 1]} : vector<8x32xf32> to vector<8x8xf32>
    %cst_105 = arith.constant dense<0.000000e+00> : vector<64x8xf32>
    %321 = tpu.matmul %319, %320, %cst_105 {dimension_numbers = #tpu.dot_dimension_numbers<[0], [0], [1], [1], [0, 1, 1, 1], [], []>} : vector<8x64xf32>, vector<8x8xf32>, vector<64x8xf32> -> vector<64x8xf32>
    %322 = vector.extract_strided_slice %278 {offsets = [0, 24], sizes = [8, 8], strides = [1, 1]} : vector<8x32xf32> to vector<8x8xf32>
    %323 = vector.extract_strided_slice %277 {offsets = [0, 24], sizes = [64, 8], strides = [1, 1]} : vector<64x32xf32> to vector<64x8xf32>
    %cst_106 = arith.constant dense<0.000000e+00> : vector<8x64xf32>
    %324 = tpu.matmul %322, %323, %cst_106 {dimension_numbers = #tpu.dot_dimension_numbers<[1], [1], [0], [0], [0, 0, 1, 0], [], []>} : vector<8x8xf32>, vector<64x8xf32>, vector<8x64xf32> -> vector<8x64xf32>
    %cst_107 = arith.constant dense<0xFF800000> : vector<64xf32>
    %325 = vector.multi_reduction <maximumf>, %324, %cst_107 [0] : vector<8x64xf32> to vector<64xf32>
    %326 = vector.shape_cast %325 : vector<64xf32> to vector<1x64xf32>
    %327 = vector.broadcast %326 : vector<1x64xf32> to vector<8x64xf32>
    %328 = arith.subf %324, %327 : vector<8x64xf32>
    %329 = math.exp %328 : vector<8x64xf32>
    %cst_108 = arith.constant dense<0.000000e+00> : vector<64xf32>
    %330 = vector.multi_reduction <add>, %329, %cst_108 [0] : vector<8x64xf32> to vector<64xf32>
    %331 = vector.shape_cast %330 : vector<64xf32> to vector<1x64xf32>
    %332 = vector.broadcast %331 : vector<1x64xf32> to vector<8x64xf32>
    %333 = arith.divf %329, %332 : vector<8x64xf32>
    %334 = vector.extract_strided_slice %279 {offsets = [0, 24], sizes = [8, 8], strides = [1, 1]} : vector<8x32xf32> to vector<8x8xf32>
    %cst_109 = arith.constant dense<0.000000e+00> : vector<64x8xf32>
    %335 = tpu.matmul %333, %334, %cst_109 {dimension_numbers = #tpu.dot_dimension_numbers<[0], [0], [1], [1], [0, 1, 1, 1], [], []>} : vector<8x64xf32>, vector<8x8xf32>, vector<64x8xf32> -> vector<64x8xf32>
    %336 = tpu.concatenate %291, %305, %319, %333 in 1 : vector<8x64xf32>, vector<8x64xf32>, vector<8x64xf32>, vector<8x64xf32> -> vector<8x256xf32>
    %c0_110 = arith.constant 0 : index
    %c0_111 = arith.constant 0 : index
    %c0_112 = arith.constant 0 : index
    %337 = vector.load %arg17[%c0_110, %c0_111, %c0_112] : memref<2x8x256xf32, #tpu.memory_space<vmem>>, vector<1x8x256xf32>
    %338 = vector.shape_cast %337 : vector<1x8x256xf32> to vector<8x256xf32>
    %339 = vector.shape_cast %336 : vector<8x256xf32> to vector<1x8x256xf32>
    tpu.vector_store %arg17[%c0_110, %c0_111, %c0_112], %339 {strides = array<i32>} : memref<2x8x256xf32, #tpu.memory_space<vmem>>, vector<1x8x256xf32>,
    %340 = tpu.concatenate %293, %307, %321, %335 in 1 : vector<64x8xf32>, vector<64x8xf32>, vector<64x8xf32>, vector<64x8xf32> -> vector<64x32xf32>
    %341 = vector.extract_strided_slice %270 {offsets = [64, 0], sizes = [64, 32], strides = [1, 1]} : vector<128x32xf32> to vector<64x32xf32>
    %342 = vector.extract_strided_slice %275 {offsets = [8, 0], sizes = [8, 32], strides = [1, 1]} : vector<16x32xf32> to vector<8x32xf32>
    %343 = vector.extract_strided_slice %276 {offsets = [8, 0], sizes = [8, 32], strides = [1, 1]} : vector<16x32xf32> to vector<8x32xf32>
    %344 = vector.extract_strided_slice %342 {offsets = [0, 0], sizes = [8, 8], strides = [1, 1]} : vector<8x32xf32> to vector<8x8xf32>
    %345 = vector.extract_strided_slice %341 {offsets = [0, 0], sizes = [64, 8], strides = [1, 1]} : vector<64x32xf32> to vector<64x8xf32>
    %cst_113 = arith.constant dense<0.000000e+00> : vector<8x64xf32>
    %346 = tpu.matmul %344, %345, %cst_113 {dimension_numbers = #tpu.dot_dimension_numbers<[1], [1], [0], [0], [0, 0, 1, 0], [], []>} : vector<8x8xf32>, vector<64x8xf32>, vector<8x64xf32> -> vector<8x64xf32>
    %cst_114 = arith.constant dense<0xFF800000> : vector<64xf32>
    %347 = vector.multi_reduction <maximumf>, %346, %cst_114 [0] : vector<8x64xf32> to vector<64xf32>
    %348 = vector.shape_cast %347 : vector<64xf32> to vector<1x64xf32>
    %349 = vector.broadcast %348 : vector<1x64xf32> to vector<8x64xf32>
    %350 = arith.subf %346, %349 : vector<8x64xf32>
    %351 = math.exp %350 : vector<8x64xf32>
    %cst_115 = arith.constant dense<0.000000e+00> : vector<64xf32>
    %352 = vector.multi_reduction <add>, %351, %cst_115 [0] : vector<8x64xf32> to vector<64xf32>
    %353 = vector.shape_cast %352 : vector<64xf32> to vector<1x64xf32>
    %354 = vector.broadcast %353 : vector<1x64xf32> to vector<8x64xf32>
    %355 = arith.divf %351, %354 : vector<8x64xf32>
    %356 = vector.extract_strided_slice %343 {offsets = [0, 0], sizes = [8, 8], strides = [1, 1]} : vector<8x32xf32> to vector<8x8xf32>
    %cst_116 = arith.constant dense<0.000000e+00> : vector<64x8xf32>
    %357 = tpu.matmul %355, %356, %cst_116 {dimension_numbers = #tpu.dot_dimension_numbers<[0], [0], [1], [1], [0, 1, 1, 1], [], []>} : vector<8x64xf32>, vector<8x8xf32>, vector<64x8xf32> -> vector<64x8xf32>
    %358 = vector.extract_strided_slice %342 {offsets = [0, 8], sizes = [8, 8], strides = [1, 1]} : vector<8x32xf32> to vector<8x8xf32>
    %359 = vector.extract_strided_slice %341 {offsets = [0, 8], sizes = [64, 8], strides = [1, 1]} : vector<64x32xf32> to vector<64x8xf32>
    %cst_117 = arith.constant dense<0.000000e+00> : vector<8x64xf32>
    %360 = tpu.matmul %358, %359, %cst_117 {dimension_numbers = #tpu.dot_dimension_numbers<[1], [1], [0], [0], [0, 0, 1, 0], [], []>} : vector<8x8xf32>, vector<64x8xf32>, vector<8x64xf32> -> vector<8x64xf32>
    %cst_118 = arith.constant dense<0xFF800000> : vector<64xf32>
    %361 = vector.multi_reduction <maximumf>, %360, %cst_118 [0] : vector<8x64xf32> to vector<64xf32>
    %362 = vector.shape_cast %361 : vector<64xf32> to vector<1x64xf32>
    %363 = vector.broadcast %362 : vector<1x64xf32> to vector<8x64xf32>
    %364 = arith.subf %360, %363 : vector<8x64xf32>
    %365 = math.exp %364 : vector<8x64xf32>
    %cst_119 = arith.constant dense<0.000000e+00> : vector<64xf32>
    %366 = vector.multi_reduction <add>, %365, %cst_119 [0] : vector<8x64xf32> to vector<64xf32>
    %367 = vector.shape_cast %366 : vector<64xf32> to vector<1x64xf32>
    %368 = vector.broadcast %367 : vector<1x64xf32> to vector<8x64xf32>
    %369 = arith.divf %365, %368 : vector<8x64xf32>
    %370 = vector.extract_strided_slice %343 {offsets = [0, 8], sizes = [8, 8], strides = [1, 1]} : vector<8x32xf32> to vector<8x8xf32>
    %cst_120 = arith.constant dense<0.000000e+00> : vector<64x8xf32>
    %371 = tpu.matmul %369, %370, %cst_120 {dimension_numbers = #tpu.dot_dimension_numbers<[0], [0], [1], [1], [0, 1, 1, 1], [], []>} : vector<8x64xf32>, vector<8x8xf32>, vector<64x8xf32> -> vector<64x8xf32>
    %372 = vector.extract_strided_slice %342 {offsets = [0, 16], sizes = [8, 8], strides = [1, 1]} : vector<8x32xf32> to vector<8x8xf32>
    %373 = vector.extract_strided_slice %341 {offsets = [0, 16], sizes = [64, 8], strides = [1, 1]} : vector<64x32xf32> to vector<64x8xf32>
    %cst_121 = arith.constant dense<0.000000e+00> : vector<8x64xf32>
    %374 = tpu.matmul %372, %373, %cst_121 {dimension_numbers = #tpu.dot_dimension_numbers<[1], [1], [0], [0], [0, 0, 1, 0], [], []>} : vector<8x8xf32>, vector<64x8xf32>, vector<8x64xf32> -> vector<8x64xf32>
    %cst_122 = arith.constant dense<0xFF800000> : vector<64xf32>
    %375 = vector.multi_reduction <maximumf>, %374, %cst_122 [0] : vector<8x64xf32> to vector<64xf32>
    %376 = vector.shape_cast %375 : vector<64xf32> to vector<1x64xf32>
    %377 = vector.broadcast %376 : vector<1x64xf32> to vector<8x64xf32>
    %378 = arith.subf %374, %377 : vector<8x64xf32>
    %379 = math.exp %378 : vector<8x64xf32>
    %cst_123 = arith.constant dense<0.000000e+00> : vector<64xf32>
    %380 = vector.multi_reduction <add>, %379, %cst_123 [0] : vector<8x64xf32> to vector<64xf32>
    %381 = vector.shape_cast %380 : vector<64xf32> to vector<1x64xf32>
    %382 = vector.broadcast %381 : vector<1x64xf32> to vector<8x64xf32>
    %383 = arith.divf %379, %382 : vector<8x64xf32>
    %384 = vector.extract_strided_slice %343 {offsets = [0, 16], sizes = [8, 8], strides = [1, 1]} : vector<8x32xf32> to vector<8x8xf32>
    %cst_124 = arith.constant dense<0.000000e+00> : vector<64x8xf32>
    %385 = tpu.matmul %383, %384, %cst_124 {dimension_numbers = #tpu.dot_dimension_numbers<[0], [0], [1], [1], [0, 1, 1, 1], [], []>} : vector<8x64xf32>, vector<8x8xf32>, vector<64x8xf32> -> vector<64x8xf32>
    %386 = vector.extract_strided_slice %342 {offsets = [0, 24], sizes = [8, 8], strides = [1, 1]} : vector<8x32xf32> to vector<8x8xf32>
    %387 = vector.extract_strided_slice %341 {offsets = [0, 24], sizes = [64, 8], strides = [1, 1]} : vector<64x32xf32> to vector<64x8xf32>
    %cst_125 = arith.constant dense<0.000000e+00> : vector<8x64xf32>
    %388 = tpu.matmul %386, %387, %cst_125 {dimension_numbers = #tpu.dot_dimension_numbers<[1], [1], [0], [0], [0, 0, 1, 0], [], []>} : vector<8x8xf32>, vector<64x8xf32>, vector<8x64xf32> -> vector<8x64xf32>
    %cst_126 = arith.constant dense<0xFF800000> : vector<64xf32>
    %389 = vector.multi_reduction <maximumf>, %388, %cst_126 [0] : vector<8x64xf32> to vector<64xf32>
    %390 = vector.shape_cast %389 : vector<64xf32> to vector<1x64xf32>
    %391 = vector.broadcast %390 : vector<1x64xf32> to vector<8x64xf32>
    %392 = arith.subf %388, %391 : vector<8x64xf32>
    %393 = math.exp %392 : vector<8x64xf32>
    %cst_127 = arith.constant dense<0.000000e+00> : vector<64xf32>
    %394 = vector.multi_reduction <add>, %393, %cst_127 [0] : vector<8x64xf32> to vector<64xf32>
    %395 = vector.shape_cast %394 : vector<64xf32> to vector<1x64xf32>
    %396 = vector.broadcast %395 : vector<1x64xf32> to vector<8x64xf32>
    %397 = arith.divf %393, %396 : vector<8x64xf32>
    %398 = vector.extract_strided_slice %343 {offsets = [0, 24], sizes = [8, 8], strides = [1, 1]} : vector<8x32xf32> to vector<8x8xf32>
    %cst_128 = arith.constant dense<0.000000e+00> : vector<64x8xf32>
    %399 = tpu.matmul %397, %398, %cst_128 {dimension_numbers = #tpu.dot_dimension_numbers<[0], [0], [1], [1], [0, 1, 1, 1], [], []>} : vector<8x64xf32>, vector<8x8xf32>, vector<64x8xf32> -> vector<64x8xf32>
    %400 = tpu.concatenate %355, %369, %383, %397 in 1 : vector<8x64xf32>, vector<8x64xf32>, vector<8x64xf32>, vector<8x64xf32> -> vector<8x256xf32>
    %c1_129 = arith.constant 1 : index
    %c0_130 = arith.constant 0 : index
    %c0_131 = arith.constant 0 : index
    %401 = vector.load %arg17[%c1_129, %c0_130, %c0_131] : memref<2x8x256xf32, #tpu.memory_space<vmem>>, vector<1x8x256xf32>
    %402 = vector.shape_cast %401 : vector<1x8x256xf32> to vector<8x256xf32>
    %403 = vector.shape_cast %400 : vector<8x256xf32> to vector<1x8x256xf32>
    tpu.vector_store %arg17[%c1_129, %c0_130, %c0_131], %403 {strides = array<i32>} : memref<2x8x256xf32, #tpu.memory_space<vmem>>, vector<1x8x256xf32>,
    %404 = tpu.concatenate %357, %371, %385, %399 in 1 : vector<64x8xf32>, vector<64x8xf32>, vector<64x8xf32>, vector<64x8xf32> -> vector<64x32xf32>
    %405 = tpu.concatenate %340, %404 in 0 : vector<64x32xf32>, vector<64x32xf32> -> vector<128x32xf32>
    %c0_132 = arith.constant 0 : index
    %c0_133 = arith.constant 0 : index
    %406 = vector.load %arg11[%c0_132, %c0_133] : memref<32x32xf32, #tpu.memory_space<vmem>>, vector<32x32xf32>
    %cst_134 = arith.constant dense<0.000000e+00> : vector<128x32xf32>
    %407 = tpu.matmul %405, %406, %cst_134 {dimension_numbers = #tpu.dot_dimension_numbers<[1], [0], [0], [1], [0, 0, 1, 1], [], []>} : vector<128x32xf32>, vector<32x32xf32>, vector<128x32xf32> -> vector<128x32xf32>
    %408 = arith.addf %1, %407 : vector<128x32xf32>
    %409 = vector.broadcast %228 : vector<1x32xf32> to vector<128x32xf32>
    %410 = arith.addf %408, %409 : vector<128x32xf32>
    %411 = vector.extract_strided_slice %0 {offsets = [8, 0], sizes = [1, 128], strides = [1, 1]} : vector<10x128xf32> to vector<1x128xf32>
    %412 = vector.extract_strided_slice %0 {offsets = [9, 0], sizes = [1, 32], strides = [1, 1]} : vector<10x128xf32> to vector<1x32xf32>
    %cst_135 = arith.constant dense<0.000000e+00> : vector<128xf32>
    %413 = vector.multi_reduction <add>, %410, %cst_135 [1] : vector<128x32xf32> to vector<128xf32>
    %414 = vector.shape_cast %413 : vector<128xf32> to vector<128x1xf32>
    %cst_136 = arith.constant 3.200000e+01 : f32
    %415 = vector.broadcast %cst_136 : f32 to vector<128x1xf32>
    %416 = arith.divf %414, %415 : vector<128x1xf32>
    %417 = vector.broadcast %416 : vector<128x1xf32> to vector<128x32xf32>
    %418 = arith.subf %410, %417 : vector<128x32xf32>
    %419 = arith.mulf %418, %418 : vector<128x32xf32>
    %cst_137 = arith.constant dense<0.000000e+00> : vector<128xf32>
    %420 = vector.multi_reduction <add>, %419, %cst_137 [1] : vector<128x32xf32> to vector<128xf32>
    %421 = vector.shape_cast %420 : vector<128xf32> to vector<128x1xf32>
    %cst_138 = arith.constant 3.200000e+01 : f32
    %422 = vector.broadcast %cst_138 : f32 to vector<128x1xf32>
    %423 = arith.divf %421, %422 : vector<128x1xf32>
    %424 = vector.broadcast %416 : vector<128x1xf32> to vector<128x32xf32>
    %425 = arith.subf %410, %424 : vector<128x32xf32>
    %cst_139 = arith.constant 9.99999974E-6 : f32
    %426 = vector.broadcast %cst_139 : f32 to vector<128x1xf32>
    %427 = arith.addf %423, %426 : vector<128x1xf32>
    %428 = math.rsqrt %427 : vector<128x1xf32>
    %429 = vector.broadcast %428 : vector<128x1xf32> to vector<128x32xf32>
    %430 = arith.mulf %425, %429 : vector<128x32xf32>
    %c0_140 = arith.constant 0 : index
    %c0_141 = arith.constant 0 : index
    %431 = vector.load %arg12[%c0_140, %c0_141] : memref<32x128xf32, #tpu.memory_space<vmem>>, vector<32x128xf32>
    %cst_142 = arith.constant dense<0.000000e+00> : vector<128x128xf32>
    %432 = tpu.matmul %430, %431, %cst_142 {dimension_numbers = #tpu.dot_dimension_numbers<[1], [0], [0], [1], [0, 0, 1, 1], [], []>} : vector<128x32xf32>, vector<32x128xf32>, vector<128x128xf32> -> vector<128x128xf32>
    %433 = vector.broadcast %411 : vector<1x128xf32> to vector<128x128xf32>
    %434 = arith.addf %432, %433 : vector<128x128xf32>
    %cst_143 = arith.constant 5.000000e-01 : f32
    %435 = vector.broadcast %cst_143 : f32 to vector<128x128xf32>
    %436 = arith.mulf %435, %434 : vector<128x128xf32>
    %cst_144 = arith.constant 0.707106769 : f32
    %437 = vector.broadcast %cst_144 : f32 to vector<128x128xf32>
    %438 = arith.mulf %434, %437 : vector<128x128xf32>
    %439 = math.erf %438 : vector<128x128xf32>
    %cst_145 = arith.constant 1.000000e+00 : f32
    %440 = vector.broadcast %cst_145 : f32 to vector<128x128xf32>
    %441 = arith.addf %440, %439 : vector<128x128xf32>
    %442 = arith.mulf %436, %441 : vector<128x128xf32>
    %c0_146 = arith.constant 0 : index
    %c0_147 = arith.constant 0 : index
    %443 = vector.load %arg13[%c0_146, %c0_147] : memref<128x32xf32, #tpu.memory_space<vmem>>, vector<128x32xf32>
    %cst_148 = arith.constant dense<0.000000e+00> : vector<128x32xf32>
    %444 = tpu.matmul %442, %443, %cst_148 {dimension_numbers = #tpu.dot_dimension_numbers<[1], [0], [0], [1], [0, 0, 1, 1], [], []>} : vector<128x128xf32>, vector<128x32xf32>, vector<128x32xf32> -> vector<128x32xf32>
    %445 = vector.broadcast %412 : vector<1x32xf32> to vector<128x32xf32>
    %446 = arith.addf %444, %445 : vector<128x32xf32>
    %447 = arith.addf %446, %410 : vector<128x32xf32>
    %c0_149 = arith.constant 0 : index
    %c0_150 = arith.constant 0 : index
    %448 = vector.load %arg14[%c0_149, %c0_150] : memref<128x32xf32, #tpu.memory_space<vmem>>, vector<128x32xf32>
    tpu.vector_store %arg14[%c0_149, %c0_150], %447 {strides = array<i32>} : memref<128x32xf32, #tpu.memory_space<vmem>>, vector<128x32xf32>,
    return
  }
  func.func @transform_0(%arg0: i32) -> (i32, i32) {
    %c0_i32 = arith.constant 0 : i32
    %c0_i32_0 = arith.constant 0 : i32
    return %arg0, %c0_i32 : i32, i32
  }
  func.func @transform_1(%arg0: i32) -> (i32, i32) {
    %c0_i32 = arith.constant 0 : i32
    %c0_i32_0 = arith.constant 0 : i32
    return %arg0, %c0_i32 : i32, i32
  }
  func.func @transform_2(%arg0: i32) -> (i32, i32) {
    %c0_i32 = arith.constant 0 : i32
    %c0_i32_0 = arith.constant 0 : i32
    %c0_i32_1 = arith.constant 0 : i32
    return %c0_i32, %c0_i32_0 : i32, i32
  }
  func.func @transform_3(%arg0: i32) -> (i32, i32) {
    %c0_i32 = arith.constant 0 : i32
    %c0_i32_0 = arith.constant 0 : i32
    %c0_i32_1 = arith.constant 0 : i32
    return %c0_i32, %c0_i32_0 : i32, i32
  }
  func.func @transform_4(%arg0: i32) -> (i32, i32) {
    %c0_i32 = arith.constant 0 : i32
    %c0_i32_0 = arith.constant 0 : i32
    %c0_i32_1 = arith.constant 0 : i32
    return %c0_i32, %c0_i32_0 : i32, i32
  }
  func.func @transform_5(%arg0: i32) -> (i32, i32) {
    %c0_i32 = arith.constant 0 : i32
    %c0_i32_0 = arith.constant 0 : i32
    %c0_i32_1 = arith.constant 0 : i32
    return %c0_i32, %c0_i32_0 : i32, i32
  }
  func.func @transform_6(%arg0: i32) -> (i32, i32) {
    %c0_i32 = arith.constant 0 : i32
    %c0_i32_0 = arith.constant 0 : i32
    %c0_i32_1 = arith.constant 0 : i32
    return %c0_i32, %c0_i32_0 : i32, i32
  }
  func.func @transform_7(%arg0: i32) -> (i32, i32) {
    %c0_i32 = arith.constant 0 : i32
    %c0_i32_0 = arith.constant 0 : i32
    %c0_i32_1 = arith.constant 0 : i32
    return %c0_i32, %c0_i32_0 : i32, i32
  }
  func.func @transform_8(%arg0: i32) -> (i32, i32) {
    %c0_i32 = arith.constant 0 : i32
    %c0_i32_0 = arith.constant 0 : i32
    %c0_i32_1 = arith.constant 0 : i32
    return %c0_i32, %c0_i32_0 : i32, i32
  }
  func.func @transform_9(%arg0: i32) -> (i32, i32) {
    %c0_i32 = arith.constant 0 : i32
    %c0_i32_0 = arith.constant 0 : i32
    %c0_i32_1 = arith.constant 0 : i32
    return %c0_i32, %c0_i32_0 : i32, i32
  }
  func.func @transform_10(%arg0: i32) -> (i32, i32) {
    %c0_i32 = arith.constant 0 : i32
    %c0_i32_0 = arith.constant 0 : i32
    %c0_i32_1 = arith.constant 0 : i32
    return %c0_i32, %c0_i32_0 : i32, i32
  }
  func.func @transform_11(%arg0: i32) -> (i32, i32) {
    %c0_i32 = arith.constant 0 : i32
    %c0_i32_0 = arith.constant 0 : i32
    %c0_i32_1 = arith.constant 0 : i32
    return %c0_i32, %c0_i32_0 : i32, i32
  }
  func.func @transform_12(%arg0: i32) -> (i32, i32) {
    %c0_i32 = arith.constant 0 : i32
    %c0_i32_0 = arith.constant 0 : i32
    %c0_i32_1 = arith.constant 0 : i32
    return %c0_i32, %c0_i32_0 : i32, i32
  }
  func.func @transform_13(%arg0: i32) -> (i32, i32) {
    %c0_i32 = arith.constant 0 : i32
    %c0_i32_0 = arith.constant 0 : i32
    return %arg0, %c0_i32 : i32, i32
  }
  func.func @transform_14(%arg0: i32) -> (i32, i32) {
    %c0_i32 = arith.constant 0 : i32
    %c0_i32_0 = arith.constant 0 : i32
    return %arg0, %c0_i32 : i32, i32
  }
  func.func @transform_15(%arg0: i32) -> (i32, i32, i32) {
    %c0_i32 = arith.constant 0 : i32
    %c0_i32_0 = arith.constant 0 : i32
    %c0_i32_1 = arith.constant 0 : i32
    return %arg0, %c0_i32, %c0_i32_0 : i32, i32, i32
  }
  func.func @transform_16(%arg0: i32) -> (i32, i32, i32) {
    %c0_i32 = arith.constant 0 : i32
    %c0_i32_0 = arith.constant 0 : i32
    %c0_i32_1 = arith.constant 0 : i32
    return %arg0, %c0_i32, %c0_i32_0 : i32, i32, i32
  }
}

</mosaic_0001>

<llo_original>
// kernel: luna_module_forward.1
$region0: #{luna_module_forward.1}
  #allocation0 [shape = 'u32[]', space=smem, size = 0x4, offset = 0x4, fixed_abs, tag = 'smem constant byte address 0x4 - core index']
  #allocation1 [shape = 'u32[144,128]{1,0:T(1,128)}', space=vmem, size = 0x12000, scoped, tag = 'internal scratch']
  %s0 = inlined_call_operand.vmem [shape: f32[128,32], index: 0, kind: input, shape index: {}]
  %s1 = inlined_call_operand.vmem [shape: f32[16,32], index: 1, kind: input, shape index: {}]
  %s2 = inlined_call_operand.vmem [shape: f32[10,128], index: 2, kind: input, shape index: {}]
  %s3 = inlined_call_operand.vmem [shape: f32[32,32], index: 3, kind: input, shape index: {}]
  %s4 = inlined_call_operand.vmem [shape: f32[32,64], index: 4, kind: input, shape index: {}]
  %s5 = inlined_call_operand.vmem [shape: f32[32,32], index: 5, kind: input, shape index: {}]
  %s6 = inlined_call_operand.vmem [shape: f32[32,128], index: 6, kind: input, shape index: {}]
  %s7 = inlined_call_operand.vmem [shape: f32[128,32], index: 7, kind: input, shape index: {}]
  %s8 = inlined_call_operand.vmem [shape: f32[32,32], index: 8, kind: input, shape index: {}]
  %s9 = inlined_call_operand.vmem [shape: f32[32,64], index: 9, kind: input, shape index: {}]
  %s10 = inlined_call_operand.vmem [shape: f32[32,32], index: 10, kind: input, shape index: {}]
  %s11 = inlined_call_operand.vmem [shape: f32[32,128], index: 11, kind: input, shape index: {}]
  %s12 = inlined_call_operand.vmem [shape: f32[128,32], index: 12, kind: input, shape index: {}]
  %s13 = inlined_call_operand.hbm [shape: f32[128,32], index: 13, kind: output, shape index: {0}]
  %s14 = inlined_call_operand.hbm [shape: f32[16,32], index: 14, kind: output, shape index: {1}]
  %s15 = inlined_call_operand.vmem [shape: f32[2,8,256], index: 15, kind: output, shape index: {2}]
  %s16 = inlined_call_operand.vmem [shape: f32[2,8,256], index: 16, kind: output, shape index: {3}]
  %17 = xla_tuple %s13, %s14, %s15, %s16
  %s18 = sld [smem:[#allocation0]]
  $region86: #{luna_module_forward.1} parent=0
    _
  %s20 = ssub.s32 1, %s18
  %s21 = scalar_select 0, %s20, %s18
  $region1: #{luna_module_forward.1} parent=0
    #allocation2 [shape = 'u8[65536]{0}', space=vmem, size = 0x10000, scoped, tag = 'output window, operand 0, single buffered']
    #allocation3 [shape = 's32[1]{0}', space=sflag, size = 0x4, scoped, tag = 'scoped memory for luna_module_forward.1']
    #allocation4 [shape = 'u8[8192]{0}', space=vmem, size = 0x2000, scoped, tag = 'output window, operand 1, single buffered']
    #allocation5 [shape = 's32[1]{0}', space=sflag, size = 0x4, scoped, tag = 'scoped memory for luna_module_forward.1']
    %22 = vsyncpa [#allocation3], 0
    %23 = vsyncpa [#allocation5], 0
    // Predicated region
    $region2: #{luna_module_forward.1} parent=1 // pred_check
      _
    $region3: #{luna_module_forward.1} parent=1 // pred_check_branch
      %25 = sbr.rel (0) target = $region5
    $region4: #{luna_module_forward.1} parent=1 // pred_region
      _
    $region5: #{luna_module_forward.1} parent=1 // pred_fallthru
      _
    // Predicated region
    $region6: #{luna_module_forward.1} parent=1 // pred_check
      _
    $region7: #{luna_module_forward.1} parent=1 // pred_check_branch
      %27 = sbr.rel (0) target = $region9
    $region8: #{luna_module_forward.1} parent=1 // pred_region
      _
    $region9: #{luna_module_forward.1} parent=1 // pred_fallthru
      _
    // Predicated region
    $region10: #{luna_module_forward.1} parent=1 // pred_check
      _
    $region11: #{luna_module_forward.1} parent=1 // pred_check_branch
      %29 = sbr.rel (0) target = $region13
    $region12: #{luna_module_forward.1} parent=1 // pred_region
      _
    $region13: #{luna_module_forward.1} parent=1 // pred_fallthru
      _
    // Predicated region
    $region14: #{luna_module_forward.1} parent=1 // pred_check
      _
    $region15: #{luna_module_forward.1} parent=1 // pred_check_branch
      %31 = sbr.rel (0) target = $region17
    $region16: #{luna_module_forward.1} parent=1 // pred_region
      _
    $region17: #{luna_module_forward.1} parent=1 // pred_fallthru
      _
    // Predicated region
    $region18: #{luna_module_forward.1} parent=1 // pred_check
      _
    $region19: #{luna_module_forward.1} parent=1 // pred_check_branch
      %33 = sbr.rel (0) target = $region21
    $region20: #{luna_module_forward.1} parent=1 // pred_region
      _
    $region21: #{luna_module_forward.1} parent=1 // pred_fallthru
      _
    // Predicated region
    $region22: #{luna_module_forward.1} parent=1 // pred_check
      _
    $region23: #{luna_module_forward.1} parent=1 // pred_check_branch
      %35 = sbr.rel (0) target = $region25
    $region24: #{luna_module_forward.1} parent=1 // pred_region
      _
    $region25: #{luna_module_forward.1} parent=1 // pred_fallthru
      _
    // Predicated region
    $region26: #{luna_module_forward.1} parent=1 // pred_check
      _
    $region27: #{luna_module_forward.1} parent=1 // pred_check_branch
      %37 = sbr.rel (0) target = $region29
    $region28: #{luna_module_forward.1} parent=1 // pred_region
      _
    $region29: #{luna_module_forward.1} parent=1 // pred_fallthru
      _
    // Predicated region
    $region30: #{luna_module_forward.1} parent=1 // pred_check
      _
    $region31: #{luna_module_forward.1} parent=1 // pred_check_branch
      %39 = sbr.rel (0) target = $region33
    $region32: #{luna_module_forward.1} parent=1 // pred_region
      _
    $region33: #{luna_module_forward.1} parent=1 // pred_fallthru
      _
    // Predicated region
    $region34: #{luna_module_forward.1} parent=1 // pred_check
      _
    $region35: #{luna_module_forward.1} parent=1 // pred_check_branch
      %41 = sbr.rel (0) target = $region37
    $region36: #{luna_module_forward.1} parent=1 // pred_region
      _
    $region37: #{luna_module_forward.1} parent=1 // pred_fallthru
      _
    // Predicated region
    $region38: #{luna_module_forward.1} parent=1 // pred_check
      _
    $region39: #{luna_module_forward.1} parent=1 // pred_check_branch
      %43 = sbr.rel (0) target = $region41
    $region40: #{luna_module_forward.1} parent=1 // pred_region
      _
    $region41: #{luna_module_forward.1} parent=1 // pred_fallthru
      _
    // Predicated region
    $region42: #{luna_module_forward.1} parent=1 // pred_check
      _
    $region43: #{luna_module_forward.1} parent=1 // pred_check_branch
      %45 = sbr.rel (0) target = $region45
    $region44: #{luna_module_forward.1} parent=1 // pred_region
      _
    $region45: #{luna_module_forward.1} parent=1 // pred_fallthru
      _
    // Predicated region
    $region46: #{luna_module_forward.1} parent=1 // pred_check
      _
    $region47: #{luna_module_forward.1} parent=1 // pred_check_branch
      %47 = sbr.rel (0) target = $region49
    $region48: #{luna_module_forward.1} parent=1 // pred_region
      _
    $region49: #{luna_module_forward.1} parent=1 // pred_fallthru
      _
    // Predicated region
    $region50: #{luna_module_forward.1} parent=1 // pred_check
      _
    $region51: #{luna_module_forward.1} parent=1 // pred_check_branch
      %49 = sbr.rel (0) target = $region53
    $region52: #{luna_module_forward.1} parent=1 // pred_region
      _
    $region53: #{luna_module_forward.1} parent=1 // pred_fallthru
      _
    %v50 = vld [vmem:[%s2] sm:$0xff]
    %v51 = vld [vmem:[%s2 + $0x8] sm:$0x3]
    %v52 = vld [vmem:[%s0] sm:$0xff]
    %v53 = vld [vmem:[%s0 + $0x8] sm:$0xff]
    %v54 = vld [vmem:[%s0 + $0x10] sm:$0xff]
    %v55 = vld [vmem:[%s0 + $0x18] sm:$0xff]
    %v56 = vld [vmem:[%s0 + $0x20] sm:$0xff]
    %v57 = vld [vmem:[%s0 + $0x28] sm:$0xff]
    %v58 = vld [vmem:[%s0 + $0x30] sm:$0xff]
    %v59 = vld [vmem:[%s0 + $0x38] sm:$0xff]
    %v60 = vld [vmem:[%s0 + $0x40] sm:$0xff]
    %v61 = vld [vmem:[%s0 + $0x48] sm:$0xff]
    %v62 = vld [vmem:[%s0 + $0x50] sm:$0xff]
    %v63 = vld [vmem:[%s0 + $0x58] sm:$0xff]
    %v64 = vld [vmem:[%s0 + $0x60] sm:$0xff]
    %v65 = vld [vmem:[%s0 + $0x68] sm:$0xff]
    %v66 = vld [vmem:[%s0 + $0x70] sm:$0xff]
    %v67 = vld [vmem:[%s0 + $0x78] sm:$0xff]
    %v68 = vld [vmem:[%s1] sm:$0xff]
    %v69 = vld [vmem:[%s1 + $0x8] sm:$0xff]
    %vm70 = vcmask 261120
    %v71 = vsel %vm70, %v68, 0.0
    %72 = vadd.xlane.f32.xlu0 %v71
    %v73 = vpop.xlane.xlu0 %72
    %v74 = vsel %vm70, %v69, 0.0
    %75 = vadd.xlane.f32.xlu0 %v74
    %v76 = vpop.xlane.xlu0 %75
    %v77 = vrcp.pop 32.0
    %v78 = vmul.f32 %v73, %v77
    %v79 = vmul.f32 %v76, %v77
    %v80 = vsub.f32 %v68, %v78
    %v81 = vsub.f32 %v69, %v79
    %v82 = vmul.f32 %v80, %v80
    %v83 = vmul.f32 %v81, %v81
    %v84 = vsel %vm70, %v82, 0.0
    %85 = vadd.xlane.f32.xlu0 %v84
    %v86 = vpop.xlane.xlu0 %85
    %v87 = vsel %vm70, %v83, 0.0
    %88 = vadd.xlane.f32.xlu0 %v87
    %v89 = vpop.xlane.xlu0 %88
    %v90 = vmul.f32 %v86, %v77
    %v91 = vmul.f32 %v89, %v77
    %v92 = vadd.f32 %v90, 1e-05
    %v93 = vadd.f32 %v91, 1e-05
    %v94 = vrsqrt.pop %v92
    %v95 = vrsqrt.pop %v93
    %v96 = vmul.f32 %v80, %v94
    %v97 = vmul.f32 %v81, %v95
    %v98 = vsel %vm70, %v52, 0.0
    %99 = vadd.xlane.f32.xlu0 %v98
    %v100 = vpop.xlane.xlu0 %99
    %v101 = vsel %vm70, %v53, 0.0
    %102 = vadd.xlane.f32.xlu0 %v101
    %v103 = vpop.xlane.xlu0 %102
    %v104 = vsel %vm70, %v54, 0.0
    %105 = vadd.xlane.f32.xlu0 %v104
    %v106 = vpop.xlane.xlu0 %105
    %v107 = vsel %vm70, %v55, 0.0
    %108 = vadd.xlane.f32.xlu0 %v107
    %v109 = vpop.xlane.xlu0 %108
    %v110 = vsel %vm70, %v56, 0.0
    %111 = vadd.xlane.f32.xlu0 %v110
    %v112 = vpop.xlane.xlu0 %111
    %v113 = vsel %vm70, %v57, 0.0
    %114 = vadd.xlane.f32.xlu0 %v113
    %v115 = vpop.xlane.xlu0 %114
    %v116 = vsel %vm70, %v58, 0.0
    %117 = vadd.xlane.f32.xlu0 %v116
    %v118 = vpop.xlane.xlu0 %117
    %v119 = vsel %vm70, %v59, 0.0
    %120 = vadd.xlane.f32.xlu0 %v119
    %v121 = vpop.xlane.xlu0 %120
    %v122 = vsel %vm70, %v60, 0.0
    %123 = vadd.xlane.f32.xlu0 %v122
    %v124 = vpop.xlane.xlu0 %123
    %v125 = vsel %vm70, %v61, 0.0
    %126 = vadd.xlane.f32.xlu0 %v125
    %v127 = vpop.xlane.xlu0 %126
    %v128 = vsel %vm70, %v62, 0.0
    %129 = vadd.xlane.f32.xlu0 %v128
    %v130 = vpop.xlane.xlu0 %129
    %v131 = vsel %vm70, %v63, 0.0
    %132 = vadd.xlane.f32.xlu0 %v131
    %v133 = vpop.xlane.xlu0 %132
    %v134 = vsel %vm70, %v64, 0.0
    %135 = vadd.xlane.f32.xlu0 %v134
    %v136 = vpop.xlane.xlu0 %135
    %v137 = vsel %vm70, %v65, 0.0
    %138 = vadd.xlane.f32.xlu0 %v137
    %v139 = vpop.xlane.xlu0 %138
    %v140 = vsel %vm70, %v66, 0.0
    %141 = vadd.xlane.f32.xlu0 %v140
    %v142 = vpop.xlane.xlu0 %141
    %v143 = vsel %vm70, %v67, 0.0
    %144 = vadd.xlane.f32.xlu0 %v143
    %v145 = vpop.xlane.xlu0 %144
    %v146 = vmul.f32 %v100, %v77
    %v147 = vmul.f32 %v103, %v77
    %v148 = vmul.f32 %v106, %v77
    %v149 = vmul.f32 %v109, %v77
    %v150 = vmul.f32 %v112, %v77
    %v151 = vmul.f32 %v115, %v77
    %v152 = vmul.f32 %v118, %v77
    %v153 = vmul.f32 %v121, %v77
    %v154 = vmul.f32 %v124, %v77
    %v155 = vmul.f32 %v127, %v77
    %v156 = vmul.f32 %v130, %v77
    %v157 = vmul.f32 %v133, %v77
    %v158 = vmul.f32 %v136, %v77
    %v159 = vmul.f32 %v139, %v77
    %v160 = vmul.f32 %v142, %v77
    %v161 = vmul.f32 %v145, %v77
    %v162 = vsub.f32 %v52, %v146
    %v163 = vsub.f32 %v53, %v147
    %v164 = vsub.f32 %v54, %v148
    %v165 = vsub.f32 %v55, %v149
    %v166 = vsub.f32 %v56, %v150
    %v167 = vsub.f32 %v57, %v151
    %v168 = vsub.f32 %v58, %v152
    %v169 = vsub.f32 %v59, %v153
    %v170 = vsub.f32 %v60, %v154
    %v171 = vsub.f32 %v61, %v155
    %v172 = vsub.f32 %v62, %v156
    %v173 = vsub.f32 %v63, %v157
    %v174 = vsub.f32 %v64, %v158
    %v175 = vsub.f32 %v65, %v159
    %v176 = vsub.f32 %v66, %v160
    %v177 = vsub.f32 %v67, %v161
    %v178 = vmul.f32 %v162, %v162
    %v179 = vmul.f32 %v163, %v163
    %v180 = vmul.f32 %v164, %v164
    %v181 = vmul.f32 %v165, %v165
    %v182 = vmul.f32 %v166, %v166
    %v183 = vmul.f32 %v167, %v167
    %v184 = vmul.f32 %v168, %v168
    %v185 = vmul.f32 %v169, %v169
    %v186 = vmul.f32 %v170, %v170
    %v187 = vmul.f32 %v171, %v171
    %v188 = vmul.f32 %v172, %v172
    %v189 = vmul.f32 %v173, %v173
    %v190 = vmul.f32 %v174, %v174
    %v191 = vmul.f32 %v175, %v175
    %v192 = vmul.f32 %v176, %v176
    %v193 = vmul.f32 %v177, %v177
    %v194 = vsel %vm70, %v178, 0.0
    %195 = vadd.xlane.f32.xlu0 %v194
    %v196 = vpop.xlane.xlu0 %195
    %v197 = vsel %vm70, %v179, 0.0
    %198 = vadd.xlane.f32.xlu0 %v197
    %v199 = vpop.xlane.xlu0 %198
    %v200 = vsel %vm70, %v180, 0.0
    %201 = vadd.xlane.f32.xlu0 %v200
    %v202 = vpop.xlane.xlu0 %201
    %v203 = vsel %vm70, %v181, 0.0
    %204 = vadd.xlane.f32.xlu0 %v203
    %v205 = vpop.xlane.xlu0 %204
    %v206 = vsel %vm70, %v182, 0.0
    %207 = vadd.xlane.f32.xlu0 %v206
    %v208 = vpop.xlane.xlu0 %207
    %v209 = vsel %vm70, %v183, 0.0
    %210 = vadd.xlane.f32.xlu0 %v209
    %v211 = vpop.xlane.xlu0 %210
    %v212 = vsel %vm70, %v184, 0.0
    %213 = vadd.xlane.f32.xlu0 %v212
    %v214 = vpop.xlane.xlu0 %213
    %v215 = vsel %vm70, %v185, 0.0
    %216 = vadd.xlane.f32.xlu0 %v215
    %v217 = vpop.xlane.xlu0 %216
    %v218 = vsel %vm70, %v186, 0.0
    %219 = vadd.xlane.f32.xlu0 %v218
    %v220 = vpop.xlane.xlu0 %219
    %v221 = vsel %vm70, %v187, 0.0
    %222 = vadd.xlane.f32.xlu0 %v221
    %v223 = vpop.xlane.xlu0 %222
    %v224 = vsel %vm70, %v188, 0.0
    %225 = vadd.xlane.f32.xlu0 %v224
    %v226 = vpop.xlane.xlu0 %225
    %v227 = vsel %vm70, %v189, 0.0
    %228 = vadd.xlane.f32.xlu0 %v227
    %v229 = vpop.xlane.xlu0 %228
    %v230 = vsel %vm70, %v190, 0.0
    %231 = vadd.xlane.f32.xlu0 %v230
    %v232 = vpop.xlane.xlu0 %231
    %v233 = vsel %vm70, %v191, 0.0
    %234 = vadd.xlane.f32.xlu0 %v233
    %v235 = vpop.xlane.xlu0 %234
    %v236 = vsel %vm70, %v192, 0.0
    %237 = vadd.xlane.f32.xlu0 %v236
    %v238 = vpop.xlane.xlu0 %237
    %v239 = vsel %vm70, %v193, 0.0
    %240 = vadd.xlane.f32.xlu0 %v239
    %v241 = vpop.xlane.xlu0 %240
    %v242 = vmul.f32 %v196, %v77
    %v243 = vmul.f32 %v199, %v77
    %v244 = vmul.f32 %v202, %v77
    %v245 = vmul.f32 %v205, %v77
    %v246 = vmul.f32 %v208, %v77
    %v247 = vmul.f32 %v211, %v77
    %v248 = vmul.f32 %v214, %v77
    %v249 = vmul.f32 %v217, %v77
    %v250 = vmul.f32 %v220, %v77
    %v251 = vmul.f32 %v223, %v77
    %v252 = vmul.f32 %v226, %v77
    %v253 = vmul.f32 %v229, %v77
    %v254 = vmul.f32 %v232, %v77
    %v255 = vmul.f32 %v235, %v77
    %v256 = vmul.f32 %v238, %v77
    %v257 = vmul.f32 %v241, %v77
    %v258 = vadd.f32 %v242, 1e-05
    %v259 = vadd.f32 %v243, 1e-05
    %v260 = vadd.f32 %v244, 1e-05
    %v261 = vadd.f32 %v245, 1e-05
    %v262 = vadd.f32 %v246, 1e-05
    %v263 = vadd.f32 %v247, 1e-05
    %v264 = vadd.f32 %v248, 1e-05
    %v265 = vadd.f32 %v249, 1e-05
    %v266 = vadd.f32 %v250, 1e-05
    %v267 = vadd.f32 %v251, 1e-05
    %v268 = vadd.f32 %v252, 1e-05
    %v269 = vadd.f32 %v253, 1e-05
    %v270 = vadd.f32 %v254, 1e-05
    %v271 = vadd.f32 %v255, 1e-05
    %v272 = vadd.f32 %v256, 1e-05
    %v273 = vadd.f32 %v257, 1e-05
    %v274 = vrsqrt.pop %v258
    %v275 = vrsqrt.pop %v259
    %v276 = vrsqrt.pop %v260
    %v277 = vrsqrt.pop %v261
    %v278 = vrsqrt.pop %v262
    %v279 = vrsqrt.pop %v263
    %v280 = vrsqrt.pop %v264
    %v281 = vrsqrt.pop %v265
    %v282 = vrsqrt.pop %v266
    %v283 = vrsqrt.pop %v267
    %v284 = vrsqrt.pop %v268
    %v285 = vrsqrt.pop %v269
    %v286 = vrsqrt.pop %v270
    %v287 = vrsqrt.pop %v271
    %v288 = vrsqrt.pop %v272
    %v289 = vrsqrt.pop %v273
    %v290 = vmul.f32 %v162, %v274
    %v291 = vmul.f32 %v163, %v275
    %v292 = vmul.f32 %v164, %v276
    %v293 = vmul.f32 %v165, %v277
    %v294 = vmul.f32 %v166, %v278
    %v295 = vmul.f32 %v167, %v279
    %v296 = vmul.f32 %v168, %v280
    %v297 = vmul.f32 %v169, %v281
    %v298 = vmul.f32 %v170, %v282
    %v299 = vmul.f32 %v171, %v283
    %v300 = vmul.f32 %v172, %v284
    %v301 = vmul.f32 %v173, %v285
    %v302 = vmul.f32 %v174, %v286
    %v303 = vmul.f32 %v175, %v287
    %v304 = vmul.f32 %v176, %v288
    %v305 = vmul.f32 %v177, %v289
    %v306 = vld [vmem:[%s3] sm:$0xff]
    %v307 = vld [vmem:[%s3 + $0x8] sm:$0xff]
    %v308 = vld [vmem:[%s3 + $0x10] sm:$0xff]
    %v309 = vld [vmem:[%s3 + $0x18] sm:$0xff]
    %v310 = vlaneseq
    %v311 = vshrl.u32 %v310, 7
    %v312 = vsub.s32 0, %v311
    %v313 = vrot.slane %v50, %v312
    %v315 = vsel %vm70, %v96, 0
    %v318 = vsel %vm70, %v97, 0
    %320 = vmatprep.subr.mxu0 0.0
    %321 = vmatpush1.msra.mxu0 %v306
    %322 = vmatprep.subr.mxu0 0.0
    %323 = vmatpush1.msra.mxu0 %v307
    %324 = vmatprep.subr.mxu0 0.0
    %325 = vmatpush1.msra.mxu0 %v308
    %326 = vmatprep.subr.mxu0 0.0
    %327 = vmatpush1.msra.mxu0 %v309
    %328 = vmatprep.subr.mxu0 0.0
    %329 = vmatpush1.msra.mxu0 0.0
    %330 = vmatprep.subr.mxu0 0.0
    %331 = vmatpush1.msra.mxu0 0.0
    %332 = vmatprep.subr.mxu0 0.0
    %333 = vmatpush1.msra.mxu0 0.0
    %334 = vmatprep.subr.mxu0 0.0
    %335 = vmatpush1.msra.mxu0 0.0
    %336 = vmatprep.subr.mxu0 0.0
    %337 = vmatpush1.msra.mxu0 0.0
    %338 = vmatprep.subr.mxu0 0.0
    %339 = vmatpush1.msra.mxu0 0.0
    %340 = vmatprep.subr.mxu0 0.0
    %341 = vmatpush1.msra.mxu0 0.0
    %342 = vmatprep.subr.mxu0 0.0
    %343 = vmatpush1.msra.mxu0 0.0
    %344 = vmatprep.subr.mxu0 0.0
    %345 = vmatpush1.msra.mxu0 0.0
    %346 = vmatprep.subr.mxu0 0.0
    %347 = vmatpush1.msra.mxu0 0.0
    %348 = vmatprep.subr.mxu0 0.0
    %349 = vmatpush1.msra.mxu0 0.0
    %350 = vmatprep.subr.mxu0 0.0
    %351 = vmatpush1.msra.mxu0 0.0
    %352 = vmatprep.subr.mxu0 0.0
    %353 = vmatpush1.msra.mxu0 0.0
    %354 = vmatprep.subr.mxu0 0.0
    %355 = vmatpush1.msra.mxu0 0.0
    %356 = vmatprep.subr.mxu0 0.0
    %357 = vmatpush1.msra.mxu0 0.0
    %358 = vmatprep.subr.mxu0 0.0
    %359 = vmatpush1.msra.mxu0 0.0
    %360 = vmatprep.subr.mxu0 0.0
    %361 = vmatpush1.msra.mxu0 0.0
    %362 = vmatprep.subr.mxu0 0.0
    %363 = vmatpush1.msra.mxu0 0.0
    %364 = vmatprep.subr.mxu0 0.0
    %365 = vmatpush1.msra.mxu0 0.0
    %366 = vmatprep.subr.mxu0 0.0
    %367 = vmatpush1.msra.mxu0 0.0
    %368 = vmatprep.subr.mxu0 0.0
    %369 = vmatpush1.msra.mxu0 0.0
    %370 = vmatprep.subr.mxu0 0.0
    %371 = vmatpush1.msra.mxu0 0.0
    %372 = vmatprep.subr.mxu0 0.0
    %373 = vmatpush1.msra.mxu0 0.0
    %374 = vmatprep.subr.mxu0 0.0
    %375 = vmatpush1.msra.mxu0 0.0
    %376 = vmatprep.subr.mxu0 0.0
    %377 = vmatpush1.msra.mxu0 0.0
    %378 = vmatprep.subr.mxu0 0.0
    %379 = vmatpush1.msra.mxu0 0.0
    %380 = vmatprep.subr.mxu0 0.0
    %381 = vmatpush1.msra.mxu0 0.0
    %382 = vmatprep.subr.mxu0 0.0
    %383 = vmatpush1.msra.mxu0 0.0
    %384 = vmatprep.mubr.f32.mxu0 0.0
    %385 = vmatmul.mubr.f32.gmra.mrb[0].mxu0 %v315
    %v386 = vpop.f32.mrb[0].mxu0
    %v387 = vadd.f32 %v313, %v386
    %v388 = vpop.f32.mrb[0].mxu0
    %389 = vmatprep.mubr.f32.mxu0 0.0
    %390 = vmatmul.mubr.f32.gmra.mrb[0].mxu0 %v318
    %v391 = vpop.f32.mrb[0].mxu0
    %v392 = vadd.f32 %v313, %v391
    %v393 = vpop.f32.mrb[0].mxu0
    %394 = vdwg.mxu0
    %v395 = vmul.f32 %v387, 0.35355338
    %v396 = vmul.f32 %v392, 0.35355338
    %v397 = vld [vmem:[%s4] sm:$0xff]
    %v398 = vld [vmem:[%s4 + $0x8] sm:$0xff]
    %v399 = vld [vmem:[%s4 + $0x10] sm:$0xff]
    %v400 = vld [vmem:[%s4 + $0x18] sm:$0xff]
    %v401 = vlaneseq
    %v402 = vshrl.u32 %v401, 7
    %v403 = vsub.s32 1, %v402
    %v404 = vrot.slane %v50, %v403
    %v406 = vsel %vm70, %v290, 0
    %v409 = vsel %vm70, %v291, 0
    %v412 = vsel %vm70, %v292, 0
    %v415 = vsel %vm70, %v293, 0
    %v418 = vsel %vm70, %v294, 0
    %v421 = vsel %vm70, %v295, 0
    %v424 = vsel %vm70, %v296, 0
    %v427 = vsel %vm70, %v297, 0
    %v430 = vsel %vm70, %v298, 0
    %v433 = vsel %vm70, %v299, 0
    %v436 = vsel %vm70, %v300, 0
    %v439 = vsel %vm70, %v301, 0
    %v442 = vsel %vm70, %v302, 0
    %v445 = vsel %vm70, %v303, 0
    %v448 = vsel %vm70, %v304, 0
    %v451 = vsel %vm70, %v305, 0
    %453 = vmatprep.subr.mxu0 0.0
    %454 = vmatpush1.msra.mxu0 %v397
    %455 = vmatprep.subr.mxu0 0.0
    %456 = vmatpush1.msra.mxu0 %v398
    %457 = vmatprep.subr.mxu0 0.0
    %458 = vmatpush1.msra.mxu0 %v399
    %459 = vmatprep.subr.mxu0 0.0
    %460 = vmatpush1.msra.mxu0 %v400
    %461 = vmatprep.subr.mxu0 0.0
    %462 = vmatpush1.msra.mxu0 0.0
    %463 = vmatprep.subr.mxu0 0.0
    %464 = vmatpush1.msra.mxu0 0.0
    %465 = vmatprep.subr.mxu0 0.0
    %466 = vmatpush1.msra.mxu0 0.0
    %467 = vmatprep.subr.mxu0 0.0
    %468 = vmatpush1.msra.mxu0 0.0
    %469 = vmatprep.subr.mxu0 0.0
    %470 = vmatpush1.msra.mxu0 0.0
    %471 = vmatprep.subr.mxu0 0.0
    %472 = vmatpush1.msra.mxu0 0.0
    %473 = vmatprep.subr.mxu0 0.0
    %474 = vmatpush1.msra.mxu0 0.0
    %475 = vmatprep.subr.mxu0 0.0
    %476 = vmatpush1.msra.mxu0 0.0
    %477 = vmatprep.subr.mxu0 0.0
    %478 = vmatpush1.msra.mxu0 0.0
    %479 = vmatprep.subr.mxu0 0.0
    %480 = vmatpush1.msra.mxu0 0.0
    %481 = vmatprep.subr.mxu0 0.0
    %482 = vmatpush1.msra.mxu0 0.0
    %483 = vmatprep.subr.mxu0 0.0
    %484 = vmatpush1.msra.mxu0 0.0
    %485 = vmatprep.subr.mxu0 0.0
    %486 = vmatpush1.msra.mxu0 0.0
    %487 = vmatprep.subr.mxu0 0.0
    %488 = vmatpush1.msra.mxu0 0.0
    %489 = vmatprep.subr.mxu0 0.0
    %490 = vmatpush1.msra.mxu0 0.0
    %491 = vmatprep.subr.mxu0 0.0
    %492 = vmatpush1.msra.mxu0 0.0
    %493 = vmatprep.subr.mxu0 0.0
    %494 = vmatpush1.msra.mxu0 0.0
    %495 = vmatprep.subr.mxu0 0.0
    %496 = vmatpush1.msra.mxu0 0.0
    %497 = vmatprep.subr.mxu0 0.0
    %498 = vmatpush1.msra.mxu0 0.0
    %499 = vmatprep.subr.mxu0 0.0
    %500 = vmatpush1.msra.mxu0 0.0
    %501 = vmatprep.subr.mxu0 0.0
    %502 = vmatpush1.msra.mxu0 0.0
    %503 = vmatprep.subr.mxu0 0.0
    %504 = vmatpush1.msra.mxu0 0.0
    %505 = vmatprep.subr.mxu0 0.0
    %506 = vmatpush1.msra.mxu0 0.0
    %507 = vmatprep.subr.mxu0 0.0
    %508 = vmatpush1.msra.mxu0 0.0
    %509 = vmatprep.subr.mxu0 0.0
    %510 = vmatpush1.msra.mxu0 0.0
    %511 = vmatprep.subr.mxu0 0.0
    %512 = vmatpush1.msra.mxu0 0.0
    %513 = vmatprep.subr.mxu0 0.0
    %514 = vmatpush1.msra.mxu0 0.0
    %515 = vmatprep.subr.mxu0 0.0
    %516 = vmatpush1.msra.mxu0 0.0
    %517 = vmatprep.mubr.f32.mxu0 0.0
    %518 = vmatmul.mubr.f32.gmra.mrb[0].mxu0 %v406
    %v519 = vpop.f32.mrb[0].mxu0
    %v520 = vadd.f32 %v404, %v519
    %v521 = vpop.f32.mrb[0].mxu0
    %522 = vmatprep.mubr.f32.mxu0 0.0
    %523 = vmatmul.mubr.f32.gmra.mrb[0].mxu0 %v409
    %v524 = vpop.f32.mrb[0].mxu0
    %v525 = vadd.f32 %v404, %v524
    %v526 = vpop.f32.mrb[0].mxu0
    %527 = vmatprep.mubr.f32.mxu0 0.0
    %528 = vmatmul.mubr.f32.gmra.mrb[0].mxu0 %v412
    %v529 = vpop.f32.mrb[0].mxu0
    %v530 = vadd.f32 %v404, %v529
    %v531 = vpop.f32.mrb[0].mxu0
    %532 = vmatprep.mubr.f32.mxu0 0.0
    %533 = vmatmul.mubr.f32.gmra.mrb[0].mxu0 %v415
    %v534 = vpop.f32.mrb[0].mxu0
    %v535 = vadd.f32 %v404, %v534
    %v536 = vpop.f32.mrb[0].mxu0
    %537 = vmatprep.mubr.f32.mxu0 0.0
    %538 = vmatmul.mubr.f32.gmra.mrb[0].mxu0 %v418
    %v539 = vpop.f32.mrb[0].mxu0
    %v540 = vadd.f32 %v404, %v539
    %v541 = vpop.f32.mrb[0].mxu0
    %542 = vmatprep.mubr.f32.mxu0 0.0
    %543 = vmatmul.mubr.f32.gmra.mrb[0].mxu0 %v421
    %v544 = vpop.f32.mrb[0].mxu0
    %v545 = vadd.f32 %v404, %v544
    %v546 = vpop.f32.mrb[0].mxu0
    %547 = vmatprep.mubr.f32.mxu0 0.0
    %548 = vmatmul.mubr.f32.gmra.mrb[0].mxu0 %v424
    %v549 = vpop.f32.mrb[0].mxu0
    %v550 = vadd.f32 %v404, %v549
    %v551 = vpop.f32.mrb[0].mxu0
    %552 = vmatprep.mubr.f32.mxu0 0.0
    %553 = vmatmul.mubr.f32.gmra.mrb[0].mxu0 %v427
    %v554 = vpop.f32.mrb[0].mxu0
    %v555 = vadd.f32 %v404, %v554
    %v556 = vpop.f32.mrb[0].mxu0
    %557 = vmatprep.mubr.f32.mxu0 0.0
    %558 = vmatmul.mubr.f32.gmra.mrb[0].mxu0 %v430
    %v559 = vpop.f32.mrb[0].mxu0
    %v560 = vadd.f32 %v404, %v559
    %v561 = vpop.f32.mrb[0].mxu0
    %562 = vmatprep.mubr.f32.mxu0 0.0
    %563 = vmatmul.mubr.f32.gmra.mrb[0].mxu0 %v433
    %v564 = vpop.f32.mrb[0].mxu0
    %v565 = vadd.f32 %v404, %v564
    %v566 = vpop.f32.mrb[0].mxu0
    %567 = vmatprep.mubr.f32.mxu0 0.0
    %568 = vmatmul.mubr.f32.gmra.mrb[0].mxu0 %v436
    %v569 = vpop.f32.mrb[0].mxu0
    %v570 = vadd.f32 %v404, %v569
    %v571 = vpop.f32.mrb[0].mxu0
    %572 = vmatprep.mubr.f32.mxu0 0.0
    %573 = vmatmul.mubr.f32.gmra.mrb[0].mxu0 %v439
    %v574 = vpop.f32.mrb[0].mxu0
    %v575 = vadd.f32 %v404, %v574
    %v576 = vpop.f32.mrb[0].mxu0
    %577 = vmatprep.mubr.f32.mxu0 0.0
    %578 = vmatmul.mubr.f32.gmra.mrb[0].mxu0 %v442
    %v579 = vpop.f32.mrb[0].mxu0
    %v580 = vadd.f32 %v404, %v579
    %v581 = vpop.f32.mrb[0].mxu0
    %582 = vmatprep.mubr.f32.mxu0 0.0
    %583 = vmatmul.mubr.f32.gmra.mrb[0].mxu0 %v445
    %v584 = vpop.f32.mrb[0].mxu0
    %v585 = vadd.f32 %v404, %v584
    %v586 = vpop.f32.mrb[0].mxu0
    %587 = vmatprep.mubr.f32.mxu0 0.0
    %588 = vmatmul.mubr.f32.gmra.mrb[0].mxu0 %v448
    %v589 = vpop.f32.mrb[0].mxu0
    %v590 = vadd.f32 %v404, %v589
    %v591 = vpop.f32.mrb[0].mxu0
    %592 = vmatprep.mubr.f32.mxu0 0.0
    %593 = vmatmul.mubr.f32.gmra.mrb[0].mxu0 %v451
    %v594 = vpop.f32.mrb[0].mxu0
    %v595 = vadd.f32 %v404, %v594
    %v596 = vpop.f32.mrb[0].mxu0
    %597 = vdwg.mxu0
    %vm598 = vcmask 64512
    %v600 = vsel %vm598, %v395, 0
    %v603 = vsel %vm598, %v520, 0
    %v606 = vsel %vm598, %v525, 0
    %v609 = vsel %vm598, %v530, 0
    %v612 = vsel %vm598, %v535, 0
    %v615 = vsel %vm598, %v540, 0
    %v618 = vsel %vm598, %v545, 0
    %v621 = vsel %vm598, %v550, 0
    %v624 = vsel %vm598, %v555, 0
    %626 = vmatprep.subr.mxu0 0.0
    %627 = vmatpush1.xpose.msra.mxu0 %v603
    %628 = vmatprep.subr.mxu0 0.0
    %629 = vmatpush1.xpose.msra.mxu0 %v606
    %630 = vmatprep.subr.mxu0 0.0
    %631 = vmatpush1.xpose.msra.mxu0 %v609
    %632 = vmatprep.subr.mxu0 0.0
    %633 = vmatpush1.xpose.msra.mxu0 %v612
    %634 = vmatprep.subr.mxu0 0.0
    %635 = vmatpush1.xpose.msra.mxu0 %v615
    %636 = vmatprep.subr.mxu0 0.0
    %637 = vmatpush1.xpose.msra.mxu0 %v618
    %638 = vmatprep.subr.mxu0 0.0
    %639 = vmatpush1.xpose.msra.mxu0 %v621
    %640 = vmatprep.subr.mxu0 0.0
    %641 = vmatpush1.xpose.msra.mxu0 %v624
    %642 = vmatprep.subr.mxu0 0.0
    %643 = vmatpush1.xpose.msra.mxu0 0.0
    %644 = vmatprep.subr.mxu0 0.0
    %645 = vmatpush1.xpose.msra.mxu0 0.0
    %646 = vmatprep.subr.mxu0 0.0
    %647 = vmatpush1.xpose.msra.mxu0 0.0
    %648 = vmatprep.subr.mxu0 0.0
    %649 = vmatpush1.xpose.msra.mxu0 0.0
    %650 = vmatprep.subr.mxu0 0.0
    %651 = vmatpush1.xpose.msra.mxu0 0.0
    %652 = vmatprep.subr.mxu0 0.0
    %653 = vmatpush1.xpose.msra.mxu0 0.0
    %654 = vmatprep.subr.mxu0 0.0
    %655 = vmatpush1.xpose.msra.mxu0 0.0
    %656 = vmatprep.subr.mxu0 0.0
    %657 = vmatpush1.xpose.msra.mxu0 0.0
    %658 = vmatprep.subr.mxu0 0.0
    %659 = vmatpush1.xpose.msra.mxu0 0.0
    %660 = vmatprep.subr.mxu0 0.0
    %661 = vmatpush1.xpose.msra.mxu0 0.0
    %662 = vmatprep.subr.mxu0 0.0
    %663 = vmatpush1.xpose.msra.mxu0 0.0
    %664 = vmatprep.subr.mxu0 0.0
    %665 = vmatpush1.xpose.msra.mxu0 0.0
    %666 = vmatprep.subr.mxu0 0.0
    %667 = vmatpush1.xpose.msra.mxu0 0.0
    %668 = vmatprep.subr.mxu0 0.0
    %669 = vmatpush1.xpose.msra.mxu0 0.0
    %670 = vmatprep.subr.mxu0 0.0
    %671 = vmatpush1.xpose.msra.mxu0 0.0
    %672 = vmatprep.subr.mxu0 0.0
    %673 = vmatpush1.xpose.msra.mxu0 0.0
    %674 = vmatprep.subr.mxu0 0.0
    %675 = vmatpush1.xpose.msra.mxu0 0.0
    %676 = vmatprep.subr.mxu0 0.0
    %677 = vmatpush1.xpose.msra.mxu0 0.0
    %678 = vmatprep.subr.mxu0 0.0
    %679 = vmatpush1.xpose.msra.mxu0 0.0
    %680 = vmatprep.subr.mxu0 0.0
    %681 = vmatpush1.xpose.msra.mxu0 0.0
    %682 = vmatprep.subr.mxu0 0.0
    %683 = vmatpush1.xpose.msra.mxu0 0.0
    %684 = vmatprep.subr.mxu0 0.0
    %685 = vmatpush1.xpose.msra.mxu0 0.0
    %686 = vmatprep.subr.mxu0 0.0
    %687 = vmatpush1.xpose.msra.mxu0 0.0
    %688 = vmatprep.subr.mxu0 0.0
    %689 = vmatpush1.xpose.msra.mxu0 0.0
    %690 = vmatprep.mubr.f32.mxu0 0.0
    %691 = vmatmul.mubr.f32.gmra.mrb[0].mxu0 %v600
    %v692 = vpop.f32.mrb[0].mxu0
    %v693 = vadd.f32 0.0, %v692
    %v694 = vpop.f32.mrb[0].mxu0
    %695 = vdwg.mxu0
    %vm696 = vcmask 523264
    %v697 = vsel %vm696, %v693, -inf
    %698 = vmax.xlane.f32.xlu0 %v697
    %v699 = vpop.xlane.xlu0 %698
    %v700 = vsub.f32 %v693, %v699
    %v701 = vmul.f32 %v700, 1.442695
    %v702 = vpow.pop %v701
    %v703 = vsel %vm696, %v702, 0.0
    %704 = vadd.xlane.f32.xlu0 %v703
    %v705 = vpop.xlane.xlu0 %704
    %v706 = vrcp.pop %v705
    %v707 = vmul.f32 %v702, %v706
    %708 = vrot.lane.b32.xlu0 %v520, 96
    %v709 = vpop.permute.xlu0 %708
    %710 = vrot.lane.b32.xlu0 %v525, 96
    %v711 = vpop.permute.xlu0 %710
    %712 = vrot.lane.b32.xlu0 %v530, 96
    %v713 = vpop.permute.xlu0 %712
    %714 = vrot.lane.b32.xlu0 %v535, 96
    %v715 = vpop.permute.xlu0 %714
    %716 = vrot.lane.b32.xlu0 %v540, 96
    %v717 = vpop.permute.xlu0 %716
    %718 = vrot.lane.b32.xlu0 %v545, 96
    %v719 = vpop.permute.xlu0 %718
    %720 = vrot.lane.b32.xlu0 %v550, 96
    %v721 = vpop.permute.xlu0 %720
    %722 = vrot.lane.b32.xlu0 %v555, 96
    %v723 = vpop.permute.xlu0 %722
    %v733 = vsel %vm696, %v707, 0
    %735 = vmatprep.subr.mxu0 0.0
    %736 = vmatpush1.msra.mxu0 %v709
    %737 = vmatprep.subr.mxu0 0.0
    %738 = vmatpush1.msra.mxu0 %v711
    %739 = vmatprep.subr.mxu0 0.0
    %740 = vmatpush1.msra.mxu0 %v713
    %741 = vmatprep.subr.mxu0 0.0
    %742 = vmatpush1.msra.mxu0 %v715
    %743 = vmatprep.subr.mxu0 0.0
    %744 = vmatpush1.msra.mxu0 %v717
    %745 = vmatprep.subr.mxu0 0.0
    %746 = vmatpush1.msra.mxu0 %v719
    %747 = vmatprep.subr.mxu0 0.0
    %748 = vmatpush1.msra.mxu0 %v721
    %749 = vmatprep.subr.mxu0 0.0
    %750 = vmatpush1.msra.mxu0 %v723
    %751 = vmatprep.subr.mxu0 0.0
    %752 = vmatpush1.msra.mxu0 0.0
    %753 = vmatprep.subr.mxu0 0.0
    %754 = vmatpush1.msra.mxu0 0.0
    %755 = vmatprep.subr.mxu0 0.0
    %756 = vmatpush1.msra.mxu0 0.0
    %757 = vmatprep.subr.mxu0 0.0
    %758 = vmatpush1.msra.mxu0 0.0
    %759 = vmatprep.subr.mxu0 0.0
    %760 = vmatpush1.msra.mxu0 0.0
    %761 = vmatprep.subr.mxu0 0.0
    %762 = vmatpush1.msra.mxu0 0.0
    %763 = vmatprep.subr.mxu0 0.0
    %764 = vmatpush1.msra.mxu0 0.0
    %765 = vmatprep.subr.mxu0 0.0
    %766 = vmatpush1.msra.mxu0 0.0
    %767 = vmatprep.subr.mxu0 0.0
    %768 = vmatpush1.msra.mxu0 0.0
    %769 = vmatprep.subr.mxu0 0.0
    %770 = vmatpush1.msra.mxu0 0.0
    %771 = vmatprep.subr.mxu0 0.0
    %772 = vmatpush1.msra.mxu0 0.0
    %773 = vmatprep.subr.mxu0 0.0
    %774 = vmatpush1.msra.mxu0 0.0
    %775 = vmatprep.subr.mxu0 0.0
    %776 = vmatpush1.msra.mxu0 0.0
    %777 = vmatprep.subr.mxu0 0.0
    %778 = vmatpush1.msra.mxu0 0.0
    %779 = vmatprep.subr.mxu0 0.0
    %780 = vmatpush1.msra.mxu0 0.0
    %781 = vmatprep.subr.mxu0 0.0
    %782 = vmatpush1.msra.mxu0 0.0
    %783 = vmatprep.subr.mxu0 0.0
    %784 = vmatpush1.msra.mxu0 0.0
    %785 = vmatprep.subr.mxu0 0.0
    %786 = vmatpush1.msra.mxu0 0.0
    %787 = vmatprep.subr.mxu0 0.0
    %788 = vmatpush1.msra.mxu0 0.0
    %789 = vmatprep.subr.mxu0 0.0
    %790 = vmatpush1.msra.mxu0 0.0
    %791 = vmatprep.subr.mxu0 0.0
    %792 = vmatpush1.msra.mxu0 0.0
    %793 = vmatprep.subr.mxu0 0.0
    %794 = vmatpush1.msra.mxu0 0.0
    %795 = vmatprep.subr.mxu0 0.0
    %796 = vmatpush1.msra.mxu0 0.0
    %797 = vmatprep.subr.mxu0 0.0
    %798 = vmatpush1.msra.mxu0 0.0
    %799 = vmatprep.mubr.f32.mxu0 0.0
    %800 = vmatmul.mubr.f32.gmra.mrb[0].mxu0 %v733
    %v801 = vpop.f32.mrb[0].mxu0
    %v802 = vadd.f32 0.0, %v801
    %v803 = vpop.f32.mrb[0].mxu0
    %804 = vdwg.mxu0
    %805 = vrot.lane.b32.xlu0 %v395, 120
    %v806 = vpop.permute.xlu0 %805
    %807 = vrot.lane.b32.xlu0 %v520, 120
    %v808 = vpop.permute.xlu0 %807
    %809 = vrot.lane.b32.xlu0 %v525, 120
    %v810 = vpop.permute.xlu0 %809
    %811 = vrot.lane.b32.xlu0 %v530, 120
    %v812 = vpop.permute.xlu0 %811
    %813 = vrot.lane.b32.xlu0 %v535, 120
    %v814 = vpop.permute.xlu0 %813
    %815 = vrot.lane.b32.xlu0 %v540, 120
    %v816 = vpop.permute.xlu0 %815
    %817 = vrot.lane.b32.xlu0 %v545, 120
    %v818 = vpop.permute.xlu0 %817
    %819 = vrot.lane.b32.xlu0 %v550, 120
    %v820 = vpop.permute.xlu0 %819
    %821 = vrot.lane.b32.xlu0 %v555, 120
    %v822 = vpop.permute.xlu0 %821
    %v823 = vsel %vm598, %v806, 0
    %v825 = vsel %vm598, %v808, 0
    %v827 = vsel %vm598, %v810, 0
    %v829 = vsel %vm598, %v812, 0
    %v831 = vsel %vm598, %v814, 0
    %v833 = vsel %vm598, %v816, 0
    %v835 = vsel %vm598, %v818, 0
    %v837 = vsel %vm598, %v820, 0
    %v839 = vsel %vm598, %v822, 0
    %841 = vmatprep.subr.mxu0 0.0
    %842 = vmatpush1.xpose.msra.mxu0 %v825
    %843 = vmatprep.subr.mxu0 0.0
    %844 = vmatpush1.xpose.msra.mxu0 %v827
    %845 = vmatprep.subr.mxu0 0.0
    %846 = vmatpush1.xpose.msra.mxu0 %v829
    %847 = vmatprep.subr.mxu0 0.0
    %848 = vmatpush1.xpose.msra.mxu0 %v831
    %849 = vmatprep.subr.mxu0 0.0
    %850 = vmatpush1.xpose.msra.mxu0 %v833
    %851 = vmatprep.subr.mxu0 0.0
    %852 = vmatpush1.xpose.msra.mxu0 %v835
    %853 = vmatprep.subr.mxu0 0.0
    %854 = vmatpush1.xpose.msra.mxu0 %v837
    %855 = vmatprep.subr.mxu0 0.0
    %856 = vmatpush1.xpose.msra.mxu0 %v839
    %857 = vmatprep.subr.mxu0 0.0
    %858 = vmatpush1.xpose.msra.mxu0 0.0
    %859 = vmatprep.subr.mxu0 0.0
    %860 = vmatpush1.xpose.msra.mxu0 0.0
    %861 = vmatprep.subr.mxu0 0.0
    %862 = vmatpush1.xpose.msra.mxu0 0.0
    %863 = vmatprep.subr.mxu0 0.0
    %864 = vmatpush1.xpose.msra.mxu0 0.0
    %865 = vmatprep.subr.mxu0 0.0
    %866 = vmatpush1.xpose.msra.mxu0 0.0
    %867 = vmatprep.subr.mxu0 0.0
    %868 = vmatpush1.xpose.msra.mxu0 0.0
    %869 = vmatprep.subr.mxu0 0.0
    %870 = vmatpush1.xpose.msra.mxu0 0.0
    %871 = vmatprep.subr.mxu0 0.0
    %872 = vmatpush1.xpose.msra.mxu0 0.0
    %873 = vmatprep.subr.mxu0 0.0
    %874 = vmatpush1.xpose.msra.mxu0 0.0
    %875 = vmatprep.subr.mxu0 0.0
    %876 = vmatpush1.xpose.msra.mxu0 0.0
    %877 = vmatprep.subr.mxu0 0.0
    %878 = vmatpush1.xpose.msra.mxu0 0.0
    %879 = vmatprep.subr.mxu0 0.0
    %880 = vmatpush1.xpose.msra.mxu0 0.0
    %881 = vmatprep.subr.mxu0 0.0
    %882 = vmatpush1.xpose.msra.mxu0 0.0
    %883 = vmatprep.subr.mxu0 0.0
    %884 = vmatpush1.xpose.msra.mxu0 0.0
    %885 = vmatprep.subr.mxu0 0.0
    %886 = vmatpush1.xpose.msra.mxu0 0.0
    %887 = vmatprep.subr.mxu0 0.0
    %888 = vmatpush1.xpose.msra.mxu0 0.0
    %889 = vmatprep.subr.mxu0 0.0
    %890 = vmatpush1.xpose.msra.mxu0 0.0
    %891 = vmatprep.subr.mxu0 0.0
    %892 = vmatpush1.xpose.msra.mxu0 0.0
    %893 = vmatprep.subr.mxu0 0.0
    %894 = vmatpush1.xpose.msra.mxu0 0.0
    %895 = vmatprep.subr.mxu0 0.0
    %896 = vmatpush1.xpose.msra.mxu0 0.0
    %897 = vmatprep.subr.mxu0 0.0
    %898 = vmatpush1.xpose.msra.mxu0 0.0
    %899 = vmatprep.subr.mxu0 0.0
    %900 = vmatpush1.xpose.msra.mxu0 0.0
    %901 = vmatprep.subr.mxu0 0.0
    %902 = vmatpush1.xpose.msra.mxu0 0.0
    %903 = vmatprep.subr.mxu0 0.0
    %904 = vmatpush1.xpose.msra.mxu0 0.0
    %905 = vmatprep.mubr.f32.mxu0 0.0
    %906 = vmatmul.mubr.f32.gmra.mrb[0].mxu0 %v823
    %v907 = vpop.f32.mrb[0].mxu0
    %v908 = vadd.f32 0.0, %v907
    %v909 = vpop.f32.mrb[0].mxu0
    %910 = vdwg.mxu0
    %v911 = vsel %vm696, %v908, -inf
    %912 = vmax.xlane.f32.xlu0 %v911
    %v913 = vpop.xlane.xlu0 %912
    %v914 = vsub.f32 %v908, %v913
    %v915 = vmul.f32 %v914, 1.442695
    %v916 = vpow.pop %v915
    %v917 = vsel %vm696, %v916, 0.0
    %918 = vadd.xlane.f32.xlu0 %v917
    %v919 = vpop.xlane.xlu0 %918
    %v920 = vrcp.pop %v919
    %v921 = vmul.f32 %v916, %v920
    %922 = vrot.lane.b32.xlu0 %v520, 88
    %v923 = vpop.permute.xlu0 %922
    %924 = vrot.lane.b32.xlu0 %v525, 88
    %v925 = vpop.permute.xlu0 %924
    %926 = vrot.lane.b32.xlu0 %v530, 88
    %v927 = vpop.permute.xlu0 %926
    %928 = vrot.lane.b32.xlu0 %v535, 88
    %v929 = vpop.permute.xlu0 %928
    %930 = vrot.lane.b32.xlu0 %v540, 88
    %v931 = vpop.permute.xlu0 %930
    %932 = vrot.lane.b32.xlu0 %v545, 88
    %v933 = vpop.permute.xlu0 %932
    %934 = vrot.lane.b32.xlu0 %v550, 88
    %v935 = vpop.permute.xlu0 %934
    %936 = vrot.lane.b32.xlu0 %v555, 88
    %v937 = vpop.permute.xlu0 %936
    %v947 = vsel %vm696, %v921, 0
    %949 = vmatprep.subr.mxu0 0.0
    %950 = vmatpush1.msra.mxu0 %v923
    %951 = vmatprep.subr.mxu0 0.0
    %952 = vmatpush1.msra.mxu0 %v925
    %953 = vmatprep.subr.mxu0 0.0
    %954 = vmatpush1.msra.mxu0 %v927
    %955 = vmatprep.subr.mxu0 0.0
    %956 = vmatpush1.msra.mxu0 %v929
    %957 = vmatprep.subr.mxu0 0.0
    %958 = vmatpush1.msra.mxu0 %v931
    %959 = vmatprep.subr.mxu0 0.0
    %960 = vmatpush1.msra.mxu0 %v933
    %961 = vmatprep.subr.mxu0 0.0
    %962 = vmatpush1.msra.mxu0 %v935
    %963 = vmatprep.subr.mxu0 0.0
    %964 = vmatpush1.msra.mxu0 %v937
    %965 = vmatprep.subr.mxu0 0.0
    %966 = vmatpush1.msra.mxu0 0.0
    %967 = vmatprep.subr.mxu0 0.0
    %968 = vmatpush1.msra.mxu0 0.0
    %969 = vmatprep.subr.mxu0 0.0
    %970 = vmatpush1.msra.mxu0 0.0
    %971 = vmatprep.subr.mxu0 0.0
    %972 = vmatpush1.msra.mxu0 0.0
    %973 = vmatprep.subr.mxu0 0.0
    %974 = vmatpush1.msra.mxu0 0.0
    %975 = vmatprep.subr.mxu0 0.0
    %976 = vmatpush1.msra.mxu0 0.0
    %977 = vmatprep.subr.mxu0 0.0
    %978 = vmatpush1.msra.mxu0 0.0
    %979 = vmatprep.subr.mxu0 0.0
    %980 = vmatpush1.msra.mxu0 0.0
    %981 = vmatprep.subr.mxu0 0.0
    %982 = vmatpush1.msra.mxu0 0.0
    %983 = vmatprep.subr.mxu0 0.0
    %984 = vmatpush1.msra.mxu0 0.0
    %985 = vmatprep.subr.mxu0 0.0
    %986 = vmatpush1.msra.mxu0 0.0
    %987 = vmatprep.subr.mxu0 0.0
    %988 = vmatpush1.msra.mxu0 0.0
    %989 = vmatprep.subr.mxu0 0.0
    %990 = vmatpush1.msra.mxu0 0.0
    %991 = vmatprep.subr.mxu0 0.0
    %992 = vmatpush1.msra.mxu0 0.0
    %993 = vmatprep.subr.mxu0 0.0
    %994 = vmatpush1.msra.mxu0 0.0
    %995 = vmatprep.subr.mxu0 0.0
    %996 = vmatpush1.msra.mxu0 0.0
    %997 = vmatprep.subr.mxu0 0.0
    %998 = vmatpush1.msra.mxu0 0.0
    %999 = vmatprep.subr.mxu0 0.0
    %1000 = vmatpush1.msra.mxu0 0.0
    %1001 = vmatprep.subr.mxu0 0.0
    %1002 = vmatpush1.msra.mxu0 0.0
    %1003 = vmatprep.subr.mxu0 0.0
    %1004 = vmatpush1.msra.mxu0 0.0
    %1005 = vmatprep.subr.mxu0 0.0
    %1006 = vmatpush1.msra.mxu0 0.0
    %1007 = vmatprep.subr.mxu0 0.0
    %1008 = vmatpush1.msra.mxu0 0.0
    %1009 = vmatprep.subr.mxu0 0.0
    %1010 = vmatpush1.msra.mxu0 0.0
    %1011 = vmatprep.subr.mxu0 0.0
    %1012 = vmatpush1.msra.mxu0 0.0
    %1013 = vmatprep.mubr.f32.mxu0 0.0
    %1014 = vmatmul.mubr.f32.gmra.mrb[0].mxu0 %v947
    %v1015 = vpop.f32.mrb[0].mxu0
    %v1016 = vadd.f32 0.0, %v1015
    %v1017 = vpop.f32.mrb[0].mxu0
    %1018 = vdwg.mxu0
    %1019 = vrot.lane.b32.xlu0 %v395, 112
    %v1020 = vpop.permute.xlu0 %1019
    %1021 = vrot.lane.b32.xlu0 %v520, 112
    %v1022 = vpop.permute.xlu0 %1021
    %1023 = vrot.lane.b32.xlu0 %v525, 112
    %v1024 = vpop.permute.xlu0 %1023
    %1025 = vrot.lane.b32.xlu0 %v530, 112
    %v1026 = vpop.permute.xlu0 %1025
    %1027 = vrot.lane.b32.xlu0 %v535, 112
    %v1028 = vpop.permute.xlu0 %1027
    %1029 = vrot.lane.b32.xlu0 %v540, 112
    %v1030 = vpop.permute.xlu0 %1029
    %1031 = vrot.lane.b32.xlu0 %v545, 112
    %v1032 = vpop.permute.xlu0 %1031
    %1033 = vrot.lane.b32.xlu0 %v550, 112
    %v1034 = vpop.permute.xlu0 %1033
    %1035 = vrot.lane.b32.xlu0 %v555, 112
    %v1036 = vpop.permute.xlu0 %1035
    %v1037 = vsel %vm598, %v1020, 0
    %v1039 = vsel %vm598, %v1022, 0
    %v1041 = vsel %vm598, %v1024, 0
    %v1043 = vsel %vm598, %v1026, 0
    %v1045 = vsel %vm598, %v1028, 0
    %v1047 = vsel %vm598, %v1030, 0
    %v1049 = vsel %vm598, %v1032, 0
    %v1051 = vsel %vm598, %v1034, 0
    %v1053 = vsel %vm598, %v1036, 0
    %1055 = vmatprep.subr.mxu0 0.0
    %1056 = vmatpush1.xpose.msra.mxu0 %v1039
    %1057 = vmatprep.subr.mxu0 0.0
    %1058 = vmatpush1.xpose.msra.mxu0 %v1041
    %1059 = vmatprep.subr.mxu0 0.0
    %1060 = vmatpush1.xpose.msra.mxu0 %v1043
    %1061 = vmatprep.subr.mxu0 0.0
    %1062 = vmatpush1.xpose.msra.mxu0 %v1045
    %1063 = vmatprep.subr.mxu0 0.0
    %1064 = vmatpush1.xpose.msra.mxu0 %v1047
    %1065 = vmatprep.subr.mxu0 0.0
    %1066 = vmatpush1.xpose.msra.mxu0 %v1049
    %1067 = vmatprep.subr.mxu0 0.0
    %1068 = vmatpush1.xpose.msra.mxu0 %v1051
    %1069 = vmatprep.subr.mxu0 0.0
    %1070 = vmatpush1.xpose.msra.mxu0 %v1053
    %1071 = vmatprep.subr.mxu0 0.0
    %1072 = vmatpush1.xpose.msra.mxu0 0.0
    %1073 = vmatprep.subr.mxu0 0.0
    %1074 = vmatpush1.xpose.msra.mxu0 0.0
    %1075 = vmatprep.subr.mxu0 0.0
    %1076 = vmatpush1.xpose.msra.mxu0 0.0
    %1077 = vmatprep.subr.mxu0 0.0
    %1078 = vmatpush1.xpose.msra.mxu0 0.0
    %1079 = vmatprep.subr.mxu0 0.0
    %1080 = vmatpush1.xpose.msra.mxu0 0.0
    %1081 = vmatprep.subr.mxu0 0.0
    %1082 = vmatpush1.xpose.msra.mxu0 0.0
    %1083 = vmatprep.subr.mxu0 0.0
    %1084 = vmatpush1.xpose.msra.mxu0 0.0
    %1085 = vmatprep.subr.mxu0 0.0
    %1086 = vmatpush1.xpose.msra.mxu0 0.0
    %1087 = vmatprep.subr.mxu0 0.0
    %1088 = vmatpush1.xpose.msra.mxu0 0.0
    %1089 = vmatprep.subr.mxu0 0.0
    %1090 = vmatpush1.xpose.msra.mxu0 0.0
    %1091 = vmatprep.subr.mxu0 0.0
    %1092 = vmatpush1.xpose.msra.mxu0 0.0
    %1093 = vmatprep.subr.mxu0 0.0
    %1094 = vmatpush1.xpose.msra.mxu0 0.0
    %1095 = vmatprep.subr.mxu0 0.0
    %1096 = vmatpush1.xpose.msra.mxu0 0.0
    %1097 = vmatprep.subr.mxu0 0.0
    %1098 = vmatpush1.xpose.msra.mxu0 0.0
    %1099 = vmatprep.subr.mxu0 0.0
    %1100 = vmatpush1.xpose.msra.mxu0 0.0
    %1101 = vmatprep.subr.mxu0 0.0
    %1102 = vmatpush1.xpose.msra.mxu0 0.0
    %1103 = vmatprep.subr.mxu0 0.0
    %1104 = vmatpush1.xpose.msra.mxu0 0.0
    %1105 = vmatprep.subr.mxu0 0.0
    %1106 = vmatpush1.xpose.msra.mxu0 0.0
    %1107 = vmatprep.subr.mxu0 0.0
    %1108 = vmatpush1.xpose.msra.mxu0 0.0
    %1109 = vmatprep.subr.mxu0 0.0
    %1110 = vmatpush1.xpose.msra.mxu0 0.0
    %1111 = vmatprep.subr.mxu0 0.0
    %1112 = vmatpush1.xpose.msra.mxu0 0.0
    %1113 = vmatprep.subr.mxu0 0.0
    %1114 = vmatpush1.xpose.msra.mxu0 0.0
    %1115 = vmatprep.subr.mxu0 0.0
    %1116 = vmatpush1.xpose.msra.mxu0 0.0
    %1117 = vmatprep.subr.mxu0 0.0
    %1118 = vmatpush1.xpose.msra.mxu0 0.0
    %1119 = vmatprep.mubr.f32.mxu0 0.0
    %1120 = vmatmul.mubr.f32.gmra.mrb[0].mxu0 %v1037
    %v1121 = vpop.f32.mrb[0].mxu0
    %v1122 = vadd.f32 0.0, %v1121
    %v1123 = vpop.f32.mrb[0].mxu0
    %1124 = vdwg.mxu0
    %v1125 = vsel %vm696, %v1122, -inf
    %1126 = vmax.xlane.f32.xlu0 %v1125
    %v1127 = vpop.xlane.xlu0 %1126
    %v1128 = vsub.f32 %v1122, %v1127
    %v1129 = vmul.f32 %v1128, 1.442695
    %v1130 = vpow.pop %v1129
    %v1131 = vsel %vm696, %v1130, 0.0
    %1132 = vadd.xlane.f32.xlu0 %v1131
    %v1133 = vpop.xlane.xlu0 %1132
    %v1134 = vrcp.pop %v1133
    %v1135 = vmul.f32 %v1130, %v1134
    %1136 = vrot.lane.b32.xlu0 %v520, 80
    %v1137 = vpop.permute.xlu0 %1136
    %1138 = vrot.lane.b32.xlu0 %v525, 80
    %v1139 = vpop.permute.xlu0 %1138
    %1140 = vrot.lane.b32.xlu0 %v530, 80
    %v1141 = vpop.permute.xlu0 %1140
    %1142 = vrot.lane.b32.xlu0 %v535, 80
    %v1143 = vpop.permute.xlu0 %1142
    %1144 = vrot.lane.b32.xlu0 %v540, 80
    %v1145 = vpop.permute.xlu0 %1144
    %1146 = vrot.lane.b32.xlu0 %v545, 80
    %v1147 = vpop.permute.xlu0 %1146
    %1148 = vrot.lane.b32.xlu0 %v550, 80
    %v1149 = vpop.permute.xlu0 %1148
    %1150 = vrot.lane.b32.xlu0 %v555, 80
    %v1151 = vpop.permute.xlu0 %1150
    %v1161 = vsel %vm696, %v1135, 0
    %1163 = vmatprep.subr.mxu0 0.0
    %1164 = vmatpush1.msra.mxu0 %v1137
    %1165 = vmatprep.subr.mxu0 0.0
    %1166 = vmatpush1.msra.mxu0 %v1139
    %1167 = vmatprep.subr.mxu0 0.0
    %1168 = vmatpush1.msra.mxu0 %v1141
    %1169 = vmatprep.subr.mxu0 0.0
    %1170 = vmatpush1.msra.mxu0 %v1143
    %1171 = vmatprep.subr.mxu0 0.0
    %1172 = vmatpush1.msra.mxu0 %v1145
    %1173 = vmatprep.subr.mxu0 0.0
    %1174 = vmatpush1.msra.mxu0 %v1147
    %1175 = vmatprep.subr.mxu0 0.0
    %1176 = vmatpush1.msra.mxu0 %v1149
    %1177 = vmatprep.subr.mxu0 0.0
    %1178 = vmatpush1.msra.mxu0 %v1151
    %1179 = vmatprep.subr.mxu0 0.0
    %1180 = vmatpush1.msra.mxu0 0.0
    %1181 = vmatprep.subr.mxu0 0.0
    %1182 = vmatpush1.msra.mxu0 0.0
    %1183 = vmatprep.subr.mxu0 0.0
    %1184 = vmatpush1.msra.mxu0 0.0
    %1185 = vmatprep.subr.mxu0 0.0
    %1186 = vmatpush1.msra.mxu0 0.0
    %1187 = vmatprep.subr.mxu0 0.0
    %1188 = vmatpush1.msra.mxu0 0.0
    %1189 = vmatprep.subr.mxu0 0.0
    %1190 = vmatpush1.msra.mxu0 0.0
    %1191 = vmatprep.subr.mxu0 0.0
    %1192 = vmatpush1.msra.mxu0 0.0
    %1193 = vmatprep.subr.mxu0 0.0
    %1194 = vmatpush1.msra.mxu0 0.0
    %1195 = vmatprep.subr.mxu0 0.0
    %1196 = vmatpush1.msra.mxu0 0.0
    %1197 = vmatprep.subr.mxu0 0.0
    %1198 = vmatpush1.msra.mxu0 0.0
    %1199 = vmatprep.subr.mxu0 0.0
    %1200 = vmatpush1.msra.mxu0 0.0
    %1201 = vmatprep.subr.mxu0 0.0
    %1202 = vmatpush1.msra.mxu0 0.0
    %1203 = vmatprep.subr.mxu0 0.0
    %1204 = vmatpush1.msra.mxu0 0.0
    %1205 = vmatprep.subr.mxu0 0.0
    %1206 = vmatpush1.msra.mxu0 0.0
    %1207 = vmatprep.subr.mxu0 0.0
    %1208 = vmatpush1.msra.mxu0 0.0
    %1209 = vmatprep.subr.mxu0 0.0
    %1210 = vmatpush1.msra.mxu0 0.0
    %1211 = vmatprep.subr.mxu0 0.0
    %1212 = vmatpush1.msra.mxu0 0.0
    %1213 = vmatprep.subr.mxu0 0.0
    %1214 = vmatpush1.msra.mxu0 0.0
    %1215 = vmatprep.subr.mxu0 0.0
    %1216 = vmatpush1.msra.mxu0 0.0
    %1217 = vmatprep.subr.mxu0 0.0
    %1218 = vmatpush1.msra.mxu0 0.0
    %1219 = vmatprep.subr.mxu0 0.0
    %1220 = vmatpush1.msra.mxu0 0.0
    %1221 = vmatprep.subr.mxu0 0.0
    %1222 = vmatpush1.msra.mxu0 0.0
    %1223 = vmatprep.subr.mxu0 0.0
    %1224 = vmatpush1.msra.mxu0 0.0
    %1225 = vmatprep.subr.mxu0 0.0
    %1226 = vmatpush1.msra.mxu0 0.0
    %1227 = vmatprep.mubr.f32.mxu0 0.0
    %1228 = vmatmul.mubr.f32.gmra.mrb[0].mxu0 %v1161
    %v1229 = vpop.f32.mrb[0].mxu0
    %v1230 = vadd.f32 0.0, %v1229
    %v1231 = vpop.f32.mrb[0].mxu0
    %1232 = vdwg.mxu0
    %1233 = vrot.lane.b32.xlu0 %v395, 104
    %v1234 = vpop.permute.xlu0 %1233
    %1235 = vrot.lane.b32.xlu0 %v520, 104
    %v1236 = vpop.permute.xlu0 %1235
    %1237 = vrot.lane.b32.xlu0 %v525, 104
    %v1238 = vpop.permute.xlu0 %1237
    %1239 = vrot.lane.b32.xlu0 %v530, 104
    %v1240 = vpop.permute.xlu0 %1239
    %1241 = vrot.lane.b32.xlu0 %v535, 104
    %v1242 = vpop.permute.xlu0 %1241
    %1243 = vrot.lane.b32.xlu0 %v540, 104
    %v1244 = vpop.permute.xlu0 %1243
    %1245 = vrot.lane.b32.xlu0 %v545, 104
    %v1246 = vpop.permute.xlu0 %1245
    %1247 = vrot.lane.b32.xlu0 %v550, 104
    %v1248 = vpop.permute.xlu0 %1247
    %1249 = vrot.lane.b32.xlu0 %v555, 104
    %v1250 = vpop.permute.xlu0 %1249
    %v1251 = vsel %vm598, %v1234, 0
    %v1253 = vsel %vm598, %v1236, 0
    %v1255 = vsel %vm598, %v1238, 0
    %v1257 = vsel %vm598, %v1240, 0
    %v1259 = vsel %vm598, %v1242, 0
    %v1261 = vsel %vm598, %v1244, 0
    %v1263 = vsel %vm598, %v1246, 0
    %v1265 = vsel %vm598, %v1248, 0
    %v1267 = vsel %vm598, %v1250, 0
    %1269 = vmatprep.subr.mxu0 0.0
    %1270 = vmatpush1.xpose.msra.mxu0 %v1253
    %1271 = vmatprep.subr.mxu0 0.0
    %1272 = vmatpush1.xpose.msra.mxu0 %v1255
    %1273 = vmatprep.subr.mxu0 0.0
    %1274 = vmatpush1.xpose.msra.mxu0 %v1257
    %1275 = vmatprep.subr.mxu0 0.0
    %1276 = vmatpush1.xpose.msra.mxu0 %v1259
    %1277 = vmatprep.subr.mxu0 0.0
    %1278 = vmatpush1.xpose.msra.mxu0 %v1261
    %1279 = vmatprep.subr.mxu0 0.0
    %1280 = vmatpush1.xpose.msra.mxu0 %v1263
    %1281 = vmatprep.subr.mxu0 0.0
    %1282 = vmatpush1.xpose.msra.mxu0 %v1265
    %1283 = vmatprep.subr.mxu0 0.0
    %1284 = vmatpush1.xpose.msra.mxu0 %v1267
    %1285 = vmatprep.subr.mxu0 0.0
    %1286 = vmatpush1.xpose.msra.mxu0 0.0
    %1287 = vmatprep.subr.mxu0 0.0
    %1288 = vmatpush1.xpose.msra.mxu0 0.0
    %1289 = vmatprep.subr.mxu0 0.0
    %1290 = vmatpush1.xpose.msra.mxu0 0.0
    %1291 = vmatprep.subr.mxu0 0.0
    %1292 = vmatpush1.xpose.msra.mxu0 0.0
    %1293 = vmatprep.subr.mxu0 0.0
    %1294 = vmatpush1.xpose.msra.mxu0 0.0
    %1295 = vmatprep.subr.mxu0 0.0
    %1296 = vmatpush1.xpose.msra.mxu0 0.0
    %1297 = vmatprep.subr.mxu0 0.0
    %1298 = vmatpush1.xpose.msra.mxu0 0.0
    %1299 = vmatprep.subr.mxu0 0.0
    %1300 = vmatpush1.xpose.msra.mxu0 0.0
    %1301 = vmatprep.subr.mxu0 0.0
    %1302 = vmatpush1.xpose.msra.mxu0 0.0
    %1303 = vmatprep.subr.mxu0 0.0
    %1304 = vmatpush1.xpose.msra.mxu0 0.0
    %1305 = vmatprep.subr.mxu0 0.0
    %1306 = vmatpush1.xpose.msra.mxu0 0.0
    %1307 = vmatprep.subr.mxu0 0.0
    %1308 = vmatpush1.xpose.msra.mxu0 0.0
    %1309 = vmatprep.subr.mxu0 0.0
    %1310 = vmatpush1.xpose.msra.mxu0 0.0
    %1311 = vmatprep.subr.mxu0 0.0
    %1312 = vmatpush1.xpose.msra.mxu0 0.0
    %1313 = vmatprep.subr.mxu0 0.0
    %1314 = vmatpush1.xpose.msra.mxu0 0.0
    %1315 = vmatprep.subr.mxu0 0.0
    %1316 = vmatpush1.xpose.msra.mxu0 0.0
    %1317 = vmatprep.subr.mxu0 0.0
    %1318 = vmatpush1.xpose.msra.mxu0 0.0
    %1319 = vmatprep.subr.mxu0 0.0
    %1320 = vmatpush1.xpose.msra.mxu0 0.0
    %1321 = vmatprep.subr.mxu0 0.0
    %1322 = vmatpush1.xpose.msra.mxu0 0.0
    %1323 = vmatprep.subr.mxu0 0.0
    %1324 = vmatpush1.xpose.msra.mxu0 0.0
    %1325 = vmatprep.subr.mxu0 0.0
    %1326 = vmatpush1.xpose.msra.mxu0 0.0
    %1327 = vmatprep.subr.mxu0 0.0
    %1328 = vmatpush1.xpose.msra.mxu0 0.0
    %1329 = vmatprep.subr.mxu0 0.0
    %1330 = vmatpush1.xpose.msra.mxu0 0.0
    %1331 = vmatprep.subr.mxu0 0.0
    %1332 = vmatpush1.xpose.msra.mxu0 0.0
    %1333 = vmatprep.mubr.f32.mxu0 0.0
    %1334 = vmatmul.mubr.f32.gmra.mrb[0].mxu0 %v1251
    %v1335 = vpop.f32.mrb[0].mxu0
    %v1336 = vadd.f32 0.0, %v1335
    %v1337 = vpop.f32.mrb[0].mxu0
    %1338 = vdwg.mxu0
    %v1339 = vsel %vm696, %v1336, -inf
    %1340 = vmax.xlane.f32.xlu0 %v1339
    %v1341 = vpop.xlane.xlu0 %1340
    %v1342 = vsub.f32 %v1336, %v1341
    %v1343 = vmul.f32 %v1342, 1.442695
    %v1344 = vpow.pop %v1343
    %v1345 = vsel %vm696, %v1344, 0.0
    %1346 = vadd.xlane.f32.xlu0 %v1345
    %v1347 = vpop.xlane.xlu0 %1346
    %v1348 = vrcp.pop %v1347
    %v1349 = vmul.f32 %v1344, %v1348
    %1350 = vrot.lane.b32.xlu0 %v520, 72
    %v1351 = vpop.permute.xlu0 %1350
    %1352 = vrot.lane.b32.xlu0 %v525, 72
    %v1353 = vpop.permute.xlu0 %1352
    %1354 = vrot.lane.b32.xlu0 %v530, 72
    %v1355 = vpop.permute.xlu0 %1354
    %1356 = vrot.lane.b32.xlu0 %v535, 72
    %v1357 = vpop.permute.xlu0 %1356
    %1358 = vrot.lane.b32.xlu0 %v540, 72
    %v1359 = vpop.permute.xlu0 %1358
    %1360 = vrot.lane.b32.xlu0 %v545, 72
    %v1361 = vpop.permute.xlu0 %1360
    %1362 = vrot.lane.b32.xlu0 %v550, 72
    %v1363 = vpop.permute.xlu0 %1362
    %1364 = vrot.lane.b32.xlu0 %v555, 72
    %v1365 = vpop.permute.xlu0 %1364
    %v1375 = vsel %vm696, %v1349, 0
    %1377 = vmatprep.subr.mxu0 0.0
    %1378 = vmatpush1.msra.mxu0 %v1351
    %1379 = vmatprep.subr.mxu0 0.0
    %1380 = vmatpush1.msra.mxu0 %v1353
    %1381 = vmatprep.subr.mxu0 0.0
    %1382 = vmatpush1.msra.mxu0 %v1355
    %1383 = vmatprep.subr.mxu0 0.0
    %1384 = vmatpush1.msra.mxu0 %v1357
    %1385 = vmatprep.subr.mxu0 0.0
    %1386 = vmatpush1.msra.mxu0 %v1359
    %1387 = vmatprep.subr.mxu0 0.0
    %1388 = vmatpush1.msra.mxu0 %v1361
    %1389 = vmatprep.subr.mxu0 0.0
    %1390 = vmatpush1.msra.mxu0 %v1363
    %1391 = vmatprep.subr.mxu0 0.0
    %1392 = vmatpush1.msra.mxu0 %v1365
    %1393 = vmatprep.subr.mxu0 0.0
    %1394 = vmatpush1.msra.mxu0 0.0
    %1395 = vmatprep.subr.mxu0 0.0
    %1396 = vmatpush1.msra.mxu0 0.0
    %1397 = vmatprep.subr.mxu0 0.0
    %1398 = vmatpush1.msra.mxu0 0.0
    %1399 = vmatprep.subr.mxu0 0.0
    %1400 = vmatpush1.msra.mxu0 0.0
    %1401 = vmatprep.subr.mxu0 0.0
    %1402 = vmatpush1.msra.mxu0 0.0
    %1403 = vmatprep.subr.mxu0 0.0
    %1404 = vmatpush1.msra.mxu0 0.0
    %1405 = vmatprep.subr.mxu0 0.0
    %1406 = vmatpush1.msra.mxu0 0.0
    %1407 = vmatprep.subr.mxu0 0.0
    %1408 = vmatpush1.msra.mxu0 0.0
    %1409 = vmatprep.subr.mxu0 0.0
    %1410 = vmatpush1.msra.mxu0 0.0
    %1411 = vmatprep.subr.mxu0 0.0
    %1412 = vmatpush1.msra.mxu0 0.0
    %1413 = vmatprep.subr.mxu0 0.0
    %1414 = vmatpush1.msra.mxu0 0.0
    %1415 = vmatprep.subr.mxu0 0.0
    %1416 = vmatpush1.msra.mxu0 0.0
    %1417 = vmatprep.subr.mxu0 0.0
    %1418 = vmatpush1.msra.mxu0 0.0
    %1419 = vmatprep.subr.mxu0 0.0
    %1420 = vmatpush1.msra.mxu0 0.0
    %1421 = vmatprep.subr.mxu0 0.0
    %1422 = vmatpush1.msra.mxu0 0.0
    %1423 = vmatprep.subr.mxu0 0.0
    %1424 = vmatpush1.msra.mxu0 0.0
    %1425 = vmatprep.subr.mxu0 0.0
    %1426 = vmatpush1.msra.mxu0 0.0
    %1427 = vmatprep.subr.mxu0 0.0
    %1428 = vmatpush1.msra.mxu0 0.0
    %1429 = vmatprep.subr.mxu0 0.0
    %1430 = vmatpush1.msra.mxu0 0.0
    %1431 = vmatprep.subr.mxu0 0.0
    %1432 = vmatpush1.msra.mxu0 0.0
    %1433 = vmatprep.subr.mxu0 0.0
    %1434 = vmatpush1.msra.mxu0 0.0
    %1435 = vmatprep.subr.mxu0 0.0
    %1436 = vmatpush1.msra.mxu0 0.0
    %1437 = vmatprep.subr.mxu0 0.0
    %1438 = vmatpush1.msra.mxu0 0.0
    %1439 = vmatprep.subr.mxu0 0.0
    %1440 = vmatpush1.msra.mxu0 0.0
    %1441 = vmatprep.mubr.f32.mxu0 0.0
    %1442 = vmatmul.mubr.f32.gmra.mrb[0].mxu0 %v1375
    %v1443 = vpop.f32.mrb[0].mxu0
    %v1444 = vadd.f32 0.0, %v1443
    %v1445 = vpop.f32.mrb[0].mxu0
    %1446 = vdwg.mxu0
    %1447 = vrot.lane.b32.xlu0 %v921, 64
    %v1448 = vpop.permute.xlu0 %1447
    %1450 = vrot.lane.b32.xlu0 %v1349, 64
    %v1451 = vpop.permute.xlu0 %1450
    %v1453 = vsel %vm696, %v707, %v1448
    %v1454 = vsel %vm696, %v1135, %v1451
    %1455 = vst [vmem:[%s15] sm:$0xff] %v1453
    %1456 = vst [vmem:[%s15 + $0x8] sm:$0xff] %v1454
    %1458 = vrot.lane.b32.xlu0 %v1016, 8
    %v1459 = vpop.permute.xlu0 %1458
    %1462 = vrot.lane.b32.xlu0 %v1230, 16
    %v1463 = vpop.permute.xlu0 %1462
    %1466 = vrot.lane.b32.xlu0 %v1444, 24
    %v1467 = vpop.permute.xlu0 %1466
    %v1469 = vsel %vm598, %v802, %v1459
    %vm1470 = vcmask 130048
    %v1471 = vsel %vm1470, %v1469, %v1463
    %vm1472 = vcmask 195584
    %v1473 = vsel %vm1472, %v1471, %v1467
    %v1475 = vsel %vm598, %v396, 0
    %v1478 = vsel %vm598, %v560, 0
    %v1481 = vsel %vm598, %v565, 0
    %v1484 = vsel %vm598, %v570, 0
    %v1487 = vsel %vm598, %v575, 0
    %v1490 = vsel %vm598, %v580, 0
    %v1493 = vsel %vm598, %v585, 0
    %v1496 = vsel %vm598, %v590, 0
    %v1499 = vsel %vm598, %v595, 0
    %1501 = vmatprep.subr.mxu0 0.0
    %1502 = vmatpush1.xpose.msra.mxu0 %v1478
    %1503 = vmatprep.subr.mxu0 0.0
    %1504 = vmatpush1.xpose.msra.mxu0 %v1481
    %1505 = vmatprep.subr.mxu0 0.0
    %1506 = vmatpush1.xpose.msra.mxu0 %v1484
    %1507 = vmatprep.subr.mxu0 0.0
    %1508 = vmatpush1.xpose.msra.mxu0 %v1487
    %1509 = vmatprep.subr.mxu0 0.0
    %1510 = vmatpush1.xpose.msra.mxu0 %v1490
    %1511 = vmatprep.subr.mxu0 0.0
    %1512 = vmatpush1.xpose.msra.mxu0 %v1493
    %1513 = vmatprep.subr.mxu0 0.0
    %1514 = vmatpush1.xpose.msra.mxu0 %v1496
    %1515 = vmatprep.subr.mxu0 0.0
    %1516 = vmatpush1.xpose.msra.mxu0 %v1499
    %1517 = vmatprep.subr.mxu0 0.0
    %1518 = vmatpush1.xpose.msra.mxu0 0.0
    %1519 = vmatprep.subr.mxu0 0.0
    %1520 = vmatpush1.xpose.msra.mxu0 0.0
    %1521 = vmatprep.subr.mxu0 0.0
    %1522 = vmatpush1.xpose.msra.mxu0 0.0
    %1523 = vmatprep.subr.mxu0 0.0
    %1524 = vmatpush1.xpose.msra.mxu0 0.0
    %1525 = vmatprep.subr.mxu0 0.0
    %1526 = vmatpush1.xpose.msra.mxu0 0.0
    %1527 = vmatprep.subr.mxu0 0.0
    %1528 = vmatpush1.xpose.msra.mxu0 0.0
    %1529 = vmatprep.subr.mxu0 0.0
    %1530 = vmatpush1.xpose.msra.mxu0 0.0
    %1531 = vmatprep.subr.mxu0 0.0
    %1532 = vmatpush1.xpose.msra.mxu0 0.0
    %1533 = vmatprep.subr.mxu0 0.0
    %1534 = vmatpush1.xpose.msra.mxu0 0.0
    %1535 = vmatprep.subr.mxu0 0.0
    %1536 = vmatpush1.xpose.msra.mxu0 0.0
    %1537 = vmatprep.subr.mxu0 0.0
    %1538 = vmatpush1.xpose.msra.mxu0 0.0
    %1539 = vmatprep.subr.mxu0 0.0
    %1540 = vmatpush1.xpose.msra.mxu0 0.0
    %1541 = vmatprep.subr.mxu0 0.0
    %1542 = vmatpush1.xpose.msra.mxu0 0.0
    %1543 = vmatprep.subr.mxu0 0.0
    %1544 = vmatpush1.xpose.msra.mxu0 0.0
    %1545 = vmatprep.subr.mxu0 0.0
    %1546 = vmatpush1.xpose.msra.mxu0 0.0
    %1547 = vmatprep.subr.mxu0 0.0
    %1548 = vmatpush1.xpose.msra.mxu0 0.0
    %1549 = vmatprep.subr.mxu0 0.0
    %1550 = vmatpush1.xpose.msra.mxu0 0.0
    %1551 = vmatprep.subr.mxu0 0.0
    %1552 = vmatpush1.xpose.msra.mxu0 0.0
    %1553 = vmatprep.subr.mxu0 0.0
    %1554 = vmatpush1.xpose.msra.mxu0 0.0
    %1555 = vmatprep.subr.mxu0 0.0
    %1556 = vmatpush1.xpose.msra.mxu0 0.0
    %1557 = vmatprep.subr.mxu0 0.0
    %1558 = vmatpush1.xpose.msra.mxu0 0.0
    %1559 = vmatprep.subr.mxu0 0.0
    %1560 = vmatpush1.xpose.msra.mxu0 0.0
    %1561 = vmatprep.subr.mxu0 0.0
    %1562 = vmatpush1.xpose.msra.mxu0 0.0
    %1563 = vmatprep.subr.mxu0 0.0
    %1564 = vmatpush1.xpose.msra.mxu0 0.0
    %1565 = vmatprep.mubr.f32.mxu0 0.0
    %1566 = vmatmul.mubr.f32.gmra.mrb[0].mxu0 %v1475
    %v1567 = vpop.f32.mrb[0].mxu0
    %v1568 = vadd.f32 0.0, %v1567
    %v1569 = vpop.f32.mrb[0].mxu0
    %1570 = vdwg.mxu0
    %v1571 = vsel %vm696, %v1568, -inf
    %1572 = vmax.xlane.f32.xlu0 %v1571
    %v1573 = vpop.xlane.xlu0 %1572
    %v1574 = vsub.f32 %v1568, %v1573
    %v1575 = vmul.f32 %v1574, 1.442695
    %v1576 = vpow.pop %v1575
    %v1577 = vsel %vm696, %v1576, 0.0
    %1578 = vadd.xlane.f32.xlu0 %v1577
    %v1579 = vpop.xlane.xlu0 %1578
    %v1580 = vrcp.pop %v1579
    %v1581 = vmul.f32 %v1576, %v1580
    %1582 = vrot.lane.b32.xlu0 %v560, 96
    %v1583 = vpop.permute.xlu0 %1582
    %1584 = vrot.lane.b32.xlu0 %v565, 96
    %v1585 = vpop.permute.xlu0 %1584
    %1586 = vrot.lane.b32.xlu0 %v570, 96
    %v1587 = vpop.permute.xlu0 %1586
    %1588 = vrot.lane.b32.xlu0 %v575, 96
    %v1589 = vpop.permute.xlu0 %1588
    %1590 = vrot.lane.b32.xlu0 %v580, 96
    %v1591 = vpop.permute.xlu0 %1590
    %1592 = vrot.lane.b32.xlu0 %v585, 96
    %v1593 = vpop.permute.xlu0 %1592
    %1594 = vrot.lane.b32.xlu0 %v590, 96
    %v1595 = vpop.permute.xlu0 %1594
    %1596 = vrot.lane.b32.xlu0 %v595, 96
    %v1597 = vpop.permute.xlu0 %1596
    %v1607 = vsel %vm696, %v1581, 0
    %1609 = vmatprep.subr.mxu0 0.0
    %1610 = vmatpush1.msra.mxu0 %v1583
    %1611 = vmatprep.subr.mxu0 0.0
    %1612 = vmatpush1.msra.mxu0 %v1585
    %1613 = vmatprep.subr.mxu0 0.0
    %1614 = vmatpush1.msra.mxu0 %v1587
    %1615 = vmatprep.subr.mxu0 0.0
    %1616 = vmatpush1.msra.mxu0 %v1589
    %1617 = vmatprep.subr.mxu0 0.0
    %1618 = vmatpush1.msra.mxu0 %v1591
    %1619 = vmatprep.subr.mxu0 0.0
    %1620 = vmatpush1.msra.mxu0 %v1593
    %1621 = vmatprep.subr.mxu0 0.0
    %1622 = vmatpush1.msra.mxu0 %v1595
    %1623 = vmatprep.subr.mxu0 0.0
    %1624 = vmatpush1.msra.mxu0 %v1597
    %1625 = vmatprep.subr.mxu0 0.0
    %1626 = vmatpush1.msra.mxu0 0.0
    %1627 = vmatprep.subr.mxu0 0.0
    %1628 = vmatpush1.msra.mxu0 0.0
    %1629 = vmatprep.subr.mxu0 0.0
    %1630 = vmatpush1.msra.mxu0 0.0
    %1631 = vmatprep.subr.mxu0 0.0
    %1632 = vmatpush1.msra.mxu0 0.0
    %1633 = vmatprep.subr.mxu0 0.0
    %1634 = vmatpush1.msra.mxu0 0.0
    %1635 = vmatprep.subr.mxu0 0.0
    %1636 = vmatpush1.msra.mxu0 0.0
    %1637 = vmatprep.subr.mxu0 0.0
    %1638 = vmatpush1.msra.mxu0 0.0
    %1639 = vmatprep.subr.mxu0 0.0
    %1640 = vmatpush1.msra.mxu0 0.0
    %1641 = vmatprep.subr.mxu0 0.0
    %1642 = vmatpush1.msra.mxu0 0.0
    %1643 = vmatprep.subr.mxu0 0.0
    %1644 = vmatpush1.msra.mxu0 0.0
    %1645 = vmatprep.subr.mxu0 0.0
    %1646 = vmatpush1.msra.mxu0 0.0
    %1647 = vmatprep.subr.mxu0 0.0
    %1648 = vmatpush1.msra.mxu0 0.0
    %1649 = vmatprep.subr.mxu0 0.0
    %1650 = vmatpush1.msra.mxu0 0.0
    %1651 = vmatprep.subr.mxu0 0.0
    %1652 = vmatpush1.msra.mxu0 0.0
    %1653 = vmatprep.subr.mxu0 0.0
    %1654 = vmatpush1.msra.mxu0 0.0
    %1655 = vmatprep.subr.mxu0 0.0
    %1656 = vmatpush1.msra.mxu0 0.0
    %1657 = vmatprep.subr.mxu0 0.0
    %1658 = vmatpush1.msra.mxu0 0.0
    %1659 = vmatprep.subr.mxu0 0.0
    %1660 = vmatpush1.msra.mxu0 0.0
    %1661 = vmatprep.subr.mxu0 0.0
    %1662 = vmatpush1.msra.mxu0 0.0
    %1663 = vmatprep.subr.mxu0 0.0
    %1664 = vmatpush1.msra.mxu0 0.0
    %1665 = vmatprep.subr.mxu0 0.0
    %1666 = vmatpush1.msra.mxu0 0.0
    %1667 = vmatprep.subr.mxu0 0.0
    %1668 = vmatpush1.msra.mxu0 0.0
    %1669 = vmatprep.subr.mxu0 0.0
    %1670 = vmatpush1.msra.mxu0 0.0
    %1671 = vmatprep.subr.mxu0 0.0
    %1672 = vmatpush1.msra.mxu0 0.0
    %1673 = vmatprep.mubr.f32.mxu0 0.0
    %1674 = vmatmul.mubr.f32.gmra.mrb[0].mxu0 %v1607
    %v1675 = vpop.f32.mrb[0].mxu0
    %v1676 = vadd.f32 0.0, %v1675
    %v1677 = vpop.f32.mrb[0].mxu0
    %1678 = vdwg.mxu0
    %1679 = vrot.lane.b32.xlu0 %v396, 120
    %v1680 = vpop.permute.xlu0 %1679
    %1681 = vrot.lane.b32.xlu0 %v560, 120
    %v1682 = vpop.permute.xlu0 %1681
    %1683 = vrot.lane.b32.xlu0 %v565, 120
    %v1684 = vpop.permute.xlu0 %1683
    %1685 = vrot.lane.b32.xlu0 %v570, 120
    %v1686 = vpop.permute.xlu0 %1685
    %1687 = vrot.lane.b32.xlu0 %v575, 120
    %v1688 = vpop.permute.xlu0 %1687
    %1689 = vrot.lane.b32.xlu0 %v580, 120
    %v1690 = vpop.permute.xlu0 %1689
    %1691 = vrot.lane.b32.xlu0 %v585, 120
    %v1692 = vpop.permute.xlu0 %1691
    %1693 = vrot.lane.b32.xlu0 %v590, 120
    %v1694 = vpop.permute.xlu0 %1693
    %1695 = vrot.lane.b32.xlu0 %v595, 120
    %v1696 = vpop.permute.xlu0 %1695
    %v1697 = vsel %vm598, %v1680, 0
    %v1699 = vsel %vm598, %v1682, 0
    %v1701 = vsel %vm598, %v1684, 0
    %v1703 = vsel %vm598, %v1686, 0
    %v1705 = vsel %vm598, %v1688, 0
    %v1707 = vsel %vm598, %v1690, 0
    %v1709 = vsel %vm598, %v1692, 0
    %v1711 = vsel %vm598, %v1694, 0
    %v1713 = vsel %vm598, %v1696, 0
    %1715 = vmatprep.subr.mxu0 0.0
    %1716 = vmatpush1.xpose.msra.mxu0 %v1699
    %1717 = vmatprep.subr.mxu0 0.0
    %1718 = vmatpush1.xpose.msra.mxu0 %v1701
    %1719 = vmatprep.subr.mxu0 0.0
    %1720 = vmatpush1.xpose.msra.mxu0 %v1703
    %1721 = vmatprep.subr.mxu0 0.0
    %1722 = vmatpush1.xpose.msra.mxu0 %v1705
    %1723 = vmatprep.subr.mxu0 0.0
    %1724 = vmatpush1.xpose.msra.mxu0 %v1707
    %1725 = vmatprep.subr.mxu0 0.0
    %1726 = vmatpush1.xpose.msra.mxu0 %v1709
    %1727 = vmatprep.subr.mxu0 0.0
    %1728 = vmatpush1.xpose.msra.mxu0 %v1711
    %1729 = vmatprep.subr.mxu0 0.0
    %1730 = vmatpush1.xpose.msra.mxu0 %v1713
    %1731 = vmatprep.subr.mxu0 0.0
    %1732 = vmatpush1.xpose.msra.mxu0 0.0
    %1733 = vmatprep.subr.mxu0 0.0
    %1734 = vmatpush1.xpose.msra.mxu0 0.0
    %1735 = vmatprep.subr.mxu0 0.0
    %1736 = vmatpush1.xpose.msra.mxu0 0.0
    %1737 = vmatprep.subr.mxu0 0.0
    %1738 = vmatpush1.xpose.msra.mxu0 0.0
    %1739 = vmatprep.subr.mxu0 0.0
    %1740 = vmatpush1.xpose.msra.mxu0 0.0
    %1741 = vmatprep.subr.mxu0 0.0
    %1742 = vmatpush1.xpose.msra.mxu0 0.0
    %1743 = vmatprep.subr.mxu0 0.0
    %1744 = vmatpush1.xpose.msra.mxu0 0.0
    %1745 = vmatprep.subr.mxu0 0.0
    %1746 = vmatpush1.xpose.msra.mxu0 0.0
    %1747 = vmatprep.subr.mxu0 0.0
    %1748 = vmatpush1.xpose.msra.mxu0 0.0
    %1749 = vmatprep.subr.mxu0 0.0
    %1750 = vmatpush1.xpose.msra.mxu0 0.0
    %1751 = vmatprep.subr.mxu0 0.0
    %1752 = vmatpush1.xpose.msra.mxu0 0.0
    %1753 = vmatprep.subr.mxu0 0.0
    %1754 = vmatpush1.xpose.msra.mxu0 0.0
    %1755 = vmatprep.subr.mxu0 0.0
    %1756 = vmatpush1.xpose.msra.mxu0 0.0
    %1757 = vmatprep.subr.mxu0 0.0
    %1758 = vmatpush1.xpose.msra.mxu0 0.0
    %1759 = vmatprep.subr.mxu0 0.0
    %1760 = vmatpush1.xpose.msra.mxu0 0.0
    %1761 = vmatprep.subr.mxu0 0.0
    %1762 = vmatpush1.xpose.msra.mxu0 0.0
    %1763 = vmatprep.subr.mxu0 0.0
    %1764 = vmatpush1.xpose.msra.mxu0 0.0
    %1765 = vmatprep.subr.mxu0 0.0
    %1766 = vmatpush1.xpose.msra.mxu0 0.0
    %1767 = vmatprep.subr.mxu0 0.0
    %1768 = vmatpush1.xpose.msra.mxu0 0.0
    %1769 = vmatprep.subr.mxu0 0.0
    %1770 = vmatpush1.xpose.msra.mxu0 0.0
    %1771 = vmatprep.subr.mxu0 0.0
    %1772 = vmatpush1.xpose.msra.mxu0 0.0
    %1773 = vmatprep.subr.mxu0 0.0
    %1774 = vmatpush1.xpose.msra.mxu0 0.0
    %1775 = vmatprep.subr.mxu0 0.0
    %1776 = vmatpush1.xpose.msra.mxu0 0.0
    %1777 = vmatprep.subr.mxu0 0.0
    %1778 = vmatpush1.xpose.msra.mxu0 0.0
    %1779 = vmatprep.mubr.f32.mxu0 0.0
    %1780 = vmatmul.mubr.f32.gmra.mrb[0].mxu0 %v1697
    %v1781 = vpop.f32.mrb[0].mxu0
    %v1782 = vadd.f32 0.0, %v1781
    %v1783 = vpop.f32.mrb[0].mxu0
    %1784 = vdwg.mxu0
    %v1785 = vsel %vm696, %v1782, -inf
    %1786 = vmax.xlane.f32.xlu0 %v1785
    %v1787 = vpop.xlane.xlu0 %1786
    %v1788 = vsub.f32 %v1782, %v1787
    %v1789 = vmul.f32 %v1788, 1.442695
    %v1790 = vpow.pop %v1789
    %v1791 = vsel %vm696, %v1790, 0.0
    %1792 = vadd.xlane.f32.xlu0 %v1791
    %v1793 = vpop.xlane.xlu0 %1792
    %v1794 = vrcp.pop %v1793
    %v1795 = vmul.f32 %v1790, %v1794
    %1796 = vrot.lane.b32.xlu0 %v560, 88
    %v1797 = vpop.permute.xlu0 %1796
    %1798 = vrot.lane.b32.xlu0 %v565, 88
    %v1799 = vpop.permute.xlu0 %1798
    %1800 = vrot.lane.b32.xlu0 %v570, 88
    %v1801 = vpop.permute.xlu0 %1800
    %1802 = vrot.lane.b32.xlu0 %v575, 88
    %v1803 = vpop.permute.xlu0 %1802
    %1804 = vrot.lane.b32.xlu0 %v580, 88
    %v1805 = vpop.permute.xlu0 %1804
    %1806 = vrot.lane.b32.xlu0 %v585, 88
    %v1807 = vpop.permute.xlu0 %1806
    %1808 = vrot.lane.b32.xlu0 %v590, 88
    %v1809 = vpop.permute.xlu0 %1808
    %1810 = vrot.lane.b32.xlu0 %v595, 88
    %v1811 = vpop.permute.xlu0 %1810
    %v1821 = vsel %vm696, %v1795, 0
    %1823 = vmatprep.subr.mxu0 0.0
    %1824 = vmatpush1.msra.mxu0 %v1797
    %1825 = vmatprep.subr.mxu0 0.0
    %1826 = vmatpush1.msra.mxu0 %v1799
    %1827 = vmatprep.subr.mxu0 0.0
    %1828 = vmatpush1.msra.mxu0 %v1801
    %1829 = vmatprep.subr.mxu0 0.0
    %1830 = vmatpush1.msra.mxu0 %v1803
    %1831 = vmatprep.subr.mxu0 0.0
    %1832 = vmatpush1.msra.mxu0 %v1805
    %1833 = vmatprep.subr.mxu0 0.0
    %1834 = vmatpush1.msra.mxu0 %v1807
    %1835 = vmatprep.subr.mxu0 0.0
    %1836 = vmatpush1.msra.mxu0 %v1809
    %1837 = vmatprep.subr.mxu0 0.0
    %1838 = vmatpush1.msra.mxu0 %v1811
    %1839 = vmatprep.subr.mxu0 0.0
    %1840 = vmatpush1.msra.mxu0 0.0
    %1841 = vmatprep.subr.mxu0 0.0
    %1842 = vmatpush1.msra.mxu0 0.0
    %1843 = vmatprep.subr.mxu0 0.0
    %1844 = vmatpush1.msra.mxu0 0.0
    %1845 = vmatprep.subr.mxu0 0.0
    %1846 = vmatpush1.msra.mxu0 0.0
    %1847 = vmatprep.subr.mxu0 0.0
    %1848 = vmatpush1.msra.mxu0 0.0
    %1849 = vmatprep.subr.mxu0 0.0
    %1850 = vmatpush1.msra.mxu0 0.0
    %1851 = vmatprep.subr.mxu0 0.0
    %1852 = vmatpush1.msra.mxu0 0.0
    %1853 = vmatprep.subr.mxu0 0.0
    %1854 = vmatpush1.msra.mxu0 0.0
    %1855 = vmatprep.subr.mxu0 0.0
    %1856 = vmatpush1.msra.mxu0 0.0
    %1857 = vmatprep.subr.mxu0 0.0
    %1858 = vmatpush1.msra.mxu0 0.0
    %1859 = vmatprep.subr.mxu0 0.0
    %1860 = vmatpush1.msra.mxu0 0.0
    %1861 = vmatprep.subr.mxu0 0.0
    %1862 = vmatpush1.msra.mxu0 0.0
    %1863 = vmatprep.subr.mxu0 0.0
    %1864 = vmatpush1.msra.mxu0 0.0
    %1865 = vmatprep.subr.mxu0 0.0
    %1866 = vmatpush1.msra.mxu0 0.0
    %1867 = vmatprep.subr.mxu0 0.0
    %1868 = vmatpush1.msra.mxu0 0.0
    %1869 = vmatprep.subr.mxu0 0.0
    %1870 = vmatpush1.msra.mxu0 0.0
    %1871 = vmatprep.subr.mxu0 0.0
    %1872 = vmatpush1.msra.mxu0 0.0
    %1873 = vmatprep.subr.mxu0 0.0
    %1874 = vmatpush1.msra.mxu0 0.0
    %1875 = vmatprep.subr.mxu0 0.0
    %1876 = vmatpush1.msra.mxu0 0.0
    %1877 = vmatprep.subr.mxu0 0.0
    %1878 = vmatpush1.msra.mxu0 0.0
    %1879 = vmatprep.subr.mxu0 0.0
    %1880 = vmatpush1.msra.mxu0 0.0
    %1881 = vmatprep.subr.mxu0 0.0
    %1882 = vmatpush1.msra.mxu0 0.0
    %1883 = vmatprep.subr.mxu0 0.0
    %1884 = vmatpush1.msra.mxu0 0.0
    %1885 = vmatprep.subr.mxu0 0.0
    %1886 = vmatpush1.msra.mxu0 0.0
    %1887 = vmatprep.mubr.f32.mxu0 0.0
    %1888 = vmatmul.mubr.f32.gmra.mrb[0].mxu0 %v1821
    %v1889 = vpop.f32.mrb[0].mxu0
    %v1890 = vadd.f32 0.0, %v1889
    %v1891 = vpop.f32.mrb[0].mxu0
    %1892 = vdwg.mxu0
    %1893 = vrot.lane.b32.xlu0 %v396, 112
    %v1894 = vpop.permute.xlu0 %1893
    %1895 = vrot.lane.b32.xlu0 %v560, 112
    %v1896 = vpop.permute.xlu0 %1895
    %1897 = vrot.lane.b32.xlu0 %v565, 112
    %v1898 = vpop.permute.xlu0 %1897
    %1899 = vrot.lane.b32.xlu0 %v570, 112
    %v1900 = vpop.permute.xlu0 %1899
    %1901 = vrot.lane.b32.xlu0 %v575, 112
    %v1902 = vpop.permute.xlu0 %1901
    %1903 = vrot.lane.b32.xlu0 %v580, 112
    %v1904 = vpop.permute.xlu0 %1903
    %1905 = vrot.lane.b32.xlu0 %v585, 112
    %v1906 = vpop.permute.xlu0 %1905
    %1907 = vrot.lane.b32.xlu0 %v590, 112
    %v1908 = vpop.permute.xlu0 %1907
    %1909 = vrot.lane.b32.xlu0 %v595, 112
    %v1910 = vpop.permute.xlu0 %1909
    %v1911 = vsel %vm598, %v1894, 0
    %v1913 = vsel %vm598, %v1896, 0
    %v1915 = vsel %vm598, %v1898, 0
    %v1917 = vsel %vm598, %v1900, 0
    %v1919 = vsel %vm598, %v1902, 0
    %v1921 = vsel %vm598, %v1904, 0
    %v1923 = vsel %vm598, %v1906, 0
    %v1925 = vsel %vm598, %v1908, 0
    %v1927 = vsel %vm598, %v1910, 0
    %1929 = vmatprep.subr.mxu0 0.0
    %1930 = vmatpush1.xpose.msra.mxu0 %v1913
    %1931 = vmatprep.subr.mxu0 0.0
    %1932 = vmatpush1.xpose.msra.mxu0 %v1915
    %1933 = vmatprep.subr.mxu0 0.0
    %1934 = vmatpush1.xpose.msra.mxu0 %v1917
    %1935 = vmatprep.subr.mxu0 0.0
    %1936 = vmatpush1.xpose.msra.mxu0 %v1919
    %1937 = vmatprep.subr.mxu0 0.0
    %1938 = vmatpush1.xpose.msra.mxu0 %v1921
    %1939 = vmatprep.subr.mxu0 0.0
    %1940 = vmatpush1.xpose.msra.mxu0 %v1923
    %1941 = vmatprep.subr.mxu0 0.0
    %1942 = vmatpush1.xpose.msra.mxu0 %v1925
    %1943 = vmatprep.subr.mxu0 0.0
    %1944 = vmatpush1.xpose.msra.mxu0 %v1927
    %1945 = vmatprep.subr.mxu0 0.0
    %1946 = vmatpush1.xpose.msra.mxu0 0.0
    %1947 = vmatprep.subr.mxu0 0.0
    %1948 = vmatpush1.xpose.msra.mxu0 0.0
    %1949 = vmatprep.subr.mxu0 0.0
    %1950 = vmatpush1.xpose.msra.mxu0 0.0
    %1951 = vmatprep.subr.mxu0 0.0
    %1952 = vmatpush1.xpose.msra.mxu0 0.0
    %1953 = vmatprep.subr.mxu0 0.0
    %1954 = vmatpush1.xpose.msra.mxu0 0.0
    %1955 = vmatprep.subr.mxu0 0.0
    %1956 = vmatpush1.xpose.msra.mxu0 0.0
    %1957 = vmatprep.subr.mxu0 0.0
    %1958 = vmatpush1.xpose.msra.mxu0 0.0
    %1959 = vmatprep.subr.mxu0 0.0
    %1960 = vmatpush1.xpose.msra.mxu0 0.0
    %1961 = vmatprep.subr.mxu0 0.0
    %1962 = vmatpush1.xpose.msra.mxu0 0.0
    %1963 = vmatprep.subr.mxu0 0.0
    %1964 = vmatpush1.xpose.msra.mxu0 0.0
    %1965 = vmatprep.subr.mxu0 0.0
    %1966 = vmatpush1.xpose.msra.mxu0 0.0
    %1967 = vmatprep.subr.mxu0 0.0
    %1968 = vmatpush1.xpose.msra.mxu0 0.0
    %1969 = vmatprep.subr.mxu0 0.0
    %1970 = vmatpush1.xpose.msra.mxu0 0.0
    %1971 = vmatprep.subr.mxu0 0.0
    %1972 = vmatpush1.xpose.msra.mxu0 0.0
    %1973 = vmatprep.subr.mxu0 0.0
    %1974 = vmatpush1.xpose.msra.mxu0 0.0
    %1975 = vmatprep.subr.mxu0 0.0
    %1976 = vmatpush1.xpose.msra.mxu0 0.0
    %1977 = vmatprep.subr.mxu0 0.0
    %1978 = vmatpush1.xpose.msra.mxu0 0.0
    %1979 = vmatprep.subr.mxu0 0.0
    %1980 = vmatpush1.xpose.msra.mxu0 0.0
    %1981 = vmatprep.subr.mxu0 0.0
    %1982 = vmatpush1.xpose.msra.mxu0 0.0
    %1983 = vmatprep.subr.mxu0 0.0
    %1984 = vmatpush1.xpose.msra.mxu0 0.0
    %1985 = vmatprep.subr.mxu0 0.0
    %1986 = vmatpush1.xpose.msra.mxu0 0.0
    %1987 = vmatprep.subr.mxu0 0.0
    %1988 = vmatpush1.xpose.msra.mxu0 0.0
    %1989 = vmatprep.subr.mxu0 0.0
    %1990 = vmatpush1.xpose.msra.mxu0 0.0
    %1991 = vmatprep.subr.mxu0 0.0
    %1992 = vmatpush1.xpose.msra.mxu0 0.0
    %1993 = vmatprep.mubr.f32.mxu0 0.0
    %1994 = vmatmul.mubr.f32.gmra.mrb[0].mxu0 %v1911
    %v1995 = vpop.f32.mrb[0].mxu0
    %v1996 = vadd.f32 0.0, %v1995
    %v1997 = vpop.f32.mrb[0].mxu0
    %1998 = vdwg.mxu0
    %v1999 = vsel %vm696, %v1996, -inf
    %2000 = vmax.xlane.f32.xlu0 %v1999
    %v2001 = vpop.xlane.xlu0 %2000
    %v2002 = vsub.f32 %v1996, %v2001
    %v2003 = vmul.f32 %v2002, 1.442695
    %v2004 = vpow.pop %v2003
    %v2005 = vsel %vm696, %v2004, 0.0
    %2006 = vadd.xlane.f32.xlu0 %v2005
    %v2007 = vpop.xlane.xlu0 %2006
    %v2008 = vrcp.pop %v2007
    %v2009 = vmul.f32 %v2004, %v2008
    %2010 = vrot.lane.b32.xlu0 %v560, 80
    %v2011 = vpop.permute.xlu0 %2010
    %2012 = vrot.lane.b32.xlu0 %v565, 80
    %v2013 = vpop.permute.xlu0 %2012
    %2014 = vrot.lane.b32.xlu0 %v570, 80
    %v2015 = vpop.permute.xlu0 %2014
    %2016 = vrot.lane.b32.xlu0 %v575, 80
    %v2017 = vpop.permute.xlu0 %2016
    %2018 = vrot.lane.b32.xlu0 %v580, 80
    %v2019 = vpop.permute.xlu0 %2018
    %2020 = vrot.lane.b32.xlu0 %v585, 80
    %v2021 = vpop.permute.xlu0 %2020
    %2022 = vrot.lane.b32.xlu0 %v590, 80
    %v2023 = vpop.permute.xlu0 %2022
    %2024 = vrot.lane.b32.xlu0 %v595, 80
    %v2025 = vpop.permute.xlu0 %2024
    %v2035 = vsel %vm696, %v2009, 0
    %2037 = vmatprep.subr.mxu0 0.0
    %2038 = vmatpush1.msra.mxu0 %v2011
    %2039 = vmatprep.subr.mxu0 0.0
    %2040 = vmatpush1.msra.mxu0 %v2013
    %2041 = vmatprep.subr.mxu0 0.0
    %2042 = vmatpush1.msra.mxu0 %v2015
    %2043 = vmatprep.subr.mxu0 0.0
    %2044 = vmatpush1.msra.mxu0 %v2017
    %2045 = vmatprep.subr.mxu0 0.0
    %2046 = vmatpush1.msra.mxu0 %v2019
    %2047 = vmatprep.subr.mxu0 0.0
    %2048 = vmatpush1.msra.mxu0 %v2021
    %2049 = vmatprep.subr.mxu0 0.0
    %2050 = vmatpush1.msra.mxu0 %v2023
    %2051 = vmatprep.subr.mxu0 0.0
    %2052 = vmatpush1.msra.mxu0 %v2025
    %2053 = vmatprep.subr.mxu0 0.0
    %2054 = vmatpush1.msra.mxu0 0.0
    %2055 = vmatprep.subr.mxu0 0.0
    %2056 = vmatpush1.msra.mxu0 0.0
    %2057 = vmatprep.subr.mxu0 0.0
    %2058 = vmatpush1.msra.mxu0 0.0
    %2059 = vmatprep.subr.mxu0 0.0
    %2060 = vmatpush1.msra.mxu0 0.0
    %2061 = vmatprep.subr.mxu0 0.0
    %2062 = vmatpush1.msra.mxu0 0.0
    %2063 = vmatprep.subr.mxu0 0.0
    %2064 = vmatpush1.msra.mxu0 0.0
    %2065 = vmatprep.subr.mxu0 0.0
    %2066 = vmatpush1.msra.mxu0 0.0
    %2067 = vmatprep.subr.mxu0 0.0
    %2068 = vmatpush1.msra.mxu0 0.0
    %2069 = vmatprep.subr.mxu0 0.0
    %2070 = vmatpush1.msra.mxu0 0.0
    %2071 = vmatprep.subr.mxu0 0.0
    %2072 = vmatpush1.msra.mxu0 0.0
    %2073 = vmatprep.subr.mxu0 0.0
    %2074 = vmatpush1.msra.mxu0 0.0
    %2075 = vmatprep.subr.mxu0 0.0
    %2076 = vmatpush1.msra.mxu0 0.0
    %2077 = vmatprep.subr.mxu0 0.0
    %2078 = vmatpush1.msra.mxu0 0.0
    %2079 = vmatprep.subr.mxu0 0.0
    %2080 = vmatpush1.msra.mxu0 0.0
    %2081 = vmatprep.subr.mxu0 0.0
    %2082 = vmatpush1.msra.mxu0 0.0
    %2083 = vmatprep.subr.mxu0 0.0
    %2084 = vmatpush1.msra.mxu0 0.0
    %2085 = vmatprep.subr.mxu0 0.0
    %2086 = vmatpush1.msra.mxu0 0.0
    %2087 = vmatprep.subr.mxu0 0.0
    %2088 = vmatpush1.msra.mxu0 0.0
    %2089 = vmatprep.subr.mxu0 0.0
    %2090 = vmatpush1.msra.mxu0 0.0
    %2091 = vmatprep.subr.mxu0 0.0
    %2092 = vmatpush1.msra.mxu0 0.0
    %2093 = vmatprep.subr.mxu0 0.0
    %2094 = vmatpush1.msra.mxu0 0.0
    %2095 = vmatprep.subr.mxu0 0.0
    %2096 = vmatpush1.msra.mxu0 0.0
    %2097 = vmatprep.subr.mxu0 0.0
    %2098 = vmatpush1.msra.mxu0 0.0
    %2099 = vmatprep.subr.mxu0 0.0
    %2100 = vmatpush1.msra.mxu0 0.0
    %2101 = vmatprep.mubr.f32.mxu0 0.0
    %2102 = vmatmul.mubr.f32.gmra.mrb[0].mxu0 %v2035
    %v2103 = vpop.f32.mrb[0].mxu0
    %v2104 = vadd.f32 0.0, %v2103
    %v2105 = vpop.f32.mrb[0].mxu0
    %2106 = vdwg.mxu0
    %2107 = vrot.lane.b32.xlu0 %v396, 104
    %v2108 = vpop.permute.xlu0 %2107
    %2109 = vrot.lane.b32.xlu0 %v560, 104
    %v2110 = vpop.permute.xlu0 %2109
    %2111 = vrot.lane.b32.xlu0 %v565, 104
    %v2112 = vpop.permute.xlu0 %2111
    %2113 = vrot.lane.b32.xlu0 %v570, 104
    %v2114 = vpop.permute.xlu0 %2113
    %2115 = vrot.lane.b32.xlu0 %v575, 104
    %v2116 = vpop.permute.xlu0 %2115
    %2117 = vrot.lane.b32.xlu0 %v580, 104
    %v2118 = vpop.permute.xlu0 %2117
    %2119 = vrot.lane.b32.xlu0 %v585, 104
    %v2120 = vpop.permute.xlu0 %2119
    %2121 = vrot.lane.b32.xlu0 %v590, 104
    %v2122 = vpop.permute.xlu0 %2121
    %2123 = vrot.lane.b32.xlu0 %v595, 104
    %v2124 = vpop.permute.xlu0 %2123
    %v2125 = vsel %vm598, %v2108, 0
    %v2127 = vsel %vm598, %v2110, 0
    %v2129 = vsel %vm598, %v2112, 0
    %v2131 = vsel %vm598, %v2114, 0
    %v2133 = vsel %vm598, %v2116, 0
    %v2135 = vsel %vm598, %v2118, 0
    %v2137 = vsel %vm598, %v2120, 0
    %v2139 = vsel %vm598, %v2122, 0
    %v2141 = vsel %vm598, %v2124, 0
    %2143 = vmatprep.subr.mxu0 0.0
    %2144 = vmatpush1.xpose.msra.mxu0 %v2127
    %2145 = vmatprep.subr.mxu0 0.0
    %2146 = vmatpush1.xpose.msra.mxu0 %v2129
    %2147 = vmatprep.subr.mxu0 0.0
    %2148 = vmatpush1.xpose.msra.mxu0 %v2131
    %2149 = vmatprep.subr.mxu0 0.0
    %2150 = vmatpush1.xpose.msra.mxu0 %v2133
    %2151 = vmatprep.subr.mxu0 0.0
    %2152 = vmatpush1.xpose.msra.mxu0 %v2135
    %2153 = vmatprep.subr.mxu0 0.0
    %2154 = vmatpush1.xpose.msra.mxu0 %v2137
    %2155 = vmatprep.subr.mxu0 0.0
    %2156 = vmatpush1.xpose.msra.mxu0 %v2139
    %2157 = vmatprep.subr.mxu0 0.0
    %2158 = vmatpush1.xpose.msra.mxu0 %v2141
    %2159 = vmatprep.subr.mxu0 0.0
    %2160 = vmatpush1.xpose.msra.mxu0 0.0
    %2161 = vmatprep.subr.mxu0 0.0
    %2162 = vmatpush1.xpose.msra.mxu0 0.0
    %2163 = vmatprep.subr.mxu0 0.0
    %2164 = vmatpush1.xpose.msra.mxu0 0.0
    %2165 = vmatprep.subr.mxu0 0.0
    %2166 = vmatpush1.xpose.msra.mxu0 0.0
    %2167 = vmatprep.subr.mxu0 0.0
    %2168 = vmatpush1.xpose.msra.mxu0 0.0
    %2169 = vmatprep.subr.mxu0 0.0
    %2170 = vmatpush1.xpose.msra.mxu0 0.0
    %2171 = vmatprep.subr.mxu0 0.0
    %2172 = vmatpush1.xpose.msra.mxu0 0.0
    %2173 = vmatprep.subr.mxu0 0.0
    %2174 = vmatpush1.xpose.msra.mxu0 0.0
    %2175 = vmatprep.subr.mxu0 0.0
    %2176 = vmatpush1.xpose.msra.mxu0 0.0
    %2177 = vmatprep.subr.mxu0 0.0
    %2178 = vmatpush1.xpose.msra.mxu0 0.0
    %2179 = vmatprep.subr.mxu0 0.0
    %2180 = vmatpush1.xpose.msra.mxu0 0.0
    %2181 = vmatprep.subr.mxu0 0.0
    %2182 = vmatpush1.xpose.msra.mxu0 0.0
    %2183 = vmatprep.subr.mxu0 0.0
    %2184 = vmatpush1.xpose.msra.mxu0 0.0
    %2185 = vmatprep.subr.mxu0 0.0
    %2186 = vmatpush1.xpose.msra.mxu0 0.0
    %2187 = vmatprep.subr.mxu0 0.0
    %2188 = vmatpush1.xpose.msra.mxu0 0.0
    %2189 = vmatprep.subr.mxu0 0.0
    %2190 = vmatpush1.xpose.msra.mxu0 0.0
    %2191 = vmatprep.subr.mxu0 0.0
    %2192 = vmatpush1.xpose.msra.mxu0 0.0
    %2193 = vmatprep.subr.mxu0 0.0
    %2194 = vmatpush1.xpose.msra.mxu0 0.0
    %2195 = vmatprep.subr.mxu0 0.0
    %2196 = vmatpush1.xpose.msra.mxu0 0.0
    %2197 = vmatprep.subr.mxu0 0.0
    %2198 = vmatpush1.xpose.msra.mxu0 0.0
    %2199 = vmatprep.subr.mxu0 0.0
    %2200 = vmatpush1.xpose.msra.mxu0 0.0
    %2201 = vmatprep.subr.mxu0 0.0
    %2202 = vmatpush1.xpose.msra.mxu0 0.0
    %2203 = vmatprep.subr.mxu0 0.0
    %2204 = vmatpush1.xpose.msra.mxu0 0.0
    %2205 = vmatprep.subr.mxu0 0.0
    %2206 = vmatpush1.xpose.msra.mxu0 0.0
    %2207 = vmatprep.mubr.f32.mxu0 0.0
    %2208 = vmatmul.mubr.f32.gmra.mrb[0].mxu0 %v2125
    %v2209 = vpop.f32.mrb[0].mxu0
    %v2210 = vadd.f32 0.0, %v2209
    %v2211 = vpop.f32.mrb[0].mxu0
    %2212 = vdwg.mxu0
    %v2213 = vsel %vm696, %v2210, -inf
    %2214 = vmax.xlane.f32.xlu0 %v2213
    %v2215 = vpop.xlane.xlu0 %2214
    %v2216 = vsub.f32 %v2210, %v2215
    %v2217 = vmul.f32 %v2216, 1.442695
    %v2218 = vpow.pop %v2217
    %v2219 = vsel %vm696, %v2218, 0.0
    %2220 = vadd.xlane.f32.xlu0 %v2219
    %v2221 = vpop.xlane.xlu0 %2220
    %v2222 = vrcp.pop %v2221
    %v2223 = vmul.f32 %v2218, %v2222
    %2224 = vrot.lane.b32.xlu0 %v560, 72
    %v2225 = vpop.permute.xlu0 %2224
    %2226 = vrot.lane.b32.xlu0 %v565, 72
    %v2227 = vpop.permute.xlu0 %2226
    %2228 = vrot.lane.b32.xlu0 %v570, 72
    %v2229 = vpop.permute.xlu0 %2228
    %2230 = vrot.lane.b32.xlu0 %v575, 72
    %v2231 = vpop.permute.xlu0 %2230
    %2232 = vrot.lane.b32.xlu0 %v580, 72
    %v2233 = vpop.permute.xlu0 %2232
    %2234 = vrot.lane.b32.xlu0 %v585, 72
    %v2235 = vpop.permute.xlu0 %2234
    %2236 = vrot.lane.b32.xlu0 %v590, 72
    %v2237 = vpop.permute.xlu0 %2236
    %2238 = vrot.lane.b32.xlu0 %v595, 72
    %v2239 = vpop.permute.xlu0 %2238
    %v2249 = vsel %vm696, %v2223, 0
    %2251 = vmatprep.subr.mxu0 0.0
    %2252 = vmatpush1.msra.mxu0 %v2225
    %2253 = vmatprep.subr.mxu0 0.0
    %2254 = vmatpush1.msra.mxu0 %v2227
    %2255 = vmatprep.subr.mxu0 0.0
    %2256 = vmatpush1.msra.mxu0 %v2229
    %2257 = vmatprep.subr.mxu0 0.0
    %2258 = vmatpush1.msra.mxu0 %v2231
    %2259 = vmatprep.subr.mxu0 0.0
    %2260 = vmatpush1.msra.mxu0 %v2233
    %2261 = vmatprep.subr.mxu0 0.0
    %2262 = vmatpush1.msra.mxu0 %v2235
    %2263 = vmatprep.subr.mxu0 0.0
    %2264 = vmatpush1.msra.mxu0 %v2237
    %2265 = vmatprep.subr.mxu0 0.0
    %2266 = vmatpush1.msra.mxu0 %v2239
    %2267 = vmatprep.subr.mxu0 0.0
    %2268 = vmatpush1.msra.mxu0 0.0
    %2269 = vmatprep.subr.mxu0 0.0
    %2270 = vmatpush1.msra.mxu0 0.0
    %2271 = vmatprep.subr.mxu0 0.0
    %2272 = vmatpush1.msra.mxu0 0.0
    %2273 = vmatprep.subr.mxu0 0.0
    %2274 = vmatpush1.msra.mxu0 0.0
    %2275 = vmatprep.subr.mxu0 0.0
    %2276 = vmatpush1.msra.mxu0 0.0
    %2277 = vmatprep.subr.mxu0 0.0
    %2278 = vmatpush1.msra.mxu0 0.0
    %2279 = vmatprep.subr.mxu0 0.0
    %2280 = vmatpush1.msra.mxu0 0.0
    %2281 = vmatprep.subr.mxu0 0.0
    %2282 = vmatpush1.msra.mxu0 0.0
    %2283 = vmatprep.subr.mxu0 0.0
    %2284 = vmatpush1.msra.mxu0 0.0
    %2285 = vmatprep.subr.mxu0 0.0
    %2286 = vmatpush1.msra.mxu0 0.0
    %2287 = vmatprep.subr.mxu0 0.0
    %2288 = vmatpush1.msra.mxu0 0.0
    %2289 = vmatprep.subr.mxu0 0.0
    %2290 = vmatpush1.msra.mxu0 0.0
    %2291 = vmatprep.subr.mxu0 0.0
    %2292 = vmatpush1.msra.mxu0 0.0
    %2293 = vmatprep.subr.mxu0 0.0
    %2294 = vmatpush1.msra.mxu0 0.0
    %2295 = vmatprep.subr.mxu0 0.0
    %2296 = vmatpush1.msra.mxu0 0.0
    %2297 = vmatprep.subr.mxu0 0.0
    %2298 = vmatpush1.msra.mxu0 0.0
    %2299 = vmatprep.subr.mxu0 0.0
    %2300 = vmatpush1.msra.mxu0 0.0
    %2301 = vmatprep.subr.mxu0 0.0
    %2302 = vmatpush1.msra.mxu0 0.0
    %2303 = vmatprep.subr.mxu0 0.0
    %2304 = vmatpush1.msra.mxu0 0.0
    %2305 = vmatprep.subr.mxu0 0.0
    %2306 = vmatpush1.msra.mxu0 0.0
    %2307 = vmatprep.subr.mxu0 0.0
    %2308 = vmatpush1.msra.mxu0 0.0
    %2309 = vmatprep.subr.mxu0 0.0
    %2310 = vmatpush1.msra.mxu0 0.0
    %2311 = vmatprep.subr.mxu0 0.0
    %2312 = vmatpush1.msra.mxu0 0.0
    %2313 = vmatprep.subr.mxu0 0.0
    %2314 = vmatpush1.msra.mxu0 0.0
    %2315 = vmatprep.mubr.f32.mxu0 0.0
    %2316 = vmatmul.mubr.f32.gmra.mrb[0].mxu0 %v2249
    %v2317 = vpop.f32.mrb[0].mxu0
    %v2318 = vadd.f32 0.0, %v2317
    %v2319 = vpop.f32.mrb[0].mxu0
    %2320 = vdwg.mxu0
    %2321 = vrot.lane.b32.xlu0 %v1795, 64
    %v2322 = vpop.permute.xlu0 %2321
    %2324 = vrot.lane.b32.xlu0 %v2223, 64
    %v2325 = vpop.permute.xlu0 %2324
    %v2327 = vsel %vm696, %v1581, %v2322
    %v2328 = vsel %vm696, %v2009, %v2325
    %s2329 = scalar_lea.vmem %s15, 16
    %2330 = vst [vmem:[%s2329] sm:$0xff] %v2327
    %2331 = vst [vmem:[%s2329 + $0x8] sm:$0xff] %v2328
    %2333 = vrot.lane.b32.xlu0 %v1890, 8
    %v2334 = vpop.permute.xlu0 %2333
    %2337 = vrot.lane.b32.xlu0 %v2104, 16
    %v2338 = vpop.permute.xlu0 %2337
    %2341 = vrot.lane.b32.xlu0 %v2318, 24
    %v2342 = vpop.permute.xlu0 %2341
    %v2344 = vsel %vm598, %v1676, %v2334
    %v2345 = vsel %vm1470, %v2344, %v2338
    %v2346 = vsel %vm1472, %v2345, %v2342
    %v2347 = vld [vmem:[%s5] sm:$0xff]
    %v2348 = vld [vmem:[%s5 + $0x8] sm:$0xff]
    %v2349 = vld [vmem:[%s5 + $0x10] sm:$0xff]
    %v2350 = vld [vmem:[%s5 + $0x18] sm:$0xff]
    %v2352 = vsel %vm70, %v1473, 0
    %v2355 = vsel %vm70, %v2346, 0
    %2357 = vmatprep.subr.mxu0 0.0
    %2358 = vmatpush1.msra.mxu0 %v2347
    %2359 = vmatprep.subr.mxu0 0.0
    %2360 = vmatpush1.msra.mxu0 %v2348
    %2361 = vmatprep.subr.mxu0 0.0
    %2362 = vmatpush1.msra.mxu0 %v2349
    %2363 = vmatprep.subr.mxu0 0.0
    %2364 = vmatpush1.msra.mxu0 %v2350
    %2365 = vmatprep.subr.mxu0 0.0
    %2366 = vmatpush1.msra.mxu0 0.0
    %2367 = vmatprep.subr.mxu0 0.0
    %2368 = vmatpush1.msra.mxu0 0.0
    %2369 = vmatprep.subr.mxu0 0.0
    %2370 = vmatpush1.msra.mxu0 0.0
    %2371 = vmatprep.subr.mxu0 0.0
    %2372 = vmatpush1.msra.mxu0 0.0
    %2373 = vmatprep.subr.mxu0 0.0
    %2374 = vmatpush1.msra.mxu0 0.0
    %2375 = vmatprep.subr.mxu0 0.0
    %2376 = vmatpush1.msra.mxu0 0.0
    %2377 = vmatprep.subr.mxu0 0.0
    %2378 = vmatpush1.msra.mxu0 0.0
    %2379 = vmatprep.subr.mxu0 0.0
    %2380 = vmatpush1.msra.mxu0 0.0
    %2381 = vmatprep.subr.mxu0 0.0
    %2382 = vmatpush1.msra.mxu0 0.0
    %2383 = vmatprep.subr.mxu0 0.0
    %2384 = vmatpush1.msra.mxu0 0.0
    %2385 = vmatprep.subr.mxu0 0.0
    %2386 = vmatpush1.msra.mxu0 0.0
    %2387 = vmatprep.subr.mxu0 0.0
    %2388 = vmatpush1.msra.mxu0 0.0
    %2389 = vmatprep.subr.mxu0 0.0
    %2390 = vmatpush1.msra.mxu0 0.0
    %2391 = vmatprep.subr.mxu0 0.0
    %2392 = vmatpush1.msra.mxu0 0.0
    %2393 = vmatprep.subr.mxu0 0.0
    %2394 = vmatpush1.msra.mxu0 0.0
    %2395 = vmatprep.subr.mxu0 0.0
    %2396 = vmatpush1.msra.mxu0 0.0
    %2397 = vmatprep.subr.mxu0 0.0
    %2398 = vmatpush1.msra.mxu0 0.0
    %2399 = vmatprep.subr.mxu0 0.0
    %2400 = vmatpush1.msra.mxu0 0.0
    %2401 = vmatprep.subr.mxu0 0.0
    %2402 = vmatpush1.msra.mxu0 0.0
    %2403 = vmatprep.subr.mxu0 0.0
    %2404 = vmatpush1.msra.mxu0 0.0
    %2405 = vmatprep.subr.mxu0 0.0
    %2406 = vmatpush1.msra.mxu0 0.0
    %2407 = vmatprep.subr.mxu0 0.0
    %2408 = vmatpush1.msra.mxu0 0.0
    %2409 = vmatprep.subr.mxu0 0.0
    %2410 = vmatpush1.msra.mxu0 0.0
    %2411 = vmatprep.subr.mxu0 0.0
    %2412 = vmatpush1.msra.mxu0 0.0
    %2413 = vmatprep.subr.mxu0 0.0
    %2414 = vmatpush1.msra.mxu0 0.0
    %2415 = vmatprep.subr.mxu0 0.0
    %2416 = vmatpush1.msra.mxu0 0.0
    %2417 = vmatprep.subr.mxu0 0.0
    %2418 = vmatpush1.msra.mxu0 0.0
    %2419 = vmatprep.subr.mxu0 0.0
    %2420 = vmatpush1.msra.mxu0 0.0
    %2421 = vmatprep.mubr.f32.mxu0 0.0
    %2422 = vmatmul.mubr.f32.gmra.mrb[0].mxu0 %v2352
    %v2423 = vpop.f32.mrb[0].mxu0
    %v2424 = vadd.f32 0.0, %v2423
    %v2425 = vpop.f32.mrb[0].mxu0
    %2426 = vmatprep.mubr.f32.mxu0 0.0
    %2427 = vmatmul.mubr.f32.gmra.mrb[0].mxu0 %v2355
    %v2428 = vpop.f32.mrb[0].mxu0
    %v2429 = vadd.f32 0.0, %v2428
    %v2430 = vpop.f32.mrb[0].mxu0
    %2431 = vdwg.mxu0
    %v2432 = vadd.f32 %v68, %v2424
    %v2433 = vadd.f32 %v69, %v2429
    %v2434 = vlaneseq
    %v2435 = vshrl.u32 %v2434, 7
    %v2436 = vsub.s32 2, %v2435
    %v2437 = vrot.slane %v50, %v2436
    %v2438 = vadd.f32 %v2432, %v2437
    %v2439 = vadd.f32 %v2433, %v2437
    %v2440 = vsel %vm70, %v2438, 0.0
    %2441 = vadd.xlane.f32.xlu0 %v2440
    %v2442 = vpop.xlane.xlu0 %2441
    %v2443 = vsel %vm70, %v2439, 0.0
    %2444 = vadd.xlane.f32.xlu0 %v2443
    %v2445 = vpop.xlane.xlu0 %2444
    %v2446 = vmul.f32 %v2442, %v77
    %v2447 = vmul.f32 %v2445, %v77
    %v2448 = vsub.f32 %v2438, %v2446
    %v2449 = vsub.f32 %v2439, %v2447
    %v2450 = vmul.f32 %v2448, %v2448
    %v2451 = vmul.f32 %v2449, %v2449
    %v2452 = vsel %vm70, %v2450, 0.0
    %2453 = vadd.xlane.f32.xlu0 %v2452
    %v2454 = vpop.xlane.xlu0 %2453
    %v2455 = vsel %vm70, %v2451, 0.0
    %2456 = vadd.xlane.f32.xlu0 %v2455
    %v2457 = vpop.xlane.xlu0 %2456
    %v2458 = vmul.f32 %v2454, %v77
    %v2459 = vmul.f32 %v2457, %v77
    %v2460 = vadd.f32 %v2458, 1e-05
    %v2461 = vadd.f32 %v2459, 1e-05
    %v2462 = vrsqrt.pop %v2460
    %v2463 = vrsqrt.pop %v2461
    %v2464 = vmul.f32 %v2448, %v2462
    %v2465 = vmul.f32 %v2449, %v2463
    %v2466 = vld [vmem:[%s6] sm:$0xff]
    %v2467 = vld [vmem:[%s6 + $0x8] sm:$0xff]
    %v2468 = vld [vmem:[%s6 + $0x10] sm:$0xff]
    %v2469 = vld [vmem:[%s6 + $0x18] sm:$0xff]
    %v2470 = vlaneseq
    %v2471 = vshrl.u32 %v2470, 7
    %v2472 = vsub.s32 3, %v2471
    %v2473 = vrot.slane %v50, %v2472
    %v2475 = vsel %vm70, %v2464, 0
    %v2478 = vsel %vm70, %v2465, 0
    %2480 = vmatprep.subr.mxu0 0.0
    %2481 = vmatpush1.msra.mxu0 %v2466
    %2482 = vmatprep.subr.mxu0 0.0
    %2483 = vmatpush1.msra.mxu0 %v2467
    %2484 = vmatprep.subr.mxu0 0.0
    %2485 = vmatpush1.msra.mxu0 %v2468
    %2486 = vmatprep.subr.mxu0 0.0
    %2487 = vmatpush1.msra.mxu0 %v2469
    %2488 = vmatprep.subr.mxu0 0.0
    %2489 = vmatpush1.msra.mxu0 0.0
    %2490 = vmatprep.subr.mxu0 0.0
    %2491 = vmatpush1.msra.mxu0 0.0
    %2492 = vmatprep.subr.mxu0 0.0
    %2493 = vmatpush1.msra.mxu0 0.0
    %2494 = vmatprep.subr.mxu0 0.0
    %2495 = vmatpush1.msra.mxu0 0.0
    %2496 = vmatprep.subr.mxu0 0.0
    %2497 = vmatpush1.msra.mxu0 0.0
    %2498 = vmatprep.subr.mxu0 0.0
    %2499 = vmatpush1.msra.mxu0 0.0
    %2500 = vmatprep.subr.mxu0 0.0
    %2501 = vmatpush1.msra.mxu0 0.0
    %2502 = vmatprep.subr.mxu0 0.0
    %2503 = vmatpush1.msra.mxu0 0.0
    %2504 = vmatprep.subr.mxu0 0.0
    %2505 = vmatpush1.msra.mxu0 0.0
    %2506 = vmatprep.subr.mxu0 0.0
    %2507 = vmatpush1.msra.mxu0 0.0
    %2508 = vmatprep.subr.mxu0 0.0
    %2509 = vmatpush1.msra.mxu0 0.0
    %2510 = vmatprep.subr.mxu0 0.0
    %2511 = vmatpush1.msra.mxu0 0.0
    %2512 = vmatprep.subr.mxu0 0.0
    %2513 = vmatpush1.msra.mxu0 0.0
    %2514 = vmatprep.subr.mxu0 0.0
    %2515 = vmatpush1.msra.mxu0 0.0
    %2516 = vmatprep.subr.mxu0 0.0
    %2517 = vmatpush1.msra.mxu0 0.0
    %2518 = vmatprep.subr.mxu0 0.0
    %2519 = vmatpush1.msra.mxu0 0.0
    %2520 = vmatprep.subr.mxu0 0.0
    %2521 = vmatpush1.msra.mxu0 0.0
    %2522 = vmatprep.subr.mxu0 0.0
    %2523 = vmatpush1.msra.mxu0 0.0
    %2524 = vmatprep.subr.mxu0 0.0
    %2525 = vmatpush1.msra.mxu0 0.0
    %2526 = vmatprep.subr.mxu0 0.0
    %2527 = vmatpush1.msra.mxu0 0.0
    %2528 = vmatprep.subr.mxu0 0.0
    %2529 = vmatpush1.msra.mxu0 0.0
    %2530 = vmatprep.subr.mxu0 0.0
    %2531 = vmatpush1.msra.mxu0 0.0
    %2532 = vmatprep.subr.mxu0 0.0
    %2533 = vmatpush1.msra.mxu0 0.0
    %2534 = vmatprep.subr.mxu0 0.0
    %2535 = vmatpush1.msra.mxu0 0.0
    %2536 = vmatprep.subr.mxu0 0.0
    %2537 = vmatpush1.msra.mxu0 0.0
    %2538 = vmatprep.subr.mxu0 0.0
    %2539 = vmatpush1.msra.mxu0 0.0
    %2540 = vmatprep.subr.mxu0 0.0
    %2541 = vmatpush1.msra.mxu0 0.0
    %2542 = vmatprep.subr.mxu0 0.0
    %2543 = vmatpush1.msra.mxu0 0.0
    %2544 = vmatprep.mubr.f32.mxu0 0.0
    %2545 = vmatmul.mubr.f32.gmra.mrb[0].mxu0 %v2475
    %v2546 = vpop.f32.mrb[0].mxu0
    %v2547 = vadd.f32 %v2473, %v2546
    %v2548 = vpop.f32.mrb[0].mxu0
    %2549 = vmatprep.mubr.f32.mxu0 0.0
    %2550 = vmatmul.mubr.f32.gmra.mrb[0].mxu0 %v2478
    %v2551 = vpop.f32.mrb[0].mxu0
    %v2552 = vadd.f32 %v2473, %v2551
    %v2553 = vpop.f32.mrb[0].mxu0
    %2554 = vdwg.mxu0
    %v2555 = vmul.f32 %v2547, 0.5
    %v2556 = vmul.f32 %v2552, 0.5
    %v2557 = vmul.f32 %v2547, 0.70710677
    %v2558 = vmul.f32 %v2552, 0.70710677
    %v2559 = verf.f32.pop %v2557
    %v2560 = verf.f32.pop %v2558
    %v2561 = vadd.f32 %v2559, 1.0
    %v2562 = vadd.f32 %v2560, 1.0
    %v2563 = vmul.f32 %v2555, %v2561
    %v2564 = vmul.f32 %v2556, %v2562
    %v2565 = vld [vmem:[%s7] sm:$0xff]
    %v2566 = vld [vmem:[%s7 + $0x8] sm:$0xff]
    %v2567 = vld [vmem:[%s7 + $0x10] sm:$0xff]
    %v2568 = vld [vmem:[%s7 + $0x18] sm:$0xff]
    %v2569 = vld [vmem:[%s7 + $0x20] sm:$0xff]
    %v2570 = vld [vmem:[%s7 + $0x28] sm:$0xff]
    %v2571 = vld [vmem:[%s7 + $0x30] sm:$0xff]
    %v2572 = vld [vmem:[%s7 + $0x38] sm:$0xff]
    %v2573 = vld [vmem:[%s7 + $0x40] sm:$0xff]
    %v2574 = vld [vmem:[%s7 + $0x48] sm:$0xff]
    %v2575 = vld [vmem:[%s7 + $0x50] sm:$0xff]
    %v2576 = vld [vmem:[%s7 + $0x58] sm:$0xff]
    %v2577 = vld [vmem:[%s7 + $0x60] sm:$0xff]
    %v2578 = vld [vmem:[%s7 + $0x68] sm:$0xff]
    %v2579 = vld [vmem:[%s7 + $0x70] sm:$0xff]
    %v2580 = vld [vmem:[%s7 + $0x78] sm:$0xff]
    %v2581 = vlaneseq
    %v2582 = vshrl.u32 %v2581, 7
    %v2583 = vsub.s32 4, %v2582
    %v2584 = vrot.slane %v50, %v2583
    %2585 = vmatprep.subr.mxu0 0.0
    %2586 = vmatpush1.msra.mxu0 %v2565
    %2587 = vmatprep.subr.mxu0 0.0
    %2588 = vmatpush1.msra.mxu0 %v2566
    %2589 = vmatprep.subr.mxu0 0.0
    %2590 = vmatpush1.msra.mxu0 %v2567
    %2591 = vmatprep.subr.mxu0 0.0
    %2592 = vmatpush1.msra.mxu0 %v2568
    %2593 = vmatprep.subr.mxu0 0.0
    %2594 = vmatpush1.msra.mxu0 %v2569
    %2595 = vmatprep.subr.mxu0 0.0
    %2596 = vmatpush1.msra.mxu0 %v2570
    %2597 = vmatprep.subr.mxu0 0.0
    %2598 = vmatpush1.msra.mxu0 %v2571
    %2599 = vmatprep.subr.mxu0 0.0
    %2600 = vmatpush1.msra.mxu0 %v2572
    %2601 = vmatprep.subr.mxu0 0.0
    %2602 = vmatpush1.msra.mxu0 %v2573
    %2603 = vmatprep.subr.mxu0 0.0
    %2604 = vmatpush1.msra.mxu0 %v2574
    %2605 = vmatprep.subr.mxu0 0.0
    %2606 = vmatpush1.msra.mxu0 %v2575
    %2607 = vmatprep.subr.mxu0 0.0
    %2608 = vmatpush1.msra.mxu0 %v2576
    %2609 = vmatprep.subr.mxu0 0.0
    %2610 = vmatpush1.msra.mxu0 %v2577
    %2611 = vmatprep.subr.mxu0 0.0
    %2612 = vmatpush1.msra.mxu0 %v2578
    %2613 = vmatprep.subr.mxu0 0.0
    %2614 = vmatpush1.msra.mxu0 %v2579
    %2615 = vmatprep.subr.mxu0 0.0
    %2616 = vmatpush1.msra.mxu0 %v2580
    %2617 = vmatprep.subr.mxu0 0.0
    %2618 = vmatpush1.msra.mxu0 0.0
    %2619 = vmatprep.subr.mxu0 0.0
    %2620 = vmatpush1.msra.mxu0 0.0
    %2621 = vmatprep.subr.mxu0 0.0
    %2622 = vmatpush1.msra.mxu0 0.0
    %2623 = vmatprep.subr.mxu0 0.0
    %2624 = vmatpush1.msra.mxu0 0.0
    %2625 = vmatprep.subr.mxu0 0.0
    %2626 = vmatpush1.msra.mxu0 0.0
    %2627 = vmatprep.subr.mxu0 0.0
    %2628 = vmatpush1.msra.mxu0 0.0
    %2629 = vmatprep.subr.mxu0 0.0
    %2630 = vmatpush1.msra.mxu0 0.0
    %2631 = vmatprep.subr.mxu0 0.0
    %2632 = vmatpush1.msra.mxu0 0.0
    %2633 = vmatprep.subr.mxu0 0.0
    %2634 = vmatpush1.msra.mxu0 0.0
    %2635 = vmatprep.subr.mxu0 0.0
    %2636 = vmatpush1.msra.mxu0 0.0
    %2637 = vmatprep.subr.mxu0 0.0
    %2638 = vmatpush1.msra.mxu0 0.0
    %2639 = vmatprep.subr.mxu0 0.0
    %2640 = vmatpush1.msra.mxu0 0.0
    %2641 = vmatprep.subr.mxu0 0.0
    %2642 = vmatpush1.msra.mxu0 0.0
    %2643 = vmatprep.subr.mxu0 0.0
    %2644 = vmatpush1.msra.mxu0 0.0
    %2645 = vmatprep.subr.mxu0 0.0
    %2646 = vmatpush1.msra.mxu0 0.0
    %2647 = vmatprep.subr.mxu0 0.0
    %2648 = vmatpush1.msra.mxu0 0.0
    %2649 = vmatprep.mubr.f32.mxu0 0.0
    %2650 = vmatmul.mubr.f32.gmra.mrb[0].mxu0 %v2563
    %v2651 = vpop.f32.mrb[0].mxu0
    %v2652 = vadd.f32 %v2584, %v2651
    %v2653 = vpop.f32.mrb[0].mxu0
    %2654 = vmatprep.mubr.f32.mxu0 0.0
    %2655 = vmatmul.mubr.f32.gmra.mrb[0].mxu0 %v2564
    %v2656 = vpop.f32.mrb[0].mxu0
    %v2657 = vadd.f32 %v2584, %v2656
    %v2658 = vpop.f32.mrb[0].mxu0
    %2659 = vdwg.mxu0
    %v2660 = vadd.f32 %v2652, %v2438
    %v2661 = vadd.f32 %v2657, %v2439
    %2662 = vst.msk [vmem:[#allocation4] sm:$0xff] %vm70, %v2660
    %2663 = vst.msk [vmem:[#allocation4 + $0x8] sm:$0xff] %vm70, %v2661
    %v2664 = vsel %vm70, %v2660, 0.0
    %2665 = vadd.xlane.f32.xlu0 %v2664
    %v2666 = vpop.xlane.xlu0 %2665
    %v2667 = vsel %vm70, %v2661, 0.0
    %2668 = vadd.xlane.f32.xlu0 %v2667
    %v2669 = vpop.xlane.xlu0 %2668
    %v2670 = vmul.f32 %v2666, %v77
    %v2671 = vmul.f32 %v2669, %v77
    %v2672 = vsub.f32 %v2660, %v2670
    %v2673 = vsub.f32 %v2661, %v2671
    %v2674 = vmul.f32 %v2672, %v2672
    %v2675 = vmul.f32 %v2673, %v2673
    %v2676 = vsel %vm70, %v2674, 0.0
    %2677 = vadd.xlane.f32.xlu0 %v2676
    %v2678 = vpop.xlane.xlu0 %2677
    %v2679 = vsel %vm70, %v2675, 0.0
    %2680 = vadd.xlane.f32.xlu0 %v2679
    %v2681 = vpop.xlane.xlu0 %2680
    %v2682 = vmul.f32 %v2678, %v77
    %v2683 = vmul.f32 %v2681, %v77
    %v2684 = vadd.f32 %v2682, 1e-05
    %v2685 = vadd.f32 %v2683, 1e-05
    %v2686 = vrsqrt.pop %v2684
    %v2687 = vrsqrt.pop %v2685
    %v2688 = vmul.f32 %v2672, %v2686
    %v2689 = vmul.f32 %v2673, %v2687
    %v2690 = vld [vmem:[%s8] sm:$0xff]
    %v2691 = vld [vmem:[%s8 + $0x8] sm:$0xff]
    %v2692 = vld [vmem:[%s8 + $0x10] sm:$0xff]
    %v2693 = vld [vmem:[%s8 + $0x18] sm:$0xff]
    %v2694 = vlaneseq
    %v2695 = vshrl.u32 %v2694, 7
    %v2696 = vsub.s32 5, %v2695
    %v2697 = vrot.slane %v50, %v2696
    %2698 = vmatprep.subr.mxu0 0.0
    %2699 = vmatpush1.msra.mxu0 %v2690
    %2700 = vmatprep.subr.mxu0 0.0
    %2701 = vmatpush1.msra.mxu0 %v2691
    %2702 = vmatprep.subr.mxu0 0.0
    %2703 = vmatpush1.msra.mxu0 %v2692
    %2704 = vmatprep.subr.mxu0 0.0
    %2705 = vmatpush1.msra.mxu0 %v2693
    %2706 = vmatprep.subr.mxu0 0.0
    %2707 = vmatpush1.msra.mxu0 0.0
    %2708 = vmatprep.subr.mxu0 0.0
    %2709 = vmatpush1.msra.mxu0 0.0
    %2710 = vmatprep.subr.mxu0 0.0
    %2711 = vmatpush1.msra.mxu0 0.0
    %2712 = vmatprep.subr.mxu0 0.0
    %2713 = vmatpush1.msra.mxu0 0.0
    %2714 = vmatprep.subr.mxu0 0.0
    %2715 = vmatpush1.msra.mxu0 0.0
    %2716 = vmatprep.subr.mxu0 0.0
    %2717 = vmatpush1.msra.mxu0 0.0
    %2718 = vmatprep.subr.mxu0 0.0
    %2719 = vmatpush1.msra.mxu0 0.0
    %2720 = vmatprep.subr.mxu0 0.0
    %2721 = vmatpush1.msra.mxu0 0.0
    %2722 = vmatprep.subr.mxu0 0.0
    %2723 = vmatpush1.msra.mxu0 0.0
    %2724 = vmatprep.subr.mxu0 0.0
    %2725 = vmatpush1.msra.mxu0 0.0
    %2726 = vmatprep.subr.mxu0 0.0
    %2727 = vmatpush1.msra.mxu0 0.0
    %2728 = vmatprep.subr.mxu0 0.0
    %2729 = vmatpush1.msra.mxu0 0.0
    %2730 = vmatprep.subr.mxu0 0.0
    %2731 = vmatpush1.msra.mxu0 0.0
    %2732 = vmatprep.subr.mxu0 0.0
    %2733 = vmatpush1.msra.mxu0 0.0
    %2734 = vmatprep.subr.mxu0 0.0
    %2735 = vmatpush1.msra.mxu0 0.0
    %2736 = vmatprep.subr.mxu0 0.0
    %2737 = vmatpush1.msra.mxu0 0.0
    %2738 = vmatprep.subr.mxu0 0.0
    %2739 = vmatpush1.msra.mxu0 0.0
    %2740 = vmatprep.subr.mxu0 0.0
    %2741 = vmatpush1.msra.mxu0 0.0
    %2742 = vmatprep.subr.mxu0 0.0
    %2743 = vmatpush1.msra.mxu0 0.0
    %2744 = vmatprep.subr.mxu0 0.0
    %2745 = vmatpush1.msra.mxu0 0.0
    %2746 = vmatprep.subr.mxu0 0.0
    %2747 = vmatpush1.msra.mxu0 0.0
    %2748 = vmatprep.subr.mxu0 0.0
    %2749 = vmatpush1.msra.mxu0 0.0
    %2750 = vmatprep.subr.mxu0 0.0
    %2751 = vmatpush1.msra.mxu0 0.0
    %2752 = vmatprep.subr.mxu0 0.0
    %2753 = vmatpush1.msra.mxu0 0.0
    %2754 = vmatprep.subr.mxu0 0.0
    %2755 = vmatpush1.msra.mxu0 0.0
    %2756 = vmatprep.subr.mxu0 0.0
    %2757 = vmatpush1.msra.mxu0 0.0
    %2758 = vmatprep.subr.mxu0 0.0
    %2759 = vmatpush1.msra.mxu0 0.0
    %2760 = vmatprep.subr.mxu0 0.0
    %2761 = vmatpush1.msra.mxu0 0.0
    %2762 = vmatprep.mubr.f32.mxu0 0.0
    %2763 = vmatmul.mubr.f32.gmra.mrb[0].mxu0 %v406
    %v2764 = vpop.f32.mrb[0].mxu0
    %v2765 = vadd.f32 %v2697, %v2764
    %v2766 = vpop.f32.mrb[0].mxu0
    %2767 = vmatprep.mubr.f32.mxu0 0.0
    %2768 = vmatmul.mubr.f32.gmra.mrb[0].mxu0 %v409
    %v2769 = vpop.f32.mrb[0].mxu0
    %v2770 = vadd.f32 %v2697, %v2769
    %v2771 = vpop.f32.mrb[0].mxu0
    %2772 = vmatprep.mubr.f32.mxu0 0.0
    %2773 = vmatmul.mubr.f32.gmra.mrb[0].mxu0 %v412
    %v2774 = vpop.f32.mrb[0].mxu0
    %v2775 = vadd.f32 %v2697, %v2774
    %v2776 = vpop.f32.mrb[0].mxu0
    %2777 = vmatprep.mubr.f32.mxu0 0.0
    %2778 = vmatmul.mubr.f32.gmra.mrb[0].mxu0 %v415
    %v2779 = vpop.f32.mrb[0].mxu0
    %v2780 = vadd.f32 %v2697, %v2779
    %v2781 = vpop.f32.mrb[0].mxu0
    %2782 = vmatprep.mubr.f32.mxu0 0.0
    %2783 = vmatmul.mubr.f32.gmra.mrb[0].mxu0 %v418
    %v2784 = vpop.f32.mrb[0].mxu0
    %v2785 = vadd.f32 %v2697, %v2784
    %v2786 = vpop.f32.mrb[0].mxu0
    %2787 = vmatprep.mubr.f32.mxu0 0.0
    %2788 = vmatmul.mubr.f32.gmra.mrb[0].mxu0 %v421
    %v2789 = vpop.f32.mrb[0].mxu0
    %v2790 = vadd.f32 %v2697, %v2789
    %v2791 = vpop.f32.mrb[0].mxu0
    %2792 = vmatprep.mubr.f32.mxu0 0.0
    %2793 = vmatmul.mubr.f32.gmra.mrb[0].mxu0 %v424
    %v2794 = vpop.f32.mrb[0].mxu0
    %v2795 = vadd.f32 %v2697, %v2794
    %v2796 = vpop.f32.mrb[0].mxu0
    %2797 = vmatprep.mubr.f32.mxu0 0.0
    %2798 = vmatmul.mubr.f32.gmra.mrb[0].mxu0 %v427
    %v2799 = vpop.f32.mrb[0].mxu0
    %v2800 = vadd.f32 %v2697, %v2799
    %v2801 = vpop.f32.mrb[0].mxu0
    %2802 = vmatprep.mubr.f32.mxu0 0.0
    %2803 = vmatmul.mubr.f32.gmra.mrb[0].mxu0 %v430
    %v2804 = vpop.f32.mrb[0].mxu0
    %v2805 = vadd.f32 %v2697, %v2804
    %v2806 = vpop.f32.mrb[0].mxu0
    %2807 = vmatprep.mubr.f32.mxu0 0.0
    %2808 = vmatmul.mubr.f32.gmra.mrb[0].mxu0 %v433
    %v2809 = vpop.f32.mrb[0].mxu0
    %v2810 = vadd.f32 %v2697, %v2809
    %v2811 = vpop.f32.mrb[0].mxu0
    %2812 = vmatprep.mubr.f32.mxu0 0.0
    %2813 = vmatmul.mubr.f32.gmra.mrb[0].mxu0 %v436
    %v2814 = vpop.f32.mrb[0].mxu0
    %v2815 = vadd.f32 %v2697, %v2814
    %v2816 = vpop.f32.mrb[0].mxu0
    %2817 = vmatprep.mubr.f32.mxu0 0.0
    %2818 = vmatmul.mubr.f32.gmra.mrb[0].mxu0 %v439
    %v2819 = vpop.f32.mrb[0].mxu0
    %v2820 = vadd.f32 %v2697, %v2819
    %v2821 = vpop.f32.mrb[0].mxu0
    %2822 = vmatprep.mubr.f32.mxu0 0.0
    %2823 = vmatmul.mubr.f32.gmra.mrb[0].mxu0 %v442
    %v2824 = vpop.f32.mrb[0].mxu0
    %v2825 = vadd.f32 %v2697, %v2824
    %v2826 = vpop.f32.mrb[0].mxu0
    %2827 = vmatprep.mubr.f32.mxu0 0.0
    %2828 = vmatmul.mubr.f32.gmra.mrb[0].mxu0 %v445
    %v2829 = vpop.f32.mrb[0].mxu0
    %v2830 = vadd.f32 %v2697, %v2829
    %v2831 = vpop.f32.mrb[0].mxu0
    %2832 = vmatprep.mubr.f32.mxu0 0.0
    %2833 = vmatmul.mubr.f32.gmra.mrb[0].mxu0 %v448
    %v2834 = vpop.f32.mrb[0].mxu0
    %v2835 = vadd.f32 %v2697, %v2834
    %v2836 = vpop.f32.mrb[0].mxu0
    %2837 = vmatprep.mubr.f32.mxu0 0.0
    %2838 = vmatmul.mubr.f32.gmra.mrb[0].mxu0 %v451
    %v2839 = vpop.f32.mrb[0].mxu0
    %v2840 = vadd.f32 %v2697, %v2839
    %v2841 = vpop.f32.mrb[0].mxu0
    %2842 = vdwg.mxu0
    %v2843 = vmul.f32 %v2765, 0.35355338
    %v2844 = vmul.f32 %v2770, 0.35355338
    %v2845 = vmul.f32 %v2775, 0.35355338
    %v2846 = vmul.f32 %v2780, 0.35355338
    %v2847 = vmul.f32 %v2785, 0.35355338
    %v2848 = vmul.f32 %v2790, 0.35355338
    %v2849 = vmul.f32 %v2795, 0.35355338
    %v2850 = vmul.f32 %v2800, 0.35355338
    %v2851 = vmul.f32 %v2805, 0.35355338
    %v2852 = vmul.f32 %v2810, 0.35355338
    %v2853 = vmul.f32 %v2815, 0.35355338
    %v2854 = vmul.f32 %v2820, 0.35355338
    %v2855 = vmul.f32 %v2825, 0.35355338
    %v2856 = vmul.f32 %v2830, 0.35355338
    %v2857 = vmul.f32 %v2835, 0.35355338
    %v2858 = vmul.f32 %v2840, 0.35355338
    %v2859 = vld [vmem:[%s9] sm:$0xff]
    %v2860 = vld [vmem:[%s9 + $0x8] sm:$0xff]
    %v2861 = vld [vmem:[%s9 + $0x10] sm:$0xff]
    %v2862 = vld [vmem:[%s9 + $0x18] sm:$0xff]
    %v2863 = vlaneseq
    %v2864 = vshrl.u32 %v2863, 7
    %v2865 = vsub.s32 6, %v2864
    %v2866 = vrot.slane %v50, %v2865
    %v2868 = vsel %vm70, %v2688, 0
    %v2871 = vsel %vm70, %v2689, 0
    %2873 = vmatprep.subr.mxu0 0.0
    %2874 = vmatpush1.msra.mxu0 %v2859
    %2875 = vmatprep.subr.mxu0 0.0
    %2876 = vmatpush1.msra.mxu0 %v2860
    %2877 = vmatprep.subr.mxu0 0.0
    %2878 = vmatpush1.msra.mxu0 %v2861
    %2879 = vmatprep.subr.mxu0 0.0
    %2880 = vmatpush1.msra.mxu0 %v2862
    %2881 = vmatprep.subr.mxu0 0.0
    %2882 = vmatpush1.msra.mxu0 0.0
    %2883 = vmatprep.subr.mxu0 0.0
    %2884 = vmatpush1.msra.mxu0 0.0
    %2885 = vmatprep.subr.mxu0 0.0
    %2886 = vmatpush1.msra.mxu0 0.0
    %2887 = vmatprep.subr.mxu0 0.0
    %2888 = vmatpush1.msra.mxu0 0.0
    %2889 = vmatprep.subr.mxu0 0.0
    %2890 = vmatpush1.msra.mxu0 0.0
    %2891 = vmatprep.subr.mxu0 0.0
    %2892 = vmatpush1.msra.mxu0 0.0
    %2893 = vmatprep.subr.mxu0 0.0
    %2894 = vmatpush1.msra.mxu0 0.0
    %2895 = vmatprep.subr.mxu0 0.0
    %2896 = vmatpush1.msra.mxu0 0.0
    %2897 = vmatprep.subr.mxu0 0.0
    %2898 = vmatpush1.msra.mxu0 0.0
    %2899 = vmatprep.subr.mxu0 0.0
    %2900 = vmatpush1.msra.mxu0 0.0
    %2901 = vmatprep.subr.mxu0 0.0
    %2902 = vmatpush1.msra.mxu0 0.0
    %2903 = vmatprep.subr.mxu0 0.0
    %2904 = vmatpush1.msra.mxu0 0.0
    %2905 = vmatprep.subr.mxu0 0.0
    %2906 = vmatpush1.msra.mxu0 0.0
    %2907 = vmatprep.subr.mxu0 0.0
    %2908 = vmatpush1.msra.mxu0 0.0
    %2909 = vmatprep.subr.mxu0 0.0
    %2910 = vmatpush1.msra.mxu0 0.0
    %2911 = vmatprep.subr.mxu0 0.0
    %2912 = vmatpush1.msra.mxu0 0.0
    %2913 = vmatprep.subr.mxu0 0.0
    %2914 = vmatpush1.msra.mxu0 0.0
    %2915 = vmatprep.subr.mxu0 0.0
    %2916 = vmatpush1.msra.mxu0 0.0
    %2917 = vmatprep.subr.mxu0 0.0
    %2918 = vmatpush1.msra.mxu0 0.0
    %2919 = vmatprep.subr.mxu0 0.0
    %2920 = vmatpush1.msra.mxu0 0.0
    %2921 = vmatprep.subr.mxu0 0.0
    %2922 = vmatpush1.msra.mxu0 0.0
    %2923 = vmatprep.subr.mxu0 0.0
    %2924 = vmatpush1.msra.mxu0 0.0
    %2925 = vmatprep.subr.mxu0 0.0
    %2926 = vmatpush1.msra.mxu0 0.0
    %2927 = vmatprep.subr.mxu0 0.0
    %2928 = vmatpush1.msra.mxu0 0.0
    %2929 = vmatprep.subr.mxu0 0.0
    %2930 = vmatpush1.msra.mxu0 0.0
    %2931 = vmatprep.subr.mxu0 0.0
    %2932 = vmatpush1.msra.mxu0 0.0
    %2933 = vmatprep.subr.mxu0 0.0
    %2934 = vmatpush1.msra.mxu0 0.0
    %2935 = vmatprep.subr.mxu0 0.0
    %2936 = vmatpush1.msra.mxu0 0.0
    %2937 = vmatprep.mubr.f32.mxu0 0.0
    %2938 = vmatmul.mubr.f32.gmra.mrb[0].mxu0 %v2868
    %v2939 = vpop.f32.mrb[0].mxu0
    %v2940 = vadd.f32 %v2866, %v2939
    %v2941 = vpop.f32.mrb[0].mxu0
    %2942 = vmatprep.mubr.f32.mxu0 0.0
    %2943 = vmatmul.mubr.f32.gmra.mrb[0].mxu0 %v2871
    %v2944 = vpop.f32.mrb[0].mxu0
    %v2945 = vadd.f32 %v2866, %v2944
    %v2946 = vpop.f32.mrb[0].mxu0
    %2947 = vdwg.mxu0
    %v2949 = vsel %vm598, %v2940, 0
    %v2952 = vsel %vm598, %v2843, 0
    %v2955 = vsel %vm598, %v2844, 0
    %v2958 = vsel %vm598, %v2845, 0
    %v2961 = vsel %vm598, %v2846, 0
    %v2964 = vsel %vm598, %v2847, 0
    %v2967 = vsel %vm598, %v2848, 0
    %v2970 = vsel %vm598, %v2849, 0
    %v2973 = vsel %vm598, %v2850, 0
    %2975 = vmatprep.subr.mxu0 0.0
    %2976 = vmatpush1.xpose.msra.mxu0 %v2952
    %2977 = vmatprep.subr.mxu0 0.0
    %2978 = vmatpush1.xpose.msra.mxu0 %v2955
    %2979 = vmatprep.subr.mxu0 0.0
    %2980 = vmatpush1.xpose.msra.mxu0 %v2958
    %2981 = vmatprep.subr.mxu0 0.0
    %2982 = vmatpush1.xpose.msra.mxu0 %v2961
    %2983 = vmatprep.subr.mxu0 0.0
    %2984 = vmatpush1.xpose.msra.mxu0 %v2964
    %2985 = vmatprep.subr.mxu0 0.0
    %2986 = vmatpush1.xpose.msra.mxu0 %v2967
    %2987 = vmatprep.subr.mxu0 0.0
    %2988 = vmatpush1.xpose.msra.mxu0 %v2970
    %2989 = vmatprep.subr.mxu0 0.0
    %2990 = vmatpush1.xpose.msra.mxu0 %v2973
    %2991 = vmatprep.subr.mxu0 0.0
    %2992 = vmatpush1.xpose.msra.mxu0 0.0
    %2993 = vmatprep.subr.mxu0 0.0
    %2994 = vmatpush1.xpose.msra.mxu0 0.0
    %2995 = vmatprep.subr.mxu0 0.0
    %2996 = vmatpush1.xpose.msra.mxu0 0.0
    %2997 = vmatprep.subr.mxu0 0.0
    %2998 = vmatpush1.xpose.msra.mxu0 0.0
    %2999 = vmatprep.subr.mxu0 0.0
    %3000 = vmatpush1.xpose.msra.mxu0 0.0
    %3001 = vmatprep.subr.mxu0 0.0
    %3002 = vmatpush1.xpose.msra.mxu0 0.0
    %3003 = vmatprep.subr.mxu0 0.0
    %3004 = vmatpush1.xpose.msra.mxu0 0.0
    %3005 = vmatprep.subr.mxu0 0.0
    %3006 = vmatpush1.xpose.msra.mxu0 0.0
    %3007 = vmatprep.subr.mxu0 0.0
    %3008 = vmatpush1.xpose.msra.mxu0 0.0
    %3009 = vmatprep.subr.mxu0 0.0
    %3010 = vmatpush1.xpose.msra.mxu0 0.0
    %3011 = vmatprep.subr.mxu0 0.0
    %3012 = vmatpush1.xpose.msra.mxu0 0.0
    %3013 = vmatprep.subr.mxu0 0.0
    %3014 = vmatpush1.xpose.msra.mxu0 0.0
    %3015 = vmatprep.subr.mxu0 0.0
    %3016 = vmatpush1.xpose.msra.mxu0 0.0
    %3017 = vmatprep.subr.mxu0 0.0
    %3018 = vmatpush1.xpose.msra.mxu0 0.0
    %3019 = vmatprep.subr.mxu0 0.0
    %3020 = vmatpush1.xpose.msra.mxu0 0.0
    %3021 = vmatprep.subr.mxu0 0.0
    %3022 = vmatpush1.xpose.msra.mxu0 0.0
    %3023 = vmatprep.subr.mxu0 0.0
    %3024 = vmatpush1.xpose.msra.mxu0 0.0
    %3025 = vmatprep.subr.mxu0 0.0
    %3026 = vmatpush1.xpose.msra.mxu0 0.0
    %3027 = vmatprep.subr.mxu0 0.0
    %3028 = vmatpush1.xpose.msra.mxu0 0.0
    %3029 = vmatprep.subr.mxu0 0.0
    %3030 = vmatpush1.xpose.msra.mxu0 0.0
    %3031 = vmatprep.subr.mxu0 0.0
    %3032 = vmatpush1.xpose.msra.mxu0 0.0
    %3033 = vmatprep.subr.mxu0 0.0
    %3034 = vmatpush1.xpose.msra.mxu0 0.0
    %3035 = vmatprep.subr.mxu0 0.0
    %3036 = vmatpush1.xpose.msra.mxu0 0.0
    %3037 = vmatprep.subr.mxu0 0.0
    %3038 = vmatpush1.xpose.msra.mxu0 0.0
    %3039 = vmatprep.mubr.f32.mxu0 0.0
    %3040 = vmatmul.mubr.f32.gmra.mrb[0].mxu0 %v2949
    %v3041 = vpop.f32.mrb[0].mxu0
    %v3042 = vadd.f32 0.0, %v3041
    %v3043 = vpop.f32.mrb[0].mxu0
    %3044 = vdwg.mxu0
    %v3045 = vsel %vm696, %v3042, -inf
    %v3046 = vrot.slane %v3045, 4
    %v3047 = vmax.f32 %v3045, %v3046
    %v3048 = vrot.slane %v3047, 2
    %v3049 = vmax.f32 %v3047, %v3048
    %v3050 = vrot.slane %v3049, 1
    %v3051 = vmax.f32 %v3049, %v3050
    %v3052 = vsub.f32 %v3042, %v3051
    %v3053 = vmul.f32 %v3052, 1.442695
    %v3054 = vpow.pop %v3053
    %v3055 = vsel %vm696, %v3054, 0.0
    %v3056 = vrot.slane %v3055, 4
    %v3057 = vadd.f32 %v3055, %v3056
    %v3058 = vrot.slane %v3057, 2
    %v3059 = vadd.f32 %v3057, %v3058
    %v3060 = vrot.slane %v3059, 1
    %v3061 = vadd.f32 %v3059, %v3060
    %v3062 = vrcp.pop %v3061
    %v3063 = vmul.f32 %v3054, %v3062
    %3064 = vxpose.xlu0.b32.start [1/16] %v3063, 128
    %3065 = vxpose.xlu0.b32.cont [2/16] 0.0, 128
    %3066 = vxpose.xlu0.b32.cont [3/16] 0.0, 128
    %3067 = vxpose.xlu0.b32.cont [4/16] 0.0, 128
    %3068 = vxpose.xlu0.b32.cont [5/16] 0.0, 128
    %3069 = vxpose.xlu0.b32.cont [6/16] 0.0, 128
    %3070 = vxpose.xlu0.b32.cont [7/16] 0.0, 128
    %3071 = vxpose.xlu0.b32.cont [8/16] 0.0, 128
    %3072 = vxpose.xlu0.b32.cont [9/16] 0.0, 128
    %3073 = vxpose.xlu0.b32.cont [10/16] 0.0, 128
    %3074 = vxpose.xlu0.b32.cont [11/16] 0.0, 128
    %3075 = vxpose.xlu0.b32.cont [12/16] 0.0, 128
    %3076 = vxpose.xlu0.b32.cont [13/16] 0.0, 128
    %3077 = vxpose.xlu0.b32.cont [14/16] 0.0, 128
    %3078 = vxpose.xlu0.b32.cont [15/16] 0.0, 128
    %3079 = vxpose.xlu0.b32.end [16/16] 0.0, 128
    %v3080 = vpop.trf.xlu0
    %v3081 = vpop.trf.xlu0
    %v3082 = vpop.trf.xlu0
    %v3083 = vpop.trf.xlu0
    %v3084 = vpop.trf.xlu0
    %v3085 = vpop.trf.xlu0
    %v3086 = vpop.trf.xlu0
    %v3087 = vpop.trf.xlu0
    %v3088 = vpop.trf.xlu0
    %v3089 = vpop.trf.xlu0
    %v3090 = vpop.trf.xlu0
    %v3091 = vpop.trf.xlu0
    %v3092 = vpop.trf.xlu0
    %v3093 = vpop.trf.xlu0
    %v3094 = vpop.trf.xlu0
    %v3095 = vpop.trf.xlu0
    %3096 = vrot.lane.b32.xlu0 %v2940, 96
    %v3097 = vpop.permute.xlu0 %3096
    %v3100 = vsel %vm598, %v3080, 0
    %v3103 = vsel %vm598, %v3081, 0
    %v3106 = vsel %vm598, %v3082, 0
    %v3109 = vsel %vm598, %v3083, 0
    %v3112 = vsel %vm598, %v3084, 0
    %v3115 = vsel %vm598, %v3085, 0
    %v3118 = vsel %vm598, %v3086, 0
    %v3121 = vsel %vm598, %v3087, 0
    %3123 = vmatprep.subr.mxu0 0.0
    %3124 = vmatpush1.msra.mxu0 %v3097
    %3125 = vmatprep.subr.mxu0 0.0
    %3126 = vmatpush1.msra.mxu0 0.0
    %3127 = vmatprep.subr.mxu0 0.0
    %3128 = vmatpush1.msra.mxu0 0.0
    %3129 = vmatprep.subr.mxu0 0.0
    %3130 = vmatpush1.msra.mxu0 0.0
    %3131 = vmatprep.subr.mxu0 0.0
    %3132 = vmatpush1.msra.mxu0 0.0
    %3133 = vmatprep.subr.mxu0 0.0
    %3134 = vmatpush1.msra.mxu0 0.0
    %3135 = vmatprep.subr.mxu0 0.0
    %3136 = vmatpush1.msra.mxu0 0.0
    %3137 = vmatprep.subr.mxu0 0.0
    %3138 = vmatpush1.msra.mxu0 0.0
    %3139 = vmatprep.subr.mxu0 0.0
    %3140 = vmatpush1.msra.mxu0 0.0
    %3141 = vmatprep.subr.mxu0 0.0
    %3142 = vmatpush1.msra.mxu0 0.0
    %3143 = vmatprep.subr.mxu0 0.0
    %3144 = vmatpush1.msra.mxu0 0.0
    %3145 = vmatprep.subr.mxu0 0.0
    %3146 = vmatpush1.msra.mxu0 0.0
    %3147 = vmatprep.subr.mxu0 0.0
    %3148 = vmatpush1.msra.mxu0 0.0
    %3149 = vmatprep.subr.mxu0 0.0
    %3150 = vmatpush1.msra.mxu0 0.0
    %3151 = vmatprep.subr.mxu0 0.0
    %3152 = vmatpush1.msra.mxu0 0.0
    %3153 = vmatprep.subr.mxu0 0.0
    %3154 = vmatpush1.msra.mxu0 0.0
    %3155 = vmatprep.subr.mxu0 0.0
    %3156 = vmatpush1.msra.mxu0 0.0
    %3157 = vmatprep.subr.mxu0 0.0
    %3158 = vmatpush1.msra.mxu0 0.0
    %3159 = vmatprep.subr.mxu0 0.0
    %3160 = vmatpush1.msra.mxu0 0.0
    %3161 = vmatprep.subr.mxu0 0.0
    %3162 = vmatpush1.msra.mxu0 0.0
    %3163 = vmatprep.subr.mxu0 0.0
    %3164 = vmatpush1.msra.mxu0 0.0
    %3165 = vmatprep.subr.mxu0 0.0
    %3166 = vmatpush1.msra.mxu0 0.0
    %3167 = vmatprep.subr.mxu0 0.0
    %3168 = vmatpush1.msra.mxu0 0.0
    %3169 = vmatprep.subr.mxu0 0.0
    %3170 = vmatpush1.msra.mxu0 0.0
    %3171 = vmatprep.subr.mxu0 0.0
    %3172 = vmatpush1.msra.mxu0 0.0
    %3173 = vmatprep.subr.mxu0 0.0
    %3174 = vmatpush1.msra.mxu0 0.0
    %3175 = vmatprep.subr.mxu0 0.0
    %3176 = vmatpush1.msra.mxu0 0.0
    %3177 = vmatprep.subr.mxu0 0.0
    %3178 = vmatpush1.msra.mxu0 0.0
    %3179 = vmatprep.subr.mxu0 0.0
    %3180 = vmatpush1.msra.mxu0 0.0
    %3181 = vmatprep.subr.mxu0 0.0
    %3182 = vmatpush1.msra.mxu0 0.0
    %3183 = vmatprep.subr.mxu0 0.0
    %3184 = vmatpush1.msra.mxu0 0.0
    %3185 = vmatprep.subr.mxu0 0.0
    %3186 = vmatpush1.msra.mxu0 0.0
    %3187 = vmatprep.mubr.f32.mxu0 0.0
    %3188 = vmatmul.mubr.f32.gmra.mrb[0].mxu0 %v3100
    %v3189 = vpop.f32.mrb[0].mxu0
    %v3190 = vadd.f32 0.0, %v3189
    %v3191 = vpop.f32.mrb[0].mxu0
    %3192 = vmatprep.mubr.f32.mxu0 0.0
    %3193 = vmatmul.mubr.f32.gmra.mrb[0].mxu0 %v3103
    %v3194 = vpop.f32.mrb[0].mxu0
    %v3195 = vadd.f32 0.0, %v3194
    %v3196 = vpop.f32.mrb[0].mxu0
    %3197 = vmatprep.mubr.f32.mxu0 0.0
    %3198 = vmatmul.mubr.f32.gmra.mrb[0].mxu0 %v3106
    %v3199 = vpop.f32.mrb[0].mxu0
    %v3200 = vadd.f32 0.0, %v3199
    %v3201 = vpop.f32.mrb[0].mxu0
    %3202 = vmatprep.mubr.f32.mxu0 0.0
    %3203 = vmatmul.mubr.f32.gmra.mrb[0].mxu0 %v3109
    %v3204 = vpop.f32.mrb[0].mxu0
    %v3205 = vadd.f32 0.0, %v3204
    %v3206 = vpop.f32.mrb[0].mxu0
    %3207 = vmatprep.mubr.f32.mxu0 0.0
    %3208 = vmatmul.mubr.f32.gmra.mrb[0].mxu0 %v3112
    %v3209 = vpop.f32.mrb[0].mxu0
    %v3210 = vadd.f32 0.0, %v3209
    %v3211 = vpop.f32.mrb[0].mxu0
    %3212 = vmatprep.mubr.f32.mxu0 0.0
    %3213 = vmatmul.mubr.f32.gmra.mrb[0].mxu0 %v3115
    %v3214 = vpop.f32.mrb[0].mxu0
    %v3215 = vadd.f32 0.0, %v3214
    %v3216 = vpop.f32.mrb[0].mxu0
    %3217 = vmatprep.mubr.f32.mxu0 0.0
    %3218 = vmatmul.mubr.f32.gmra.mrb[0].mxu0 %v3118
    %v3219 = vpop.f32.mrb[0].mxu0
    %v3220 = vadd.f32 0.0, %v3219
    %v3221 = vpop.f32.mrb[0].mxu0
    %3222 = vmatprep.mubr.f32.mxu0 0.0
    %3223 = vmatmul.mubr.f32.gmra.mrb[0].mxu0 %v3121
    %v3224 = vpop.f32.mrb[0].mxu0
    %v3225 = vadd.f32 0.0, %v3224
    %v3226 = vpop.f32.mrb[0].mxu0
    %3227 = vdwg.mxu0
    %3228 = vrot.lane.b32.xlu0 %v2940, 120
    %v3229 = vpop.permute.xlu0 %3228
    %3230 = vrot.lane.b32.xlu0 %v2843, 120
    %v3231 = vpop.permute.xlu0 %3230
    %3232 = vrot.lane.b32.xlu0 %v2844, 120
    %v3233 = vpop.permute.xlu0 %3232
    %3234 = vrot.lane.b32.xlu0 %v2845, 120
    %v3235 = vpop.permute.xlu0 %3234
    %3236 = vrot.lane.b32.xlu0 %v2846, 120
    %v3237 = vpop.permute.xlu0 %3236
    %3238 = vrot.lane.b32.xlu0 %v2847, 120
    %v3239 = vpop.permute.xlu0 %3238
    %3240 = vrot.lane.b32.xlu0 %v2848, 120
    %v3241 = vpop.permute.xlu0 %3240
    %3242 = vrot.lane.b32.xlu0 %v2849, 120
    %v3243 = vpop.permute.xlu0 %3242
    %3244 = vrot.lane.b32.xlu0 %v2850, 120
    %v3245 = vpop.permute.xlu0 %3244
    %v3246 = vsel %vm598, %v3229, 0
    %v3248 = vsel %vm598, %v3231, 0
    %v3250 = vsel %vm598, %v3233, 0
    %v3252 = vsel %vm598, %v3235, 0
    %v3254 = vsel %vm598, %v3237, 0
    %v3256 = vsel %vm598, %v3239, 0
    %v3258 = vsel %vm598, %v3241, 0
    %v3260 = vsel %vm598, %v3243, 0
    %v3262 = vsel %vm598, %v3245, 0
    %3264 = vmatprep.subr.mxu0 0.0
    %3265 = vmatpush1.xpose.msra.mxu0 %v3248
    %3266 = vmatprep.subr.mxu0 0.0
    %3267 = vmatpush1.xpose.msra.mxu0 %v3250
    %3268 = vmatprep.subr.mxu0 0.0
    %3269 = vmatpush1.xpose.msra.mxu0 %v3252
    %3270 = vmatprep.subr.mxu0 0.0
    %3271 = vmatpush1.xpose.msra.mxu0 %v3254
    %3272 = vmatprep.subr.mxu0 0.0
    %3273 = vmatpush1.xpose.msra.mxu0 %v3256
    %3274 = vmatprep.subr.mxu0 0.0
    %3275 = vmatpush1.xpose.msra.mxu0 %v3258
    %3276 = vmatprep.subr.mxu0 0.0
    %3277 = vmatpush1.xpose.msra.mxu0 %v3260
    %3278 = vmatprep.subr.mxu0 0.0
    %3279 = vmatpush1.xpose.msra.mxu0 %v3262
    %3280 = vmatprep.subr.mxu0 0.0
    %3281 = vmatpush1.xpose.msra.mxu0 0.0
    %3282 = vmatprep.subr.mxu0 0.0
    %3283 = vmatpush1.xpose.msra.mxu0 0.0
    %3284 = vmatprep.subr.mxu0 0.0
    %3285 = vmatpush1.xpose.msra.mxu0 0.0
    %3286 = vmatprep.subr.mxu0 0.0
    %3287 = vmatpush1.xpose.msra.mxu0 0.0
    %3288 = vmatprep.subr.mxu0 0.0
    %3289 = vmatpush1.xpose.msra.mxu0 0.0
    %3290 = vmatprep.subr.mxu0 0.0
    %3291 = vmatpush1.xpose.msra.mxu0 0.0
    %3292 = vmatprep.subr.mxu0 0.0
    %3293 = vmatpush1.xpose.msra.mxu0 0.0
    %3294 = vmatprep.subr.mxu0 0.0
    %3295 = vmatpush1.xpose.msra.mxu0 0.0
    %3296 = vmatprep.subr.mxu0 0.0
    %3297 = vmatpush1.xpose.msra.mxu0 0.0
    %3298 = vmatprep.subr.mxu0 0.0
    %3299 = vmatpush1.xpose.msra.mxu0 0.0
    %3300 = vmatprep.subr.mxu0 0.0
    %3301 = vmatpush1.xpose.msra.mxu0 0.0
    %3302 = vmatprep.subr.mxu0 0.0
    %3303 = vmatpush1.xpose.msra.mxu0 0.0
    %3304 = vmatprep.subr.mxu0 0.0
    %3305 = vmatpush1.xpose.msra.mxu0 0.0
    %3306 = vmatprep.subr.mxu0 0.0
    %3307 = vmatpush1.xpose.msra.mxu0 0.0
    %3308 = vmatprep.subr.mxu0 0.0
    %3309 = vmatpush1.xpose.msra.mxu0 0.0
    %3310 = vmatprep.subr.mxu0 0.0
    %3311 = vmatpush1.xpose.msra.mxu0 0.0
    %3312 = vmatprep.subr.mxu0 0.0
    %3313 = vmatpush1.xpose.msra.mxu0 0.0
    %3314 = vmatprep.subr.mxu0 0.0
    %3315 = vmatpush1.xpose.msra.mxu0 0.0
    %3316 = vmatprep.subr.mxu0 0.0
    %3317 = vmatpush1.xpose.msra.mxu0 0.0
    %3318 = vmatprep.subr.mxu0 0.0
    %3319 = vmatpush1.xpose.msra.mxu0 0.0
    %3320 = vmatprep.subr.mxu0 0.0
    %3321 = vmatpush1.xpose.msra.mxu0 0.0
    %3322 = vmatprep.subr.mxu0 0.0
    %3323 = vmatpush1.xpose.msra.mxu0 0.0
    %3324 = vmatprep.subr.mxu0 0.0
    %3325 = vmatpush1.xpose.msra.mxu0 0.0
    %3326 = vmatprep.subr.mxu0 0.0
    %3327 = vmatpush1.xpose.msra.mxu0 0.0
    %3328 = vmatprep.mubr.f32.mxu0 0.0
    %3329 = vmatmul.mubr.f32.gmra.mrb[0].mxu0 %v3246
    %v3330 = vpop.f32.mrb[0].mxu0
    %v3331 = vadd.f32 0.0, %v3330
    %v3332 = vpop.f32.mrb[0].mxu0
    %3333 = vdwg.mxu0
    %v3334 = vsel %vm696, %v3331, -inf
    %v3335 = vrot.slane %v3334, 4
    %v3336 = vmax.f32 %v3334, %v3335
    %v3337 = vrot.slane %v3336, 2
    %v3338 = vmax.f32 %v3336, %v3337
    %v3339 = vrot.slane %v3338, 1
    %v3340 = vmax.f32 %v3338, %v3339
    %v3341 = vsub.f32 %v3331, %v3340
    %v3342 = vmul.f32 %v3341, 1.442695
    %v3343 = vpow.pop %v3342
    %v3344 = vsel %vm696, %v3343, 0.0
    %v3345 = vrot.slane %v3344, 4
    %v3346 = vadd.f32 %v3344, %v3345
    %v3347 = vrot.slane %v3346, 2
    %v3348 = vadd.f32 %v3346, %v3347
    %v3349 = vrot.slane %v3348, 1
    %v3350 = vadd.f32 %v3348, %v3349
    %v3351 = vrcp.pop %v3350
    %v3352 = vmul.f32 %v3343, %v3351
    %3353 = vxpose.xlu0.b32.start [1/16] %v3352, 128
    %3354 = vxpose.xlu0.b32.cont [2/16] 0.0, 128
    %3355 = vxpose.xlu0.b32.cont [3/16] 0.0, 128
    %3356 = vxpose.xlu0.b32.cont [4/16] 0.0, 128
    %3357 = vxpose.xlu0.b32.cont [5/16] 0.0, 128
    %3358 = vxpose.xlu0.b32.cont [6/16] 0.0, 128
    %3359 = vxpose.xlu0.b32.cont [7/16] 0.0, 128
    %3360 = vxpose.xlu0.b32.cont [8/16] 0.0, 128
    %3361 = vxpose.xlu0.b32.cont [9/16] 0.0, 128
    %3362 = vxpose.xlu0.b32.cont [10/16] 0.0, 128
    %3363 = vxpose.xlu0.b32.cont [11/16] 0.0, 128
    %3364 = vxpose.xlu0.b32.cont [12/16] 0.0, 128
    %3365 = vxpose.xlu0.b32.cont [13/16] 0.0, 128
    %3366 = vxpose.xlu0.b32.cont [14/16] 0.0, 128
    %3367 = vxpose.xlu0.b32.cont [15/16] 0.0, 128
    %3368 = vxpose.xlu0.b32.end [16/16] 0.0, 128
    %v3369 = vpop.trf.xlu0
    %v3370 = vpop.trf.xlu0
    %v3371 = vpop.trf.xlu0
    %v3372 = vpop.trf.xlu0
    %v3373 = vpop.trf.xlu0
    %v3374 = vpop.trf.xlu0
    %v3375 = vpop.trf.xlu0
    %v3376 = vpop.trf.xlu0
    %v3377 = vpop.trf.xlu0
    %v3378 = vpop.trf.xlu0
    %v3379 = vpop.trf.xlu0
    %v3380 = vpop.trf.xlu0
    %v3381 = vpop.trf.xlu0
    %v3382 = vpop.trf.xlu0
    %v3383 = vpop.trf.xlu0
    %v3384 = vpop.trf.xlu0
    %3385 = vrot.lane.b32.xlu0 %v2940, 88
    %v3386 = vpop.permute.xlu0 %3385
    %v3389 = vsel %vm598, %v3369, 0
    %v3392 = vsel %vm598, %v3370, 0
    %v3395 = vsel %vm598, %v3371, 0
    %v3398 = vsel %vm598, %v3372, 0
    %v3401 = vsel %vm598, %v3373, 0
    %v3404 = vsel %vm598, %v3374, 0
    %v3407 = vsel %vm598, %v3375, 0
    %v3410 = vsel %vm598, %v3376, 0
    %3412 = vmatprep.subr.mxu0 0.0
    %3413 = vmatpush1.msra.mxu0 %v3386
    %3414 = vmatprep.subr.mxu0 0.0
    %3415 = vmatpush1.msra.mxu0 0.0
    %3416 = vmatprep.subr.mxu0 0.0
    %3417 = vmatpush1.msra.mxu0 0.0
    %3418 = vmatprep.subr.mxu0 0.0
    %3419 = vmatpush1.msra.mxu0 0.0
    %3420 = vmatprep.subr.mxu0 0.0
    %3421 = vmatpush1.msra.mxu0 0.0
    %3422 = vmatprep.subr.mxu0 0.0
    %3423 = vmatpush1.msra.mxu0 0.0
    %3424 = vmatprep.subr.mxu0 0.0
    %3425 = vmatpush1.msra.mxu0 0.0
    %3426 = vmatprep.subr.mxu0 0.0
    %3427 = vmatpush1.msra.mxu0 0.0
    %3428 = vmatprep.subr.mxu0 0.0
    %3429 = vmatpush1.msra.mxu0 0.0
    %3430 = vmatprep.subr.mxu0 0.0
    %3431 = vmatpush1.msra.mxu0 0.0
    %3432 = vmatprep.subr.mxu0 0.0
    %3433 = vmatpush1.msra.mxu0 0.0
    %3434 = vmatprep.subr.mxu0 0.0
    %3435 = vmatpush1.msra.mxu0 0.0
    %3436 = vmatprep.subr.mxu0 0.0
    %3437 = vmatpush1.msra.mxu0 0.0
    %3438 = vmatprep.subr.mxu0 0.0
    %3439 = vmatpush1.msra.mxu0 0.0
    %3440 = vmatprep.subr.mxu0 0.0
    %3441 = vmatpush1.msra.mxu0 0.0
    %3442 = vmatprep.subr.mxu0 0.0
    %3443 = vmatpush1.msra.mxu0 0.0
    %3444 = vmatprep.subr.mxu0 0.0
    %3445 = vmatpush1.msra.mxu0 0.0
    %3446 = vmatprep.subr.mxu0 0.0
    %3447 = vmatpush1.msra.mxu0 0.0
    %3448 = vmatprep.subr.mxu0 0.0
    %3449 = vmatpush1.msra.mxu0 0.0
    %3450 = vmatprep.subr.mxu0 0.0
    %3451 = vmatpush1.msra.mxu0 0.0
    %3452 = vmatprep.subr.mxu0 0.0
    %3453 = vmatpush1.msra.mxu0 0.0
    %3454 = vmatprep.subr.mxu0 0.0
    %3455 = vmatpush1.msra.mxu0 0.0
    %3456 = vmatprep.subr.mxu0 0.0
    %3457 = vmatpush1.msra.mxu0 0.0
    %3458 = vmatprep.subr.mxu0 0.0
    %3459 = vmatpush1.msra.mxu0 0.0
    %3460 = vmatprep.subr.mxu0 0.0
    %3461 = vmatpush1.msra.mxu0 0.0
    %3462 = vmatprep.subr.mxu0 0.0
    %3463 = vmatpush1.msra.mxu0 0.0
    %3464 = vmatprep.subr.mxu0 0.0
    %3465 = vmatpush1.msra.mxu0 0.0
    %3466 = vmatprep.subr.mxu0 0.0
    %3467 = vmatpush1.msra.mxu0 0.0
    %3468 = vmatprep.subr.mxu0 0.0
    %3469 = vmatpush1.msra.mxu0 0.0
    %3470 = vmatprep.subr.mxu0 0.0
    %3471 = vmatpush1.msra.mxu0 0.0
    %3472 = vmatprep.subr.mxu0 0.0
    %3473 = vmatpush1.msra.mxu0 0.0
    %3474 = vmatprep.subr.mxu0 0.0
    %3475 = vmatpush1.msra.mxu0 0.0
    %3476 = vmatprep.mubr.f32.mxu0 0.0
    %3477 = vmatmul.mubr.f32.gmra.mrb[0].mxu0 %v3389
    %v3478 = vpop.f32.mrb[0].mxu0
    %v3479 = vadd.f32 0.0, %v3478
    %v3480 = vpop.f32.mrb[0].mxu0
    %3481 = vmatprep.mubr.f32.mxu0 0.0
    %3482 = vmatmul.mubr.f32.gmra.mrb[0].mxu0 %v3392
    %v3483 = vpop.f32.mrb[0].mxu0
    %v3484 = vadd.f32 0.0, %v3483
    %v3485 = vpop.f32.mrb[0].mxu0
    %3486 = vmatprep.mubr.f32.mxu0 0.0
    %3487 = vmatmul.mubr.f32.gmra.mrb[0].mxu0 %v3395
    %v3488 = vpop.f32.mrb[0].mxu0
    %v3489 = vadd.f32 0.0, %v3488
    %v3490 = vpop.f32.mrb[0].mxu0
    %3491 = vmatprep.mubr.f32.mxu0 0.0
    %3492 = vmatmul.mubr.f32.gmra.mrb[0].mxu0 %v3398
    %v3493 = vpop.f32.mrb[0].mxu0
    %v3494 = vadd.f32 0.0, %v3493
    %v3495 = vpop.f32.mrb[0].mxu0
    %3496 = vmatprep.mubr.f32.mxu0 0.0
    %3497 = vmatmul.mubr.f32.gmra.mrb[0].mxu0 %v3401
    %v3498 = vpop.f32.mrb[0].mxu0
    %v3499 = vadd.f32 0.0, %v3498
    %v3500 = vpop.f32.mrb[0].mxu0
    %3501 = vmatprep.mubr.f32.mxu0 0.0
    %3502 = vmatmul.mubr.f32.gmra.mrb[0].mxu0 %v3404
    %v3503 = vpop.f32.mrb[0].mxu0
    %v3504 = vadd.f32 0.0, %v3503
    %v3505 = vpop.f32.mrb[0].mxu0
    %3506 = vmatprep.mubr.f32.mxu0 0.0
    %3507 = vmatmul.mubr.f32.gmra.mrb[0].mxu0 %v3407
    %v3508 = vpop.f32.mrb[0].mxu0
    %v3509 = vadd.f32 0.0, %v3508
    %v3510 = vpop.f32.mrb[0].mxu0
    %3511 = vmatprep.mubr.f32.mxu0 0.0
    %3512 = vmatmul.mubr.f32.gmra.mrb[0].mxu0 %v3410
    %v3513 = vpop.f32.mrb[0].mxu0
    %v3514 = vadd.f32 0.0, %v3513
    %v3515 = vpop.f32.mrb[0].mxu0
    %3516 = vdwg.mxu0
    %3517 = vrot.lane.b32.xlu0 %v2940, 112
    %v3518 = vpop.permute.xlu0 %3517
    %3519 = vrot.lane.b32.xlu0 %v2843, 112
    %v3520 = vpop.permute.xlu0 %3519
    %3521 = vrot.lane.b32.xlu0 %v2844, 112
    %v3522 = vpop.permute.xlu0 %3521
    %3523 = vrot.lane.b32.xlu0 %v2845, 112
    %v3524 = vpop.permute.xlu0 %3523
    %3525 = vrot.lane.b32.xlu0 %v2846, 112
    %v3526 = vpop.permute.xlu0 %3525
    %3527 = vrot.lane.b32.xlu0 %v2847, 112
    %v3528 = vpop.permute.xlu0 %3527
    %3529 = vrot.lane.b32.xlu0 %v2848, 112
    %v3530 = vpop.permute.xlu0 %3529
    %3531 = vrot.lane.b32.xlu0 %v2849, 112
    %v3532 = vpop.permute.xlu0 %3531
    %3533 = vrot.lane.b32.xlu0 %v2850, 112
    %v3534 = vpop.permute.xlu0 %3533
    %v3535 = vsel %vm598, %v3518, 0
    %v3537 = vsel %vm598, %v3520, 0
    %v3539 = vsel %vm598, %v3522, 0
    %v3541 = vsel %vm598, %v3524, 0
    %v3543 = vsel %vm598, %v3526, 0
    %v3545 = vsel %vm598, %v3528, 0
    %v3547 = vsel %vm598, %v3530, 0
    %v3549 = vsel %vm598, %v3532, 0
    %v3551 = vsel %vm598, %v3534, 0
    %3553 = vmatprep.subr.mxu0 0.0
    %3554 = vmatpush1.xpose.msra.mxu0 %v3537
    %3555 = vmatprep.subr.mxu0 0.0
    %3556 = vmatpush1.xpose.msra.mxu0 %v3539
    %3557 = vmatprep.subr.mxu0 0.0
    %3558 = vmatpush1.xpose.msra.mxu0 %v3541
    %3559 = vmatprep.subr.mxu0 0.0
    %3560 = vmatpush1.xpose.msra.mxu0 %v3543
    %3561 = vmatprep.subr.mxu0 0.0
    %3562 = vmatpush1.xpose.msra.mxu0 %v3545
    %3563 = vmatprep.subr.mxu0 0.0
    %3564 = vmatpush1.xpose.msra.mxu0 %v3547
    %3565 = vmatprep.subr.mxu0 0.0
    %3566 = vmatpush1.xpose.msra.mxu0 %v3549
    %3567 = vmatprep.subr.mxu0 0.0
    %3568 = vmatpush1.xpose.msra.mxu0 %v3551
    %3569 = vmatprep.subr.mxu0 0.0
    %3570 = vmatpush1.xpose.msra.mxu0 0.0
    %3571 = vmatprep.subr.mxu0 0.0
    %3572 = vmatpush1.xpose.msra.mxu0 0.0
    %3573 = vmatprep.subr.mxu0 0.0
    %3574 = vmatpush1.xpose.msra.mxu0 0.0
    %3575 = vmatprep.subr.mxu0 0.0
    %3576 = vmatpush1.xpose.msra.mxu0 0.0
    %3577 = vmatprep.subr.mxu0 0.0
    %3578 = vmatpush1.xpose.msra.mxu0 0.0
    %3579 = vmatprep.subr.mxu0 0.0
    %3580 = vmatpush1.xpose.msra.mxu0 0.0
    %3581 = vmatprep.subr.mxu0 0.0
    %3582 = vmatpush1.xpose.msra.mxu0 0.0
    %3583 = vmatprep.subr.mxu0 0.0
    %3584 = vmatpush1.xpose.msra.mxu0 0.0
    %3585 = vmatprep.subr.mxu0 0.0
    %3586 = vmatpush1.xpose.msra.mxu0 0.0
    %3587 = vmatprep.subr.mxu0 0.0
    %3588 = vmatpush1.xpose.msra.mxu0 0.0
    %3589 = vmatprep.subr.mxu0 0.0
    %3590 = vmatpush1.xpose.msra.mxu0 0.0
    %3591 = vmatprep.subr.mxu0 0.0
    %3592 = vmatpush1.xpose.msra.mxu0 0.0
    %3593 = vmatprep.subr.mxu0 0.0
    %3594 = vmatpush1.xpose.msra.mxu0 0.0
    %3595 = vmatprep.subr.mxu0 0.0
    %3596 = vmatpush1.xpose.msra.mxu0 0.0
    %3597 = vmatprep.subr.mxu0 0.0
    %3598 = vmatpush1.xpose.msra.mxu0 0.0
    %3599 = vmatprep.subr.mxu0 0.0
    %3600 = vmatpush1.xpose.msra.mxu0 0.0
    %3601 = vmatprep.subr.mxu0 0.0
    %3602 = vmatpush1.xpose.msra.mxu0 0.0
    %3603 = vmatprep.subr.mxu0 0.0
    %3604 = vmatpush1.xpose.msra.mxu0 0.0
    %3605 = vmatprep.subr.mxu0 0.0
    %3606 = vmatpush1.xpose.msra.mxu0 0.0
    %3607 = vmatprep.subr.mxu0 0.0
    %3608 = vmatpush1.xpose.msra.mxu0 0.0
    %3609 = vmatprep.subr.mxu0 0.0
    %3610 = vmatpush1.xpose.msra.mxu0 0.0
    %3611 = vmatprep.subr.mxu0 0.0
    %3612 = vmatpush1.xpose.msra.mxu0 0.0
    %3613 = vmatprep.subr.mxu0 0.0
    %3614 = vmatpush1.xpose.msra.mxu0 0.0
    %3615 = vmatprep.subr.mxu0 0.0
    %3616 = vmatpush1.xpose.msra.mxu0 0.0
    %3617 = vmatprep.mubr.f32.mxu0 0.0
    %3618 = vmatmul.mubr.f32.gmra.mrb[0].mxu0 %v3535
    %v3619 = vpop.f32.mrb[0].mxu0
    %v3620 = vadd.f32 0.0, %v3619
    %v3621 = vpop.f32.mrb[0].mxu0
    %3622 = vdwg.mxu0
    %v3623 = vsel %vm696, %v3620, -inf
    %v3624 = vrot.slane %v3623, 4
    %v3625 = vmax.f32 %v3623, %v3624
    %v3626 = vrot.slane %v3625, 2
    %v3627 = vmax.f32 %v3625, %v3626
    %v3628 = vrot.slane %v3627, 1
    %v3629 = vmax.f32 %v3627, %v3628
    %v3630 = vsub.f32 %v3620, %v3629
    %v3631 = vmul.f32 %v3630, 1.442695
    %v3632 = vpow.pop %v3631
    %v3633 = vsel %vm696, %v3632, 0.0
    %v3634 = vrot.slane %v3633, 4
    %v3635 = vadd.f32 %v3633, %v3634
    %v3636 = vrot.slane %v3635, 2
    %v3637 = vadd.f32 %v3635, %v3636
    %v3638 = vrot.slane %v3637, 1
    %v3639 = vadd.f32 %v3637, %v3638
    %v3640 = vrcp.pop %v3639
    %v3641 = vmul.f32 %v3632, %v3640
    %3642 = vxpose.xlu0.b32.start [1/16] %v3641, 128
    %3643 = vxpose.xlu0.b32.cont [2/16] 0.0, 128
    %3644 = vxpose.xlu0.b32.cont [3/16] 0.0, 128
    %3645 = vxpose.xlu0.b32.cont [4/16] 0.0, 128
    %3646 = vxpose.xlu0.b32.cont [5/16] 0.0, 128
    %3647 = vxpose.xlu0.b32.cont [6/16] 0.0, 128
    %3648 = vxpose.xlu0.b32.cont [7/16] 0.0, 128
    %3649 = vxpose.xlu0.b32.cont [8/16] 0.0, 128
    %3650 = vxpose.xlu0.b32.cont [9/16] 0.0, 128
    %3651 = vxpose.xlu0.b32.cont [10/16] 0.0, 128
    %3652 = vxpose.xlu0.b32.cont [11/16] 0.0, 128
    %3653 = vxpose.xlu0.b32.cont [12/16] 0.0, 128
    %3654 = vxpose.xlu0.b32.cont [13/16] 0.0, 128
    %3655 = vxpose.xlu0.b32.cont [14/16] 0.0, 128
    %3656 = vxpose.xlu0.b32.cont [15/16] 0.0, 128
    %3657 = vxpose.xlu0.b32.end [16/16] 0.0, 128
    %v3658 = vpop.trf.xlu0
    %v3659 = vpop.trf.xlu0
    %v3660 = vpop.trf.xlu0
    %v3661 = vpop.trf.xlu0
    %v3662 = vpop.trf.xlu0
    %v3663 = vpop.trf.xlu0
    %v3664 = vpop.trf.xlu0
    %v3665 = vpop.trf.xlu0
    %v3666 = vpop.trf.xlu0
    %v3667 = vpop.trf.xlu0
    %v3668 = vpop.trf.xlu0
    %v3669 = vpop.trf.xlu0
    %v3670 = vpop.trf.xlu0
    %v3671 = vpop.trf.xlu0
    %v3672 = vpop.trf.xlu0
    %v3673 = vpop.trf.xlu0
    %3674 = vrot.lane.b32.xlu0 %v2940, 80
    %v3675 = vpop.permute.xlu0 %3674
    %v3678 = vsel %vm598, %v3658, 0
    %v3681 = vsel %vm598, %v3659, 0
    %v3684 = vsel %vm598, %v3660, 0
    %v3687 = vsel %vm598, %v3661, 0
    %v3690 = vsel %vm598, %v3662, 0
    %v3693 = vsel %vm598, %v3663, 0
    %v3696 = vsel %vm598, %v3664, 0
    %v3699 = vsel %vm598, %v3665, 0
    %3701 = vmatprep.subr.mxu0 0.0
    %3702 = vmatpush1.msra.mxu0 %v3675
    %3703 = vmatprep.subr.mxu0 0.0
    %3704 = vmatpush1.msra.mxu0 0.0
    %3705 = vmatprep.subr.mxu0 0.0
    %3706 = vmatpush1.msra.mxu0 0.0
    %3707 = vmatprep.subr.mxu0 0.0
    %3708 = vmatpush1.msra.mxu0 0.0
    %3709 = vmatprep.subr.mxu0 0.0
    %3710 = vmatpush1.msra.mxu0 0.0
    %3711 = vmatprep.subr.mxu0 0.0
    %3712 = vmatpush1.msra.mxu0 0.0
    %3713 = vmatprep.subr.mxu0 0.0
    %3714 = vmatpush1.msra.mxu0 0.0
    %3715 = vmatprep.subr.mxu0 0.0
    %3716 = vmatpush1.msra.mxu0 0.0
    %3717 = vmatprep.subr.mxu0 0.0
    %3718 = vmatpush1.msra.mxu0 0.0
    %3719 = vmatprep.subr.mxu0 0.0
    %3720 = vmatpush1.msra.mxu0 0.0
    %3721 = vmatprep.subr.mxu0 0.0
    %3722 = vmatpush1.msra.mxu0 0.0
    %3723 = vmatprep.subr.mxu0 0.0
    %3724 = vmatpush1.msra.mxu0 0.0
    %3725 = vmatprep.subr.mxu0 0.0
    %3726 = vmatpush1.msra.mxu0 0.0
    %3727 = vmatprep.subr.mxu0 0.0
    %3728 = vmatpush1.msra.mxu0 0.0
    %3729 = vmatprep.subr.mxu0 0.0
    %3730 = vmatpush1.msra.mxu0 0.0
    %3731 = vmatprep.subr.mxu0 0.0
    %3732 = vmatpush1.msra.mxu0 0.0
    %3733 = vmatprep.subr.mxu0 0.0
    %3734 = vmatpush1.msra.mxu0 0.0
    %3735 = vmatprep.subr.mxu0 0.0
    %3736 = vmatpush1.msra.mxu0 0.0
    %3737 = vmatprep.subr.mxu0 0.0
    %3738 = vmatpush1.msra.mxu0 0.0
    %3739 = vmatprep.subr.mxu0 0.0
    %3740 = vmatpush1.msra.mxu0 0.0
    %3741 = vmatprep.subr.mxu0 0.0
    %3742 = vmatpush1.msra.mxu0 0.0
    %3743 = vmatprep.subr.mxu0 0.0
    %3744 = vmatpush1.msra.mxu0 0.0
    %3745 = vmatprep.subr.mxu0 0.0
    %3746 = vmatpush1.msra.mxu0 0.0
    %3747 = vmatprep.subr.mxu0 0.0
    %3748 = vmatpush1.msra.mxu0 0.0
    %3749 = vmatprep.subr.mxu0 0.0
    %3750 = vmatpush1.msra.mxu0 0.0
    %3751 = vmatprep.subr.mxu0 0.0
    %3752 = vmatpush1.msra.mxu0 0.0
    %3753 = vmatprep.subr.mxu0 0.0
    %3754 = vmatpush1.msra.mxu0 0.0
    %3755 = vmatprep.subr.mxu0 0.0
    %3756 = vmatpush1.msra.mxu0 0.0
    %3757 = vmatprep.subr.mxu0 0.0
    %3758 = vmatpush1.msra.mxu0 0.0
    %3759 = vmatprep.subr.mxu0 0.0
    %3760 = vmatpush1.msra.mxu0 0.0
    %3761 = vmatprep.subr.mxu0 0.0
    %3762 = vmatpush1.msra.mxu0 0.0
    %3763 = vmatprep.subr.mxu0 0.0
    %3764 = vmatpush1.msra.mxu0 0.0
    %3765 = vmatprep.mubr.f32.mxu0 0.0
    %3766 = vmatmul.mubr.f32.gmra.mrb[0].mxu0 %v3678
    %v3767 = vpop.f32.mrb[0].mxu0
    %v3768 = vadd.f32 0.0, %v3767
    %v3769 = vpop.f32.mrb[0].mxu0
    %3770 = vmatprep.mubr.f32.mxu0 0.0
    %3771 = vmatmul.mubr.f32.gmra.mrb[0].mxu0 %v3681
    %v3772 = vpop.f32.mrb[0].mxu0
    %v3773 = vadd.f32 0.0, %v3772
    %v3774 = vpop.f32.mrb[0].mxu0
    %3775 = vmatprep.mubr.f32.mxu0 0.0
    %3776 = vmatmul.mubr.f32.gmra.mrb[0].mxu0 %v3684
    %v3777 = vpop.f32.mrb[0].mxu0
    %v3778 = vadd.f32 0.0, %v3777
    %v3779 = vpop.f32.mrb[0].mxu0
    %3780 = vmatprep.mubr.f32.mxu0 0.0
    %3781 = vmatmul.mubr.f32.gmra.mrb[0].mxu0 %v3687
    %v3782 = vpop.f32.mrb[0].mxu0
    %v3783 = vadd.f32 0.0, %v3782
    %v3784 = vpop.f32.mrb[0].mxu0
    %3785 = vmatprep.mubr.f32.mxu0 0.0
    %3786 = vmatmul.mubr.f32.gmra.mrb[0].mxu0 %v3690
    %v3787 = vpop.f32.mrb[0].mxu0
    %v3788 = vadd.f32 0.0, %v3787
    %v3789 = vpop.f32.mrb[0].mxu0
    %3790 = vmatprep.mubr.f32.mxu0 0.0
    %3791 = vmatmul.mubr.f32.gmra.mrb[0].mxu0 %v3693
    %v3792 = vpop.f32.mrb[0].mxu0
    %v3793 = vadd.f32 0.0, %v3792
    %v3794 = vpop.f32.mrb[0].mxu0
    %3795 = vmatprep.mubr.f32.mxu0 0.0
    %3796 = vmatmul.mubr.f32.gmra.mrb[0].mxu0 %v3696
    %v3797 = vpop.f32.mrb[0].mxu0
    %v3798 = vadd.f32 0.0, %v3797
    %v3799 = vpop.f32.mrb[0].mxu0
    %3800 = vmatprep.mubr.f32.mxu0 0.0
    %3801 = vmatmul.mubr.f32.gmra.mrb[0].mxu0 %v3699
    %v3802 = vpop.f32.mrb[0].mxu0
    %v3803 = vadd.f32 0.0, %v3802
    %v3804 = vpop.f32.mrb[0].mxu0
    %3805 = vdwg.mxu0
    %3806 = vrot.lane.b32.xlu0 %v2940, 104
    %v3807 = vpop.permute.xlu0 %3806
    %3808 = vrot.lane.b32.xlu0 %v2843, 104
    %v3809 = vpop.permute.xlu0 %3808
    %3810 = vrot.lane.b32.xlu0 %v2844, 104
    %v3811 = vpop.permute.xlu0 %3810
    %3812 = vrot.lane.b32.xlu0 %v2845, 104
    %v3813 = vpop.permute.xlu0 %3812
    %3814 = vrot.lane.b32.xlu0 %v2846, 104
    %v3815 = vpop.permute.xlu0 %3814
    %3816 = vrot.lane.b32.xlu0 %v2847, 104
    %v3817 = vpop.permute.xlu0 %3816
    %3818 = vrot.lane.b32.xlu0 %v2848, 104
    %v3819 = vpop.permute.xlu0 %3818
    %3820 = vrot.lane.b32.xlu0 %v2849, 104
    %v3821 = vpop.permute.xlu0 %3820
    %3822 = vrot.lane.b32.xlu0 %v2850, 104
    %v3823 = vpop.permute.xlu0 %3822
    %v3824 = vsel %vm598, %v3807, 0
    %v3826 = vsel %vm598, %v3809, 0
    %v3828 = vsel %vm598, %v3811, 0
    %v3830 = vsel %vm598, %v3813, 0
    %v3832 = vsel %vm598, %v3815, 0
    %v3834 = vsel %vm598, %v3817, 0
    %v3836 = vsel %vm598, %v3819, 0
    %v3838 = vsel %vm598, %v3821, 0
    %v3840 = vsel %vm598, %v3823, 0
    %3842 = vmatprep.subr.mxu0 0.0
    %3843 = vmatpush1.xpose.msra.mxu0 %v3826
    %3844 = vmatprep.subr.mxu0 0.0
    %3845 = vmatpush1.xpose.msra.mxu0 %v3828
    %3846 = vmatprep.subr.mxu0 0.0
    %3847 = vmatpush1.xpose.msra.mxu0 %v3830
    %3848 = vmatprep.subr.mxu0 0.0
    %3849 = vmatpush1.xpose.msra.mxu0 %v3832
    %3850 = vmatprep.subr.mxu0 0.0
    %3851 = vmatpush1.xpose.msra.mxu0 %v3834
    %3852 = vmatprep.subr.mxu0 0.0
    %3853 = vmatpush1.xpose.msra.mxu0 %v3836
    %3854 = vmatprep.subr.mxu0 0.0
    %3855 = vmatpush1.xpose.msra.mxu0 %v3838
    %3856 = vmatprep.subr.mxu0 0.0
    %3857 = vmatpush1.xpose.msra.mxu0 %v3840
    %3858 = vmatprep.subr.mxu0 0.0
    %3859 = vmatpush1.xpose.msra.mxu0 0.0
    %3860 = vmatprep.subr.mxu0 0.0
    %3861 = vmatpush1.xpose.msra.mxu0 0.0
    %3862 = vmatprep.subr.mxu0 0.0
    %3863 = vmatpush1.xpose.msra.mxu0 0.0
    %3864 = vmatprep.subr.mxu0 0.0
    %3865 = vmatpush1.xpose.msra.mxu0 0.0
    %3866 = vmatprep.subr.mxu0 0.0
    %3867 = vmatpush1.xpose.msra.mxu0 0.0
    %3868 = vmatprep.subr.mxu0 0.0
    %3869 = vmatpush1.xpose.msra.mxu0 0.0
    %3870 = vmatprep.subr.mxu0 0.0
    %3871 = vmatpush1.xpose.msra.mxu0 0.0
    %3872 = vmatprep.subr.mxu0 0.0
    %3873 = vmatpush1.xpose.msra.mxu0 0.0
    %3874 = vmatprep.subr.mxu0 0.0
    %3875 = vmatpush1.xpose.msra.mxu0 0.0
    %3876 = vmatprep.subr.mxu0 0.0
    %3877 = vmatpush1.xpose.msra.mxu0 0.0
    %3878 = vmatprep.subr.mxu0 0.0
    %3879 = vmatpush1.xpose.msra.mxu0 0.0
    %3880 = vmatprep.subr.mxu0 0.0
    %3881 = vmatpush1.xpose.msra.mxu0 0.0
    %3882 = vmatprep.subr.mxu0 0.0
    %3883 = vmatpush1.xpose.msra.mxu0 0.0
    %3884 = vmatprep.subr.mxu0 0.0
    %3885 = vmatpush1.xpose.msra.mxu0 0.0
    %3886 = vmatprep.subr.mxu0 0.0
    %3887 = vmatpush1.xpose.msra.mxu0 0.0
    %3888 = vmatprep.subr.mxu0 0.0
    %3889 = vmatpush1.xpose.msra.mxu0 0.0
    %3890 = vmatprep.subr.mxu0 0.0
    %3891 = vmatpush1.xpose.msra.mxu0 0.0
    %3892 = vmatprep.subr.mxu0 0.0
    %3893 = vmatpush1.xpose.msra.mxu0 0.0
    %3894 = vmatprep.subr.mxu0 0.0
    %3895 = vmatpush1.xpose.msra.mxu0 0.0
    %3896 = vmatprep.subr.mxu0 0.0
    %3897 = vmatpush1.xpose.msra.mxu0 0.0
    %3898 = vmatprep.subr.mxu0 0.0
    %3899 = vmatpush1.xpose.msra.mxu0 0.0
    %3900 = vmatprep.subr.mxu0 0.0
    %3901 = vmatpush1.xpose.msra.mxu0 0.0
    %3902 = vmatprep.subr.mxu0 0.0
    %3903 = vmatpush1.xpose.msra.mxu0 0.0
    %3904 = vmatprep.subr.mxu0 0.0
    %3905 = vmatpush1.xpose.msra.mxu0 0.0
    %3906 = vmatprep.mubr.f32.mxu0 0.0
    %3907 = vmatmul.mubr.f32.gmra.mrb[0].mxu0 %v3824
    %v3908 = vpop.f32.mrb[0].mxu0
    %v3909 = vadd.f32 0.0, %v3908
    %v3910 = vpop.f32.mrb[0].mxu0
    %3911 = vdwg.mxu0
    %v3912 = vsel %vm696, %v3909, -inf
    %v3913 = vrot.slane %v3912, 4
    %v3914 = vmax.f32 %v3912, %v3913
    %v3915 = vrot.slane %v3914, 2
    %v3916 = vmax.f32 %v3914, %v3915
    %v3917 = vrot.slane %v3916, 1
    %v3918 = vmax.f32 %v3916, %v3917
    %v3919 = vsub.f32 %v3909, %v3918
    %v3920 = vmul.f32 %v3919, 1.442695
    %v3921 = vpow.pop %v3920
    %v3922 = vsel %vm696, %v3921, 0.0
    %v3923 = vrot.slane %v3922, 4
    %v3924 = vadd.f32 %v3922, %v3923
    %v3925 = vrot.slane %v3924, 2
    %v3926 = vadd.f32 %v3924, %v3925
    %v3927 = vrot.slane %v3926, 1
    %v3928 = vadd.f32 %v3926, %v3927
    %v3929 = vrcp.pop %v3928
    %v3930 = vmul.f32 %v3921, %v3929
    %3931 = vxpose.xlu0.b32.start [1/16] %v3930, 128
    %3932 = vxpose.xlu0.b32.cont [2/16] 0.0, 128
    %3933 = vxpose.xlu0.b32.cont [3/16] 0.0, 128
    %3934 = vxpose.xlu0.b32.cont [4/16] 0.0, 128
    %3935 = vxpose.xlu0.b32.cont [5/16] 0.0, 128
    %3936 = vxpose.xlu0.b32.cont [6/16] 0.0, 128
    %3937 = vxpose.xlu0.b32.cont [7/16] 0.0, 128
    %3938 = vxpose.xlu0.b32.cont [8/16] 0.0, 128
    %3939 = vxpose.xlu0.b32.cont [9/16] 0.0, 128
    %3940 = vxpose.xlu0.b32.cont [10/16] 0.0, 128
    %3941 = vxpose.xlu0.b32.cont [11/16] 0.0, 128
    %3942 = vxpose.xlu0.b32.cont [12/16] 0.0, 128
    %3943 = vxpose.xlu0.b32.cont [13/16] 0.0, 128
    %3944 = vxpose.xlu0.b32.cont [14/16] 0.0, 128
    %3945 = vxpose.xlu0.b32.cont [15/16] 0.0, 128
    %3946 = vxpose.xlu0.b32.end [16/16] 0.0, 128
    %v3947 = vpop.trf.xlu0
    %v3948 = vpop.trf.xlu0
    %v3949 = vpop.trf.xlu0
    %v3950 = vpop.trf.xlu0
    %v3951 = vpop.trf.xlu0
    %v3952 = vpop.trf.xlu0
    %v3953 = vpop.trf.xlu0
    %v3954 = vpop.trf.xlu0
    %v3955 = vpop.trf.xlu0
    %v3956 = vpop.trf.xlu0
    %v3957 = vpop.trf.xlu0
    %v3958 = vpop.trf.xlu0
    %v3959 = vpop.trf.xlu0
    %v3960 = vpop.trf.xlu0
    %v3961 = vpop.trf.xlu0
    %v3962 = vpop.trf.xlu0
    %3963 = vrot.lane.b32.xlu0 %v2940, 72
    %v3964 = vpop.permute.xlu0 %3963
    %v3967 = vsel %vm598, %v3947, 0
    %v3970 = vsel %vm598, %v3948, 0
    %v3973 = vsel %vm598, %v3949, 0
    %v3976 = vsel %vm598, %v3950, 0
    %v3979 = vsel %vm598, %v3951, 0
    %v3982 = vsel %vm598, %v3952, 0
    %v3985 = vsel %vm598, %v3953, 0
    %v3988 = vsel %vm598, %v3954, 0
    %3990 = vmatprep.subr.mxu0 0.0
    %3991 = vmatpush1.msra.mxu0 %v3964
    %3992 = vmatprep.subr.mxu0 0.0
    %3993 = vmatpush1.msra.mxu0 0.0
    %3994 = vmatprep.subr.mxu0 0.0
    %3995 = vmatpush1.msra.mxu0 0.0
    %3996 = vmatprep.subr.mxu0 0.0
    %3997 = vmatpush1.msra.mxu0 0.0
    %3998 = vmatprep.subr.mxu0 0.0
    %3999 = vmatpush1.msra.mxu0 0.0
    %4000 = vmatprep.subr.mxu0 0.0
    %4001 = vmatpush1.msra.mxu0 0.0
    %4002 = vmatprep.subr.mxu0 0.0
    %4003 = vmatpush1.msra.mxu0 0.0
    %4004 = vmatprep.subr.mxu0 0.0
    %4005 = vmatpush1.msra.mxu0 0.0
    %4006 = vmatprep.subr.mxu0 0.0
    %4007 = vmatpush1.msra.mxu0 0.0
    %4008 = vmatprep.subr.mxu0 0.0
    %4009 = vmatpush1.msra.mxu0 0.0
    %4010 = vmatprep.subr.mxu0 0.0
    %4011 = vmatpush1.msra.mxu0 0.0
    %4012 = vmatprep.subr.mxu0 0.0
    %4013 = vmatpush1.msra.mxu0 0.0
    %4014 = vmatprep.subr.mxu0 0.0
    %4015 = vmatpush1.msra.mxu0 0.0
    %4016 = vmatprep.subr.mxu0 0.0
    %4017 = vmatpush1.msra.mxu0 0.0
    %4018 = vmatprep.subr.mxu0 0.0
    %4019 = vmatpush1.msra.mxu0 0.0
    %4020 = vmatprep.subr.mxu0 0.0
    %4021 = vmatpush1.msra.mxu0 0.0
    %4022 = vmatprep.subr.mxu0 0.0
    %4023 = vmatpush1.msra.mxu0 0.0
    %4024 = vmatprep.subr.mxu0 0.0
    %4025 = vmatpush1.msra.mxu0 0.0
    %4026 = vmatprep.subr.mxu0 0.0
    %4027 = vmatpush1.msra.mxu0 0.0
    %4028 = vmatprep.subr.mxu0 0.0
    %4029 = vmatpush1.msra.mxu0 0.0
    %4030 = vmatprep.subr.mxu0 0.0
    %4031 = vmatpush1.msra.mxu0 0.0
    %4032 = vmatprep.subr.mxu0 0.0
    %4033 = vmatpush1.msra.mxu0 0.0
    %4034 = vmatprep.subr.mxu0 0.0
    %4035 = vmatpush1.msra.mxu0 0.0
    %4036 = vmatprep.subr.mxu0 0.0
    %4037 = vmatpush1.msra.mxu0 0.0
    %4038 = vmatprep.subr.mxu0 0.0
    %4039 = vmatpush1.msra.mxu0 0.0
    %4040 = vmatprep.subr.mxu0 0.0
    %4041 = vmatpush1.msra.mxu0 0.0
    %4042 = vmatprep.subr.mxu0 0.0
    %4043 = vmatpush1.msra.mxu0 0.0
    %4044 = vmatprep.subr.mxu0 0.0
    %4045 = vmatpush1.msra.mxu0 0.0
    %4046 = vmatprep.subr.mxu0 0.0
    %4047 = vmatpush1.msra.mxu0 0.0
    %4048 = vmatprep.subr.mxu0 0.0
    %4049 = vmatpush1.msra.mxu0 0.0
    %4050 = vmatprep.subr.mxu0 0.0
    %4051 = vmatpush1.msra.mxu0 0.0
    %4052 = vmatprep.subr.mxu0 0.0
    %4053 = vmatpush1.msra.mxu0 0.0
    %4054 = vmatprep.mubr.f32.mxu0 0.0
    %4055 = vmatmul.mubr.f32.gmra.mrb[0].mxu0 %v3967
    %v4056 = vpop.f32.mrb[0].mxu0
    %v4057 = vadd.f32 0.0, %v4056
    %v4058 = vpop.f32.mrb[0].mxu0
    %4059 = vmatprep.mubr.f32.mxu0 0.0
    %4060 = vmatmul.mubr.f32.gmra.mrb[0].mxu0 %v3970
    %v4061 = vpop.f32.mrb[0].mxu0
    %v4062 = vadd.f32 0.0, %v4061
    %v4063 = vpop.f32.mrb[0].mxu0
    %4064 = vmatprep.mubr.f32.mxu0 0.0
    %4065 = vmatmul.mubr.f32.gmra.mrb[0].mxu0 %v3973
    %v4066 = vpop.f32.mrb[0].mxu0
    %v4067 = vadd.f32 0.0, %v4066
    %v4068 = vpop.f32.mrb[0].mxu0
    %4069 = vmatprep.mubr.f32.mxu0 0.0
    %4070 = vmatmul.mubr.f32.gmra.mrb[0].mxu0 %v3976
    %v4071 = vpop.f32.mrb[0].mxu0
    %v4072 = vadd.f32 0.0, %v4071
    %v4073 = vpop.f32.mrb[0].mxu0
    %4074 = vmatprep.mubr.f32.mxu0 0.0
    %4075 = vmatmul.mubr.f32.gmra.mrb[0].mxu0 %v3979
    %v4076 = vpop.f32.mrb[0].mxu0
    %v4077 = vadd.f32 0.0, %v4076
    %v4078 = vpop.f32.mrb[0].mxu0
    %4079 = vmatprep.mubr.f32.mxu0 0.0
    %4080 = vmatmul.mubr.f32.gmra.mrb[0].mxu0 %v3982
    %v4081 = vpop.f32.mrb[0].mxu0
    %v4082 = vadd.f32 0.0, %v4081
    %v4083 = vpop.f32.mrb[0].mxu0
    %4084 = vmatprep.mubr.f32.mxu0 0.0
    %4085 = vmatmul.mubr.f32.gmra.mrb[0].mxu0 %v3985
    %v4086 = vpop.f32.mrb[0].mxu0
    %v4087 = vadd.f32 0.0, %v4086
    %v4088 = vpop.f32.mrb[0].mxu0
    %4089 = vmatprep.mubr.f32.mxu0 0.0
    %4090 = vmatmul.mubr.f32.gmra.mrb[0].mxu0 %v3988
    %v4091 = vpop.f32.mrb[0].mxu0
    %v4092 = vadd.f32 0.0, %v4091
    %v4093 = vpop.f32.mrb[0].mxu0
    %4094 = vdwg.mxu0
    %4096 = vrot.lane.b32.xlu0 %v3352, 64
    %v4097 = vpop.permute.xlu0 %4096
    %4100 = vrot.lane.b32.xlu0 %v3930, 64
    %v4101 = vpop.permute.xlu0 %4100
    %v4103 = vsel %vm696, %v3063, %v4097
    %v4104 = vsel %vm696, %v3641, %v4101
    %4105 = vst [vmem:[%s16] sm:$0xff] %v4103
    %4106 = vst [vmem:[%s16 + $0x8] sm:$0xff] %v4104
    %4115 = vrot.lane.b32.xlu0 %v3479, 8
    %v4116 = vpop.permute.xlu0 %4115
    %4117 = vrot.lane.b32.xlu0 %v3484, 8
    %v4118 = vpop.permute.xlu0 %4117
    %4119 = vrot.lane.b32.xlu0 %v3489, 8
    %v4120 = vpop.permute.xlu0 %4119
    %4121 = vrot.lane.b32.xlu0 %v3494, 8
    %v4122 = vpop.permute.xlu0 %4121
    %4123 = vrot.lane.b32.xlu0 %v3499, 8
    %v4124 = vpop.permute.xlu0 %4123
    %4125 = vrot.lane.b32.xlu0 %v3504, 8
    %v4126 = vpop.permute.xlu0 %4125
    %4127 = vrot.lane.b32.xlu0 %v3509, 8
    %v4128 = vpop.permute.xlu0 %4127
    %4129 = vrot.lane.b32.xlu0 %v3514, 8
    %v4130 = vpop.permute.xlu0 %4129
    %4147 = vrot.lane.b32.xlu0 %v3768, 16
    %v4148 = vpop.permute.xlu0 %4147
    %4149 = vrot.lane.b32.xlu0 %v3773, 16
    %v4150 = vpop.permute.xlu0 %4149
    %4151 = vrot.lane.b32.xlu0 %v3778, 16
    %v4152 = vpop.permute.xlu0 %4151
    %4153 = vrot.lane.b32.xlu0 %v3783, 16
    %v4154 = vpop.permute.xlu0 %4153
    %4155 = vrot.lane.b32.xlu0 %v3788, 16
    %v4156 = vpop.permute.xlu0 %4155
    %4157 = vrot.lane.b32.xlu0 %v3793, 16
    %v4158 = vpop.permute.xlu0 %4157
    %4159 = vrot.lane.b32.xlu0 %v3798, 16
    %v4160 = vpop.permute.xlu0 %4159
    %4161 = vrot.lane.b32.xlu0 %v3803, 16
    %v4162 = vpop.permute.xlu0 %4161
    %4179 = vrot.lane.b32.xlu0 %v4057, 24
    %v4180 = vpop.permute.xlu0 %4179
    %4181 = vrot.lane.b32.xlu0 %v4062, 24
    %v4182 = vpop.permute.xlu0 %4181
    %4183 = vrot.lane.b32.xlu0 %v4067, 24
    %v4184 = vpop.permute.xlu0 %4183
    %4185 = vrot.lane.b32.xlu0 %v4072, 24
    %v4186 = vpop.permute.xlu0 %4185
    %4187 = vrot.lane.b32.xlu0 %v4077, 24
    %v4188 = vpop.permute.xlu0 %4187
    %4189 = vrot.lane.b32.xlu0 %v4082, 24
    %v4190 = vpop.permute.xlu0 %4189
    %4191 = vrot.lane.b32.xlu0 %v4087, 24
    %v4192 = vpop.permute.xlu0 %4191
    %4193 = vrot.lane.b32.xlu0 %v4092, 24
    %v4194 = vpop.permute.xlu0 %4193
    %v4203 = vsel %vm598, %v3190, %v4116
    %v4204 = vsel %vm598, %v3195, %v4118
    %v4205 = vsel %vm598, %v3200, %v4120
    %v4206 = vsel %vm598, %v3205, %v4122
    %v4207 = vsel %vm598, %v3210, %v4124
    %v4208 = vsel %vm598, %v3215, %v4126
    %v4209 = vsel %vm598, %v3220, %v4128
    %v4210 = vsel %vm598, %v3225, %v4130
    %v4211 = vsel %vm1470, %v4203, %v4148
    %v4212 = vsel %vm1470, %v4204, %v4150
    %v4213 = vsel %vm1470, %v4205, %v4152
    %v4214 = vsel %vm1470, %v4206, %v4154
    %v4215 = vsel %vm1470, %v4207, %v4156
    %v4216 = vsel %vm1470, %v4208, %v4158
    %v4217 = vsel %vm1470, %v4209, %v4160
    %v4218 = vsel %vm1470, %v4210, %v4162
    %v4219 = vsel %vm1472, %v4211, %v4180
    %v4220 = vsel %vm1472, %v4212, %v4182
    %v4221 = vsel %vm1472, %v4213, %v4184
    %v4222 = vsel %vm1472, %v4214, %v4186
    %v4223 = vsel %vm1472, %v4215, %v4188
    %v4224 = vsel %vm1472, %v4216, %v4190
    %v4225 = vsel %vm1472, %v4217, %v4192
    %v4226 = vsel %vm1472, %v4218, %v4194
    %v4228 = vsel %vm598, %v2945, 0
    %v4231 = vsel %vm598, %v2851, 0
    %v4234 = vsel %vm598, %v2852, 0
    %v4237 = vsel %vm598, %v2853, 0
    %v4240 = vsel %vm598, %v2854, 0
    %v4243 = vsel %vm598, %v2855, 0
    %v4246 = vsel %vm598, %v2856, 0
    %v4249 = vsel %vm598, %v2857, 0
    %v4252 = vsel %vm598, %v2858, 0
    %4254 = vmatprep.subr.mxu0 0.0
    %4255 = vmatpush1.xpose.msra.mxu0 %v4231
    %4256 = vmatprep.subr.mxu0 0.0
    %4257 = vmatpush1.xpose.msra.mxu0 %v4234
    %4258 = vmatprep.subr.mxu0 0.0
    %4259 = vmatpush1.xpose.msra.mxu0 %v4237
    %4260 = vmatprep.subr.mxu0 0.0
    %4261 = vmatpush1.xpose.msra.mxu0 %v4240
    %4262 = vmatprep.subr.mxu0 0.0
    %4263 = vmatpush1.xpose.msra.mxu0 %v4243
    %4264 = vmatprep.subr.mxu0 0.0
    %4265 = vmatpush1.xpose.msra.mxu0 %v4246
    %4266 = vmatprep.subr.mxu0 0.0
    %4267 = vmatpush1.xpose.msra.mxu0 %v4249
    %4268 = vmatprep.subr.mxu0 0.0
    %4269 = vmatpush1.xpose.msra.mxu0 %v4252
    %4270 = vmatprep.subr.mxu0 0.0
    %4271 = vmatpush1.xpose.msra.mxu0 0.0
    %4272 = vmatprep.subr.mxu0 0.0
    %4273 = vmatpush1.xpose.msra.mxu0 0.0
    %4274 = vmatprep.subr.mxu0 0.0
    %4275 = vmatpush1.xpose.msra.mxu0 0.0
    %4276 = vmatprep.subr.mxu0 0.0
    %4277 = vmatpush1.xpose.msra.mxu0 0.0
    %4278 = vmatprep.subr.mxu0 0.0
    %4279 = vmatpush1.xpose.msra.mxu0 0.0
    %4280 = vmatprep.subr.mxu0 0.0
    %4281 = vmatpush1.xpose.msra.mxu0 0.0
    %4282 = vmatprep.subr.mxu0 0.0
    %4283 = vmatpush1.xpose.msra.mxu0 0.0
    %4284 = vmatprep.subr.mxu0 0.0
    %4285 = vmatpush1.xpose.msra.mxu0 0.0
    %4286 = vmatprep.subr.mxu0 0.0
    %4287 = vmatpush1.xpose.msra.mxu0 0.0
    %4288 = vmatprep.subr.mxu0 0.0
    %4289 = vmatpush1.xpose.msra.mxu0 0.0
    %4290 = vmatprep.subr.mxu0 0.0
    %4291 = vmatpush1.xpose.msra.mxu0 0.0
    %4292 = vmatprep.subr.mxu0 0.0
    %4293 = vmatpush1.xpose.msra.mxu0 0.0
    %4294 = vmatprep.subr.mxu0 0.0
    %4295 = vmatpush1.xpose.msra.mxu0 0.0
    %4296 = vmatprep.subr.mxu0 0.0
    %4297 = vmatpush1.xpose.msra.mxu0 0.0
    %4298 = vmatprep.subr.mxu0 0.0
    %4299 = vmatpush1.xpose.msra.mxu0 0.0
    %4300 = vmatprep.subr.mxu0 0.0
    %4301 = vmatpush1.xpose.msra.mxu0 0.0
    %4302 = vmatprep.subr.mxu0 0.0
    %4303 = vmatpush1.xpose.msra.mxu0 0.0
    %4304 = vmatprep.subr.mxu0 0.0
    %4305 = vmatpush1.xpose.msra.mxu0 0.0
    %4306 = vmatprep.subr.mxu0 0.0
    %4307 = vmatpush1.xpose.msra.mxu0 0.0
    %4308 = vmatprep.subr.mxu0 0.0
    %4309 = vmatpush1.xpose.msra.mxu0 0.0
    %4310 = vmatprep.subr.mxu0 0.0
    %4311 = vmatpush1.xpose.msra.mxu0 0.0
    %4312 = vmatprep.subr.mxu0 0.0
    %4313 = vmatpush1.xpose.msra.mxu0 0.0
    %4314 = vmatprep.subr.mxu0 0.0
    %4315 = vmatpush1.xpose.msra.mxu0 0.0
    %4316 = vmatprep.subr.mxu0 0.0
    %4317 = vmatpush1.xpose.msra.mxu0 0.0
    %4318 = vmatprep.mubr.f32.mxu0 0.0
    %4319 = vmatmul.mubr.f32.gmra.mrb[0].mxu0 %v4228
    %v4320 = vpop.f32.mrb[0].mxu0
    %v4321 = vadd.f32 0.0, %v4320
    %v4322 = vpop.f32.mrb[0].mxu0
    %4323 = vdwg.mxu0
    %v4324 = vsel %vm696, %v4321, -inf
    %v4325 = vrot.slane %v4324, 4
    %v4326 = vmax.f32 %v4324, %v4325
    %v4327 = vrot.slane %v4326, 2
    %v4328 = vmax.f32 %v4326, %v4327
    %v4329 = vrot.slane %v4328, 1
    %v4330 = vmax.f32 %v4328, %v4329
    %v4331 = vsub.f32 %v4321, %v4330
    %v4332 = vmul.f32 %v4331, 1.442695
    %v4333 = vpow.pop %v4332
    %v4334 = vsel %vm696, %v4333, 0.0
    %v4335 = vrot.slane %v4334, 4
    %v4336 = vadd.f32 %v4334, %v4335
    %v4337 = vrot.slane %v4336, 2
    %v4338 = vadd.f32 %v4336, %v4337
    %v4339 = vrot.slane %v4338, 1
    %v4340 = vadd.f32 %v4338, %v4339
    %v4341 = vrcp.pop %v4340
    %v4342 = vmul.f32 %v4333, %v4341
    %4343 = vxpose.xlu0.b32.start [1/16] %v4342, 128
    %4344 = vxpose.xlu0.b32.cont [2/16] 0.0, 128
    %4345 = vxpose.xlu0.b32.cont [3/16] 0.0, 128
    %4346 = vxpose.xlu0.b32.cont [4/16] 0.0, 128
    %4347 = vxpose.xlu0.b32.cont [5/16] 0.0, 128
    %4348 = vxpose.xlu0.b32.cont [6/16] 0.0, 128
    %4349 = vxpose.xlu0.b32.cont [7/16] 0.0, 128
    %4350 = vxpose.xlu0.b32.cont [8/16] 0.0, 128
    %4351 = vxpose.xlu0.b32.cont [9/16] 0.0, 128
    %4352 = vxpose.xlu0.b32.cont [10/16] 0.0, 128
    %4353 = vxpose.xlu0.b32.cont [11/16] 0.0, 128
    %4354 = vxpose.xlu0.b32.cont [12/16] 0.0, 128
    %4355 = vxpose.xlu0.b32.cont [13/16] 0.0, 128
    %4356 = vxpose.xlu0.b32.cont [14/16] 0.0, 128
    %4357 = vxpose.xlu0.b32.cont [15/16] 0.0, 128
    %4358 = vxpose.xlu0.b32.end [16/16] 0.0, 128
    %v4359 = vpop.trf.xlu0
    %v4360 = vpop.trf.xlu0
    %v4361 = vpop.trf.xlu0
    %v4362 = vpop.trf.xlu0
    %v4363 = vpop.trf.xlu0
    %v4364 = vpop.trf.xlu0
    %v4365 = vpop.trf.xlu0
    %v4366 = vpop.trf.xlu0
    %v4367 = vpop.trf.xlu0
    %v4368 = vpop.trf.xlu0
    %v4369 = vpop.trf.xlu0
    %v4370 = vpop.trf.xlu0
    %v4371 = vpop.trf.xlu0
    %v4372 = vpop.trf.xlu0
    %v4373 = vpop.trf.xlu0
    %v4374 = vpop.trf.xlu0
    %4375 = vrot.lane.b32.xlu0 %v2945, 96
    %v4376 = vpop.permute.xlu0 %4375
    %v4379 = vsel %vm598, %v4359, 0
    %v4382 = vsel %vm598, %v4360, 0
    %v4385 = vsel %vm598, %v4361, 0
    %v4388 = vsel %vm598, %v4362, 0
    %v4391 = vsel %vm598, %v4363, 0
    %v4394 = vsel %vm598, %v4364, 0
    %v4397 = vsel %vm598, %v4365, 0
    %v4400 = vsel %vm598, %v4366, 0
    %4402 = vmatprep.subr.mxu0 0.0
    %4403 = vmatpush1.msra.mxu0 %v4376
    %4404 = vmatprep.subr.mxu0 0.0
    %4405 = vmatpush1.msra.mxu0 0.0
    %4406 = vmatprep.subr.mxu0 0.0
    %4407 = vmatpush1.msra.mxu0 0.0
    %4408 = vmatprep.subr.mxu0 0.0
    %4409 = vmatpush1.msra.mxu0 0.0
    %4410 = vmatprep.subr.mxu0 0.0
    %4411 = vmatpush1.msra.mxu0 0.0
    %4412 = vmatprep.subr.mxu0 0.0
    %4413 = vmatpush1.msra.mxu0 0.0
    %4414 = vmatprep.subr.mxu0 0.0
    %4415 = vmatpush1.msra.mxu0 0.0
    %4416 = vmatprep.subr.mxu0 0.0
    %4417 = vmatpush1.msra.mxu0 0.0
    %4418 = vmatprep.subr.mxu0 0.0
    %4419 = vmatpush1.msra.mxu0 0.0
    %4420 = vmatprep.subr.mxu0 0.0
    %4421 = vmatpush1.msra.mxu0 0.0
    %4422 = vmatprep.subr.mxu0 0.0
    %4423 = vmatpush1.msra.mxu0 0.0
    %4424 = vmatprep.subr.mxu0 0.0
    %4425 = vmatpush1.msra.mxu0 0.0
    %4426 = vmatprep.subr.mxu0 0.0
    %4427 = vmatpush1.msra.mxu0 0.0
    %4428 = vmatprep.subr.mxu0 0.0
    %4429 = vmatpush1.msra.mxu0 0.0
    %4430 = vmatprep.subr.mxu0 0.0
    %4431 = vmatpush1.msra.mxu0 0.0
    %4432 = vmatprep.subr.mxu0 0.0
    %4433 = vmatpush1.msra.mxu0 0.0
    %4434 = vmatprep.subr.mxu0 0.0
    %4435 = vmatpush1.msra.mxu0 0.0
    %4436 = vmatprep.subr.mxu0 0.0
    %4437 = vmatpush1.msra.mxu0 0.0
    %4438 = vmatprep.subr.mxu0 0.0
    %4439 = vmatpush1.msra.mxu0 0.0
    %4440 = vmatprep.subr.mxu0 0.0
    %4441 = vmatpush1.msra.mxu0 0.0
    %4442 = vmatprep.subr.mxu0 0.0
    %4443 = vmatpush1.msra.mxu0 0.0
    %4444 = vmatprep.subr.mxu0 0.0
    %4445 = vmatpush1.msra.mxu0 0.0
    %4446 = vmatprep.subr.mxu0 0.0
    %4447 = vmatpush1.msra.mxu0 0.0
    %4448 = vmatprep.subr.mxu0 0.0
    %4449 = vmatpush1.msra.mxu0 0.0
    %4450 = vmatprep.subr.mxu0 0.0
    %4451 = vmatpush1.msra.mxu0 0.0
    %4452 = vmatprep.subr.mxu0 0.0
    %4453 = vmatpush1.msra.mxu0 0.0
    %4454 = vmatprep.subr.mxu0 0.0
    %4455 = vmatpush1.msra.mxu0 0.0
    %4456 = vmatprep.subr.mxu0 0.0
    %4457 = vmatpush1.msra.mxu0 0.0
    %4458 = vmatprep.subr.mxu0 0.0
    %4459 = vmatpush1.msra.mxu0 0.0
    %4460 = vmatprep.subr.mxu0 0.0
    %4461 = vmatpush1.msra.mxu0 0.0
    %4462 = vmatprep.subr.mxu0 0.0
    %4463 = vmatpush1.msra.mxu0 0.0
    %4464 = vmatprep.subr.mxu0 0.0
    %4465 = vmatpush1.msra.mxu0 0.0
    %4466 = vmatprep.mubr.f32.mxu0 0.0
    %4467 = vmatmul.mubr.f32.gmra.mrb[0].mxu0 %v4379
    %v4468 = vpop.f32.mrb[0].mxu0
    %v4469 = vadd.f32 0.0, %v4468
    %v4470 = vpop.f32.mrb[0].mxu0
    %4471 = vmatprep.mubr.f32.mxu0 0.0
    %4472 = vmatmul.mubr.f32.gmra.mrb[0].mxu0 %v4382
    %v4473 = vpop.f32.mrb[0].mxu0
    %v4474 = vadd.f32 0.0, %v4473
    %v4475 = vpop.f32.mrb[0].mxu0
    %4476 = vmatprep.mubr.f32.mxu0 0.0
    %4477 = vmatmul.mubr.f32.gmra.mrb[0].mxu0 %v4385
    %v4478 = vpop.f32.mrb[0].mxu0
    %v4479 = vadd.f32 0.0, %v4478
    %v4480 = vpop.f32.mrb[0].mxu0
    %4481 = vmatprep.mubr.f32.mxu0 0.0
    %4482 = vmatmul.mubr.f32.gmra.mrb[0].mxu0 %v4388
    %v4483 = vpop.f32.mrb[0].mxu0
    %v4484 = vadd.f32 0.0, %v4483
    %v4485 = vpop.f32.mrb[0].mxu0
    %4486 = vmatprep.mubr.f32.mxu0 0.0
    %4487 = vmatmul.mubr.f32.gmra.mrb[0].mxu0 %v4391
    %v4488 = vpop.f32.mrb[0].mxu0
    %v4489 = vadd.f32 0.0, %v4488
    %v4490 = vpop.f32.mrb[0].mxu0
    %4491 = vmatprep.mubr.f32.mxu0 0.0
    %4492 = vmatmul.mubr.f32.gmra.mrb[0].mxu0 %v4394
    %v4493 = vpop.f32.mrb[0].mxu0
    %v4494 = vadd.f32 0.0, %v4493
    %v4495 = vpop.f32.mrb[0].mxu0
    %4496 = vmatprep.mubr.f32.mxu0 0.0
    %4497 = vmatmul.mubr.f32.gmra.mrb[0].mxu0 %v4397
    %v4498 = vpop.f32.mrb[0].mxu0
    %v4499 = vadd.f32 0.0, %v4498
    %v4500 = vpop.f32.mrb[0].mxu0
    %4501 = vmatprep.mubr.f32.mxu0 0.0
    %4502 = vmatmul.mubr.f32.gmra.mrb[0].mxu0 %v4400
    %v4503 = vpop.f32.mrb[0].mxu0
    %v4504 = vadd.f32 0.0, %v4503
    %v4505 = vpop.f32.mrb[0].mxu0
    %4506 = vdwg.mxu0
    %4507 = vrot.lane.b32.xlu0 %v2945, 120
    %v4508 = vpop.permute.xlu0 %4507
    %4509 = vrot.lane.b32.xlu0 %v2851, 120
    %v4510 = vpop.permute.xlu0 %4509
    %4511 = vrot.lane.b32.xlu0 %v2852, 120
    %v4512 = vpop.permute.xlu0 %4511
    %4513 = vrot.lane.b32.xlu0 %v2853, 120
    %v4514 = vpop.permute.xlu0 %4513
    %4515 = vrot.lane.b32.xlu0 %v2854, 120
    %v4516 = vpop.permute.xlu0 %4515
    %4517 = vrot.lane.b32.xlu0 %v2855, 120
    %v4518 = vpop.permute.xlu0 %4517
    %4519 = vrot.lane.b32.xlu0 %v2856, 120
    %v4520 = vpop.permute.xlu0 %4519
    %4521 = vrot.lane.b32.xlu0 %v2857, 120
    %v4522 = vpop.permute.xlu0 %4521
    %4523 = vrot.lane.b32.xlu0 %v2858, 120
    %v4524 = vpop.permute.xlu0 %4523
    %v4525 = vsel %vm598, %v4508, 0
    %v4527 = vsel %vm598, %v4510, 0
    %v4529 = vsel %vm598, %v4512, 0
    %v4531 = vsel %vm598, %v4514, 0
    %v4533 = vsel %vm598, %v4516, 0
    %v4535 = vsel %vm598, %v4518, 0
    %v4537 = vsel %vm598, %v4520, 0
    %v4539 = vsel %vm598, %v4522, 0
    %v4541 = vsel %vm598, %v4524, 0
    %4543 = vmatprep.subr.mxu0 0.0
    %4544 = vmatpush1.xpose.msra.mxu0 %v4527
    %4545 = vmatprep.subr.mxu0 0.0
    %4546 = vmatpush1.xpose.msra.mxu0 %v4529
    %4547 = vmatprep.subr.mxu0 0.0
    %4548 = vmatpush1.xpose.msra.mxu0 %v4531
    %4549 = vmatprep.subr.mxu0 0.0
    %4550 = vmatpush1.xpose.msra.mxu0 %v4533
    %4551 = vmatprep.subr.mxu0 0.0
    %4552 = vmatpush1.xpose.msra.mxu0 %v4535
    %4553 = vmatprep.subr.mxu0 0.0
    %4554 = vmatpush1.xpose.msra.mxu0 %v4537
    %4555 = vmatprep.subr.mxu0 0.0
    %4556 = vmatpush1.xpose.msra.mxu0 %v4539
    %4557 = vmatprep.subr.mxu0 0.0
    %4558 = vmatpush1.xpose.msra.mxu0 %v4541
    %4559 = vmatprep.subr.mxu0 0.0
    %4560 = vmatpush1.xpose.msra.mxu0 0.0
    %4561 = vmatprep.subr.mxu0 0.0
    %4562 = vmatpush1.xpose.msra.mxu0 0.0
    %4563 = vmatprep.subr.mxu0 0.0
    %4564 = vmatpush1.xpose.msra.mxu0 0.0
    %4565 = vmatprep.subr.mxu0 0.0
    %4566 = vmatpush1.xpose.msra.mxu0 0.0
    %4567 = vmatprep.subr.mxu0 0.0
    %4568 = vmatpush1.xpose.msra.mxu0 0.0
    %4569 = vmatprep.subr.mxu0 0.0
    %4570 = vmatpush1.xpose.msra.mxu0 0.0
    %4571 = vmatprep.subr.mxu0 0.0
    %4572 = vmatpush1.xpose.msra.mxu0 0.0
    %4573 = vmatprep.subr.mxu0 0.0
    %4574 = vmatpush1.xpose.msra.mxu0 0.0
    %4575 = vmatprep.subr.mxu0 0.0
    %4576 = vmatpush1.xpose.msra.mxu0 0.0
    %4577 = vmatprep.subr.mxu0 0.0
    %4578 = vmatpush1.xpose.msra.mxu0 0.0
    %4579 = vmatprep.subr.mxu0 0.0
    %4580 = vmatpush1.xpose.msra.mxu0 0.0
    %4581 = vmatprep.subr.mxu0 0.0
    %4582 = vmatpush1.xpose.msra.mxu0 0.0
    %4583 = vmatprep.subr.mxu0 0.0
    %4584 = vmatpush1.xpose.msra.mxu0 0.0
    %4585 = vmatprep.subr.mxu0 0.0
    %4586 = vmatpush1.xpose.msra.mxu0 0.0
    %4587 = vmatprep.subr.mxu0 0.0
    %4588 = vmatpush1.xpose.msra.mxu0 0.0
    %4589 = vmatprep.subr.mxu0 0.0
    %4590 = vmatpush1.xpose.msra.mxu0 0.0
    %4591 = vmatprep.subr.mxu0 0.0
    %4592 = vmatpush1.xpose.msra.mxu0 0.0
    %4593 = vmatprep.subr.mxu0 0.0
    %4594 = vmatpush1.xpose.msra.mxu0 0.0
    %4595 = vmatprep.subr.mxu0 0.0
    %4596 = vmatpush1.xpose.msra.mxu0 0.0
    %4597 = vmatprep.subr.mxu0 0.0
    %4598 = vmatpush1.xpose.msra.mxu0 0.0
    %4599 = vmatprep.subr.mxu0 0.0
    %4600 = vmatpush1.xpose.msra.mxu0 0.0
    %4601 = vmatprep.subr.mxu0 0.0
    %4602 = vmatpush1.xpose.msra.mxu0 0.0
    %4603 = vmatprep.subr.mxu0 0.0
    %4604 = vmatpush1.xpose.msra.mxu0 0.0
    %4605 = vmatprep.subr.mxu0 0.0
    %4606 = vmatpush1.xpose.msra.mxu0 0.0
    %4607 = vmatprep.mubr.f32.mxu0 0.0
    %4608 = vmatmul.mubr.f32.gmra.mrb[0].mxu0 %v4525
    %v4609 = vpop.f32.mrb[0].mxu0
    %v4610 = vadd.f32 0.0, %v4609
    %v4611 = vpop.f32.mrb[0].mxu0
    %4612 = vdwg.mxu0
    %v4613 = vsel %vm696, %v4610, -inf
    %v4614 = vrot.slane %v4613, 4
    %v4615 = vmax.f32 %v4613, %v4614
    %v4616 = vrot.slane %v4615, 2
    %v4617 = vmax.f32 %v4615, %v4616
    %v4618 = vrot.slane %v4617, 1
    %v4619 = vmax.f32 %v4617, %v4618
    %v4620 = vsub.f32 %v4610, %v4619
    %v4621 = vmul.f32 %v4620, 1.442695
    %v4622 = vpow.pop %v4621
    %v4623 = vsel %vm696, %v4622, 0.0
    %v4624 = vrot.slane %v4623, 4
    %v4625 = vadd.f32 %v4623, %v4624
    %v4626 = vrot.slane %v4625, 2
    %v4627 = vadd.f32 %v4625, %v4626
    %v4628 = vrot.slane %v4627, 1
    %v4629 = vadd.f32 %v4627, %v4628
    %v4630 = vrcp.pop %v4629
    %v4631 = vmul.f32 %v4622, %v4630
    %4632 = vxpose.xlu0.b32.start [1/16] %v4631, 128
    %4633 = vxpose.xlu0.b32.cont [2/16] 0.0, 128
    %4634 = vxpose.xlu0.b32.cont [3/16] 0.0, 128
    %4635 = vxpose.xlu0.b32.cont [4/16] 0.0, 128
    %4636 = vxpose.xlu0.b32.cont [5/16] 0.0, 128
    %4637 = vxpose.xlu0.b32.cont [6/16] 0.0, 128
    %4638 = vxpose.xlu0.b32.cont [7/16] 0.0, 128
    %4639 = vxpose.xlu0.b32.cont [8/16] 0.0, 128
    %4640 = vxpose.xlu0.b32.cont [9/16] 0.0, 128
    %4641 = vxpose.xlu0.b32.cont [10/16] 0.0, 128
    %4642 = vxpose.xlu0.b32.cont [11/16] 0.0, 128
    %4643 = vxpose.xlu0.b32.cont [12/16] 0.0, 128
    %4644 = vxpose.xlu0.b32.cont [13/16] 0.0, 128
    %4645 = vxpose.xlu0.b32.cont [14/16] 0.0, 128
    %4646 = vxpose.xlu0.b32.cont [15/16] 0.0, 128
    %4647 = vxpose.xlu0.b32.end [16/16] 0.0, 128
    %v4648 = vpop.trf.xlu0
    %v4649 = vpop.trf.xlu0
    %v4650 = vpop.trf.xlu0
    %v4651 = vpop.trf.xlu0
    %v4652 = vpop.trf.xlu0
    %v4653 = vpop.trf.xlu0
    %v4654 = vpop.trf.xlu0
    %v4655 = vpop.trf.xlu0
    %v4656 = vpop.trf.xlu0
    %v4657 = vpop.trf.xlu0
    %v4658 = vpop.trf.xlu0
    %v4659 = vpop.trf.xlu0
    %v4660 = vpop.trf.xlu0
    %v4661 = vpop.trf.xlu0
    %v4662 = vpop.trf.xlu0
    %v4663 = vpop.trf.xlu0
    %4664 = vrot.lane.b32.xlu0 %v2945, 88
    %v4665 = vpop.permute.xlu0 %4664
    %v4668 = vsel %vm598, %v4648, 0
    %v4671 = vsel %vm598, %v4649, 0
    %v4674 = vsel %vm598, %v4650, 0
    %v4677 = vsel %vm598, %v4651, 0
    %v4680 = vsel %vm598, %v4652, 0
    %v4683 = vsel %vm598, %v4653, 0
    %v4686 = vsel %vm598, %v4654, 0
    %v4689 = vsel %vm598, %v4655, 0
    %4691 = vmatprep.subr.mxu0 0.0
    %4692 = vmatpush1.msra.mxu0 %v4665
    %4693 = vmatprep.subr.mxu0 0.0
    %4694 = vmatpush1.msra.mxu0 0.0
    %4695 = vmatprep.subr.mxu0 0.0
    %4696 = vmatpush1.msra.mxu0 0.0
    %4697 = vmatprep.subr.mxu0 0.0
    %4698 = vmatpush1.msra.mxu0 0.0
    %4699 = vmatprep.subr.mxu0 0.0
    %4700 = vmatpush1.msra.mxu0 0.0
    %4701 = vmatprep.subr.mxu0 0.0
    %4702 = vmatpush1.msra.mxu0 0.0
    %4703 = vmatprep.subr.mxu0 0.0
    %4704 = vmatpush1.msra.mxu0 0.0
    %4705 = vmatprep.subr.mxu0 0.0
    %4706 = vmatpush1.msra.mxu0 0.0
    %4707 = vmatprep.subr.mxu0 0.0
    %4708 = vmatpush1.msra.mxu0 0.0
    %4709 = vmatprep.subr.mxu0 0.0
    %4710 = vmatpush1.msra.mxu0 0.0
    %4711 = vmatprep.subr.mxu0 0.0
    %4712 = vmatpush1.msra.mxu0 0.0
    %4713 = vmatprep.subr.mxu0 0.0
    %4714 = vmatpush1.msra.mxu0 0.0
    %4715 = vmatprep.subr.mxu0 0.0
    %4716 = vmatpush1.msra.mxu0 0.0
    %4717 = vmatprep.subr.mxu0 0.0
    %4718 = vmatpush1.msra.mxu0 0.0
    %4719 = vmatprep.subr.mxu0 0.0
    %4720 = vmatpush1.msra.mxu0 0.0
    %4721 = vmatprep.subr.mxu0 0.0
    %4722 = vmatpush1.msra.mxu0 0.0
    %4723 = vmatprep.subr.mxu0 0.0
    %4724 = vmatpush1.msra.mxu0 0.0
    %4725 = vmatprep.subr.mxu0 0.0
    %4726 = vmatpush1.msra.mxu0 0.0
    %4727 = vmatprep.subr.mxu0 0.0
    %4728 = vmatpush1.msra.mxu0 0.0
    %4729 = vmatprep.subr.mxu0 0.0
    %4730 = vmatpush1.msra.mxu0 0.0
    %4731 = vmatprep.subr.mxu0 0.0
    %4732 = vmatpush1.msra.mxu0 0.0
    %4733 = vmatprep.subr.mxu0 0.0
    %4734 = vmatpush1.msra.mxu0 0.0
    %4735 = vmatprep.subr.mxu0 0.0
    %4736 = vmatpush1.msra.mxu0 0.0
    %4737 = vmatprep.subr.mxu0 0.0
    %4738 = vmatpush1.msra.mxu0 0.0
    %4739 = vmatprep.subr.mxu0 0.0
    %4740 = vmatpush1.msra.mxu0 0.0
    %4741 = vmatprep.subr.mxu0 0.0
    %4742 = vmatpush1.msra.mxu0 0.0
    %4743 = vmatprep.subr.mxu0 0.0
    %4744 = vmatpush1.msra.mxu0 0.0
    %4745 = vmatprep.subr.mxu0 0.0
    %4746 = vmatpush1.msra.mxu0 0.0
    %4747 = vmatprep.subr.mxu0 0.0
    %4748 = vmatpush1.msra.mxu0 0.0
    %4749 = vmatprep.subr.mxu0 0.0
    %4750 = vmatpush1.msra.mxu0 0.0
    %4751 = vmatprep.subr.mxu0 0.0
    %4752 = vmatpush1.msra.mxu0 0.0
    %4753 = vmatprep.subr.mxu0 0.0
    %4754 = vmatpush1.msra.mxu0 0.0
    %4755 = vmatprep.mubr.f32.mxu0 0.0
    %4756 = vmatmul.mubr.f32.gmra.mrb[0].mxu0 %v4668
    %v4757 = vpop.f32.mrb[0].mxu0
    %v4758 = vadd.f32 0.0, %v4757
    %v4759 = vpop.f32.mrb[0].mxu0
    %4760 = vmatprep.mubr.f32.mxu0 0.0
    %4761 = vmatmul.mubr.f32.gmra.mrb[0].mxu0 %v4671
    %v4762 = vpop.f32.mrb[0].mxu0
    %v4763 = vadd.f32 0.0, %v4762
    %v4764 = vpop.f32.mrb[0].mxu0
    %4765 = vmatprep.mubr.f32.mxu0 0.0
    %4766 = vmatmul.mubr.f32.gmra.mrb[0].mxu0 %v4674
    %v4767 = vpop.f32.mrb[0].mxu0
    %v4768 = vadd.f32 0.0, %v4767
    %v4769 = vpop.f32.mrb[0].mxu0
    %4770 = vmatprep.mubr.f32.mxu0 0.0
    %4771 = vmatmul.mubr.f32.gmra.mrb[0].mxu0 %v4677
    %v4772 = vpop.f32.mrb[0].mxu0
    %v4773 = vadd.f32 0.0, %v4772
    %v4774 = vpop.f32.mrb[0].mxu0
    %4775 = vmatprep.mubr.f32.mxu0 0.0
    %4776 = vmatmul.mubr.f32.gmra.mrb[0].mxu0 %v4680
    %v4777 = vpop.f32.mrb[0].mxu0
    %v4778 = vadd.f32 0.0, %v4777
    %v4779 = vpop.f32.mrb[0].mxu0
    %4780 = vmatprep.mubr.f32.mxu0 0.0
    %4781 = vmatmul.mubr.f32.gmra.mrb[0].mxu0 %v4683
    %v4782 = vpop.f32.mrb[0].mxu0
    %v4783 = vadd.f32 0.0, %v4782
    %v4784 = vpop.f32.mrb[0].mxu0
    %4785 = vmatprep.mubr.f32.mxu0 0.0
    %4786 = vmatmul.mubr.f32.gmra.mrb[0].mxu0 %v4686
    %v4787 = vpop.f32.mrb[0].mxu0
    %v4788 = vadd.f32 0.0, %v4787
    %v4789 = vpop.f32.mrb[0].mxu0
    %4790 = vmatprep.mubr.f32.mxu0 0.0
    %4791 = vmatmul.mubr.f32.gmra.mrb[0].mxu0 %v4689
    %v4792 = vpop.f32.mrb[0].mxu0
    %v4793 = vadd.f32 0.0, %v4792
    %v4794 = vpop.f32.mrb[0].mxu0
    %4795 = vdwg.mxu0
    %4796 = vrot.lane.b32.xlu0 %v2945, 112
    %v4797 = vpop.permute.xlu0 %4796
    %4798 = vrot.lane.b32.xlu0 %v2851, 112
    %v4799 = vpop.permute.xlu0 %4798
    %4800 = vrot.lane.b32.xlu0 %v2852, 112
    %v4801 = vpop.permute.xlu0 %4800
    %4802 = vrot.lane.b32.xlu0 %v2853, 112
    %v4803 = vpop.permute.xlu0 %4802
    %4804 = vrot.lane.b32.xlu0 %v2854, 112
    %v4805 = vpop.permute.xlu0 %4804
    %4806 = vrot.lane.b32.xlu0 %v2855, 112
    %v4807 = vpop.permute.xlu0 %4806
    %4808 = vrot.lane.b32.xlu0 %v2856, 112
    %v4809 = vpop.permute.xlu0 %4808
    %4810 = vrot.lane.b32.xlu0 %v2857, 112
    %v4811 = vpop.permute.xlu0 %4810
    %4812 = vrot.lane.b32.xlu0 %v2858, 112
    %v4813 = vpop.permute.xlu0 %4812
    %v4814 = vsel %vm598, %v4797, 0
    %v4816 = vsel %vm598, %v4799, 0
    %v4818 = vsel %vm598, %v4801, 0
    %v4820 = vsel %vm598, %v4803, 0
    %v4822 = vsel %vm598, %v4805, 0
    %v4824 = vsel %vm598, %v4807, 0
    %v4826 = vsel %vm598, %v4809, 0
    %v4828 = vsel %vm598, %v4811, 0
    %v4830 = vsel %vm598, %v4813, 0
    %4832 = vmatprep.subr.mxu0 0.0
    %4833 = vmatpush1.xpose.msra.mxu0 %v4816
    %4834 = vmatprep.subr.mxu0 0.0
    %4835 = vmatpush1.xpose.msra.mxu0 %v4818
    %4836 = vmatprep.subr.mxu0 0.0
    %4837 = vmatpush1.xpose.msra.mxu0 %v4820
    %4838 = vmatprep.subr.mxu0 0.0
    %4839 = vmatpush1.xpose.msra.mxu0 %v4822
    %4840 = vmatprep.subr.mxu0 0.0
    %4841 = vmatpush1.xpose.msra.mxu0 %v4824
    %4842 = vmatprep.subr.mxu0 0.0
    %4843 = vmatpush1.xpose.msra.mxu0 %v4826
    %4844 = vmatprep.subr.mxu0 0.0
    %4845 = vmatpush1.xpose.msra.mxu0 %v4828
    %4846 = vmatprep.subr.mxu0 0.0
    %4847 = vmatpush1.xpose.msra.mxu0 %v4830
    %4848 = vmatprep.subr.mxu0 0.0
    %4849 = vmatpush1.xpose.msra.mxu0 0.0
    %4850 = vmatprep.subr.mxu0 0.0
    %4851 = vmatpush1.xpose.msra.mxu0 0.0
    %4852 = vmatprep.subr.mxu0 0.0
    %4853 = vmatpush1.xpose.msra.mxu0 0.0
    %4854 = vmatprep.subr.mxu0 0.0
    %4855 = vmatpush1.xpose.msra.mxu0 0.0
    %4856 = vmatprep.subr.mxu0 0.0
    %4857 = vmatpush1.xpose.msra.mxu0 0.0
    %4858 = vmatprep.subr.mxu0 0.0
    %4859 = vmatpush1.xpose.msra.mxu0 0.0
    %4860 = vmatprep.subr.mxu0 0.0
    %4861 = vmatpush1.xpose.msra.mxu0 0.0
    %4862 = vmatprep.subr.mxu0 0.0
    %4863 = vmatpush1.xpose.msra.mxu0 0.0
    %4864 = vmatprep.subr.mxu0 0.0
    %4865 = vmatpush1.xpose.msra.mxu0 0.0
    %4866 = vmatprep.subr.mxu0 0.0
    %4867 = vmatpush1.xpose.msra.mxu0 0.0
    %4868 = vmatprep.subr.mxu0 0.0
    %4869 = vmatpush1.xpose.msra.mxu0 0.0
    %4870 = vmatprep.subr.mxu0 0.0
    %4871 = vmatpush1.xpose.msra.mxu0 0.0
    %4872 = vmatprep.subr.mxu0 0.0
    %4873 = vmatpush1.xpose.msra.mxu0 0.0
    %4874 = vmatprep.subr.mxu0 0.0
    %4875 = vmatpush1.xpose.msra.mxu0 0.0
    %4876 = vmatprep.subr.mxu0 0.0
    %4877 = vmatpush1.xpose.msra.mxu0 0.0
    %4878 = vmatprep.subr.mxu0 0.0
    %4879 = vmatpush1.xpose.msra.mxu0 0.0
    %4880 = vmatprep.subr.mxu0 0.0
    %4881 = vmatpush1.xpose.msra.mxu0 0.0
    %4882 = vmatprep.subr.mxu0 0.0
    %4883 = vmatpush1.xpose.msra.mxu0 0.0
    %4884 = vmatprep.subr.mxu0 0.0
    %4885 = vmatpush1.xpose.msra.mxu0 0.0
    %4886 = vmatprep.subr.mxu0 0.0
    %4887 = vmatpush1.xpose.msra.mxu0 0.0
    %4888 = vmatprep.subr.mxu0 0.0
    %4889 = vmatpush1.xpose.msra.mxu0 0.0
    %4890 = vmatprep.subr.mxu0 0.0
    %4891 = vmatpush1.xpose.msra.mxu0 0.0
    %4892 = vmatprep.subr.mxu0 0.0
    %4893 = vmatpush1.xpose.msra.mxu0 0.0
    %4894 = vmatprep.subr.mxu0 0.0
    %4895 = vmatpush1.xpose.msra.mxu0 0.0
    %4896 = vmatprep.mubr.f32.mxu0 0.0
    %4897 = vmatmul.mubr.f32.gmra.mrb[0].mxu0 %v4814
    %v4898 = vpop.f32.mrb[0].mxu0
    %v4899 = vadd.f32 0.0, %v4898
    %v4900 = vpop.f32.mrb[0].mxu0
    %4901 = vdwg.mxu0
    %v4902 = vsel %vm696, %v4899, -inf
    %v4903 = vrot.slane %v4902, 4
    %v4904 = vmax.f32 %v4902, %v4903
    %v4905 = vrot.slane %v4904, 2
    %v4906 = vmax.f32 %v4904, %v4905
    %v4907 = vrot.slane %v4906, 1
    %v4908 = vmax.f32 %v4906, %v4907
    %v4909 = vsub.f32 %v4899, %v4908
    %v4910 = vmul.f32 %v4909, 1.442695
    %v4911 = vpow.pop %v4910
    %v4912 = vsel %vm696, %v4911, 0.0
    %v4913 = vrot.slane %v4912, 4
    %v4914 = vadd.f32 %v4912, %v4913
    %v4915 = vrot.slane %v4914, 2
    %v4916 = vadd.f32 %v4914, %v4915
    %v4917 = vrot.slane %v4916, 1
    %v4918 = vadd.f32 %v4916, %v4917
    %v4919 = vrcp.pop %v4918
    %v4920 = vmul.f32 %v4911, %v4919
    %4921 = vxpose.xlu0.b32.start [1/16] %v4920, 128
    %4922 = vxpose.xlu0.b32.cont [2/16] 0.0, 128
    %4923 = vxpose.xlu0.b32.cont [3/16] 0.0, 128
    %4924 = vxpose.xlu0.b32.cont [4/16] 0.0, 128
    %4925 = vxpose.xlu0.b32.cont [5/16] 0.0, 128
    %4926 = vxpose.xlu0.b32.cont [6/16] 0.0, 128
    %4927 = vxpose.xlu0.b32.cont [7/16] 0.0, 128
    %4928 = vxpose.xlu0.b32.cont [8/16] 0.0, 128
    %4929 = vxpose.xlu0.b32.cont [9/16] 0.0, 128
    %4930 = vxpose.xlu0.b32.cont [10/16] 0.0, 128
    %4931 = vxpose.xlu0.b32.cont [11/16] 0.0, 128
    %4932 = vxpose.xlu0.b32.cont [12/16] 0.0, 128
    %4933 = vxpose.xlu0.b32.cont [13/16] 0.0, 128
    %4934 = vxpose.xlu0.b32.cont [14/16] 0.0, 128
    %4935 = vxpose.xlu0.b32.cont [15/16] 0.0, 128
    %4936 = vxpose.xlu0.b32.end [16/16] 0.0, 128
    %v4937 = vpop.trf.xlu0
    %v4938 = vpop.trf.xlu0
    %v4939 = vpop.trf.xlu0
    %v4940 = vpop.trf.xlu0
    %v4941 = vpop.trf.xlu0
    %v4942 = vpop.trf.xlu0
    %v4943 = vpop.trf.xlu0
    %v4944 = vpop.trf.xlu0
    %v4945 = vpop.trf.xlu0
    %v4946 = vpop.trf.xlu0
    %v4947 = vpop.trf.xlu0
    %v4948 = vpop.trf.xlu0
    %v4949 = vpop.trf.xlu0
    %v4950 = vpop.trf.xlu0
    %v4951 = vpop.trf.xlu0
    %v4952 = vpop.trf.xlu0
    %4953 = vrot.lane.b32.xlu0 %v2945, 80
    %v4954 = vpop.permute.xlu0 %4953
    %v4957 = vsel %vm598, %v4937, 0
    %v4960 = vsel %vm598, %v4938, 0
    %v4963 = vsel %vm598, %v4939, 0
    %v4966 = vsel %vm598, %v4940, 0
    %v4969 = vsel %vm598, %v4941, 0
    %v4972 = vsel %vm598, %v4942, 0
    %v4975 = vsel %vm598, %v4943, 0
    %v4978 = vsel %vm598, %v4944, 0
    %4980 = vmatprep.subr.mxu0 0.0
    %4981 = vmatpush1.msra.mxu0 %v4954
    %4982 = vmatprep.subr.mxu0 0.0
    %4983 = vmatpush1.msra.mxu0 0.0
    %4984 = vmatprep.subr.mxu0 0.0
    %4985 = vmatpush1.msra.mxu0 0.0
    %4986 = vmatprep.subr.mxu0 0.0
    %4987 = vmatpush1.msra.mxu0 0.0
    %4988 = vmatprep.subr.mxu0 0.0
    %4989 = vmatpush1.msra.mxu0 0.0
    %4990 = vmatprep.subr.mxu0 0.0
    %4991 = vmatpush1.msra.mxu0 0.0
    %4992 = vmatprep.subr.mxu0 0.0
    %4993 = vmatpush1.msra.mxu0 0.0
    %4994 = vmatprep.subr.mxu0 0.0
    %4995 = vmatpush1.msra.mxu0 0.0
    %4996 = vmatprep.subr.mxu0 0.0
    %4997 = vmatpush1.msra.mxu0 0.0
    %4998 = vmatprep.subr.mxu0 0.0
    %4999 = vmatpush1.msra.mxu0 0.0
    %5000 = vmatprep.subr.mxu0 0.0
    %5001 = vmatpush1.msra.mxu0 0.0
    %5002 = vmatprep.subr.mxu0 0.0
    %5003 = vmatpush1.msra.mxu0 0.0
    %5004 = vmatprep.subr.mxu0 0.0
    %5005 = vmatpush1.msra.mxu0 0.0
    %5006 = vmatprep.subr.mxu0 0.0
    %5007 = vmatpush1.msra.mxu0 0.0
    %5008 = vmatprep.subr.mxu0 0.0
    %5009 = vmatpush1.msra.mxu0 0.0
    %5010 = vmatprep.subr.mxu0 0.0
    %5011 = vmatpush1.msra.mxu0 0.0
    %5012 = vmatprep.subr.mxu0 0.0
    %5013 = vmatpush1.msra.mxu0 0.0
    %5014 = vmatprep.subr.mxu0 0.0
    %5015 = vmatpush1.msra.mxu0 0.0
    %5016 = vmatprep.subr.mxu0 0.0
    %5017 = vmatpush1.msra.mxu0 0.0
    %5018 = vmatprep.subr.mxu0 0.0
    %5019 = vmatpush1.msra.mxu0 0.0
    %5020 = vmatprep.subr.mxu0 0.0
    %5021 = vmatpush1.msra.mxu0 0.0
    %5022 = vmatprep.subr.mxu0 0.0
    %5023 = vmatpush1.msra.mxu0 0.0
    %5024 = vmatprep.subr.mxu0 0.0
    %5025 = vmatpush1.msra.mxu0 0.0
    %5026 = vmatprep.subr.mxu0 0.0
    %5027 = vmatpush1.msra.mxu0 0.0
    %5028 = vmatprep.subr.mxu0 0.0
    %5029 = vmatpush1.msra.mxu0 0.0
    %5030 = vmatprep.subr.mxu0 0.0
    %5031 = vmatpush1.msra.mxu0 0.0
    %5032 = vmatprep.subr.mxu0 0.0
    %5033 = vmatpush1.msra.mxu0 0.0
    %5034 = vmatprep.subr.mxu0 0.0
    %5035 = vmatpush1.msra.mxu0 0.0
    %5036 = vmatprep.subr.mxu0 0.0
    %5037 = vmatpush1.msra.mxu0 0.0
    %5038 = vmatprep.subr.mxu0 0.0
    %5039 = vmatpush1.msra.mxu0 0.0
    %5040 = vmatprep.subr.mxu0 0.0
    %5041 = vmatpush1.msra.mxu0 0.0
    %5042 = vmatprep.subr.mxu0 0.0
    %5043 = vmatpush1.msra.mxu0 0.0
    %5044 = vmatprep.mubr.f32.mxu0 0.0
    %5045 = vmatmul.mubr.f32.gmra.mrb[0].mxu0 %v4957
    %v5046 = vpop.f32.mrb[0].mxu0
    %v5047 = vadd.f32 0.0, %v5046
    %v5048 = vpop.f32.mrb[0].mxu0
    %5049 = vmatprep.mubr.f32.mxu0 0.0
    %5050 = vmatmul.mubr.f32.gmra.mrb[0].mxu0 %v4960
    %v5051 = vpop.f32.mrb[0].mxu0
    %v5052 = vadd.f32 0.0, %v5051
    %v5053 = vpop.f32.mrb[0].mxu0
    %5054 = vmatprep.mubr.f32.mxu0 0.0
    %5055 = vmatmul.mubr.f32.gmra.mrb[0].mxu0 %v4963
    %v5056 = vpop.f32.mrb[0].mxu0
    %v5057 = vadd.f32 0.0, %v5056
    %v5058 = vpop.f32.mrb[0].mxu0
    %5059 = vmatprep.mubr.f32.mxu0 0.0
    %5060 = vmatmul.mubr.f32.gmra.mrb[0].mxu0 %v4966
    %v5061 = vpop.f32.mrb[0].mxu0
    %v5062 = vadd.f32 0.0, %v5061
    %v5063 = vpop.f32.mrb[0].mxu0
    %5064 = vmatprep.mubr.f32.mxu0 0.0
    %5065 = vmatmul.mubr.f32.gmra.mrb[0].mxu0 %v4969
    %v5066 = vpop.f32.mrb[0].mxu0
    %v5067 = vadd.f32 0.0, %v5066
    %v5068 = vpop.f32.mrb[0].mxu0
    %5069 = vmatprep.mubr.f32.mxu0 0.0
    %5070 = vmatmul.mubr.f32.gmra.mrb[0].mxu0 %v4972
    %v5071 = vpop.f32.mrb[0].mxu0
    %v5072 = vadd.f32 0.0, %v5071
    %v5073 = vpop.f32.mrb[0].mxu0
    %5074 = vmatprep.mubr.f32.mxu0 0.0
    %5075 = vmatmul.mubr.f32.gmra.mrb[0].mxu0 %v4975
    %v5076 = vpop.f32.mrb[0].mxu0
    %v5077 = vadd.f32 0.0, %v5076
    %v5078 = vpop.f32.mrb[0].mxu0
    %5079 = vmatprep.mubr.f32.mxu0 0.0
    %5080 = vmatmul.mubr.f32.gmra.mrb[0].mxu0 %v4978
    %v5081 = vpop.f32.mrb[0].mxu0
    %v5082 = vadd.f32 0.0, %v5081
    %v5083 = vpop.f32.mrb[0].mxu0
    %5084 = vdwg.mxu0
    %5085 = vrot.lane.b32.xlu0 %v2945, 104
    %v5086 = vpop.permute.xlu0 %5085
    %5087 = vrot.lane.b32.xlu0 %v2851, 104
    %v5088 = vpop.permute.xlu0 %5087
    %5089 = vrot.lane.b32.xlu0 %v2852, 104
    %v5090 = vpop.permute.xlu0 %5089
    %5091 = vrot.lane.b32.xlu0 %v2853, 104
    %v5092 = vpop.permute.xlu0 %5091
    %5093 = vrot.lane.b32.xlu0 %v2854, 104
    %v5094 = vpop.permute.xlu0 %5093
    %5095 = vrot.lane.b32.xlu0 %v2855, 104
    %v5096 = vpop.permute.xlu0 %5095
    %5097 = vrot.lane.b32.xlu0 %v2856, 104
    %v5098 = vpop.permute.xlu0 %5097
    %5099 = vrot.lane.b32.xlu0 %v2857, 104
    %v5100 = vpop.permute.xlu0 %5099
    %5101 = vrot.lane.b32.xlu0 %v2858, 104
    %v5102 = vpop.permute.xlu0 %5101
    %v5103 = vsel %vm598, %v5086, 0
    %v5105 = vsel %vm598, %v5088, 0
    %v5107 = vsel %vm598, %v5090, 0
    %v5109 = vsel %vm598, %v5092, 0
    %v5111 = vsel %vm598, %v5094, 0
    %v5113 = vsel %vm598, %v5096, 0
    %v5115 = vsel %vm598, %v5098, 0
    %v5117 = vsel %vm598, %v5100, 0
    %v5119 = vsel %vm598, %v5102, 0
    %5121 = vmatprep.subr.mxu0 0.0
    %5122 = vmatpush1.xpose.msra.mxu0 %v5105
    %5123 = vmatprep.subr.mxu0 0.0
    %5124 = vmatpush1.xpose.msra.mxu0 %v5107
    %5125 = vmatprep.subr.mxu0 0.0
    %5126 = vmatpush1.xpose.msra.mxu0 %v5109
    %5127 = vmatprep.subr.mxu0 0.0
    %5128 = vmatpush1.xpose.msra.mxu0 %v5111
    %5129 = vmatprep.subr.mxu0 0.0
    %5130 = vmatpush1.xpose.msra.mxu0 %v5113
    %5131 = vmatprep.subr.mxu0 0.0
    %5132 = vmatpush1.xpose.msra.mxu0 %v5115
    %5133 = vmatprep.subr.mxu0 0.0
    %5134 = vmatpush1.xpose.msra.mxu0 %v5117
    %5135 = vmatprep.subr.mxu0 0.0
    %5136 = vmatpush1.xpose.msra.mxu0 %v5119
    %5137 = vmatprep.subr.mxu0 0.0
    %5138 = vmatpush1.xpose.msra.mxu0 0.0
    %5139 = vmatprep.subr.mxu0 0.0
    %5140 = vmatpush1.xpose.msra.mxu0 0.0
    %5141 = vmatprep.subr.mxu0 0.0
    %5142 = vmatpush1.xpose.msra.mxu0 0.0
    %5143 = vmatprep.subr.mxu0 0.0
    %5144 = vmatpush1.xpose.msra.mxu0 0.0
    %5145 = vmatprep.subr.mxu0 0.0
    %5146 = vmatpush1.xpose.msra.mxu0 0.0
    %5147 = vmatprep.subr.mxu0 0.0
    %5148 = vmatpush1.xpose.msra.mxu0 0.0
    %5149 = vmatprep.subr.mxu0 0.0
    %5150 = vmatpush1.xpose.msra.mxu0 0.0
    %5151 = vmatprep.subr.mxu0 0.0
    %5152 = vmatpush1.xpose.msra.mxu0 0.0
    %5153 = vmatprep.subr.mxu0 0.0
    %5154 = vmatpush1.xpose.msra.mxu0 0.0
    %5155 = vmatprep.subr.mxu0 0.0
    %5156 = vmatpush1.xpose.msra.mxu0 0.0
    %5157 = vmatprep.subr.mxu0 0.0
    %5158 = vmatpush1.xpose.msra.mxu0 0.0
    %5159 = vmatprep.subr.mxu0 0.0
    %5160 = vmatpush1.xpose.msra.mxu0 0.0
    %5161 = vmatprep.subr.mxu0 0.0
    %5162 = vmatpush1.xpose.msra.mxu0 0.0
    %5163 = vmatprep.subr.mxu0 0.0
    %5164 = vmatpush1.xpose.msra.mxu0 0.0
    %5165 = vmatprep.subr.mxu0 0.0
    %5166 = vmatpush1.xpose.msra.mxu0 0.0
    %5167 = vmatprep.subr.mxu0 0.0
    %5168 = vmatpush1.xpose.msra.mxu0 0.0
    %5169 = vmatprep.subr.mxu0 0.0
    %5170 = vmatpush1.xpose.msra.mxu0 0.0
    %5171 = vmatprep.subr.mxu0 0.0
    %5172 = vmatpush1.xpose.msra.mxu0 0.0
    %5173 = vmatprep.subr.mxu0 0.0
    %5174 = vmatpush1.xpose.msra.mxu0 0.0
    %5175 = vmatprep.subr.mxu0 0.0
    %5176 = vmatpush1.xpose.msra.mxu0 0.0
    %5177 = vmatprep.subr.mxu0 0.0
    %5178 = vmatpush1.xpose.msra.mxu0 0.0
    %5179 = vmatprep.subr.mxu0 0.0
    %5180 = vmatpush1.xpose.msra.mxu0 0.0
    %5181 = vmatprep.subr.mxu0 0.0
    %5182 = vmatpush1.xpose.msra.mxu0 0.0
    %5183 = vmatprep.subr.mxu0 0.0
    %5184 = vmatpush1.xpose.msra.mxu0 0.0
    %5185 = vmatprep.mubr.f32.mxu0 0.0
    %5186 = vmatmul.mubr.f32.gmra.mrb[0].mxu0 %v5103
    %v5187 = vpop.f32.mrb[0].mxu0
    %v5188 = vadd.f32 0.0, %v5187
    %v5189 = vpop.f32.mrb[0].mxu0
    %5190 = vdwg.mxu0
    %v5191 = vsel %vm696, %v5188, -inf
    %v5192 = vrot.slane %v5191, 4
    %v5193 = vmax.f32 %v5191, %v5192
    %v5194 = vrot.slane %v5193, 2
    %v5195 = vmax.f32 %v5193, %v5194
    %v5196 = vrot.slane %v5195, 1
    %v5197 = vmax.f32 %v5195, %v5196
    %v5198 = vsub.f32 %v5188, %v5197
    %v5199 = vmul.f32 %v5198, 1.442695
    %v5200 = vpow.pop %v5199
    %v5201 = vsel %vm696, %v5200, 0.0
    %v5202 = vrot.slane %v5201, 4
    %v5203 = vadd.f32 %v5201, %v5202
    %v5204 = vrot.slane %v5203, 2
    %v5205 = vadd.f32 %v5203, %v5204
    %v5206 = vrot.slane %v5205, 1
    %v5207 = vadd.f32 %v5205, %v5206
    %v5208 = vrcp.pop %v5207
    %v5209 = vmul.f32 %v5200, %v5208
    %5210 = vxpose.xlu0.b32.start [1/16] %v5209, 128
    %5211 = vxpose.xlu0.b32.cont [2/16] 0.0, 128
    %5212 = vxpose.xlu0.b32.cont [3/16] 0.0, 128
    %5213 = vxpose.xlu0.b32.cont [4/16] 0.0, 128
    %5214 = vxpose.xlu0.b32.cont [5/16] 0.0, 128
    %5215 = vxpose.xlu0.b32.cont [6/16] 0.0, 128
    %5216 = vxpose.xlu0.b32.cont [7/16] 0.0, 128
    %5217 = vxpose.xlu0.b32.cont [8/16] 0.0, 128
    %5218 = vxpose.xlu0.b32.cont [9/16] 0.0, 128
    %5219 = vxpose.xlu0.b32.cont [10/16] 0.0, 128
    %5220 = vxpose.xlu0.b32.cont [11/16] 0.0, 128
    %5221 = vxpose.xlu0.b32.cont [12/16] 0.0, 128
    %5222 = vxpose.xlu0.b32.cont [13/16] 0.0, 128
    %5223 = vxpose.xlu0.b32.cont [14/16] 0.0, 128
    %5224 = vxpose.xlu0.b32.cont [15/16] 0.0, 128
    %5225 = vxpose.xlu0.b32.end [16/16] 0.0, 128
    %v5226 = vpop.trf.xlu0
    %v5227 = vpop.trf.xlu0
    %v5228 = vpop.trf.xlu0
    %v5229 = vpop.trf.xlu0
    %v5230 = vpop.trf.xlu0
    %v5231 = vpop.trf.xlu0
    %v5232 = vpop.trf.xlu0
    %v5233 = vpop.trf.xlu0
    %v5234 = vpop.trf.xlu0
    %v5235 = vpop.trf.xlu0
    %v5236 = vpop.trf.xlu0
    %v5237 = vpop.trf.xlu0
    %v5238 = vpop.trf.xlu0
    %v5239 = vpop.trf.xlu0
    %v5240 = vpop.trf.xlu0
    %v5241 = vpop.trf.xlu0
    %5242 = vrot.lane.b32.xlu0 %v2945, 72
    %v5243 = vpop.permute.xlu0 %5242
    %v5246 = vsel %vm598, %v5226, 0
    %v5249 = vsel %vm598, %v5227, 0
    %v5252 = vsel %vm598, %v5228, 0
    %v5255 = vsel %vm598, %v5229, 0
    %v5258 = vsel %vm598, %v5230, 0
    %v5261 = vsel %vm598, %v5231, 0
    %v5264 = vsel %vm598, %v5232, 0
    %v5267 = vsel %vm598, %v5233, 0
    %5269 = vmatprep.subr.mxu0 0.0
    %5270 = vmatpush1.msra.mxu0 %v5243
    %5271 = vmatprep.subr.mxu0 0.0
    %5272 = vmatpush1.msra.mxu0 0.0
    %5273 = vmatprep.subr.mxu0 0.0
    %5274 = vmatpush1.msra.mxu0 0.0
    %5275 = vmatprep.subr.mxu0 0.0
    %5276 = vmatpush1.msra.mxu0 0.0
    %5277 = vmatprep.subr.mxu0 0.0
    %5278 = vmatpush1.msra.mxu0 0.0
    %5279 = vmatprep.subr.mxu0 0.0
    %5280 = vmatpush1.msra.mxu0 0.0
    %5281 = vmatprep.subr.mxu0 0.0
    %5282 = vmatpush1.msra.mxu0 0.0
    %5283 = vmatprep.subr.mxu0 0.0
    %5284 = vmatpush1.msra.mxu0 0.0
    %5285 = vmatprep.subr.mxu0 0.0
    %5286 = vmatpush1.msra.mxu0 0.0
    %5287 = vmatprep.subr.mxu0 0.0
    %5288 = vmatpush1.msra.mxu0 0.0
    %5289 = vmatprep.subr.mxu0 0.0
    %5290 = vmatpush1.msra.mxu0 0.0
    %5291 = vmatprep.subr.mxu0 0.0
    %5292 = vmatpush1.msra.mxu0 0.0
    %5293 = vmatprep.subr.mxu0 0.0
    %5294 = vmatpush1.msra.mxu0 0.0
    %5295 = vmatprep.subr.mxu0 0.0
    %5296 = vmatpush1.msra.mxu0 0.0
    %5297 = vmatprep.subr.mxu0 0.0
    %5298 = vmatpush1.msra.mxu0 0.0
    %5299 = vmatprep.subr.mxu0 0.0
    %5300 = vmatpush1.msra.mxu0 0.0
    %5301 = vmatprep.subr.mxu0 0.0
    %5302 = vmatpush1.msra.mxu0 0.0
    %5303 = vmatprep.subr.mxu0 0.0
    %5304 = vmatpush1.msra.mxu0 0.0
    %5305 = vmatprep.subr.mxu0 0.0
    %5306 = vmatpush1.msra.mxu0 0.0
    %5307 = vmatprep.subr.mxu0 0.0
    %5308 = vmatpush1.msra.mxu0 0.0
    %5309 = vmatprep.subr.mxu0 0.0
    %5310 = vmatpush1.msra.mxu0 0.0
    %5311 = vmatprep.subr.mxu0 0.0
    %5312 = vmatpush1.msra.mxu0 0.0
    %5313 = vmatprep.subr.mxu0 0.0
    %5314 = vmatpush1.msra.mxu0 0.0
    %5315 = vmatprep.subr.mxu0 0.0
    %5316 = vmatpush1.msra.mxu0 0.0
    %5317 = vmatprep.subr.mxu0 0.0
    %5318 = vmatpush1.msra.mxu0 0.0
    %5319 = vmatprep.subr.mxu0 0.0
    %5320 = vmatpush1.msra.mxu0 0.0
    %5321 = vmatprep.subr.mxu0 0.0
    %5322 = vmatpush1.msra.mxu0 0.0
    %5323 = vmatprep.subr.mxu0 0.0
    %5324 = vmatpush1.msra.mxu0 0.0
    %5325 = vmatprep.subr.mxu0 0.0
    %5326 = vmatpush1.msra.mxu0 0.0
    %5327 = vmatprep.subr.mxu0 0.0
    %5328 = vmatpush1.msra.mxu0 0.0
    %5329 = vmatprep.subr.mxu0 0.0
    %5330 = vmatpush1.msra.mxu0 0.0
    %5331 = vmatprep.subr.mxu0 0.0
    %5332 = vmatpush1.msra.mxu0 0.0
    %5333 = vmatprep.mubr.f32.mxu0 0.0
    %5334 = vmatmul.mubr.f32.gmra.mrb[0].mxu0 %v5246
    %v5335 = vpop.f32.mrb[0].mxu0
    %v5336 = vadd.f32 0.0, %v5335
    %v5337 = vpop.f32.mrb[0].mxu0
    %5338 = vmatprep.mubr.f32.mxu0 0.0
    %5339 = vmatmul.mubr.f32.gmra.mrb[0].mxu0 %v5249
    %v5340 = vpop.f32.mrb[0].mxu0
    %v5341 = vadd.f32 0.0, %v5340
    %v5342 = vpop.f32.mrb[0].mxu0
    %5343 = vmatprep.mubr.f32.mxu0 0.0
    %5344 = vmatmul.mubr.f32.gmra.mrb[0].mxu0 %v5252
    %v5345 = vpop.f32.mrb[0].mxu0
    %v5346 = vadd.f32 0.0, %v5345
    %v5347 = vpop.f32.mrb[0].mxu0
    %5348 = vmatprep.mubr.f32.mxu0 0.0
    %5349 = vmatmul.mubr.f32.gmra.mrb[0].mxu0 %v5255
    %v5350 = vpop.f32.mrb[0].mxu0
    %v5351 = vadd.f32 0.0, %v5350
    %v5352 = vpop.f32.mrb[0].mxu0
    %5353 = vmatprep.mubr.f32.mxu0 0.0
    %5354 = vmatmul.mubr.f32.gmra.mrb[0].mxu0 %v5258
    %v5355 = vpop.f32.mrb[0].mxu0
    %v5356 = vadd.f32 0.0, %v5355
    %v5357 = vpop.f32.mrb[0].mxu0
    %5358 = vmatprep.mubr.f32.mxu0 0.0
    %5359 = vmatmul.mubr.f32.gmra.mrb[0].mxu0 %v5261
    %v5360 = vpop.f32.mrb[0].mxu0
    %v5361 = vadd.f32 0.0, %v5360
    %v5362 = vpop.f32.mrb[0].mxu0
    %5363 = vmatprep.mubr.f32.mxu0 0.0
    %5364 = vmatmul.mubr.f32.gmra.mrb[0].mxu0 %v5264
    %v5365 = vpop.f32.mrb[0].mxu0
    %v5366 = vadd.f32 0.0, %v5365
    %v5367 = vpop.f32.mrb[0].mxu0
    %5368 = vmatprep.mubr.f32.mxu0 0.0
    %5369 = vmatmul.mubr.f32.gmra.mrb[0].mxu0 %v5267
    %v5370 = vpop.f32.mrb[0].mxu0
    %v5371 = vadd.f32 0.0, %v5370
    %v5372 = vpop.f32.mrb[0].mxu0
    %5373 = vdwg.mxu0
    %5375 = vrot.lane.b32.xlu0 %v4631, 64
    %v5376 = vpop.permute.xlu0 %5375
    %5379 = vrot.lane.b32.xlu0 %v5209, 64
    %v5380 = vpop.permute.xlu0 %5379
    %v5382 = vsel %vm696, %v4342, %v5376
    %v5383 = vsel %vm696, %v4920, %v5380
    %s5384 = scalar_lea.vmem %s16, 16
    %5385 = vst [vmem:[%s5384] sm:$0xff] %v5382
    %5386 = vst [vmem:[%s5384 + $0x8] sm:$0xff] %v5383
    %5395 = vrot.lane.b32.xlu0 %v4758, 8
    %v5396 = vpop.permute.xlu0 %5395
    %5397 = vrot.lane.b32.xlu0 %v4763, 8
    %v5398 = vpop.permute.xlu0 %5397
    %5399 = vrot.lane.b32.xlu0 %v4768, 8
    %v5400 = vpop.permute.xlu0 %5399
    %5401 = vrot.lane.b32.xlu0 %v4773, 8
    %v5402 = vpop.permute.xlu0 %5401
    %5403 = vrot.lane.b32.xlu0 %v4778, 8
    %v5404 = vpop.permute.xlu0 %5403
    %5405 = vrot.lane.b32.xlu0 %v4783, 8
    %v5406 = vpop.permute.xlu0 %5405
    %5407 = vrot.lane.b32.xlu0 %v4788, 8
    %v5408 = vpop.permute.xlu0 %5407
    %5409 = vrot.lane.b32.xlu0 %v4793, 8
    %v5410 = vpop.permute.xlu0 %5409
    %5427 = vrot.lane.b32.xlu0 %v5047, 16
    %v5428 = vpop.permute.xlu0 %5427
    %5429 = vrot.lane.b32.xlu0 %v5052, 16
    %v5430 = vpop.permute.xlu0 %5429
    %5431 = vrot.lane.b32.xlu0 %v5057, 16
    %v5432 = vpop.permute.xlu0 %5431
    %5433 = vrot.lane.b32.xlu0 %v5062, 16
    %v5434 = vpop.permute.xlu0 %5433
    %5435 = vrot.lane.b32.xlu0 %v5067, 16
    %v5436 = vpop.permute.xlu0 %5435
    %5437 = vrot.lane.b32.xlu0 %v5072, 16
    %v5438 = vpop.permute.xlu0 %5437
    %5439 = vrot.lane.b32.xlu0 %v5077, 16
    %v5440 = vpop.permute.xlu0 %5439
    %5441 = vrot.lane.b32.xlu0 %v5082, 16
    %v5442 = vpop.permute.xlu0 %5441
    %5459 = vrot.lane.b32.xlu0 %v5336, 24
    %v5460 = vpop.permute.xlu0 %5459
    %5461 = vrot.lane.b32.xlu0 %v5341, 24
    %v5462 = vpop.permute.xlu0 %5461
    %5463 = vrot.lane.b32.xlu0 %v5346, 24
    %v5464 = vpop.permute.xlu0 %5463
    %5465 = vrot.lane.b32.xlu0 %v5351, 24
    %v5466 = vpop.permute.xlu0 %5465
    %5467 = vrot.lane.b32.xlu0 %v5356, 24
    %v5468 = vpop.permute.xlu0 %5467
    %5469 = vrot.lane.b32.xlu0 %v5361, 24
    %v5470 = vpop.permute.xlu0 %5469
    %5471 = vrot.lane.b32.xlu0 %v5366, 24
    %v5472 = vpop.permute.xlu0 %5471
    %5473 = vrot.lane.b32.xlu0 %v5371, 24
    %v5474 = vpop.permute.xlu0 %5473
    %v5483 = vsel %vm598, %v4469, %v5396
    %v5484 = vsel %vm598, %v4474, %v5398
    %v5485 = vsel %vm598, %v4479, %v5400
    %v5486 = vsel %vm598, %v4484, %v5402
    %v5487 = vsel %vm598, %v4489, %v5404
    %v5488 = vsel %vm598, %v4494, %v5406
    %v5489 = vsel %vm598, %v4499, %v5408
    %v5490 = vsel %vm598, %v4504, %v5410
    %v5491 = vsel %vm1470, %v5483, %v5428
    %v5492 = vsel %vm1470, %v5484, %v5430
    %v5493 = vsel %vm1470, %v5485, %v5432
    %v5494 = vsel %vm1470, %v5486, %v5434
    %v5495 = vsel %vm1470, %v5487, %v5436
    %v5496 = vsel %vm1470, %v5488, %v5438
    %v5497 = vsel %vm1470, %v5489, %v5440
    %v5498 = vsel %vm1470, %v5490, %v5442
    %v5499 = vsel %vm1472, %v5491, %v5460
    %v5500 = vsel %vm1472, %v5492, %v5462
    %v5501 = vsel %vm1472, %v5493, %v5464
    %v5502 = vsel %vm1472, %v5494, %v5466
    %v5503 = vsel %vm1472, %v5495, %v5468
    %v5504 = vsel %vm1472, %v5496, %v5470
    %v5505 = vsel %vm1472, %v5497, %v5472
    %v5506 = vsel %vm1472, %v5498, %v5474
    %v5507 = vld [vmem:[%s10] sm:$0xff]
    %v5508 = vld [vmem:[%s10 + $0x8] sm:$0xff]
    %v5509 = vld [vmem:[%s10 + $0x10] sm:$0xff]
    %v5510 = vld [vmem:[%s10 + $0x18] sm:$0xff]
    %v5512 = vsel %vm70, %v4219, 0
    %v5515 = vsel %vm70, %v4220, 0
    %v5518 = vsel %vm70, %v4221, 0
    %v5521 = vsel %vm70, %v4222, 0
    %v5524 = vsel %vm70, %v4223, 0
    %v5527 = vsel %vm70, %v4224, 0
    %v5530 = vsel %vm70, %v4225, 0
    %v5533 = vsel %vm70, %v4226, 0
    %v5536 = vsel %vm70, %v5499, 0
    %v5539 = vsel %vm70, %v5500, 0
    %v5542 = vsel %vm70, %v5501, 0
    %v5545 = vsel %vm70, %v5502, 0
    %v5548 = vsel %vm70, %v5503, 0
    %v5551 = vsel %vm70, %v5504, 0
    %v5554 = vsel %vm70, %v5505, 0
    %v5557 = vsel %vm70, %v5506, 0
    %5559 = vmatprep.subr.mxu0 0.0
    %5560 = vmatpush1.msra.mxu0 %v5507
    %5561 = vmatprep.subr.mxu0 0.0
    %5562 = vmatpush1.msra.mxu0 %v5508
    %5563 = vmatprep.subr.mxu0 0.0
    %5564 = vmatpush1.msra.mxu0 %v5509
    %5565 = vmatprep.subr.mxu0 0.0
    %5566 = vmatpush1.msra.mxu0 %v5510
    %5567 = vmatprep.subr.mxu0 0.0
    %5568 = vmatpush1.msra.mxu0 0.0
    %5569 = vmatprep.subr.mxu0 0.0
    %5570 = vmatpush1.msra.mxu0 0.0
    %5571 = vmatprep.subr.mxu0 0.0
    %5572 = vmatpush1.msra.mxu0 0.0
    %5573 = vmatprep.subr.mxu0 0.0
    %5574 = vmatpush1.msra.mxu0 0.0
    %5575 = vmatprep.subr.mxu0 0.0
    %5576 = vmatpush1.msra.mxu0 0.0
    %5577 = vmatprep.subr.mxu0 0.0
    %5578 = vmatpush1.msra.mxu0 0.0
    %5579 = vmatprep.subr.mxu0 0.0
    %5580 = vmatpush1.msra.mxu0 0.0
    %5581 = vmatprep.subr.mxu0 0.0
    %5582 = vmatpush1.msra.mxu0 0.0
    %5583 = vmatprep.subr.mxu0 0.0
    %5584 = vmatpush1.msra.mxu0 0.0
    %5585 = vmatprep.subr.mxu0 0.0
    %5586 = vmatpush1.msra.mxu0 0.0
    %5587 = vmatprep.subr.mxu0 0.0
    %5588 = vmatpush1.msra.mxu0 0.0
    %5589 = vmatprep.subr.mxu0 0.0
    %5590 = vmatpush1.msra.mxu0 0.0
    %5591 = vmatprep.subr.mxu0 0.0
    %5592 = vmatpush1.msra.mxu0 0.0
    %5593 = vmatprep.subr.mxu0 0.0
    %5594 = vmatpush1.msra.mxu0 0.0
    %5595 = vmatprep.subr.mxu0 0.0
    %5596 = vmatpush1.msra.mxu0 0.0
    %5597 = vmatprep.subr.mxu0 0.0
    %5598 = vmatpush1.msra.mxu0 0.0
    %5599 = vmatprep.subr.mxu0 0.0
    %5600 = vmatpush1.msra.mxu0 0.0
    %5601 = vmatprep.subr.mxu0 0.0
    %5602 = vmatpush1.msra.mxu0 0.0
    %5603 = vmatprep.subr.mxu0 0.0
    %5604 = vmatpush1.msra.mxu0 0.0
    %5605 = vmatprep.subr.mxu0 0.0
    %5606 = vmatpush1.msra.mxu0 0.0
    %5607 = vmatprep.subr.mxu0 0.0
    %5608 = vmatpush1.msra.mxu0 0.0
    %5609 = vmatprep.subr.mxu0 0.0
    %5610 = vmatpush1.msra.mxu0 0.0
    %5611 = vmatprep.subr.mxu0 0.0
    %5612 = vmatpush1.msra.mxu0 0.0
    %5613 = vmatprep.subr.mxu0 0.0
    %5614 = vmatpush1.msra.mxu0 0.0
    %5615 = vmatprep.subr.mxu0 0.0
    %5616 = vmatpush1.msra.mxu0 0.0
    %5617 = vmatprep.subr.mxu0 0.0
    %5618 = vmatpush1.msra.mxu0 0.0
    %5619 = vmatprep.subr.mxu0 0.0
    %5620 = vmatpush1.msra.mxu0 0.0
    %5621 = vmatprep.subr.mxu0 0.0
    %5622 = vmatpush1.msra.mxu0 0.0
    %5623 = vmatprep.mubr.f32.mxu0 0.0
    %5624 = vmatmul.mubr.f32.gmra.mrb[0].mxu0 %v5512
    %v5625 = vpop.f32.mrb[0].mxu0
    %v5626 = vadd.f32 0.0, %v5625
    %v5627 = vpop.f32.mrb[0].mxu0
    %5628 = vmatprep.mubr.f32.mxu0 0.0
    %5629 = vmatmul.mubr.f32.gmra.mrb[0].mxu0 %v5515
    %v5630 = vpop.f32.mrb[0].mxu0
    %v5631 = vadd.f32 0.0, %v5630
    %v5632 = vpop.f32.mrb[0].mxu0
    %5633 = vmatprep.mubr.f32.mxu0 0.0
    %5634 = vmatmul.mubr.f32.gmra.mrb[0].mxu0 %v5518
    %v5635 = vpop.f32.mrb[0].mxu0
    %v5636 = vadd.f32 0.0, %v5635
    %v5637 = vpop.f32.mrb[0].mxu0
    %5638 = vmatprep.mubr.f32.mxu0 0.0
    %5639 = vmatmul.mubr.f32.gmra.mrb[0].mxu0 %v5521
    %v5640 = vpop.f32.mrb[0].mxu0
    %v5641 = vadd.f32 0.0, %v5640
    %v5642 = vpop.f32.mrb[0].mxu0
    %5643 = vmatprep.mubr.f32.mxu0 0.0
    %5644 = vmatmul.mubr.f32.gmra.mrb[0].mxu0 %v5524
    %v5645 = vpop.f32.mrb[0].mxu0
    %v5646 = vadd.f32 0.0, %v5645
    %v5647 = vpop.f32.mrb[0].mxu0
    %5648 = vmatprep.mubr.f32.mxu0 0.0
    %5649 = vmatmul.mubr.f32.gmra.mrb[0].mxu0 %v5527
    %v5650 = vpop.f32.mrb[0].mxu0
    %v5651 = vadd.f32 0.0, %v5650
    %v5652 = vpop.f32.mrb[0].mxu0
    %5653 = vmatprep.mubr.f32.mxu0 0.0
    %5654 = vmatmul.mubr.f32.gmra.mrb[0].mxu0 %v5530
    %v5655 = vpop.f32.mrb[0].mxu0
    %v5656 = vadd.f32 0.0, %v5655
    %v5657 = vpop.f32.mrb[0].mxu0
    %5658 = vmatprep.mubr.f32.mxu0 0.0
    %5659 = vmatmul.mubr.f32.gmra.mrb[0].mxu0 %v5533
    %v5660 = vpop.f32.mrb[0].mxu0
    %v5661 = vadd.f32 0.0, %v5660
    %v5662 = vpop.f32.mrb[0].mxu0
    %5663 = vmatprep.mubr.f32.mxu0 0.0
    %5664 = vmatmul.mubr.f32.gmra.mrb[0].mxu0 %v5536
    %v5665 = vpop.f32.mrb[0].mxu0
    %v5666 = vadd.f32 0.0, %v5665
    %v5667 = vpop.f32.mrb[0].mxu0
    %5668 = vmatprep.mubr.f32.mxu0 0.0
    %5669 = vmatmul.mubr.f32.gmra.mrb[0].mxu0 %v5539
    %v5670 = vpop.f32.mrb[0].mxu0
    %v5671 = vadd.f32 0.0, %v5670
    %v5672 = vpop.f32.mrb[0].mxu0
    %5673 = vmatprep.mubr.f32.mxu0 0.0
    %5674 = vmatmul.mubr.f32.gmra.mrb[0].mxu0 %v5542
    %v5675 = vpop.f32.mrb[0].mxu0
    %v5676 = vadd.f32 0.0, %v5675
    %v5677 = vpop.f32.mrb[0].mxu0
    %5678 = vmatprep.mubr.f32.mxu0 0.0
    %5679 = vmatmul.mubr.f32.gmra.mrb[0].mxu0 %v5545
    %v5680 = vpop.f32.mrb[0].mxu0
    %v5681 = vadd.f32 0.0, %v5680
    %v5682 = vpop.f32.mrb[0].mxu0
    %5683 = vmatprep.mubr.f32.mxu0 0.0
    %5684 = vmatmul.mubr.f32.gmra.mrb[0].mxu0 %v5548
    %v5685 = vpop.f32.mrb[0].mxu0
    %v5686 = vadd.f32 0.0, %v5685
    %v5687 = vpop.f32.mrb[0].mxu0
    %5688 = vmatprep.mubr.f32.mxu0 0.0
    %5689 = vmatmul.mubr.f32.gmra.mrb[0].mxu0 %v5551
    %v5690 = vpop.f32.mrb[0].mxu0
    %v5691 = vadd.f32 0.0, %v5690
    %v5692 = vpop.f32.mrb[0].mxu0
    %5693 = vmatprep.mubr.f32.mxu0 0.0
    %5694 = vmatmul.mubr.f32.gmra.mrb[0].mxu0 %v5554
    %v5695 = vpop.f32.mrb[0].mxu0
    %v5696 = vadd.f32 0.0, %v5695
    %v5697 = vpop.f32.mrb[0].mxu0
    %5698 = vmatprep.mubr.f32.mxu0 0.0
    %5699 = vmatmul.mubr.f32.gmra.mrb[0].mxu0 %v5557
    %v5700 = vpop.f32.mrb[0].mxu0
    %v5701 = vadd.f32 0.0, %v5700
    %v5702 = vpop.f32.mrb[0].mxu0
    %5703 = vdwg.mxu0
    %v5704 = vadd.f32 %v52, %v5626
    %v5705 = vadd.f32 %v53, %v5631
    %v5706 = vadd.f32 %v54, %v5636
    %v5707 = vadd.f32 %v55, %v5641
    %v5708 = vadd.f32 %v56, %v5646
    %v5709 = vadd.f32 %v57, %v5651
    %v5710 = vadd.f32 %v58, %v5656
    %v5711 = vadd.f32 %v59, %v5661
    %v5712 = vadd.f32 %v60, %v5666
    %v5713 = vadd.f32 %v61, %v5671
    %v5714 = vadd.f32 %v62, %v5676
    %v5715 = vadd.f32 %v63, %v5681
    %v5716 = vadd.f32 %v64, %v5686
    %v5717 = vadd.f32 %v65, %v5691
    %v5718 = vadd.f32 %v66, %v5696
    %v5719 = vadd.f32 %v67, %v5701
    %v5720 = vlaneseq
    %v5721 = vshrl.u32 %v5720, 7
    %v5722 = vsub.s32 7, %v5721
    %v5723 = vrot.slane %v50, %v5722
    %v5724 = vadd.f32 %v5704, %v5723
    %v5725 = vadd.f32 %v5705, %v5723
    %v5726 = vadd.f32 %v5706, %v5723
    %v5727 = vadd.f32 %v5707, %v5723
    %v5728 = vadd.f32 %v5708, %v5723
    %v5729 = vadd.f32 %v5709, %v5723
    %v5730 = vadd.f32 %v5710, %v5723
    %v5731 = vadd.f32 %v5711, %v5723
    %v5732 = vadd.f32 %v5712, %v5723
    %v5733 = vadd.f32 %v5713, %v5723
    %v5734 = vadd.f32 %v5714, %v5723
    %v5735 = vadd.f32 %v5715, %v5723
    %v5736 = vadd.f32 %v5716, %v5723
    %v5737 = vadd.f32 %v5717, %v5723
    %v5738 = vadd.f32 %v5718, %v5723
    %v5739 = vadd.f32 %v5719, %v5723
    %v5740 = vsel %vm70, %v5724, 0.0
    %5741 = vadd.xlane.f32.xlu0 %v5740
    %v5742 = vpop.xlane.xlu0 %5741
    %v5743 = vsel %vm70, %v5725, 0.0
    %5744 = vadd.xlane.f32.xlu0 %v5743
    %v5745 = vpop.xlane.xlu0 %5744
    %v5746 = vsel %vm70, %v5726, 0.0
    %5747 = vadd.xlane.f32.xlu0 %v5746
    %v5748 = vpop.xlane.xlu0 %5747
    %v5749 = vsel %vm70, %v5727, 0.0
    %5750 = vadd.xlane.f32.xlu0 %v5749
    %v5751 = vpop.xlane.xlu0 %5750
    %v5752 = vsel %vm70, %v5728, 0.0
    %5753 = vadd.xlane.f32.xlu0 %v5752
    %v5754 = vpop.xlane.xlu0 %5753
    %v5755 = vsel %vm70, %v5729, 0.0
    %5756 = vadd.xlane.f32.xlu0 %v5755
    %v5757 = vpop.xlane.xlu0 %5756
    %v5758 = vsel %vm70, %v5730, 0.0
    %5759 = vadd.xlane.f32.xlu0 %v5758
    %v5760 = vpop.xlane.xlu0 %5759
    %v5761 = vsel %vm70, %v5731, 0.0
    %5762 = vadd.xlane.f32.xlu0 %v5761
    %v5763 = vpop.xlane.xlu0 %5762
    %v5764 = vsel %vm70, %v5732, 0.0
    %5765 = vadd.xlane.f32.xlu0 %v5764
    %v5766 = vpop.xlane.xlu0 %5765
    %v5767 = vsel %vm70, %v5733, 0.0
    %5768 = vadd.xlane.f32.xlu0 %v5767
    %v5769 = vpop.xlane.xlu0 %5768
    %v5770 = vsel %vm70, %v5734, 0.0
    %5771 = vadd.xlane.f32.xlu0 %v5770
    %v5772 = vpop.xlane.xlu0 %5771
    %v5773 = vsel %vm70, %v5735, 0.0
    %5774 = vadd.xlane.f32.xlu0 %v5773
    %v5775 = vpop.xlane.xlu0 %5774
    %v5776 = vsel %vm70, %v5736, 0.0
    %5777 = vadd.xlane.f32.xlu0 %v5776
    %v5778 = vpop.xlane.xlu0 %5777
    %v5779 = vsel %vm70, %v5737, 0.0
    %5780 = vadd.xlane.f32.xlu0 %v5779
    %v5781 = vpop.xlane.xlu0 %5780
    %v5782 = vsel %vm70, %v5738, 0.0
    %5783 = vadd.xlane.f32.xlu0 %v5782
    %v5784 = vpop.xlane.xlu0 %5783
    %v5785 = vsel %vm70, %v5739, 0.0
    %5786 = vadd.xlane.f32.xlu0 %v5785
    %v5787 = vpop.xlane.xlu0 %5786
    %v5788 = vmul.f32 %v5742, %v77
    %v5789 = vmul.f32 %v5745, %v77
    %v5790 = vmul.f32 %v5748, %v77
    %v5791 = vmul.f32 %v5751, %v77
    %v5792 = vmul.f32 %v5754, %v77
    %v5793 = vmul.f32 %v5757, %v77
    %v5794 = vmul.f32 %v5760, %v77
    %v5795 = vmul.f32 %v5763, %v77
    %v5796 = vmul.f32 %v5766, %v77
    %v5797 = vmul.f32 %v5769, %v77
    %v5798 = vmul.f32 %v5772, %v77
    %v5799 = vmul.f32 %v5775, %v77
    %v5800 = vmul.f32 %v5778, %v77
    %v5801 = vmul.f32 %v5781, %v77
    %v5802 = vmul.f32 %v5784, %v77
    %v5803 = vmul.f32 %v5787, %v77
    %v5804 = vsub.f32 %v5724, %v5788
    %v5805 = vsub.f32 %v5725, %v5789
    %v5806 = vsub.f32 %v5726, %v5790
    %v5807 = vsub.f32 %v5727, %v5791
    %v5808 = vsub.f32 %v5728, %v5792
    %v5809 = vsub.f32 %v5729, %v5793
    %v5810 = vsub.f32 %v5730, %v5794
    %v5811 = vsub.f32 %v5731, %v5795
    %v5812 = vsub.f32 %v5732, %v5796
    %v5813 = vsub.f32 %v5733, %v5797
    %v5814 = vsub.f32 %v5734, %v5798
    %v5815 = vsub.f32 %v5735, %v5799
    %v5816 = vsub.f32 %v5736, %v5800
    %v5817 = vsub.f32 %v5737, %v5801
    %v5818 = vsub.f32 %v5738, %v5802
    %v5819 = vsub.f32 %v5739, %v5803
    %v5820 = vmul.f32 %v5804, %v5804
    %v5821 = vmul.f32 %v5805, %v5805
    %v5822 = vmul.f32 %v5806, %v5806
    %v5823 = vmul.f32 %v5807, %v5807
    %v5824 = vmul.f32 %v5808, %v5808
    %v5825 = vmul.f32 %v5809, %v5809
    %v5826 = vmul.f32 %v5810, %v5810
    %v5827 = vmul.f32 %v5811, %v5811
    %v5828 = vmul.f32 %v5812, %v5812
    %v5829 = vmul.f32 %v5813, %v5813
    %v5830 = vmul.f32 %v5814, %v5814
    %v5831 = vmul.f32 %v5815, %v5815
    %v5832 = vmul.f32 %v5816, %v5816
    %v5833 = vmul.f32 %v5817, %v5817
    %v5834 = vmul.f32 %v5818, %v5818
    %v5835 = vmul.f32 %v5819, %v5819
    %v5836 = vsel %vm70, %v5820, 0.0
    %5837 = vadd.xlane.f32.xlu0 %v5836
    %v5838 = vpop.xlane.xlu0 %5837
    %v5839 = vsel %vm70, %v5821, 0.0
    %5840 = vadd.xlane.f32.xlu0 %v5839
    %v5841 = vpop.xlane.xlu0 %5840
    %v5842 = vsel %vm70, %v5822, 0.0
    %5843 = vadd.xlane.f32.xlu0 %v5842
    %v5844 = vpop.xlane.xlu0 %5843
    %v5845 = vsel %vm70, %v5823, 0.0
    %5846 = vadd.xlane.f32.xlu0 %v5845
    %v5847 = vpop.xlane.xlu0 %5846
    %v5848 = vsel %vm70, %v5824, 0.0
    %5849 = vadd.xlane.f32.xlu0 %v5848
    %v5850 = vpop.xlane.xlu0 %5849
    %v5851 = vsel %vm70, %v5825, 0.0
    %5852 = vadd.xlane.f32.xlu0 %v5851
    %v5853 = vpop.xlane.xlu0 %5852
    %v5854 = vsel %vm70, %v5826, 0.0
    %5855 = vadd.xlane.f32.xlu0 %v5854
    %v5856 = vpop.xlane.xlu0 %5855
    %v5857 = vsel %vm70, %v5827, 0.0
    %5858 = vadd.xlane.f32.xlu0 %v5857
    %v5859 = vpop.xlane.xlu0 %5858
    %v5860 = vsel %vm70, %v5828, 0.0
    %5861 = vadd.xlane.f32.xlu0 %v5860
    %v5862 = vpop.xlane.xlu0 %5861
    %v5863 = vsel %vm70, %v5829, 0.0
    %5864 = vadd.xlane.f32.xlu0 %v5863
    %v5865 = vpop.xlane.xlu0 %5864
    %v5866 = vsel %vm70, %v5830, 0.0
    %5867 = vadd.xlane.f32.xlu0 %v5866
    %v5868 = vpop.xlane.xlu0 %5867
    %v5869 = vsel %vm70, %v5831, 0.0
    %5870 = vadd.xlane.f32.xlu0 %v5869
    %v5871 = vpop.xlane.xlu0 %5870
    %v5872 = vsel %vm70, %v5832, 0.0
    %5873 = vadd.xlane.f32.xlu0 %v5872
    %v5874 = vpop.xlane.xlu0 %5873
    %v5875 = vsel %vm70, %v5833, 0.0
    %5876 = vadd.xlane.f32.xlu0 %v5875
    %v5877 = vpop.xlane.xlu0 %5876
    %v5878 = vsel %vm70, %v5834, 0.0
    %5879 = vadd.xlane.f32.xlu0 %v5878
    %v5880 = vpop.xlane.xlu0 %5879
    %v5881 = vsel %vm70, %v5835, 0.0
    %5882 = vadd.xlane.f32.xlu0 %v5881
    %v5883 = vpop.xlane.xlu0 %5882
    %v5884 = vmul.f32 %v5838, %v77
    %v5885 = vmul.f32 %v5841, %v77
    %v5886 = vmul.f32 %v5844, %v77
    %v5887 = vmul.f32 %v5847, %v77
    %v5888 = vmul.f32 %v5850, %v77
    %v5889 = vmul.f32 %v5853, %v77
    %v5890 = vmul.f32 %v5856, %v77
    %v5891 = vmul.f32 %v5859, %v77
    %v5892 = vmul.f32 %v5862, %v77
    %v5893 = vmul.f32 %v5865, %v77
    %v5894 = vmul.f32 %v5868, %v77
    %v5895 = vmul.f32 %v5871, %v77
    %v5896 = vmul.f32 %v5874, %v77
    %v5897 = vmul.f32 %v5877, %v77
    %v5898 = vmul.f32 %v5880, %v77
    %v5899 = vmul.f32 %v5883, %v77
    %v5900 = vadd.f32 %v5884, 1e-05
    %v5901 = vadd.f32 %v5885, 1e-05
    %v5902 = vadd.f32 %v5886, 1e-05
    %v5903 = vadd.f32 %v5887, 1e-05
    %v5904 = vadd.f32 %v5888, 1e-05
    %v5905 = vadd.f32 %v5889, 1e-05
    %v5906 = vadd.f32 %v5890, 1e-05
    %v5907 = vadd.f32 %v5891, 1e-05
    %v5908 = vadd.f32 %v5892, 1e-05
    %v5909 = vadd.f32 %v5893, 1e-05
    %v5910 = vadd.f32 %v5894, 1e-05
    %v5911 = vadd.f32 %v5895, 1e-05
    %v5912 = vadd.f32 %v5896, 1e-05
    %v5913 = vadd.f32 %v5897, 1e-05
    %v5914 = vadd.f32 %v5898, 1e-05
    %v5915 = vadd.f32 %v5899, 1e-05
    %v5916 = vrsqrt.pop %v5900
    %v5917 = vrsqrt.pop %v5901
    %v5918 = vrsqrt.pop %v5902
    %v5919 = vrsqrt.pop %v5903
    %v5920 = vrsqrt.pop %v5904
    %v5921 = vrsqrt.pop %v5905
    %v5922 = vrsqrt.pop %v5906
    %v5923 = vrsqrt.pop %v5907
    %v5924 = vrsqrt.pop %v5908
    %v5925 = vrsqrt.pop %v5909
    %v5926 = vrsqrt.pop %v5910
    %v5927 = vrsqrt.pop %v5911
    %v5928 = vrsqrt.pop %v5912
    %v5929 = vrsqrt.pop %v5913
    %v5930 = vrsqrt.pop %v5914
    %v5931 = vrsqrt.pop %v5915
    %v5932 = vmul.f32 %v5804, %v5916
    %v5933 = vmul.f32 %v5805, %v5917
    %v5934 = vmul.f32 %v5806, %v5918
    %v5935 = vmul.f32 %v5807, %v5919
    %v5936 = vmul.f32 %v5808, %v5920
    %v5937 = vmul.f32 %v5809, %v5921
    %v5938 = vmul.f32 %v5810, %v5922
    %v5939 = vmul.f32 %v5811, %v5923
    %v5940 = vmul.f32 %v5812, %v5924
    %v5941 = vmul.f32 %v5813, %v5925
    %v5942 = vmul.f32 %v5814, %v5926
    %v5943 = vmul.f32 %v5815, %v5927
    %v5944 = vmul.f32 %v5816, %v5928
    %v5945 = vmul.f32 %v5817, %v5929
    %v5946 = vmul.f32 %v5818, %v5930
    %v5947 = vmul.f32 %v5819, %v5931
    %v5948 = vld [vmem:[%s11] sm:$0xff]
    %v5949 = vld [vmem:[%s11 + $0x8] sm:$0xff]
    %v5950 = vld [vmem:[%s11 + $0x10] sm:$0xff]
    %v5951 = vld [vmem:[%s11 + $0x18] sm:$0xff]
    %v5952 = vlaneseq
    %v5953 = vshrl.u32 %v5952, 7
    %v5954 = vsub.s32 0, %v5953
    %v5955 = vrot.slane %v51, %v5954
    %v5957 = vsel %vm70, %v5932, 0
    %v5960 = vsel %vm70, %v5933, 0
    %v5963 = vsel %vm70, %v5934, 0
    %v5966 = vsel %vm70, %v5935, 0
    %v5969 = vsel %vm70, %v5936, 0
    %v5972 = vsel %vm70, %v5937, 0
    %v5975 = vsel %vm70, %v5938, 0
    %v5978 = vsel %vm70, %v5939, 0
    %v5981 = vsel %vm70, %v5940, 0
    %v5984 = vsel %vm70, %v5941, 0
    %v5987 = vsel %vm70, %v5942, 0
    %v5990 = vsel %vm70, %v5943, 0
    %v5993 = vsel %vm70, %v5944, 0
    %v5996 = vsel %vm70, %v5945, 0
    %v5999 = vsel %vm70, %v5946, 0
    %v6002 = vsel %vm70, %v5947, 0
    %6004 = vmatprep.subr.mxu0 0.0
    %6005 = vmatpush1.msra.mxu0 %v5948
    %6006 = vmatprep.subr.mxu0 0.0
    %6007 = vmatpush1.msra.mxu0 %v5949
    %6008 = vmatprep.subr.mxu0 0.0
    %6009 = vmatpush1.msra.mxu0 %v5950
    %6010 = vmatprep.subr.mxu0 0.0
    %6011 = vmatpush1.msra.mxu0 %v5951
    %6012 = vmatprep.subr.mxu0 0.0
    %6013 = vmatpush1.msra.mxu0 0.0
    %6014 = vmatprep.subr.mxu0 0.0
    %6015 = vmatpush1.msra.mxu0 0.0
    %6016 = vmatprep.subr.mxu0 0.0
    %6017 = vmatpush1.msra.mxu0 0.0
    %6018 = vmatprep.subr.mxu0 0.0
    %6019 = vmatpush1.msra.mxu0 0.0
    %6020 = vmatprep.subr.mxu0 0.0
    %6021 = vmatpush1.msra.mxu0 0.0
    %6022 = vmatprep.subr.mxu0 0.0
    %6023 = vmatpush1.msra.mxu0 0.0
    %6024 = vmatprep.subr.mxu0 0.0
    %6025 = vmatpush1.msra.mxu0 0.0
    %6026 = vmatprep.subr.mxu0 0.0
    %6027 = vmatpush1.msra.mxu0 0.0
    %6028 = vmatprep.subr.mxu0 0.0
    %6029 = vmatpush1.msra.mxu0 0.0
    %6030 = vmatprep.subr.mxu0 0.0
    %6031 = vmatpush1.msra.mxu0 0.0
    %6032 = vmatprep.subr.mxu0 0.0
    %6033 = vmatpush1.msra.mxu0 0.0
    %6034 = vmatprep.subr.mxu0 0.0
    %6035 = vmatpush1.msra.mxu0 0.0
    %6036 = vmatprep.subr.mxu0 0.0
    %6037 = vmatpush1.msra.mxu0 0.0
    %6038 = vmatprep.subr.mxu0 0.0
    %6039 = vmatpush1.msra.mxu0 0.0
    %6040 = vmatprep.subr.mxu0 0.0
    %6041 = vmatpush1.msra.mxu0 0.0
    %6042 = vmatprep.subr.mxu0 0.0
    %6043 = vmatpush1.msra.mxu0 0.0
    %6044 = vmatprep.subr.mxu0 0.0
    %6045 = vmatpush1.msra.mxu0 0.0
    %6046 = vmatprep.subr.mxu0 0.0
    %6047 = vmatpush1.msra.mxu0 0.0
    %6048 = vmatprep.subr.mxu0 0.0
    %6049 = vmatpush1.msra.mxu0 0.0
    %6050 = vmatprep.subr.mxu0 0.0
    %6051 = vmatpush1.msra.mxu0 0.0
    %6052 = vmatprep.subr.mxu0 0.0
    %6053 = vmatpush1.msra.mxu0 0.0
    %6054 = vmatprep.subr.mxu0 0.0
    %6055 = vmatpush1.msra.mxu0 0.0
    %6056 = vmatprep.subr.mxu0 0.0
    %6057 = vmatpush1.msra.mxu0 0.0
    %6058 = vmatprep.subr.mxu0 0.0
    %6059 = vmatpush1.msra.mxu0 0.0
    %6060 = vmatprep.subr.mxu0 0.0
    %6061 = vmatpush1.msra.mxu0 0.0
    %6062 = vmatprep.subr.mxu0 0.0
    %6063 = vmatpush1.msra.mxu0 0.0
    %6064 = vmatprep.subr.mxu0 0.0
    %6065 = vmatpush1.msra.mxu0 0.0
    %6066 = vmatprep.subr.mxu0 0.0
    %6067 = vmatpush1.msra.mxu0 0.0
    %6068 = vmatprep.mubr.f32.mxu0 0.0
    %6069 = vmatmul.mubr.f32.gmra.mrb[0].mxu0 %v5957
    %v6070 = vpop.f32.mrb[0].mxu0
    %v6071 = vadd.f32 %v5955, %v6070
    %v6072 = vpop.f32.mrb[0].mxu0
    %6073 = vmatprep.mubr.f32.mxu0 0.0
    %6074 = vmatmul.mubr.f32.gmra.mrb[0].mxu0 %v5960
    %v6075 = vpop.f32.mrb[0].mxu0
    %v6076 = vadd.f32 %v5955, %v6075
    %v6077 = vpop.f32.mrb[0].mxu0
    %6078 = vmatprep.mubr.f32.mxu0 0.0
    %6079 = vmatmul.mubr.f32.gmra.mrb[0].mxu0 %v5963
    %v6080 = vpop.f32.mrb[0].mxu0
    %v6081 = vadd.f32 %v5955, %v6080
    %v6082 = vpop.f32.mrb[0].mxu0
    %6083 = vmatprep.mubr.f32.mxu0 0.0
    %6084 = vmatmul.mubr.f32.gmra.mrb[0].mxu0 %v5966
    %v6085 = vpop.f32.mrb[0].mxu0
    %v6086 = vadd.f32 %v5955, %v6085
    %v6087 = vpop.f32.mrb[0].mxu0
    %6088 = vmatprep.mubr.f32.mxu0 0.0
    %6089 = vmatmul.mubr.f32.gmra.mrb[0].mxu0 %v5969
    %v6090 = vpop.f32.mrb[0].mxu0
    %v6091 = vadd.f32 %v5955, %v6090
    %v6092 = vpop.f32.mrb[0].mxu0
    %6093 = vmatprep.mubr.f32.mxu0 0.0
    %6094 = vmatmul.mubr.f32.gmra.mrb[0].mxu0 %v5972
    %v6095 = vpop.f32.mrb[0].mxu0
    %v6096 = vadd.f32 %v5955, %v6095
    %v6097 = vpop.f32.mrb[0].mxu0
    %6098 = vmatprep.mubr.f32.mxu0 0.0
    %6099 = vmatmul.mubr.f32.gmra.mrb[0].mxu0 %v5975
    %v6100 = vpop.f32.mrb[0].mxu0
    %v6101 = vadd.f32 %v5955, %v6100
    %v6102 = vpop.f32.mrb[0].mxu0
    %6103 = vmatprep.mubr.f32.mxu0 0.0
    %6104 = vmatmul.mubr.f32.gmra.mrb[0].mxu0 %v5978
    %v6105 = vpop.f32.mrb[0].mxu0
    %v6106 = vadd.f32 %v5955, %v6105
    %v6107 = vpop.f32.mrb[0].mxu0
    %6108 = vmatprep.mubr.f32.mxu0 0.0
    %6109 = vmatmul.mubr.f32.gmra.mrb[0].mxu0 %v5981
    %v6110 = vpop.f32.mrb[0].mxu0
    %v6111 = vadd.f32 %v5955, %v6110
    %v6112 = vpop.f32.mrb[0].mxu0
    %6113 = vmatprep.mubr.f32.mxu0 0.0
    %6114 = vmatmul.mubr.f32.gmra.mrb[0].mxu0 %v5984
    %v6115 = vpop.f32.mrb[0].mxu0
    %v6116 = vadd.f32 %v5955, %v6115
    %v6117 = vpop.f32.mrb[0].mxu0
    %6118 = vmatprep.mubr.f32.mxu0 0.0
    %6119 = vmatmul.mubr.f32.gmra.mrb[0].mxu0 %v5987
    %v6120 = vpop.f32.mrb[0].mxu0
    %v6121 = vadd.f32 %v5955, %v6120
    %v6122 = vpop.f32.mrb[0].mxu0
    %6123 = vmatprep.mubr.f32.mxu0 0.0
    %6124 = vmatmul.mubr.f32.gmra.mrb[0].mxu0 %v5990
    %v6125 = vpop.f32.mrb[0].mxu0
    %v6126 = vadd.f32 %v5955, %v6125
    %v6127 = vpop.f32.mrb[0].mxu0
    %6128 = vmatprep.mubr.f32.mxu0 0.0
    %6129 = vmatmul.mubr.f32.gmra.mrb[0].mxu0 %v5993
    %v6130 = vpop.f32.mrb[0].mxu0
    %v6131 = vadd.f32 %v5955, %v6130
    %v6132 = vpop.f32.mrb[0].mxu0
    %6133 = vmatprep.mubr.f32.mxu0 0.0
    %6134 = vmatmul.mubr.f32.gmra.mrb[0].mxu0 %v5996
    %v6135 = vpop.f32.mrb[0].mxu0
    %v6136 = vadd.f32 %v5955, %v6135
    %v6137 = vpop.f32.mrb[0].mxu0
    %6138 = vmatprep.mubr.f32.mxu0 0.0
    %6139 = vmatmul.mubr.f32.gmra.mrb[0].mxu0 %v5999
    %v6140 = vpop.f32.mrb[0].mxu0
    %v6141 = vadd.f32 %v5955, %v6140
    %v6142 = vpop.f32.mrb[0].mxu0
    %6143 = vmatprep.mubr.f32.mxu0 0.0
    %6144 = vmatmul.mubr.f32.gmra.mrb[0].mxu0 %v6002
    %v6145 = vpop.f32.mrb[0].mxu0
    %v6146 = vadd.f32 %v5955, %v6145
    %v6147 = vpop.f32.mrb[0].mxu0
    %6148 = vdwg.mxu0
    %v6149 = vmul.f32 %v6071, 0.5
    %v6150 = vmul.f32 %v6076, 0.5
    %v6151 = vmul.f32 %v6081, 0.5
    %v6152 = vmul.f32 %v6086, 0.5
    %v6153 = vmul.f32 %v6091, 0.5
    %v6154 = vmul.f32 %v6096, 0.5
    %v6155 = vmul.f32 %v6101, 0.5
    %v6156 = vmul.f32 %v6106, 0.5
    %v6157 = vmul.f32 %v6111, 0.5
    %v6158 = vmul.f32 %v6116, 0.5
    %v6159 = vmul.f32 %v6121, 0.5
    %v6160 = vmul.f32 %v6126, 0.5
    %v6161 = vmul.f32 %v6131, 0.5
    %v6162 = vmul.f32 %v6136, 0.5
    %v6163 = vmul.f32 %v6141, 0.5
    %v6164 = vmul.f32 %v6146, 0.5
    %v6165 = vmul.f32 %v6071, 0.70710677
    %v6166 = vmul.f32 %v6076, 0.70710677
    %v6167 = vmul.f32 %v6081, 0.70710677
    %v6168 = vmul.f32 %v6086, 0.70710677
    %v6169 = vmul.f32 %v6091, 0.70710677
    %v6170 = vmul.f32 %v6096, 0.70710677
    %v6171 = vmul.f32 %v6101, 0.70710677
    %v6172 = vmul.f32 %v6106, 0.70710677
    %v6173 = vmul.f32 %v6111, 0.70710677
    %v6174 = vmul.f32 %v6116, 0.70710677
    %v6175 = vmul.f32 %v6121, 0.70710677
    %v6176 = vmul.f32 %v6126, 0.70710677
    %v6177 = vmul.f32 %v6131, 0.70710677
    %v6178 = vmul.f32 %v6136, 0.70710677
    %v6179 = vmul.f32 %v6141, 0.70710677
    %v6180 = vmul.f32 %v6146, 0.70710677
    %v6181 = verf.f32.pop %v6165
    %v6182 = verf.f32.pop %v6166
    %v6183 = verf.f32.pop %v6167
    %v6184 = verf.f32.pop %v6168
    %v6185 = verf.f32.pop %v6169
    %v6186 = verf.f32.pop %v6170
    %v6187 = verf.f32.pop %v6171
    %v6188 = verf.f32.pop %v6172
    %v6189 = verf.f32.pop %v6173
    %v6190 = verf.f32.pop %v6174
    %v6191 = verf.f32.pop %v6175
    %v6192 = verf.f32.pop %v6176
    %v6193 = verf.f32.pop %v6177
    %v6194 = verf.f32.pop %v6178
    %v6195 = verf.f32.pop %v6179
    %v6196 = verf.f32.pop %v6180
    %v6197 = vadd.f32 %v6181, 1.0
    %v6198 = vadd.f32 %v6182, 1.0
    %v6199 = vadd.f32 %v6183, 1.0
    %v6200 = vadd.f32 %v6184, 1.0
    %v6201 = vadd.f32 %v6185, 1.0
    %v6202 = vadd.f32 %v6186, 1.0
    %v6203 = vadd.f32 %v6187, 1.0
    %v6204 = vadd.f32 %v6188, 1.0
    %v6205 = vadd.f32 %v6189, 1.0
    %v6206 = vadd.f32 %v6190, 1.0
    %v6207 = vadd.f32 %v6191, 1.0
    %v6208 = vadd.f32 %v6192, 1.0
    %v6209 = vadd.f32 %v6193, 1.0
    %v6210 = vadd.f32 %v6194, 1.0
    %v6211 = vadd.f32 %v6195, 1.0
    %v6212 = vadd.f32 %v6196, 1.0
    %v6213 = vmul.f32 %v6149, %v6197
    %v6214 = vmul.f32 %v6150, %v6198
    %v6215 = vmul.f32 %v6151, %v6199
    %v6216 = vmul.f32 %v6152, %v6200
    %v6217 = vmul.f32 %v6153, %v6201
    %v6218 = vmul.f32 %v6154, %v6202
    %v6219 = vmul.f32 %v6155, %v6203
    %v6220 = vmul.f32 %v6156, %v6204
    %v6221 = vmul.f32 %v6157, %v6205
    %v6222 = vmul.f32 %v6158, %v6206
    %v6223 = vmul.f32 %v6159, %v6207
    %v6224 = vmul.f32 %v6160, %v6208
    %v6225 = vmul.f32 %v6161, %v6209
    %v6226 = vmul.f32 %v6162, %v6210
    %v6227 = vmul.f32 %v6163, %v6211
    %v6228 = vmul.f32 %v6164, %v6212
    %v6229 = vld [vmem:[%s12] sm:$0xff]
    %v6230 = vld [vmem:[%s12 + $0x8] sm:$0xff]
    %v6231 = vld [vmem:[%s12 + $0x10] sm:$0xff]
    %v6232 = vld [vmem:[%s12 + $0x18] sm:$0xff]
    %v6233 = vld [vmem:[%s12 + $0x20] sm:$0xff]
    %v6234 = vld [vmem:[%s12 + $0x28] sm:$0xff]
    %v6235 = vld [vmem:[%s12 + $0x30] sm:$0xff]
    %v6236 = vld [vmem:[%s12 + $0x38] sm:$0xff]
    %v6237 = vld [vmem:[%s12 + $0x40] sm:$0xff]
    %v6238 = vld [vmem:[%s12 + $0x48] sm:$0xff]
    %v6239 = vld [vmem:[%s12 + $0x50] sm:$0xff]
    %v6240 = vld [vmem:[%s12 + $0x58] sm:$0xff]
    %v6241 = vld [vmem:[%s12 + $0x60] sm:$0xff]
    %v6242 = vld [vmem:[%s12 + $0x68] sm:$0xff]
    %v6243 = vld [vmem:[%s12 + $0x70] sm:$0xff]
    %v6244 = vld [vmem:[%s12 + $0x78] sm:$0xff]
    %v6245 = vlaneseq
    %v6246 = vshrl.u32 %v6245, 7
    %v6247 = vsub.s32 1, %v6246
    %v6248 = vrot.slane %v51, %v6247
    %6249 = vmatprep.subr.mxu0 0.0
    %6250 = vmatpush1.msra.mxu0 %v6229
    %6251 = vmatprep.subr.mxu0 0.0
    %6252 = vmatpush1.msra.mxu0 %v6230
    %6253 = vmatprep.subr.mxu0 0.0
    %6254 = vmatpush1.msra.mxu0 %v6231
    %6255 = vmatprep.subr.mxu0 0.0
    %6256 = vmatpush1.msra.mxu0 %v6232
    %6257 = vmatprep.subr.mxu0 0.0
    %6258 = vmatpush1.msra.mxu0 %v6233
    %6259 = vmatprep.subr.mxu0 0.0
    %6260 = vmatpush1.msra.mxu0 %v6234
    %6261 = vmatprep.subr.mxu0 0.0
    %6262 = vmatpush1.msra.mxu0 %v6235
    %6263 = vmatprep.subr.mxu0 0.0
    %6264 = vmatpush1.msra.mxu0 %v6236
    %6265 = vmatprep.subr.mxu0 0.0
    %6266 = vmatpush1.msra.mxu0 %v6237
    %6267 = vmatprep.subr.mxu0 0.0
    %6268 = vmatpush1.msra.mxu0 %v6238
    %6269 = vmatprep.subr.mxu0 0.0
    %6270 = vmatpush1.msra.mxu0 %v6239
    %6271 = vmatprep.subr.mxu0 0.0
    %6272 = vmatpush1.msra.mxu0 %v6240
    %6273 = vmatprep.subr.mxu0 0.0
    %6274 = vmatpush1.msra.mxu0 %v6241
    %6275 = vmatprep.subr.mxu0 0.0
    %6276 = vmatpush1.msra.mxu0 %v6242
    %6277 = vmatprep.subr.mxu0 0.0
    %6278 = vmatpush1.msra.mxu0 %v6243
    %6279 = vmatprep.subr.mxu0 0.0
    %6280 = vmatpush1.msra.mxu0 %v6244
    %6281 = vmatprep.subr.mxu0 0.0
    %6282 = vmatpush1.msra.mxu0 0.0
    %6283 = vmatprep.subr.mxu0 0.0
    %6284 = vmatpush1.msra.mxu0 0.0
    %6285 = vmatprep.subr.mxu0 0.0
    %6286 = vmatpush1.msra.mxu0 0.0
    %6287 = vmatprep.subr.mxu0 0.0
    %6288 = vmatpush1.msra.mxu0 0.0
    %6289 = vmatprep.subr.mxu0 0.0
    %6290 = vmatpush1.msra.mxu0 0.0
    %6291 = vmatprep.subr.mxu0 0.0
    %6292 = vmatpush1.msra.mxu0 0.0
    %6293 = vmatprep.subr.mxu0 0.0
    %6294 = vmatpush1.msra.mxu0 0.0
    %6295 = vmatprep.subr.mxu0 0.0
    %6296 = vmatpush1.msra.mxu0 0.0
    %6297 = vmatprep.subr.mxu0 0.0
    %6298 = vmatpush1.msra.mxu0 0.0
    %6299 = vmatprep.subr.mxu0 0.0
    %6300 = vmatpush1.msra.mxu0 0.0
    %6301 = vmatprep.subr.mxu0 0.0
    %6302 = vmatpush1.msra.mxu0 0.0
    %6303 = vmatprep.subr.mxu0 0.0
    %6304 = vmatpush1.msra.mxu0 0.0
    %6305 = vmatprep.subr.mxu0 0.0
    %6306 = vmatpush1.msra.mxu0 0.0
    %6307 = vmatprep.subr.mxu0 0.0
    %6308 = vmatpush1.msra.mxu0 0.0
    %6309 = vmatprep.subr.mxu0 0.0
    %6310 = vmatpush1.msra.mxu0 0.0
    %6311 = vmatprep.subr.mxu0 0.0
    %6312 = vmatpush1.msra.mxu0 0.0
    %6313 = vmatprep.mubr.f32.mxu0 0.0
    %6314 = vmatmul.mubr.f32.gmra.mrb[0].mxu0 %v6213
    %v6315 = vpop.f32.mrb[0].mxu0
    %v6316 = vadd.f32 %v6248, %v6315
    %v6317 = vpop.f32.mrb[0].mxu0
    %6318 = vmatprep.mubr.f32.mxu0 0.0
    %6319 = vmatmul.mubr.f32.gmra.mrb[0].mxu0 %v6214
    %v6320 = vpop.f32.mrb[0].mxu0
    %v6321 = vadd.f32 %v6248, %v6320
    %v6322 = vpop.f32.mrb[0].mxu0
    %6323 = vmatprep.mubr.f32.mxu0 0.0
    %6324 = vmatmul.mubr.f32.gmra.mrb[0].mxu0 %v6215
    %v6325 = vpop.f32.mrb[0].mxu0
    %v6326 = vadd.f32 %v6248, %v6325
    %v6327 = vpop.f32.mrb[0].mxu0
    %6328 = vmatprep.mubr.f32.mxu0 0.0
    %6329 = vmatmul.mubr.f32.gmra.mrb[0].mxu0 %v6216
    %v6330 = vpop.f32.mrb[0].mxu0
    %v6331 = vadd.f32 %v6248, %v6330
    %v6332 = vpop.f32.mrb[0].mxu0
    %6333 = vmatprep.mubr.f32.mxu0 0.0
    %6334 = vmatmul.mubr.f32.gmra.mrb[0].mxu0 %v6217
    %v6335 = vpop.f32.mrb[0].mxu0
    %v6336 = vadd.f32 %v6248, %v6335
    %v6337 = vpop.f32.mrb[0].mxu0
    %6338 = vmatprep.mubr.f32.mxu0 0.0
    %6339 = vmatmul.mubr.f32.gmra.mrb[0].mxu0 %v6218
    %v6340 = vpop.f32.mrb[0].mxu0
    %v6341 = vadd.f32 %v6248, %v6340
    %v6342 = vpop.f32.mrb[0].mxu0
    %6343 = vmatprep.mubr.f32.mxu0 0.0
    %6344 = vmatmul.mubr.f32.gmra.mrb[0].mxu0 %v6219
    %v6345 = vpop.f32.mrb[0].mxu0
    %v6346 = vadd.f32 %v6248, %v6345
    %v6347 = vpop.f32.mrb[0].mxu0
    %6348 = vmatprep.mubr.f32.mxu0 0.0
    %6349 = vmatmul.mubr.f32.gmra.mrb[0].mxu0 %v6220
    %v6350 = vpop.f32.mrb[0].mxu0
    %v6351 = vadd.f32 %v6248, %v6350
    %v6352 = vpop.f32.mrb[0].mxu0
    %6353 = vmatprep.mubr.f32.mxu0 0.0
    %6354 = vmatmul.mubr.f32.gmra.mrb[0].mxu0 %v6221
    %v6355 = vpop.f32.mrb[0].mxu0
    %v6356 = vadd.f32 %v6248, %v6355
    %v6357 = vpop.f32.mrb[0].mxu0
    %6358 = vmatprep.mubr.f32.mxu0 0.0
    %6359 = vmatmul.mubr.f32.gmra.mrb[0].mxu0 %v6222
    %v6360 = vpop.f32.mrb[0].mxu0
    %v6361 = vadd.f32 %v6248, %v6360
    %v6362 = vpop.f32.mrb[0].mxu0
    %6363 = vmatprep.mubr.f32.mxu0 0.0
    %6364 = vmatmul.mubr.f32.gmra.mrb[0].mxu0 %v6223
    %v6365 = vpop.f32.mrb[0].mxu0
    %v6366 = vadd.f32 %v6248, %v6365
    %v6367 = vpop.f32.mrb[0].mxu0
    %6368 = vmatprep.mubr.f32.mxu0 0.0
    %6369 = vmatmul.mubr.f32.gmra.mrb[0].mxu0 %v6224
    %v6370 = vpop.f32.mrb[0].mxu0
    %v6371 = vadd.f32 %v6248, %v6370
    %v6372 = vpop.f32.mrb[0].mxu0
    %6373 = vmatprep.mubr.f32.mxu0 0.0
    %6374 = vmatmul.mubr.f32.gmra.mrb[0].mxu0 %v6225
    %v6375 = vpop.f32.mrb[0].mxu0
    %v6376 = vadd.f32 %v6248, %v6375
    %v6377 = vpop.f32.mrb[0].mxu0
    %6378 = vmatprep.mubr.f32.mxu0 0.0
    %6379 = vmatmul.mubr.f32.gmra.mrb[0].mxu0 %v6226
    %v6380 = vpop.f32.mrb[0].mxu0
    %v6381 = vadd.f32 %v6248, %v6380
    %v6382 = vpop.f32.mrb[0].mxu0
    %6383 = vmatprep.mubr.f32.mxu0 0.0
    %6384 = vmatmul.mubr.f32.gmra.mrb[0].mxu0 %v6227
    %v6385 = vpop.f32.mrb[0].mxu0
    %v6386 = vadd.f32 %v6248, %v6385
    %v6387 = vpop.f32.mrb[0].mxu0
    %6388 = vmatprep.mubr.f32.mxu0 0.0
    %6389 = vmatmul.mubr.f32.gmra.mrb[0].mxu0 %v6228
    %v6390 = vpop.f32.mrb[0].mxu0
    %v6391 = vadd.f32 %v6248, %v6390
    %v6392 = vpop.f32.mrb[0].mxu0
    %6393 = vdwg.mxu0
    %v6394 = vadd.f32 %v6316, %v5724
    %v6395 = vadd.f32 %v6321, %v5725
    %v6396 = vadd.f32 %v6326, %v5726
    %v6397 = vadd.f32 %v6331, %v5727
    %v6398 = vadd.f32 %v6336, %v5728
    %v6399 = vadd.f32 %v6341, %v5729
    %v6400 = vadd.f32 %v6346, %v5730
    %v6401 = vadd.f32 %v6351, %v5731
    %v6402 = vadd.f32 %v6356, %v5732
    %v6403 = vadd.f32 %v6361, %v5733
    %v6404 = vadd.f32 %v6366, %v5734
    %v6405 = vadd.f32 %v6371, %v5735
    %v6406 = vadd.f32 %v6376, %v5736
    %v6407 = vadd.f32 %v6381, %v5737
    %v6408 = vadd.f32 %v6386, %v5738
    %v6409 = vadd.f32 %v6391, %v5739
    %6410 = vst.msk [vmem:[#allocation2] sm:$0xff] %vm70, %v6394
    %6411 = vst.msk [vmem:[#allocation2 + $0x8] sm:$0xff] %vm70, %v6395
    %6412 = vst.msk [vmem:[#allocation2 + $0x10] sm:$0xff] %vm70, %v6396
    %6413 = vst.msk [vmem:[#allocation2 + $0x18] sm:$0xff] %vm70, %v6397
    %6414 = vst.msk [vmem:[#allocation2 + $0x20] sm:$0xff] %vm70, %v6398
    %6415 = vst.msk [vmem:[#allocation2 + $0x28] sm:$0xff] %vm70, %v6399
    %6416 = vst.msk [vmem:[#allocation2 + $0x30] sm:$0xff] %vm70, %v6400
    %6417 = vst.msk [vmem:[#allocation2 + $0x38] sm:$0xff] %vm70, %v6401
    %6418 = vst.msk [vmem:[#allocation2 + $0x40] sm:$0xff] %vm70, %v6402
    %6419 = vst.msk [vmem:[#allocation2 + $0x48] sm:$0xff] %vm70, %v6403
    %6420 = vst.msk [vmem:[#allocation2 + $0x50] sm:$0xff] %vm70, %v6404
    %6421 = vst.msk [vmem:[#allocation2 + $0x58] sm:$0xff] %vm70, %v6405
    %6422 = vst.msk [vmem:[#allocation2 + $0x60] sm:$0xff] %vm70, %v6406
    %6423 = vst.msk [vmem:[#allocation2 + $0x68] sm:$0xff] %vm70, %v6407
    %6424 = vst.msk [vmem:[#allocation2 + $0x70] sm:$0xff] %vm70, %v6408
    %6425 = vst.msk [vmem:[#allocation2 + $0x78] sm:$0xff] %vm70, %v6409
    // Predicated region
    $region54: #{luna_module_forward.1} parent=1 // pred_check
      _
    $region55: #{luna_module_forward.1} parent=1 // pred_check_branch
      %6427 = sbr.rel (0) target = $region57
    $region56: #{luna_module_forward.1} parent=1 // pred_region
      %s6429 = ssub.s32 2048, 2048
      %6430 = vsyncadd [#allocation3], %s6429
      %s6431 = sshll.u32 [#allocation2], 4
      %s6432 = int_to_ptr.vmem [resolvable:$true] %s6431
      %6437 = dma.vmem_to_hbm [thread:$0]  %s6432, 2048, %s13, [#allocation3], 128, 128, 8
    $region57: #{luna_module_forward.1} parent=1 // pred_fallthru
      _
    // Predicated region
    $region58: #{luna_module_forward.1} parent=1 // pred_check
      _
    $region59: #{luna_module_forward.1} parent=1 // pred_check_branch
      %6439 = sbr.rel (0) target = $region61
    $region60: #{luna_module_forward.1} parent=1 // pred_region
      %s6441 = ssub.s32 256, 256
      %6442 = vsyncadd [#allocation5], %s6441
      %s6443 = sshll.u32 [#allocation4], 4
      %s6444 = int_to_ptr.vmem [resolvable:$true] %s6443
      %6449 = dma.vmem_to_hbm [thread:$0]  %s6444, 256, %s14, [#allocation5], 128, 128, 8
    $region61: #{luna_module_forward.1} parent=1 // pred_fallthru
      _
    // Predicated region
    $region62: #{luna_module_forward.1} parent=1 // pred_check
      _
    $region63: #{luna_module_forward.1} parent=1 // pred_check_branch
      %6451 = sbr.rel (0) target = $region65
    $region64: #{luna_module_forward.1} parent=1 // pred_region
      _
    $region65: #{luna_module_forward.1} parent=1 // pred_fallthru
      _
    // Predicated region
    $region66: #{luna_module_forward.1} parent=1 // pred_check
      _
    $region67: #{luna_module_forward.1} parent=1 // pred_check_branch
      %6453 = sbr.rel (0) target = $region69
    $region68: #{luna_module_forward.1} parent=1 // pred_region
      _
    $region69: #{luna_module_forward.1} parent=1 // pred_fallthru
      _
    // Predicated region
    $region70: #{luna_module_forward.1} parent=1 // pred_check
      _
    $region71: #{luna_module_forward.1} parent=1 // pred_check_branch
      %6455 = sbr.rel (0) target = $region73
    $region72: #{luna_module_forward.1} parent=1 // pred_region
      %6456 = dma.done [#allocation3], 2048
    $region73: #{luna_module_forward.1} parent=1 // pred_fallthru
      _
    // Predicated region
    $region74: #{luna_module_forward.1} parent=1 // pred_check
      _
    $region75: #{luna_module_forward.1} parent=1 // pred_check_branch
      %6458 = sbr.rel (0) target = $region77
    $region76: #{luna_module_forward.1} parent=1 // pred_region
      %6459 = dma.done [#allocation5], 256
    $region77: #{luna_module_forward.1} parent=1 // pred_fallthru
      _
    // Predicated region
    $region78: #{luna_module_forward.1} parent=1 // pred_check
      _
    $region79: #{luna_module_forward.1} parent=1 // pred_check_branch
      %6461 = sbr.rel (0) target = $region81
    $region80: #{luna_module_forward.1} parent=1 // pred_region
      _
    $region81: #{luna_module_forward.1} parent=1 // pred_fallthru
      _
    // Predicated region
    $region82: #{luna_module_forward.1} parent=1 // pred_check
      _
    $region83: #{luna_module_forward.1} parent=1 // pred_check_branch
      %6463 = sbr.rel (0) target = $region85
    $region84: #{luna_module_forward.1} parent=1 // pred_region
      _
    $region85: #{luna_module_forward.1} parent=1 // pred_fallthru
      _
    %6464 = vsyncpa [#allocation3], 1
    %6465 = vsyncpa [#allocation5], 1

</llo_original>
